<compile_context>
chip_gen: v5e
topology: v5e:2x2
jax: 0.10.0
libtpu: 0.0.40
codegen_flags: <defaults>
</compile_context>

<pallas_src>
import jax
import jax.numpy as jnp
import numpy as np
from jax.experimental import pallas as pl
from jax.experimental.pallas import tpu as pltpu

LANE = 128  # pad all feature / hidden widths to this


# ----------------------------------------------------------------------------
# Fused Pallas kernel: init MLP + n_iter MPNN iterations for ONE chunk of graphs.
# ----------------------------------------------------------------------------
def _mpnn_fused_kernel(x_ref, a_ref, e_ref,
                       wi1_ref, bi1_ref, wi2_ref, bi2_ref, wi3_ref, bi3_ref,
                       w1a_ref, w1b_ref, w1c_ref, b1_ref,
                       w2_ref, b2_ref, w3_ref, b3_ref,
                       h_out_ref, g_out_ref):
    f32 = jnp.float32
    m = x_ref.shape[0]          # node rows in this chunk (= graphs_per_chunk * N)
    bc = g_out_ref.shape[0]     # graphs in this chunk
    n_iter = w1a_ref.shape[0]

    def relu(v):
        return jnp.maximum(v, 0.0)

    def norm_rows(v):
        # v / (||v||_2 + 1e-8) -- eps placement & exact reciprocal match the
        # PyTorch reference. (rsqrt / approx=True would run on the EUP but risks
        # the 1e-4/1e-5 check; the VALU cost here is negligible.)
        nrm = jnp.sqrt(jnp.sum(v * v, axis=1, keepdims=True))
        return v * pl.reciprocal(nrm + 1e-8, approx=False)

    # ---- init_network MLP: Linear->ReLU->Linear->ReLU->Linear (all node rows) ----
    h = relu(jnp.dot(x_ref[...], wi1_ref[...], preferred_element_type=f32) + bi1_ref[...])
    h = relu(jnp.dot(h, wi2_ref[...], preferred_element_type=f32) + bi2_ref[...])
    h = jnp.dot(h, wi3_ref[...], preferred_element_type=f32) + bi3_ref[...]

    # ---- n_iter message-passing iterations (n_iter is small & static: unroll) ----
    # TODO(synk): switch to lax.fori_loop with dynamic weight slices if n_iter grows
    #             enough to inflate code size / vreg live ranges.
    for it in range(n_iter):
        # ONE augmented MXU matmul produces BOTH the per-node message aggregation
        # (block-diagonal adjacency rows) and the per-graph unnormalized global sums
        # (trailing all-ones rows), from the same h the reference uses for both.
        full = jnp.dot(a_ref[...], h, preferred_element_type=f32)   # (m + bc, dp)
        agg = full[:m, :]                   # sum of incoming neighbor features
        g = norm_rows(full[m:, :])          # per-graph normalized global rep

        # First NodeNetwork linear with the [agg | h | g] concat split into three
        # matmuls; g's contribution is a small (bc, m1) matvec broadcast back to the
        # nodes via the 0/1 matrix E (no (m, dp) G broadcast, no concat scratch).
        gz = jnp.dot(g, w1c_ref[it], preferred_element_type=f32)    # (bc, m1)
        z = (jnp.dot(agg, w1a_ref[it], preferred_element_type=f32)
             + jnp.dot(h, w1b_ref[it], preferred_element_type=f32)
             + jnp.dot(e_ref[...], gz, preferred_element_type=f32)
             + b1_ref[it])
        z = relu(z)
        z = relu(jnp.dot(z, w2_ref[it], preferred_element_type=f32) + b2_ref[it])
        out = jnp.dot(z, w3_ref[it], preferred_element_type=f32) + b3_ref[it]
        h = norm_rows(out)                  # per-row Frobenius normalization

    h_out_ref[...] = h
    # Final global rep from the FINAL h: reuse the all-ones sum rows of A_aug.
    s_fin = jnp.dot(a_ref[pl.ds(m, bc), :], h, preferred_element_type=f32)
    g_out_ref[...] = norm_rows(s_fin)


# ----------------------------------------------------------------------------
# Host-side packing (done ONCE): pad to 128 lanes, split/stack weights, build
# per-chunk augmented block-diagonal adjacency and the node<-graph broadcast E.
# ----------------------------------------------------------------------------
def _round_up(x, m):
    return ((x + m - 1) // m) * m


def _pad2(a, rows, cols):
    return jnp.pad(a, ((0, rows - a.shape[0]), (0, cols - a.shape[1])))


def pack_params(init_params, iter_params_list, *, hidden_size, lane=LANE):
    """Zero-pad weights/biases to lane-dense shapes, split the concat weight of each
    NodeNetwork first linear into its agg/h/g blocks, and stack over n_iter."""
    wi1, bi1, wi2, bi2, wi3, bi3 = init_params
    ip = _round_up(wi1.shape[0], lane)
    f1p = _round_up(wi1.shape[1], lane)
    f2p = _round_up(wi2.shape[1], lane)
    dp = _round_up(hidden_size, lane)

    packed = dict(
        wi1=_pad2(wi1, ip, f1p), bi1=_pad2(bi1, 1, f1p),
        wi2=_pad2(wi2, f1p, f2p), bi2=_pad2(bi2, 1, f2p),
        wi3=_pad2(wi3, f2p, dp), bi3=_pad2(bi3, 1, dp),
    )

    d = hidden_size
    w1a, w1b, w1c, b1s, w2s, b2s, w3s, b3s = ([] for _ in range(8))
    for (w1, b1, w2, b2, w3, b3) in iter_params_list:
        m1p = _round_up(w1.shape[1], lane)
        m2p = _round_up(w2.shape[1], lane)
        w1a.append(_pad2(w1[0 * d:1 * d], dp, m1p))   # multiplies agg
        w1b.append(_pad2(w1[1 * d:2 * d], dp, m1p))   # multiplies h
        w1c.append(_pad2(w1[2 * d:3 * d], dp, m1p))   # multiplies g (graph-broadcast)
        b1s.append(_pad2(b1, 1, m1p))
        w2s.append(_pad2(w2, m1p, m2p))
        b2s.append(_pad2(b2, 1, m2p))
        w3s.append(_pad2(w3, m2p, dp))
        b3s.append(_pad2(b3, 1, dp))

    packed.update(
        w1a=jnp.stack(w1a), w1b=jnp.stack(w1b), w1c=jnp.stack(w1c), b1=jnp.stack(b1s),
        w2=jnp.stack(w2s), b2=jnp.stack(b2s), w3=jnp.stack(w3s), b3=jnp.stack(b3s))
    return packed


def pack_graphs(x, adj, *, graphs_per_chunk, lane=LANE):
    """x: (B, N, F) node features; adj: (B, N, N) with adj[b, i, j] = 1 iff edge j->i.

    Returns:
      x_rows : (B*N, ip)  lane-padded, graph-major row-stacked node features
      a_aug  : (num_chunks*(bc*N + bc), bc*N)  per-chunk block-diagonal adjacency
               augmented with bc all-ones per-graph sum rows
      e_mat  : (bc*N, bc)  0/1 node<-graph broadcast matrix (same for every chunk)
    """
    B, N, F = x.shape
    bc = graphs_per_chunk
    assert B % bc == 0, "batch must be a multiple of graphs_per_chunk"
    m = bc * N
    assert m % 128 == 0 and bc % 8 == 0, "chunk sizing must stay (8,128)-aligned"
    num_chunks = B // bc
    ip = _round_up(F, lane)

    x_rows = jnp.pad(x, ((0, 0), (0, 0), (0, ip - F))).reshape(B * N, ip)

    adj_np = np.asarray(adj, dtype=np.float32)
    rows_aug = m + bc
    a_aug = np.zeros((num_chunks * rows_aug, m), np.float32)
    for c in range(num_chunks):
        base = c * rows_aug
        for b in range(bc):
            g = c * bc + b
            a_aug[base + b * N: base + (b + 1) * N, b * N:(b + 1) * N] = adj_np[g]
            a_aug[base + m + b, b * N:(b + 1) * N] = 1.0   # per-graph sum row

    e_mat = np.zeros((m, bc), np.float32)
    for b in range(bc):
        e_mat[b * N:(b + 1) * N, b] = 1.0

    return x_rows, jnp.asarray(a_aug), jnp.asarray(e_mat)


def mpnn_forward(x_rows, a_aug, e_mat, packed, *, graphs_per_chunk, nodes_per_graph):
    """Full batched MPNN.forward: grid over graph chunks; weights stay VMEM-resident."""
    bc = graphs_per_chunk
    n = nodes_per_graph
    m = bc * n
    rows_aug = m + bc
    ip = x_rows.shape[1]
    dp = packed["wi3"].shape[1]
    num_chunks = x_rows.shape[0] // m
    assert x_rows.shape[0] == num_chunks * m
    assert a_aug.shape == (num_chunks * rows_aug, m)
    assert packed["wi1"].shape[0] == ip

    def whole(arr):
        # Full-array block with a constant index map -> DMA'd once, resident across
        # all grid steps (Pallas skips re-fetch when the block index is unchanged).
        zeros = (0,) * arr.ndim
        return pl.BlockSpec(arr.shape, lambda c, z=zeros: z)

    weight_keys = ("wi1", "bi1", "wi2", "bi2", "wi3", "bi3",
                   "w1a", "w1b", "w1c", "b1", "w2", "b2", "w3", "b3")
    weights = [packed[k] for k in weight_keys]

    in_specs = ([pl.BlockSpec((m, ip), lambda c: (c, 0)),          # node features (per chunk)
                 pl.BlockSpec((rows_aug, m), lambda c: (c, 0)),    # augmented adjacency (per chunk)
                 whole(e_mat)]                                     # node<-graph broadcast
                + [whole(w) for w in weights])

    h_pad, g_pad = pl.pallas_call(
        _mpnn_fused_kernel,
        out_shape=(jax.ShapeDtypeStruct((num_chunks * m, dp), jnp.float32),
                   jax.ShapeDtypeStruct((num_chunks * bc, dp), jnp.float32)),
        grid=(num_chunks,),
        in_specs=in_specs,
        out_specs=(pl.BlockSpec((m, dp), lambda c: (c, 0)),
                   pl.BlockSpec((bc, dp), lambda c: (c, 0))),
        compiler_params=pltpu.CompilerParams(
            dimension_semantics=("parallel",)),   # chunks are independent -> both TCs on v7x
    )(x_rows, a_aug, e_mat, *weights)
    return h_pad, g_pad


# ----------------------------------------------------------------------------
# Deterministic parameter init (PyTorch nn.Linear default: U(-1/sqrt(fan_in), +))
# ----------------------------------------------------------------------------
def linear_params(key, fan_in, fan_out):
    kw, kb = jax.random.split(key)
    bound = 1.0 / np.sqrt(fan_in)
    w = jax.random.uniform(kw, (fan_in, fan_out), jnp.float32, -bound, bound)
    b = jax.random.uniform(kb, (1, fan_out), jnp.float32, -bound, bound)
    return w, b


def build_mlp_params(key, inputsize, outputsize, features):
    sizes = [inputsize] + list(features) + [outputsize]
    keys = jax.random.split(key, len(sizes) - 1)
    params = []
    for k, fi, fo in zip(keys, sizes[:-1], sizes[1:]):
        params.extend(linear_params(k, fi, fo))
    return tuple(params)


# ----------------------------------------------------------------------------
# Pure-JAX reference (unpadded, single graph) for correctness checking.
# ----------------------------------------------------------------------------
def _ref_mlp(x, params):
    w1, b1, w2, b2, w3, b3 = params
    h = jnp.maximum(x @ w1 + b1, 0.0)
    h = jnp.maximum(h @ w2 + b2, 0.0)
    return h @ w3 + b3


def _ref_forward(x, adj, init_params, iter_params_list):
    h = _ref_mlp(x, init_params)
    g = jnp.sum(h, axis=0, keepdims=True)
    g = g / (jnp.linalg.norm(g, axis=1, keepdims=True) + 1e-8)
    for p in iter_params_list:
        agg = adj @ h
        inp = jnp.concatenate([agg, h, jnp.broadcast_to(g, h.shape)], axis=1)
        out = _ref_mlp(inp, p)
        h = out / (jnp.linalg.norm(out, axis=1, keepdims=True) + 1e-8)
        g = jnp.sum(h, axis=0, keepdims=True)
        g = g / (jnp.linalg.norm(g, axis=1, keepdims=True) + 1e-8)
    return h, g


# ----------------------------------------------------------------------------
if __name__ == "__main__":
    # config['embedding_model']
    config = dict(
        truth_inputsize=8,
        truth_hidden_size=32,
        truth_init_layers=[32, 32],
        truth_mpnn_layers=[64, 64],
        n_iter=2,
    )
    N = 16    # 'truth_particles' nodes per graph
    B = 64    # graphs in the batch
    BC = 16   # graphs per grid step: BC*N = 256 node rows fills the v6e/v7x MXU

    key = jax.random.PRNGKey(0)
    k_x, k_adj, k_init, k_iter = jax.random.split(key, 4)

    # node input features for every graph
    x = jax.random.normal(k_x, (B, N, config["truth_inputsize"]), jnp.float32)

    # directed graphs: ring (guarantees in-degree >= 1) + random extra edges
    ring = jnp.roll(jnp.eye(N, dtype=jnp.float32), shift=1, axis=0)      # edge i -> i+1
    extra = jax.random.bernoulli(k_adj, 0.25, (B, N, N)).astype(jnp.float32)
    extra = extra * (1.0 - jnp.eye(N, dtype=jnp.float32))                # no self loops
    adj = jnp.clip(ring[None] + extra, 0.0, 1.0)                         # adj[b,i,j]: j -> i

    # parameters (natural, unpadded sizes — exactly what the PyTorch module holds)
    D = config["truth_hidden_size"]
    init_params = build_mlp_params(
        k_init, config["truth_inputsize"], D, config["truth_init_layers"])
    iter_keys = jax.random.split(k_iter, config["n_iter"])
    iter_params_list = [
        build_mlp_params(k, 3 * D, D, config["truth_mpnn_layers"]) for k in iter_keys
    ]

    # pack (pad / split / stack / chunk) once, then run the single fused Pallas kernel
    packed = pack_params(init_params, iter_params_list, hidden_size=D)
    x_rows, a_aug, e_mat = pack_graphs(x, adj, graphs_per_chunk=BC)
    h_pad, g_pad = mpnn_forward(x_rows, a_aug, e_mat, packed,
                                graphs_per_chunk=BC, nodes_per_graph=N)
    jax.block_until_ready((h_pad, g_pad))

    # un-pad / un-chunk and compare against the pure-JAX (unpadded) reference
    h_out = h_pad[:, :D].reshape(B, N, D)
    g_out = g_pad[:, :D]
    h_ref, g_ref = jax.vmap(_ref_forward, in_axes=(0, 0, None, None))(
        x, adj, init_params, iter_params_list)
    g_ref = g_ref.reshape(B, D)
    np.testing.assert_allclose(np.asarray(h_out), np.asarray(h_ref), rtol=1e-4, atol=1e-5)
    np.testing.assert_allclose(np.asarray(g_out), np.asarray(g_ref), rtol=1e-4, atol=1e-5)

    print("KERNEL_OK")
</pallas_src>

<mosaic_0001>
module attributes {stable_mosaic.version = 11 : i64} {
  func.func @_mpnn_fused_kernel(%arg0: i32, %arg1: memref<256x128xf32, #tpu.memory_space<vmem>>, %arg2: memref<272x256xf32, #tpu.memory_space<vmem>>, %arg3: memref<256x16xf32, #tpu.memory_space<vmem>>, %arg4: memref<128x128xf32, #tpu.memory_space<vmem>>, %arg5: memref<1x128xf32, #tpu.memory_space<vmem>>, %arg6: memref<128x128xf32, #tpu.memory_space<vmem>>, %arg7: memref<1x128xf32, #tpu.memory_space<vmem>>, %arg8: memref<128x128xf32, #tpu.memory_space<vmem>>, %arg9: memref<1x128xf32, #tpu.memory_space<vmem>>, %arg10: memref<2x128x128xf32, #tpu.memory_space<vmem>>, %arg11: memref<2x128x128xf32, #tpu.memory_space<vmem>>, %arg12: memref<2x128x128xf32, #tpu.memory_space<vmem>>, %arg13: memref<2x1x128xf32, #tpu.memory_space<vmem>>, %arg14: memref<2x128x128xf32, #tpu.memory_space<vmem>>, %arg15: memref<2x1x128xf32, #tpu.memory_space<vmem>>, %arg16: memref<2x128x128xf32, #tpu.memory_space<vmem>>, %arg17: memref<2x1x128xf32, #tpu.memory_space<vmem>>, %arg18: memref<256x128xf32, #tpu.memory_space<vmem>>, %arg19: memref<16x128xf32, #tpu.memory_space<vmem>>) attributes {dimension_semantics = [#tpu.dimension_semantics<parallel>], iteration_bounds = array<i64: 4>, scalar_prefetch = 0 : i64, scratch_operands = 0 : i64, tpu.core_type = #tpu.core_type<tc>, window_params = [{transform_indices = @transform_0, window_bounds = array<i64: 256, 128>}, {transform_indices = @transform_1, window_bounds = array<i64: 272, 256>}, {pipeline_mode = #tpu.pipeline_mode<synchronous>, transform_indices = @transform_2, window_bounds = array<i64: 256, 16>}, {pipeline_mode = #tpu.pipeline_mode<synchronous>, transform_indices = @transform_3, window_bounds = array<i64: 128, 128>}, {pipeline_mode = #tpu.pipeline_mode<synchronous>, transform_indices = @transform_4, window_bounds = array<i64: 1, 128>}, {pipeline_mode = #tpu.pipeline_mode<synchronous>, transform_indices = @transform_5, window_bounds = array<i64: 128, 128>}, {pipeline_mode = #tpu.pipeline_mode<synchronous>, transform_indices = @transform_6, window_bounds = array<i64: 1, 128>}, {pipeline_mode = #tpu.pipeline_mode<synchronous>, transform_indices = @transform_7, window_bounds = array<i64: 128, 128>}, {pipeline_mode = #tpu.pipeline_mode<synchronous>, transform_indices = @transform_8, window_bounds = array<i64: 1, 128>}, {pipeline_mode = #tpu.pipeline_mode<synchronous>, transform_indices = @transform_9, window_bounds = array<i64: 2, 128, 128>}, {pipeline_mode = #tpu.pipeline_mode<synchronous>, transform_indices = @transform_10, window_bounds = array<i64: 2, 128, 128>}, {pipeline_mode = #tpu.pipeline_mode<synchronous>, transform_indices = @transform_11, window_bounds = array<i64: 2, 128, 128>}, {pipeline_mode = #tpu.pipeline_mode<synchronous>, transform_indices = @transform_12, window_bounds = array<i64: 2, 1, 128>}, {pipeline_mode = #tpu.pipeline_mode<synchronous>, transform_indices = @transform_13, window_bounds = array<i64: 2, 128, 128>}, {pipeline_mode = #tpu.pipeline_mode<synchronous>, transform_indices = @transform_14, window_bounds = array<i64: 2, 1, 128>}, {pipeline_mode = #tpu.pipeline_mode<synchronous>, transform_indices = @transform_15, window_bounds = array<i64: 2, 128, 128>}, {pipeline_mode = #tpu.pipeline_mode<synchronous>, transform_indices = @transform_16, window_bounds = array<i64: 2, 1, 128>}, {transform_indices = @transform_17, window_bounds = array<i64: 256, 128>}, {transform_indices = @transform_18, window_bounds = array<i64: 16, 128>}]} {
    %c0 = arith.constant 0 : index
    %c0_0 = arith.constant 0 : index
    %0 = vector.load %arg1[%c0, %c0_0] : memref<256x128xf32, #tpu.memory_space<vmem>>, vector<256x128xf32>
    %c0_1 = arith.constant 0 : index
    %c0_2 = arith.constant 0 : index
    %1 = vector.load %arg4[%c0_1, %c0_2] : memref<128x128xf32, #tpu.memory_space<vmem>>, vector<128x128xf32>
    %cst = arith.constant dense<0.000000e+00> : vector<256x128xf32>
    %2 = tpu.matmul %0, %1, %cst {dimension_numbers = #tpu.dot_dimension_numbers<[1], [0], [0], [1], [0, 0, 1, 1], [], []>} : vector<256x128xf32>, vector<128x128xf32>, vector<256x128xf32> -> vector<256x128xf32>
    %c0_3 = arith.constant 0 : index
    %c0_4 = arith.constant 0 : index
    %3 = vector.load %arg5[%c0_3, %c0_4] : memref<1x128xf32, #tpu.memory_space<vmem>>, vector<1x128xf32>
    %4 = vector.broadcast %3 : vector<1x128xf32> to vector<256x128xf32>
    %5 = arith.addf %2, %4 : vector<256x128xf32>
    %cst_5 = arith.constant 0.000000e+00 : f32
    %6 = vector.broadcast %cst_5 : f32 to vector<256x128xf32>
    %7 = arith.maximumf %5, %6 : vector<256x128xf32>
    %c0_6 = arith.constant 0 : index
    %c0_7 = arith.constant 0 : index
    %8 = vector.load %arg6[%c0_6, %c0_7] : memref<128x128xf32, #tpu.memory_space<vmem>>, vector<128x128xf32>
    %cst_8 = arith.constant dense<0.000000e+00> : vector<256x128xf32>
    %9 = tpu.matmul %7, %8, %cst_8 {dimension_numbers = #tpu.dot_dimension_numbers<[1], [0], [0], [1], [0, 0, 1, 1], [], []>} : vector<256x128xf32>, vector<128x128xf32>, vector<256x128xf32> -> vector<256x128xf32>
    %c0_9 = arith.constant 0 : index
    %c0_10 = arith.constant 0 : index
    %10 = vector.load %arg7[%c0_9, %c0_10] : memref<1x128xf32, #tpu.memory_space<vmem>>, vector<1x128xf32>
    %11 = vector.broadcast %10 : vector<1x128xf32> to vector<256x128xf32>
    %12 = arith.addf %9, %11 : vector<256x128xf32>
    %cst_11 = arith.constant 0.000000e+00 : f32
    %13 = vector.broadcast %cst_11 : f32 to vector<256x128xf32>
    %14 = arith.maximumf %12, %13 : vector<256x128xf32>
    %c0_12 = arith.constant 0 : index
    %c0_13 = arith.constant 0 : index
    %15 = vector.load %arg8[%c0_12, %c0_13] : memref<128x128xf32, #tpu.memory_space<vmem>>, vector<128x128xf32>
    %cst_14 = arith.constant dense<0.000000e+00> : vector<256x128xf32>
    %16 = tpu.matmul %14, %15, %cst_14 {dimension_numbers = #tpu.dot_dimension_numbers<[1], [0], [0], [1], [0, 0, 1, 1], [], []>} : vector<256x128xf32>, vector<128x128xf32>, vector<256x128xf32> -> vector<256x128xf32>
    %c0_15 = arith.constant 0 : index
    %c0_16 = arith.constant 0 : index
    %17 = vector.load %arg9[%c0_15, %c0_16] : memref<1x128xf32, #tpu.memory_space<vmem>>, vector<1x128xf32>
    %18 = vector.broadcast %17 : vector<1x128xf32> to vector<256x128xf32>
    %19 = arith.addf %16, %18 : vector<256x128xf32>
    %c0_17 = arith.constant 0 : index
    %c0_18 = arith.constant 0 : index
    %20 = vector.load %arg2[%c0_17, %c0_18] : memref<272x256xf32, #tpu.memory_space<vmem>>, vector<272x256xf32>
    %cst_19 = arith.constant dense<0.000000e+00> : vector<272x128xf32>
    %21 = tpu.matmul %20, %19, %cst_19 {dimension_numbers = #tpu.dot_dimension_numbers<[1], [0], [0], [1], [0, 0, 1, 1], [], []>} : vector<272x256xf32>, vector<256x128xf32>, vector<272x128xf32> -> vector<272x128xf32>
    %22 = vector.extract_strided_slice %21 {offsets = [0, 0], sizes = [256, 128], strides = [1, 1]} : vector<272x128xf32> to vector<256x128xf32>
    %23 = vector.extract_strided_slice %21 {offsets = [256, 0], sizes = [16, 128], strides = [1, 1]} : vector<272x128xf32> to vector<16x128xf32>
    %24 = arith.mulf %23, %23 : vector<16x128xf32>
    %cst_20 = arith.constant dense<0.000000e+00> : vector<16xf32>
    %25 = vector.multi_reduction <add>, %24, %cst_20 [1] : vector<16x128xf32> to vector<16xf32>
    %26 = vector.shape_cast %25 : vector<16xf32> to vector<16x1xf32>
    %27 = math.sqrt %26 : vector<16x1xf32>
    %cst_21 = arith.constant 9.99999993E-9 : f32
    %28 = vector.broadcast %cst_21 : f32 to vector<16x1xf32>
    %29 = arith.addf %27, %28 : vector<16x1xf32>
    %30 = tpu.reciprocal %29 : vector<16x1xf32> -> vector<16x1xf32>
    %31 = vector.broadcast %30 : vector<16x1xf32> to vector<16x128xf32>
    %32 = arith.mulf %23, %31 : vector<16x128xf32>
    %c0_22 = arith.constant 0 : index
    %c0_23 = arith.constant 0 : index
    %c0_24 = arith.constant 0 : index
    %33 = vector.load %arg12[%c0_22, %c0_23, %c0_24] : memref<2x128x128xf32, #tpu.memory_space<vmem>>, vector<1x128x128xf32>
    %34 = vector.shape_cast %33 : vector<1x128x128xf32> to vector<128x128xf32>
    %cst_25 = arith.constant dense<0.000000e+00> : vector<16x128xf32>
    %35 = tpu.matmul %32, %34, %cst_25 {dimension_numbers = #tpu.dot_dimension_numbers<[1], [0], [0], [1], [0, 0, 1, 1], [], []>} : vector<16x128xf32>, vector<128x128xf32>, vector<16x128xf32> -> vector<16x128xf32>
    %c0_26 = arith.constant 0 : index
    %c0_27 = arith.constant 0 : index
    %c0_28 = arith.constant 0 : index
    %36 = vector.load %arg10[%c0_26, %c0_27, %c0_28] : memref<2x128x128xf32, #tpu.memory_space<vmem>>, vector<1x128x128xf32>
    %37 = vector.shape_cast %36 : vector<1x128x128xf32> to vector<128x128xf32>
    %cst_29 = arith.constant dense<0.000000e+00> : vector<256x128xf32>
    %38 = tpu.matmul %22, %37, %cst_29 {dimension_numbers = #tpu.dot_dimension_numbers<[1], [0], [0], [1], [0, 0, 1, 1], [], []>} : vector<256x128xf32>, vector<128x128xf32>, vector<256x128xf32> -> vector<256x128xf32>
    %c0_30 = arith.constant 0 : index
    %c0_31 = arith.constant 0 : index
    %c0_32 = arith.constant 0 : index
    %39 = vector.load %arg11[%c0_30, %c0_31, %c0_32] : memref<2x128x128xf32, #tpu.memory_space<vmem>>, vector<1x128x128xf32>
    %40 = vector.shape_cast %39 : vector<1x128x128xf32> to vector<128x128xf32>
    %cst_33 = arith.constant dense<0.000000e+00> : vector<256x128xf32>
    %41 = tpu.matmul %19, %40, %cst_33 {dimension_numbers = #tpu.dot_dimension_numbers<[1], [0], [0], [1], [0, 0, 1, 1], [], []>} : vector<256x128xf32>, vector<128x128xf32>, vector<256x128xf32> -> vector<256x128xf32>
    %42 = arith.addf %38, %41 : vector<256x128xf32>
    %c0_34 = arith.constant 0 : index
    %c0_35 = arith.constant 0 : index
    %43 = vector.load %arg3[%c0_34, %c0_35] : memref<256x16xf32, #tpu.memory_space<vmem>>, vector<256x16xf32>
    %cst_36 = arith.constant dense<0.000000e+00> : vector<256x128xf32>
    %44 = tpu.matmul %43, %35, %cst_36 {dimension_numbers = #tpu.dot_dimension_numbers<[1], [0], [0], [1], [0, 0, 1, 1], [], []>} : vector<256x16xf32>, vector<16x128xf32>, vector<256x128xf32> -> vector<256x128xf32>
    %45 = arith.addf %42, %44 : vector<256x128xf32>
    %c0_37 = arith.constant 0 : index
    %c0_38 = arith.constant 0 : index
    %c0_39 = arith.constant 0 : index
    %46 = vector.load %arg13[%c0_37, %c0_38, %c0_39] : memref<2x1x128xf32, #tpu.memory_space<vmem>>, vector<1x1x128xf32>
    %47 = vector.shape_cast %46 : vector<1x1x128xf32> to vector<1x128xf32>
    %48 = vector.broadcast %47 : vector<1x128xf32> to vector<256x128xf32>
    %49 = arith.addf %45, %48 : vector<256x128xf32>
    %cst_40 = arith.constant 0.000000e+00 : f32
    %50 = vector.broadcast %cst_40 : f32 to vector<256x128xf32>
    %51 = arith.maximumf %49, %50 : vector<256x128xf32>
    %c0_41 = arith.constant 0 : index
    %c0_42 = arith.constant 0 : index
    %c0_43 = arith.constant 0 : index
    %52 = vector.load %arg14[%c0_41, %c0_42, %c0_43] : memref<2x128x128xf32, #tpu.memory_space<vmem>>, vector<1x128x128xf32>
    %53 = vector.shape_cast %52 : vector<1x128x128xf32> to vector<128x128xf32>
    %cst_44 = arith.constant dense<0.000000e+00> : vector<256x128xf32>
    %54 = tpu.matmul %51, %53, %cst_44 {dimension_numbers = #tpu.dot_dimension_numbers<[1], [0], [0], [1], [0, 0, 1, 1], [], []>} : vector<256x128xf32>, vector<128x128xf32>, vector<256x128xf32> -> vector<256x128xf32>
    %c0_45 = arith.constant 0 : index
    %c0_46 = arith.constant 0 : index
    %c0_47 = arith.constant 0 : index
    %55 = vector.load %arg15[%c0_45, %c0_46, %c0_47] : memref<2x1x128xf32, #tpu.memory_space<vmem>>, vector<1x1x128xf32>
    %56 = vector.shape_cast %55 : vector<1x1x128xf32> to vector<1x128xf32>
    %57 = vector.broadcast %56 : vector<1x128xf32> to vector<256x128xf32>
    %58 = arith.addf %54, %57 : vector<256x128xf32>
    %cst_48 = arith.constant 0.000000e+00 : f32
    %59 = vector.broadcast %cst_48 : f32 to vector<256x128xf32>
    %60 = arith.maximumf %58, %59 : vector<256x128xf32>
    %c0_49 = arith.constant 0 : index
    %c0_50 = arith.constant 0 : index
    %c0_51 = arith.constant 0 : index
    %61 = vector.load %arg16[%c0_49, %c0_50, %c0_51] : memref<2x128x128xf32, #tpu.memory_space<vmem>>, vector<1x128x128xf32>
    %62 = vector.shape_cast %61 : vector<1x128x128xf32> to vector<128x128xf32>
    %cst_52 = arith.constant dense<0.000000e+00> : vector<256x128xf32>
    %63 = tpu.matmul %60, %62, %cst_52 {dimension_numbers = #tpu.dot_dimension_numbers<[1], [0], [0], [1], [0, 0, 1, 1], [], []>} : vector<256x128xf32>, vector<128x128xf32>, vector<256x128xf32> -> vector<256x128xf32>
    %c0_53 = arith.constant 0 : index
    %c0_54 = arith.constant 0 : index
    %c0_55 = arith.constant 0 : index
    %64 = vector.load %arg17[%c0_53, %c0_54, %c0_55] : memref<2x1x128xf32, #tpu.memory_space<vmem>>, vector<1x1x128xf32>
    %65 = vector.shape_cast %64 : vector<1x1x128xf32> to vector<1x128xf32>
    %66 = vector.broadcast %65 : vector<1x128xf32> to vector<256x128xf32>
    %67 = arith.addf %63, %66 : vector<256x128xf32>
    %68 = arith.mulf %67, %67 : vector<256x128xf32>
    %cst_56 = arith.constant dense<0.000000e+00> : vector<256xf32>
    %69 = vector.multi_reduction <add>, %68, %cst_56 [1] : vector<256x128xf32> to vector<256xf32>
    %70 = vector.shape_cast %69 : vector<256xf32> to vector<256x1xf32>
    %71 = math.sqrt %70 : vector<256x1xf32>
    %cst_57 = arith.constant 9.99999993E-9 : f32
    %72 = vector.broadcast %cst_57 : f32 to vector<256x1xf32>
    %73 = arith.addf %71, %72 : vector<256x1xf32>
    %74 = tpu.reciprocal %73 : vector<256x1xf32> -> vector<256x1xf32>
    %75 = vector.broadcast %74 : vector<256x1xf32> to vector<256x128xf32>
    %76 = arith.mulf %67, %75 : vector<256x128xf32>
    %c0_58 = arith.constant 0 : index
    %c0_59 = arith.constant 0 : index
    %77 = vector.load %arg2[%c0_58, %c0_59] : memref<272x256xf32, #tpu.memory_space<vmem>>, vector<272x256xf32>
    %cst_60 = arith.constant dense<0.000000e+00> : vector<272x128xf32>
    %78 = tpu.matmul %77, %76, %cst_60 {dimension_numbers = #tpu.dot_dimension_numbers<[1], [0], [0], [1], [0, 0, 1, 1], [], []>} : vector<272x256xf32>, vector<256x128xf32>, vector<272x128xf32> -> vector<272x128xf32>
    %79 = vector.extract_strided_slice %78 {offsets = [0, 0], sizes = [256, 128], strides = [1, 1]} : vector<272x128xf32> to vector<256x128xf32>
    %80 = vector.extract_strided_slice %78 {offsets = [256, 0], sizes = [16, 128], strides = [1, 1]} : vector<272x128xf32> to vector<16x128xf32>
    %81 = arith.mulf %80, %80 : vector<16x128xf32>
    %cst_61 = arith.constant dense<0.000000e+00> : vector<16xf32>
    %82 = vector.multi_reduction <add>, %81, %cst_61 [1] : vector<16x128xf32> to vector<16xf32>
    %83 = vector.shape_cast %82 : vector<16xf32> to vector<16x1xf32>
    %84 = math.sqrt %83 : vector<16x1xf32>
    %cst_62 = arith.constant 9.99999993E-9 : f32
    %85 = vector.broadcast %cst_62 : f32 to vector<16x1xf32>
    %86 = arith.addf %84, %85 : vector<16x1xf32>
    %87 = tpu.reciprocal %86 : vector<16x1xf32> -> vector<16x1xf32>
    %88 = vector.broadcast %87 : vector<16x1xf32> to vector<16x128xf32>
    %89 = arith.mulf %80, %88 : vector<16x128xf32>
    %c1 = arith.constant 1 : index
    %c0_63 = arith.constant 0 : index
    %c0_64 = arith.constant 0 : index
    %90 = vector.load %arg12[%c1, %c0_63, %c0_64] : memref<2x128x128xf32, #tpu.memory_space<vmem>>, vector<1x128x128xf32>
    %91 = vector.shape_cast %90 : vector<1x128x128xf32> to vector<128x128xf32>
    %cst_65 = arith.constant dense<0.000000e+00> : vector<16x128xf32>
    %92 = tpu.matmul %89, %91, %cst_65 {dimension_numbers = #tpu.dot_dimension_numbers<[1], [0], [0], [1], [0, 0, 1, 1], [], []>} : vector<16x128xf32>, vector<128x128xf32>, vector<16x128xf32> -> vector<16x128xf32>
    %c1_66 = arith.constant 1 : index
    %c0_67 = arith.constant 0 : index
    %c0_68 = arith.constant 0 : index
    %93 = vector.load %arg10[%c1_66, %c0_67, %c0_68] : memref<2x128x128xf32, #tpu.memory_space<vmem>>, vector<1x128x128xf32>
    %94 = vector.shape_cast %93 : vector<1x128x128xf32> to vector<128x128xf32>
    %cst_69 = arith.constant dense<0.000000e+00> : vector<256x128xf32>
    %95 = tpu.matmul %79, %94, %cst_69 {dimension_numbers = #tpu.dot_dimension_numbers<[1], [0], [0], [1], [0, 0, 1, 1], [], []>} : vector<256x128xf32>, vector<128x128xf32>, vector<256x128xf32> -> vector<256x128xf32>
    %c1_70 = arith.constant 1 : index
    %c0_71 = arith.constant 0 : index
    %c0_72 = arith.constant 0 : index
    %96 = vector.load %arg11[%c1_70, %c0_71, %c0_72] : memref<2x128x128xf32, #tpu.memory_space<vmem>>, vector<1x128x128xf32>
    %97 = vector.shape_cast %96 : vector<1x128x128xf32> to vector<128x128xf32>
    %cst_73 = arith.constant dense<0.000000e+00> : vector<256x128xf32>
    %98 = tpu.matmul %76, %97, %cst_73 {dimension_numbers = #tpu.dot_dimension_numbers<[1], [0], [0], [1], [0, 0, 1, 1], [], []>} : vector<256x128xf32>, vector<128x128xf32>, vector<256x128xf32> -> vector<256x128xf32>
    %99 = arith.addf %95, %98 : vector<256x128xf32>
    %c0_74 = arith.constant 0 : index
    %c0_75 = arith.constant 0 : index
    %100 = vector.load %arg3[%c0_74, %c0_75] : memref<256x16xf32, #tpu.memory_space<vmem>>, vector<256x16xf32>
    %cst_76 = arith.constant dense<0.000000e+00> : vector<256x128xf32>
    %101 = tpu.matmul %100, %92, %cst_76 {dimension_numbers = #tpu.dot_dimension_numbers<[1], [0], [0], [1], [0, 0, 1, 1], [], []>} : vector<256x16xf32>, vector<16x128xf32>, vector<256x128xf32> -> vector<256x128xf32>
    %102 = arith.addf %99, %101 : vector<256x128xf32>
    %c1_77 = arith.constant 1 : index
    %c0_78 = arith.constant 0 : index
    %c0_79 = arith.constant 0 : index
    %103 = vector.load %arg13[%c1_77, %c0_78, %c0_79] : memref<2x1x128xf32, #tpu.memory_space<vmem>>, vector<1x1x128xf32>
    %104 = vector.shape_cast %103 : vector<1x1x128xf32> to vector<1x128xf32>
    %105 = vector.broadcast %104 : vector<1x128xf32> to vector<256x128xf32>
    %106 = arith.addf %102, %105 : vector<256x128xf32>
    %cst_80 = arith.constant 0.000000e+00 : f32
    %107 = vector.broadcast %cst_80 : f32 to vector<256x128xf32>
    %108 = arith.maximumf %106, %107 : vector<256x128xf32>
    %c1_81 = arith.constant 1 : index
    %c0_82 = arith.constant 0 : index
    %c0_83 = arith.constant 0 : index
    %109 = vector.load %arg14[%c1_81, %c0_82, %c0_83] : memref<2x128x128xf32, #tpu.memory_space<vmem>>, vector<1x128x128xf32>
    %110 = vector.shape_cast %109 : vector<1x128x128xf32> to vector<128x128xf32>
    %cst_84 = arith.constant dense<0.000000e+00> : vector<256x128xf32>
    %111 = tpu.matmul %108, %110, %cst_84 {dimension_numbers = #tpu.dot_dimension_numbers<[1], [0], [0], [1], [0, 0, 1, 1], [], []>} : vector<256x128xf32>, vector<128x128xf32>, vector<256x128xf32> -> vector<256x128xf32>
    %c1_85 = arith.constant 1 : index
    %c0_86 = arith.constant 0 : index
    %c0_87 = arith.constant 0 : index
    %112 = vector.load %arg15[%c1_85, %c0_86, %c0_87] : memref<2x1x128xf32, #tpu.memory_space<vmem>>, vector<1x1x128xf32>
    %113 = vector.shape_cast %112 : vector<1x1x128xf32> to vector<1x128xf32>
    %114 = vector.broadcast %113 : vector<1x128xf32> to vector<256x128xf32>
    %115 = arith.addf %111, %114 : vector<256x128xf32>
    %cst_88 = arith.constant 0.000000e+00 : f32
    %116 = vector.broadcast %cst_88 : f32 to vector<256x128xf32>
    %117 = arith.maximumf %115, %116 : vector<256x128xf32>
    %c1_89 = arith.constant 1 : index
    %c0_90 = arith.constant 0 : index
    %c0_91 = arith.constant 0 : index
    %118 = vector.load %arg16[%c1_89, %c0_90, %c0_91] : memref<2x128x128xf32, #tpu.memory_space<vmem>>, vector<1x128x128xf32>
    %119 = vector.shape_cast %118 : vector<1x128x128xf32> to vector<128x128xf32>
    %cst_92 = arith.constant dense<0.000000e+00> : vector<256x128xf32>
    %120 = tpu.matmul %117, %119, %cst_92 {dimension_numbers = #tpu.dot_dimension_numbers<[1], [0], [0], [1], [0, 0, 1, 1], [], []>} : vector<256x128xf32>, vector<128x128xf32>, vector<256x128xf32> -> vector<256x128xf32>
    %c1_93 = arith.constant 1 : index
    %c0_94 = arith.constant 0 : index
    %c0_95 = arith.constant 0 : index
    %121 = vector.load %arg17[%c1_93, %c0_94, %c0_95] : memref<2x1x128xf32, #tpu.memory_space<vmem>>, vector<1x1x128xf32>
    %122 = vector.shape_cast %121 : vector<1x1x128xf32> to vector<1x128xf32>
    %123 = vector.broadcast %122 : vector<1x128xf32> to vector<256x128xf32>
    %124 = arith.addf %120, %123 : vector<256x128xf32>
    %125 = arith.mulf %124, %124 : vector<256x128xf32>
    %cst_96 = arith.constant dense<0.000000e+00> : vector<256xf32>
    %126 = vector.multi_reduction <add>, %125, %cst_96 [1] : vector<256x128xf32> to vector<256xf32>
    %127 = vector.shape_cast %126 : vector<256xf32> to vector<256x1xf32>
    %128 = math.sqrt %127 : vector<256x1xf32>
    %cst_97 = arith.constant 9.99999993E-9 : f32
    %129 = vector.broadcast %cst_97 : f32 to vector<256x1xf32>
    %130 = arith.addf %128, %129 : vector<256x1xf32>
    %131 = tpu.reciprocal %130 : vector<256x1xf32> -> vector<256x1xf32>
    %132 = vector.broadcast %131 : vector<256x1xf32> to vector<256x128xf32>
    %133 = arith.mulf %124, %132 : vector<256x128xf32>
    %c0_98 = arith.constant 0 : index
    %c0_99 = arith.constant 0 : index
    %134 = vector.load %arg18[%c0_98, %c0_99] : memref<256x128xf32, #tpu.memory_space<vmem>>, vector<256x128xf32>
    tpu.vector_store %arg18[%c0_98, %c0_99], %133 {strides = array<i32>} : memref<256x128xf32, #tpu.memory_space<vmem>>, vector<256x128xf32>,
    %c256 = arith.constant 256 : index
    %c0_100 = arith.constant 0 : index
    %135 = vector.load %arg2[%c256, %c0_100] : memref<272x256xf32, #tpu.memory_space<vmem>>, vector<16x256xf32>
    %cst_101 = arith.constant dense<0.000000e+00> : vector<16x128xf32>
    %136 = tpu.matmul %135, %133, %cst_101 {dimension_numbers = #tpu.dot_dimension_numbers<[1], [0], [0], [1], [0, 0, 1, 1], [], []>} : vector<16x256xf32>, vector<256x128xf32>, vector<16x128xf32> -> vector<16x128xf32>
    %137 = arith.mulf %136, %136 : vector<16x128xf32>
    %cst_102 = arith.constant dense<0.000000e+00> : vector<16xf32>
    %138 = vector.multi_reduction <add>, %137, %cst_102 [1] : vector<16x128xf32> to vector<16xf32>
    %139 = vector.shape_cast %138 : vector<16xf32> to vector<16x1xf32>
    %140 = math.sqrt %139 : vector<16x1xf32>
    %cst_103 = arith.constant 9.99999993E-9 : f32
    %141 = vector.broadcast %cst_103 : f32 to vector<16x1xf32>
    %142 = arith.addf %140, %141 : vector<16x1xf32>
    %143 = tpu.reciprocal %142 : vector<16x1xf32> -> vector<16x1xf32>
    %144 = vector.broadcast %143 : vector<16x1xf32> to vector<16x128xf32>
    %145 = arith.mulf %136, %144 : vector<16x128xf32>
    %c0_104 = arith.constant 0 : index
    %c0_105 = arith.constant 0 : index
    %146 = vector.load %arg19[%c0_104, %c0_105] : memref<16x128xf32, #tpu.memory_space<vmem>>, vector<16x128xf32>
    tpu.vector_store %arg19[%c0_104, %c0_105], %145 {strides = array<i32>} : memref<16x128xf32, #tpu.memory_space<vmem>>, vector<16x128xf32>,
    return
  }
  func.func @transform_0(%arg0: i32) -> (i32, i32) {
    %c0_i32 = arith.constant 0 : i32
    %c0_i32_0 = arith.constant 0 : i32
    return %arg0, %c0_i32 : i32, i32
  }
  func.func @transform_1(%arg0: i32) -> (i32, i32) {
    %c0_i32 = arith.constant 0 : i32
    %c0_i32_0 = arith.constant 0 : i32
    return %arg0, %c0_i32 : i32, i32
  }
  func.func @transform_2(%arg0: i32) -> (i32, i32) {
    %c0_i32 = arith.constant 0 : i32
    %c0_i32_0 = arith.constant 0 : i32
    %c0_i32_1 = arith.constant 0 : i32
    return %c0_i32, %c0_i32_0 : i32, i32
  }
  func.func @transform_3(%arg0: i32) -> (i32, i32) {
    %c0_i32 = arith.constant 0 : i32
    %c0_i32_0 = arith.constant 0 : i32
    %c0_i32_1 = arith.constant 0 : i32
    return %c0_i32, %c0_i32_0 : i32, i32
  }
  func.func @transform_4(%arg0: i32) -> (i32, i32) {
    %c0_i32 = arith.constant 0 : i32
    %c0_i32_0 = arith.constant 0 : i32
    %c0_i32_1 = arith.constant 0 : i32
    return %c0_i32, %c0_i32_0 : i32, i32
  }
  func.func @transform_5(%arg0: i32) -> (i32, i32) {
    %c0_i32 = arith.constant 0 : i32
    %c0_i32_0 = arith.constant 0 : i32
    %c0_i32_1 = arith.constant 0 : i32
    return %c0_i32, %c0_i32_0 : i32, i32
  }
  func.func @transform_6(%arg0: i32) -> (i32, i32) {
    %c0_i32 = arith.constant 0 : i32
    %c0_i32_0 = arith.constant 0 : i32
    %c0_i32_1 = arith.constant 0 : i32
    return %c0_i32, %c0_i32_0 : i32, i32
  }
  func.func @transform_7(%arg0: i32) -> (i32, i32) {
    %c0_i32 = arith.constant 0 : i32
    %c0_i32_0 = arith.constant 0 : i32
    %c0_i32_1 = arith.constant 0 : i32
    return %c0_i32, %c0_i32_0 : i32, i32
  }
  func.func @transform_8(%arg0: i32) -> (i32, i32) {
    %c0_i32 = arith.constant 0 : i32
    %c0_i32_0 = arith.constant 0 : i32
    %c0_i32_1 = arith.constant 0 : i32
    return %c0_i32, %c0_i32_0 : i32, i32
  }
  func.func @transform_9(%arg0: i32) -> (i32, i32, i32) {
    %c0_i32 = arith.constant 0 : i32
    %c0_i32_0 = arith.constant 0 : i32
    %c0_i32_1 = arith.constant 0 : i32
    %c0_i32_2 = arith.constant 0 : i32
    return %c0_i32, %c0_i32_0, %c0_i32_1 : i32, i32, i32
  }
  func.func @transform_10(%arg0: i32) -> (i32, i32, i32) {
    %c0_i32 = arith.constant 0 : i32
    %c0_i32_0 = arith.constant 0 : i32
    %c0_i32_1 = arith.constant 0 : i32
    %c0_i32_2 = arith.constant 0 : i32
    return %c0_i32, %c0_i32_0, %c0_i32_1 : i32, i32, i32
  }
  func.func @transform_11(%arg0: i32) -> (i32, i32, i32) {
    %c0_i32 = arith.constant 0 : i32
    %c0_i32_0 = arith.constant 0 : i32
    %c0_i32_1 = arith.constant 0 : i32
    %c0_i32_2 = arith.constant 0 : i32
    return %c0_i32, %c0_i32_0, %c0_i32_1 : i32, i32, i32
  }
  func.func @transform_12(%arg0: i32) -> (i32, i32, i32) {
    %c0_i32 = arith.constant 0 : i32
    %c0_i32_0 = arith.constant 0 : i32
    %c0_i32_1 = arith.constant 0 : i32
    %c0_i32_2 = arith.constant 0 : i32
    return %c0_i32, %c0_i32_0, %c0_i32_1 : i32, i32, i32
  }
  func.func @transform_13(%arg0: i32) -> (i32, i32, i32) {
    %c0_i32 = arith.constant 0 : i32
    %c0_i32_0 = arith.constant 0 : i32
    %c0_i32_1 = arith.constant 0 : i32
    %c0_i32_2 = arith.constant 0 : i32
    return %c0_i32, %c0_i32_0, %c0_i32_1 : i32, i32, i32
  }
  func.func @transform_14(%arg0: i32) -> (i32, i32, i32) {
    %c0_i32 = arith.constant 0 : i32
    %c0_i32_0 = arith.constant 0 : i32
    %c0_i32_1 = arith.constant 0 : i32
    %c0_i32_2 = arith.constant 0 : i32
    return %c0_i32, %c0_i32_0, %c0_i32_1 : i32, i32, i32
  }
  func.func @transform_15(%arg0: i32) -> (i32, i32, i32) {
    %c0_i32 = arith.constant 0 : i32
    %c0_i32_0 = arith.constant 0 : i32
    %c0_i32_1 = arith.constant 0 : i32
    %c0_i32_2 = arith.constant 0 : i32
    return %c0_i32, %c0_i32_0, %c0_i32_1 : i32, i32, i32
  }
  func.func @transform_16(%arg0: i32) -> (i32, i32, i32) {
    %c0_i32 = arith.constant 0 : i32
    %c0_i32_0 = arith.constant 0 : i32
    %c0_i32_1 = arith.constant 0 : i32
    %c0_i32_2 = arith.constant 0 : i32
    return %c0_i32, %c0_i32_0, %c0_i32_1 : i32, i32, i32
  }
  func.func @transform_17(%arg0: i32) -> (i32, i32) {
    %c0_i32 = arith.constant 0 : i32
    %c0_i32_0 = arith.constant 0 : i32
    return %arg0, %c0_i32 : i32, i32
  }
  func.func @transform_18(%arg0: i32) -> (i32, i32) {
    %c0_i32 = arith.constant 0 : i32
    %c0_i32_0 = arith.constant 0 : i32
    return %arg0, %c0_i32 : i32, i32
  }
}

</mosaic_0001>

<llo_original>
// kernel: tpu_custom_call.1
$region0: #{tpu_custom_call.1}
  #allocation0 [shape = 'u32[]', space=smem, size = 0x4, offset = 0x4, fixed_abs, tag = 'smem constant byte address 0x4 - core index']
  #allocation1 [shape = 'u32[72,128]{1,0:T(1,128)}', space=vmem, size = 0x9000, scoped, tag = 'internal scratch']
  %s0 = inlined_call_operand.hbm [shape: f32[1024,128], index: 0, kind: input, shape index: {}]
  %s1 = inlined_call_operand.hbm [shape: f32[1088,256], index: 1, kind: input, shape index: {}]
  %s2 = inlined_call_operand.vmem [shape: f32[256,16], index: 2, kind: input, shape index: {}]
  %s3 = inlined_call_operand.hbm [shape: f32[128,128], index: 3, kind: input, shape index: {}]
  %s4 = inlined_call_operand.hbm [shape: f32[1,128], index: 4, kind: input, shape index: {}]
  %s5 = inlined_call_operand.hbm [shape: f32[128,128], index: 5, kind: input, shape index: {}]
  %s6 = inlined_call_operand.hbm [shape: f32[1,128], index: 6, kind: input, shape index: {}]
  %s7 = inlined_call_operand.hbm [shape: f32[128,128], index: 7, kind: input, shape index: {}]
  %s8 = inlined_call_operand.hbm [shape: f32[1,128], index: 8, kind: input, shape index: {}]
  %s9 = inlined_call_operand.hbm [shape: f32[2,128,128], index: 9, kind: input, shape index: {}]
  %s10 = inlined_call_operand.hbm [shape: f32[2,128,128], index: 10, kind: input, shape index: {}]
  %s11 = inlined_call_operand.hbm [shape: f32[2,128,128], index: 11, kind: input, shape index: {}]
  %s12 = inlined_call_operand.hbm [shape: f32[2,1,128], index: 12, kind: input, shape index: {}]
  %s13 = inlined_call_operand.hbm [shape: f32[2,128,128], index: 13, kind: input, shape index: {}]
  %s14 = inlined_call_operand.hbm [shape: f32[2,1,128], index: 14, kind: input, shape index: {}]
  %s15 = inlined_call_operand.hbm [shape: f32[2,128,128], index: 15, kind: input, shape index: {}]
  %s16 = inlined_call_operand.hbm [shape: f32[2,1,128], index: 16, kind: input, shape index: {}]
  %s17 = inlined_call_operand.hbm [shape: f32[1024,128], index: 17, kind: output, shape index: {0}]
  %s18 = inlined_call_operand.hbm [shape: f32[64,128], index: 18, kind: output, shape index: {1}]
  %19 = xla_tuple %s17, %s18
  %s20 = sld [smem:[#allocation0]]
  $region173: #{tpu_custom_call.1} parent=0
    _
  %s22 = ssub.s32 1, %s20
  %s23 = scalar_select 0, %s22, %s20
  $region1: #{tpu_custom_call.1} parent=0
    #allocation2 [shape = 'u8[262144]{0}', space=vmem, size = 0x40000, scoped, tag = 'input window, operand 0']
    #allocation3 [shape = 's32[2]{0}', space=sflag, size = 0x8, scoped, tag = 'scoped memory for tpu_custom_call.1']
    #allocation4 [shape = 's32[2]{0}', space=sflag, size = 0x8, scoped, tag = 'scoped memory for tpu_custom_call.1']
    #allocation5 [shape = 'u8[557056]{0}', space=vmem, size = 0x88000, scoped, tag = 'input window, operand 1']
    #allocation6 [shape = 's32[2]{0}', space=sflag, size = 0x8, scoped, tag = 'scoped memory for tpu_custom_call.1']
    #allocation7 [shape = 'u8[65536]{0}', space=vmem, size = 0x10000, scoped, tag = 'input window, operand 3, single buffered']
    #allocation8 [shape = 'u8[512]{0}', space=vmem, size = 0x400, scoped, tag = 'input window, operand 4, single buffered']
    #allocation9 [shape = 's32[1]{0}', space=sflag, size = 0x4, scoped, tag = 'scoped memory for tpu_custom_call.1']
    #allocation10 [shape = 'u8[65536]{0}', space=vmem, size = 0x10000, scoped, tag = 'input window, operand 5, single buffered']
    #allocation11 [shape = 'u8[512]{0}', space=vmem, size = 0x400, scoped, tag = 'input window, operand 6, single buffered']
    #allocation12 [shape = 's32[1]{0}', space=sflag, size = 0x4, scoped, tag = 'scoped memory for tpu_custom_call.1']
    #allocation13 [shape = 'u8[65536]{0}', space=vmem, size = 0x10000, scoped, tag = 'input window, operand 7, single buffered']
    #allocation14 [shape = 'u8[512]{0}', space=vmem, size = 0x400, scoped, tag = 'input window, operand 8, single buffered']
    #allocation15 [shape = 's32[1]{0}', space=sflag, size = 0x4, scoped, tag = 'scoped memory for tpu_custom_call.1']
    #allocation16 [shape = 'u8[131072]{0}', space=vmem, size = 0x20000, scoped, tag = 'input window, operand 9, single buffered']
    #allocation17 [shape = 'u8[131072]{0}', space=vmem, size = 0x20000, scoped, tag = 'input window, operand 10, single buffered']
    #allocation18 [shape = 's32[1]{0}', space=sflag, size = 0x4, scoped, tag = 'scoped memory for tpu_custom_call.1']
    #allocation19 [shape = 'u8[131072]{0}', space=vmem, size = 0x20000, scoped, tag = 'input window, operand 11, single buffered']
    #allocation20 [shape = 'u8[1024]{0}', space=vmem, size = 0x400, scoped, tag = 'input window, operand 12, single buffered']
    #allocation21 [shape = 's32[1]{0}', space=sflag, size = 0x4, scoped, tag = 'scoped memory for tpu_custom_call.1']
    #allocation22 [shape = 'u8[131072]{0}', space=vmem, size = 0x20000, scoped, tag = 'input window, operand 13, single buffered']
    #allocation23 [shape = 'u8[1024]{0}', space=vmem, size = 0x400, scoped, tag = 'input window, operand 14, single buffered']
    #allocation24 [shape = 's32[1]{0}', space=sflag, size = 0x4, scoped, tag = 'scoped memory for tpu_custom_call.1']
    #allocation25 [shape = 'u8[131072]{0}', space=vmem, size = 0x20000, scoped, tag = 'input window, operand 15, single buffered']
    #allocation26 [shape = 'u8[1024]{0}', space=vmem, size = 0x400, scoped, tag = 'input window, operand 16, single buffered']
    #allocation27 [shape = 's32[1]{0}', space=sflag, size = 0x4, scoped, tag = 'scoped memory for tpu_custom_call.1']
    #allocation28 [shape = 'u8[262144]{0}', space=vmem, size = 0x40000, scoped, tag = 'output window, operand 0']
    #allocation29 [shape = 'u8[16384]{0}', space=vmem, size = 0x4000, scoped, tag = 'output window, operand 1']
    #allocation30 [shape = 's32[2]{0}', space=sflag, size = 0x8, scoped, tag = 'scoped memory for tpu_custom_call.1']
    %24 = vsyncpa [#allocation3], 0
    %s25 = scalar_lea.sflag [#allocation3], 1
    %26 = vsyncpa %s25, 0
    %27 = vsyncpa [#allocation6], 0
    %s28 = scalar_lea.sflag [#allocation6], 1
    %29 = vsyncpa %s28, 0
    %30 = vsyncpa [#allocation9], 0
    %31 = vsyncpa [#allocation12], 0
    %32 = vsyncpa [#allocation15], 0
    %33 = vsyncpa [#allocation18], 0
    %34 = vsyncpa [#allocation21], 0
    %35 = vsyncpa [#allocation24], 0
    %36 = vsyncpa [#allocation27], 0
    %37 = vsyncpa [#allocation4], 0
    %s38 = scalar_lea.sflag [#allocation4], 1
    %39 = vsyncpa %s38, 0
    %40 = vsyncpa [#allocation30], 0
    %s41 = scalar_lea.sflag [#allocation30], 1
    %42 = vsyncpa %s41, 0
    loop: start=0, step=1, limit=6
    $region2: #{tpu_custom_call.1} parent=1 // loop_pre_header
      _
    $region3: #{tpu_custom_call.1} parent=1 // loop_header
      %s44 = sphi 0, %s48
      %p45 = scmp.ge.s32.totalorder %s44, 6
      %s54 = sphi 0, %s56
      %s57 = sphi 0, %s54
      %s58 = sphi 0, %s57
      %s74 = sphi 0, %s58
      %s80 = sphi 0, %s82
      %s83 = sphi 0, %s80
      %s84 = sphi 0, %s83
      %s100 = sphi 0, %s84
      %s104 = sphi 0, %s104
      %s106 = sphi 0, %s104
      %s107 = sphi 0, %s106
      %s121 = sphi 0, %s107
      %s125 = sphi 0, %s125
      %s127 = sphi 0, %s125
      %s128 = sphi 0, %s127
      %s142 = sphi 0, %s128
      %s146 = sphi 0, %s146
      %s148 = sphi 0, %s146
      %s149 = sphi 0, %s148
      %s163 = sphi 0, %s149
      %s167 = sphi 0, %s167
      %s169 = sphi 0, %s167
      %s170 = sphi 0, %s169
      %s184 = sphi 0, %s170
      %s188 = sphi 0, %s188
      %s190 = sphi 0, %s188
      %s191 = sphi 0, %s190
      %s205 = sphi 0, %s191
      %s209 = sphi 0, %s209
      %s211 = sphi 0, %s209
      %s212 = sphi 0, %s211
      %s226 = sphi 0, %s212
      %s230 = sphi 0, %s230
      %s232 = sphi 0, %s230
      %s233 = sphi 0, %s232
      %s247 = sphi 0, %s233
      %s251 = sphi 0, %s251
      %s253 = sphi 0, %s251
      %s254 = sphi 0, %s253
      %s268 = sphi 0, %s254
      %s272 = sphi 0, %s272
      %s274 = sphi 0, %s272
      %s275 = sphi 0, %s274
      %s289 = sphi 0, %s275
      %s293 = sphi 0, %s293
      %s295 = sphi 0, %s293
      %s296 = sphi 0, %s295
      %s310 = sphi 0, %s296
      %s314 = sphi 0, %s314
      %s316 = sphi 0, %s314
      %s317 = sphi 0, %s316
      %s331 = sphi 0, %s317
      %s335 = sphi 0, %s335
      %s337 = sphi 0, %s335
      %s338 = sphi 0, %s337
      %s352 = sphi 0, %s338
      %s356 = sphi 0, %s356
      %s358 = sphi 0, %s356
      %s359 = sphi 0, %s358
      %s373 = sphi 0, %s359
      %s377 = sphi 0, %s377
      %s379 = sphi 0, %s377
      %s380 = sphi 0, %s379
      %s394 = sphi 0, %s380
      %s398 = sphi 0, %s398
      %s400 = sphi 0, %s398
      %s401 = sphi 0, %s400
      %s415 = sphi 0, %s401
      %s421 = sphi 0, %s423
      %s424 = sphi 0, %s421
      %s425 = sphi 0, %s424
      %s441 = sphi 0, %s425
      %s447 = sphi 0, %s449
      %s450 = sphi 0, %s447
      %s451 = sphi 0, %s450
      %s467 = sphi 0, %s451
    $region4: #{tpu_custom_call.1} parent=1 // loop_header_branch
      %47 = sbr.rel (%p45) target = $region8
    $region5: #{tpu_custom_call.1} parent=1 // loop_body
      %s49 = ssub.s32 %s44, 1
      %s50 = ssub.s32 %s44, 2
      %s51 = sadd.s32 %s44, 1
      %s52 = ssub.s32 %s44, %s51
      %p53 = scmp.eq.s32.totalorder %s52, 0
      %s55 = sadd.s32 %s54, 1
      %s56 = scalar_select %p53, %s54, %s55
      %p59 = pneg %p53
      %p60 = scmp.eq.s32.totalorder %s44, 3
      %p61 = por %p59, %p60
      %p62 = scmp.ne.s32.totalorder %s54, %s57
      %p63 = scmp.eq.s32.totalorder %s44, 0
      %p64 = por %p62, %p63
      %p65 = scmp.ne.s32.totalorder %s54, %s57
      %p66 = scmp.eq.s32.totalorder %s49, 3
      %p67 = por %p65, %p66
      %p68 = scmp.ne.s32.totalorder %s57, %s58
      %p69 = scmp.eq.s32.totalorder %s49, 0
      %p70 = por %p68, %p69
      %p71 = scmp.ne.s32.totalorder %s57, %s58
      %p72 = scmp.eq.s32.totalorder %s50, 3
      %p73 = por %p71, %p72
      %p75 = scmp.ne.s32.totalorder %s58, %s74
      %p76 = scmp.eq.s32.totalorder %s50, 0
      %p77 = por %p75, %p76
      %s78 = ssub.s32 %s44, %s51
      %p79 = scmp.eq.s32.totalorder %s78, 0
      %s81 = sadd.s32 %s80, 1
      %s82 = scalar_select %p79, %s80, %s81
      %p85 = pneg %p79
      %p86 = scmp.eq.s32.totalorder %s44, 3
      %p87 = por %p85, %p86
      %p88 = scmp.ne.s32.totalorder %s80, %s83
      %p89 = scmp.eq.s32.totalorder %s44, 0
      %p90 = por %p88, %p89
      %p91 = scmp.ne.s32.totalorder %s80, %s83
      %p92 = scmp.eq.s32.totalorder %s49, 3
      %p93 = por %p91, %p92
      %p94 = scmp.ne.s32.totalorder %s83, %s84
      %p95 = scmp.eq.s32.totalorder %s49, 0
      %p96 = por %p94, %p95
      %p97 = scmp.ne.s32.totalorder %s83, %s84
      %p98 = scmp.eq.s32.totalorder %s50, 3
      %p99 = por %p97, %p98
      %p101 = scmp.ne.s32.totalorder %s84, %s100
      %p102 = scmp.eq.s32.totalorder %s50, 0
      %p103 = por %p101, %p102
      %s105 = sadd.s32 %s104, 1
      %p108 = scmp.eq.s32.totalorder %s44, 3
      %p109 = scmp.ne.s32.totalorder %s104, %s106
      %p110 = scmp.eq.s32.totalorder %s44, 0
      %p111 = por %p109, %p110
      %p112 = scmp.ne.s32.totalorder %s104, %s106
      %p113 = scmp.eq.s32.totalorder %s49, 3
      %p114 = por %p112, %p113
      %p115 = scmp.ne.s32.totalorder %s106, %s107
      %p116 = scmp.eq.s32.totalorder %s49, 0
      %p117 = por %p115, %p116
      %p118 = scmp.ne.s32.totalorder %s106, %s107
      %p119 = scmp.eq.s32.totalorder %s50, 3
      %p120 = por %p118, %p119
      %p122 = scmp.ne.s32.totalorder %s107, %s121
      %p123 = scmp.eq.s32.totalorder %s50, 0
      %p124 = por %p122, %p123
      %s126 = sadd.s32 %s125, 1
      %p129 = scmp.eq.s32.totalorder %s44, 3
      %p130 = scmp.ne.s32.totalorder %s125, %s127
      %p131 = scmp.eq.s32.totalorder %s44, 0
      %p132 = por %p130, %p131
      %p133 = scmp.ne.s32.totalorder %s125, %s127
      %p134 = scmp.eq.s32.totalorder %s49, 3
      %p135 = por %p133, %p134
      %p136 = scmp.ne.s32.totalorder %s127, %s128
      %p137 = scmp.eq.s32.totalorder %s49, 0
      %p138 = por %p136, %p137
      %p139 = scmp.ne.s32.totalorder %s127, %s128
      %p140 = scmp.eq.s32.totalorder %s50, 3
      %p141 = por %p139, %p140
      %p143 = scmp.ne.s32.totalorder %s128, %s142
      %p144 = scmp.eq.s32.totalorder %s50, 0
      %p145 = por %p143, %p144
      %s147 = sadd.s32 %s146, 1
      %p150 = scmp.eq.s32.totalorder %s44, 3
      %p151 = scmp.ne.s32.totalorder %s146, %s148
      %p152 = scmp.eq.s32.totalorder %s44, 0
      %p153 = por %p151, %p152
      %p154 = scmp.ne.s32.totalorder %s146, %s148
      %p155 = scmp.eq.s32.totalorder %s49, 3
      %p156 = por %p154, %p155
      %p157 = scmp.ne.s32.totalorder %s148, %s149
      %p158 = scmp.eq.s32.totalorder %s49, 0
      %p159 = por %p157, %p158
      %p160 = scmp.ne.s32.totalorder %s148, %s149
      %p161 = scmp.eq.s32.totalorder %s50, 3
      %p162 = por %p160, %p161
      %p164 = scmp.ne.s32.totalorder %s149, %s163
      %p165 = scmp.eq.s32.totalorder %s50, 0
      %p166 = por %p164, %p165
      %s168 = sadd.s32 %s167, 1
      %p171 = scmp.eq.s32.totalorder %s44, 3
      %p172 = scmp.ne.s32.totalorder %s167, %s169
      %p173 = scmp.eq.s32.totalorder %s44, 0
      %p174 = por %p172, %p173
      %p175 = scmp.ne.s32.totalorder %s167, %s169
      %p176 = scmp.eq.s32.totalorder %s49, 3
      %p177 = por %p175, %p176
      %p178 = scmp.ne.s32.totalorder %s169, %s170
      %p179 = scmp.eq.s32.totalorder %s49, 0
      %p180 = por %p178, %p179
      %p181 = scmp.ne.s32.totalorder %s169, %s170
      %p182 = scmp.eq.s32.totalorder %s50, 3
      %p183 = por %p181, %p182
      %p185 = scmp.ne.s32.totalorder %s170, %s184
      %p186 = scmp.eq.s32.totalorder %s50, 0
      %p187 = por %p185, %p186
      %s189 = sadd.s32 %s188, 1
      %p192 = scmp.eq.s32.totalorder %s44, 3
      %p193 = scmp.ne.s32.totalorder %s188, %s190
      %p194 = scmp.eq.s32.totalorder %s44, 0
      %p195 = por %p193, %p194
      %p196 = scmp.ne.s32.totalorder %s188, %s190
      %p197 = scmp.eq.s32.totalorder %s49, 3
      %p198 = por %p196, %p197
      %p199 = scmp.ne.s32.totalorder %s190, %s191
      %p200 = scmp.eq.s32.totalorder %s49, 0
      %p201 = por %p199, %p200
      %p202 = scmp.ne.s32.totalorder %s190, %s191
      %p203 = scmp.eq.s32.totalorder %s50, 3
      %p204 = por %p202, %p203
      %p206 = scmp.ne.s32.totalorder %s191, %s205
      %p207 = scmp.eq.s32.totalorder %s50, 0
      %p208 = por %p206, %p207
      %s210 = sadd.s32 %s209, 1
      %p213 = scmp.eq.s32.totalorder %s44, 3
      %p214 = scmp.ne.s32.totalorder %s209, %s211
      %p215 = scmp.eq.s32.totalorder %s44, 0
      %p216 = por %p214, %p215
      %p217 = scmp.ne.s32.totalorder %s209, %s211
      %p218 = scmp.eq.s32.totalorder %s49, 3
      %p219 = por %p217, %p218
      %p220 = scmp.ne.s32.totalorder %s211, %s212
      %p221 = scmp.eq.s32.totalorder %s49, 0
      %p222 = por %p220, %p221
      %p223 = scmp.ne.s32.totalorder %s211, %s212
      %p224 = scmp.eq.s32.totalorder %s50, 3
      %p225 = por %p223, %p224
      %p227 = scmp.ne.s32.totalorder %s212, %s226
      %p228 = scmp.eq.s32.totalorder %s50, 0
      %p229 = por %p227, %p228
      %s231 = sadd.s32 %s230, 1
      %p234 = scmp.eq.s32.totalorder %s44, 3
      %p235 = scmp.ne.s32.totalorder %s230, %s232
      %p236 = scmp.eq.s32.totalorder %s44, 0
      %p237 = por %p235, %p236
      %p238 = scmp.ne.s32.totalorder %s230, %s232
      %p239 = scmp.eq.s32.totalorder %s49, 3
      %p240 = por %p238, %p239
      %p241 = scmp.ne.s32.totalorder %s232, %s233
      %p242 = scmp.eq.s32.totalorder %s49, 0
      %p243 = por %p241, %p242
      %p244 = scmp.ne.s32.totalorder %s232, %s233
      %p245 = scmp.eq.s32.totalorder %s50, 3
      %p246 = por %p244, %p245
      %p248 = scmp.ne.s32.totalorder %s233, %s247
      %p249 = scmp.eq.s32.totalorder %s50, 0
      %p250 = por %p248, %p249
      %s252 = sadd.s32 %s251, 1
      %p255 = scmp.eq.s32.totalorder %s44, 3
      %p256 = scmp.ne.s32.totalorder %s251, %s253
      %p257 = scmp.eq.s32.totalorder %s44, 0
      %p258 = por %p256, %p257
      %p259 = scmp.ne.s32.totalorder %s251, %s253
      %p260 = scmp.eq.s32.totalorder %s49, 3
      %p261 = por %p259, %p260
      %p262 = scmp.ne.s32.totalorder %s253, %s254
      %p263 = scmp.eq.s32.totalorder %s49, 0
      %p264 = por %p262, %p263
      %p265 = scmp.ne.s32.totalorder %s253, %s254
      %p266 = scmp.eq.s32.totalorder %s50, 3
      %p267 = por %p265, %p266
      %p269 = scmp.ne.s32.totalorder %s254, %s268
      %p270 = scmp.eq.s32.totalorder %s50, 0
      %p271 = por %p269, %p270
      %s273 = sadd.s32 %s272, 1
      %p276 = scmp.eq.s32.totalorder %s44, 3
      %p277 = scmp.ne.s32.totalorder %s272, %s274
      %p278 = scmp.eq.s32.totalorder %s44, 0
      %p279 = por %p277, %p278
      %p280 = scmp.ne.s32.totalorder %s272, %s274
      %p281 = scmp.eq.s32.totalorder %s49, 3
      %p282 = por %p280, %p281
      %p283 = scmp.ne.s32.totalorder %s274, %s275
      %p284 = scmp.eq.s32.totalorder %s49, 0
      %p285 = por %p283, %p284
      %p286 = scmp.ne.s32.totalorder %s274, %s275
      %p287 = scmp.eq.s32.totalorder %s50, 3
      %p288 = por %p286, %p287
      %p290 = scmp.ne.s32.totalorder %s275, %s289
      %p291 = scmp.eq.s32.totalorder %s50, 0
      %p292 = por %p290, %p291
      %s294 = sadd.s32 %s293, 1
      %p297 = scmp.eq.s32.totalorder %s44, 3
      %p298 = scmp.ne.s32.totalorder %s293, %s295
      %p299 = scmp.eq.s32.totalorder %s44, 0
      %p300 = por %p298, %p299
      %p301 = scmp.ne.s32.totalorder %s293, %s295
      %p302 = scmp.eq.s32.totalorder %s49, 3
      %p303 = por %p301, %p302
      %p304 = scmp.ne.s32.totalorder %s295, %s296
      %p305 = scmp.eq.s32.totalorder %s49, 0
      %p306 = por %p304, %p305
      %p307 = scmp.ne.s32.totalorder %s295, %s296
      %p308 = scmp.eq.s32.totalorder %s50, 3
      %p309 = por %p307, %p308
      %p311 = scmp.ne.s32.totalorder %s296, %s310
      %p312 = scmp.eq.s32.totalorder %s50, 0
      %p313 = por %p311, %p312
      %s315 = sadd.s32 %s314, 1
      %p318 = scmp.eq.s32.totalorder %s44, 3
      %p319 = scmp.ne.s32.totalorder %s314, %s316
      %p320 = scmp.eq.s32.totalorder %s44, 0
      %p321 = por %p319, %p320
      %p322 = scmp.ne.s32.totalorder %s314, %s316
      %p323 = scmp.eq.s32.totalorder %s49, 3
      %p324 = por %p322, %p323
      %p325 = scmp.ne.s32.totalorder %s316, %s317
      %p326 = scmp.eq.s32.totalorder %s49, 0
      %p327 = por %p325, %p326
      %p328 = scmp.ne.s32.totalorder %s316, %s317
      %p329 = scmp.eq.s32.totalorder %s50, 3
      %p330 = por %p328, %p329
      %p332 = scmp.ne.s32.totalorder %s317, %s331
      %p333 = scmp.eq.s32.totalorder %s50, 0
      %p334 = por %p332, %p333
      %s336 = sadd.s32 %s335, 1
      %p339 = scmp.eq.s32.totalorder %s44, 3
      %p340 = scmp.ne.s32.totalorder %s335, %s337
      %p341 = scmp.eq.s32.totalorder %s44, 0
      %p342 = por %p340, %p341
      %p343 = scmp.ne.s32.totalorder %s335, %s337
      %p344 = scmp.eq.s32.totalorder %s49, 3
      %p345 = por %p343, %p344
      %p346 = scmp.ne.s32.totalorder %s337, %s338
      %p347 = scmp.eq.s32.totalorder %s49, 0
      %p348 = por %p346, %p347
      %p349 = scmp.ne.s32.totalorder %s337, %s338
      %p350 = scmp.eq.s32.totalorder %s50, 3
      %p351 = por %p349, %p350
      %p353 = scmp.ne.s32.totalorder %s338, %s352
      %p354 = scmp.eq.s32.totalorder %s50, 0
      %p355 = por %p353, %p354
      %s357 = sadd.s32 %s356, 1
      %p360 = scmp.eq.s32.totalorder %s44, 3
      %p361 = scmp.ne.s32.totalorder %s356, %s358
      %p362 = scmp.eq.s32.totalorder %s44, 0
      %p363 = por %p361, %p362
      %p364 = scmp.ne.s32.totalorder %s356, %s358
      %p365 = scmp.eq.s32.totalorder %s49, 3
      %p366 = por %p364, %p365
      %p367 = scmp.ne.s32.totalorder %s358, %s359
      %p368 = scmp.eq.s32.totalorder %s49, 0
      %p369 = por %p367, %p368
      %p370 = scmp.ne.s32.totalorder %s358, %s359
      %p371 = scmp.eq.s32.totalorder %s50, 3
      %p372 = por %p370, %p371
      %p374 = scmp.ne.s32.totalorder %s359, %s373
      %p375 = scmp.eq.s32.totalorder %s50, 0
      %p376 = por %p374, %p375
      %s378 = sadd.s32 %s377, 1
      %p381 = scmp.eq.s32.totalorder %s44, 3
      %p382 = scmp.ne.s32.totalorder %s377, %s379
      %p383 = scmp.eq.s32.totalorder %s44, 0
      %p384 = por %p382, %p383
      %p385 = scmp.ne.s32.totalorder %s377, %s379
      %p386 = scmp.eq.s32.totalorder %s49, 3
      %p387 = por %p385, %p386
      %p388 = scmp.ne.s32.totalorder %s379, %s380
      %p389 = scmp.eq.s32.totalorder %s49, 0
      %p390 = por %p388, %p389
      %p391 = scmp.ne.s32.totalorder %s379, %s380
      %p392 = scmp.eq.s32.totalorder %s50, 3
      %p393 = por %p391, %p392
      %p395 = scmp.ne.s32.totalorder %s380, %s394
      %p396 = scmp.eq.s32.totalorder %s50, 0
      %p397 = por %p395, %p396
      %s399 = sadd.s32 %s398, 1
      %p402 = scmp.eq.s32.totalorder %s44, 3
      %p403 = scmp.ne.s32.totalorder %s398, %s400
      %p404 = scmp.eq.s32.totalorder %s44, 0
      %p405 = por %p403, %p404
      %p406 = scmp.ne.s32.totalorder %s398, %s400
      %p407 = scmp.eq.s32.totalorder %s49, 3
      %p408 = por %p406, %p407
      %p409 = scmp.ne.s32.totalorder %s400, %s401
      %p410 = scmp.eq.s32.totalorder %s49, 0
      %p411 = por %p409, %p410
      %p412 = scmp.ne.s32.totalorder %s400, %s401
      %p413 = scmp.eq.s32.totalorder %s50, 3
      %p414 = por %p412, %p413
      %p416 = scmp.ne.s32.totalorder %s401, %s415
      %p417 = scmp.eq.s32.totalorder %s50, 0
      %p418 = por %p416, %p417
      %s419 = ssub.s32 %s44, %s51
      %p420 = scmp.eq.s32.totalorder %s419, 0
      %s422 = sadd.s32 %s421, 1
      %s423 = scalar_select %p420, %s421, %s422
      %p426 = pneg %p420
      %p427 = scmp.eq.s32.totalorder %s44, 3
      %p428 = por %p426, %p427
      %p429 = scmp.ne.s32.totalorder %s421, %s424
      %p430 = scmp.eq.s32.totalorder %s44, 0
      %p431 = por %p429, %p430
      %p432 = scmp.ne.s32.totalorder %s421, %s424
      %p433 = scmp.eq.s32.totalorder %s49, 3
      %p434 = por %p432, %p433
      %p435 = scmp.ne.s32.totalorder %s424, %s425
      %p436 = scmp.eq.s32.totalorder %s49, 0
      %p437 = por %p435, %p436
      %p438 = scmp.ne.s32.totalorder %s424, %s425
      %p439 = scmp.eq.s32.totalorder %s50, 3
      %p440 = por %p438, %p439
      %p442 = scmp.ne.s32.totalorder %s425, %s441
      %p443 = scmp.eq.s32.totalorder %s50, 0
      %p444 = por %p442, %p443
      %s445 = ssub.s32 %s44, %s51
      %p446 = scmp.eq.s32.totalorder %s445, 0
      %s448 = sadd.s32 %s447, 1
      %s449 = scalar_select %p446, %s447, %s448
      %p452 = pneg %p446
      %p453 = scmp.eq.s32.totalorder %s44, 3
      %p454 = por %p452, %p453
      %p455 = scmp.ne.s32.totalorder %s447, %s450
      %p456 = scmp.eq.s32.totalorder %s44, 0
      %p457 = por %p455, %p456
      %p458 = scmp.ne.s32.totalorder %s447, %s450
      %p459 = scmp.eq.s32.totalorder %s49, 3
      %p460 = por %p458, %p459
      %p461 = scmp.ne.s32.totalorder %s450, %s451
      %p462 = scmp.eq.s32.totalorder %s49, 0
      %p463 = por %p461, %p462
      %p464 = scmp.ne.s32.totalorder %s450, %s451
      %p465 = scmp.eq.s32.totalorder %s50, 3
      %p466 = por %p464, %p465
      %p468 = scmp.ne.s32.totalorder %s451, %s467
      %p469 = scmp.eq.s32.totalorder %s50, 0
      %p470 = por %p468, %p469
      %p471 = scmp.le.s32.totalorder 1, %s44
      %p472 = scmp.lt.s32.totalorder %s44, 5
      %p473 = pnand %p471, %p472
      %p474 = pneg %p473
      // Predicated region
      $region9: #{tpu_custom_call.1} parent=5 // pred_check
        _
      $region10: #{tpu_custom_call.1} parent=5 // pred_check_branch
        %476 = sbr.rel (%p473) target = $region12
      $region11: #{tpu_custom_call.1} parent=5 // pred_region
        %s477 = ssub.s32 %s44, 1
        // Predicated region
        $region13: #{tpu_custom_call.1} parent=11 // pred_check
          %p478 = pneg %p117
        $region14: #{tpu_custom_call.1} parent=11 // pred_check_branch
          %480 = sbr.rel (%p478) target = $region16
        $region15: #{tpu_custom_call.1} parent=11 // pred_region
          _
        $region16: #{tpu_custom_call.1} parent=11 // pred_fallthru
          _
        // Predicated region
        $region17: #{tpu_custom_call.1} parent=11 // pred_check
          %p481 = pneg %p138
        $region18: #{tpu_custom_call.1} parent=11 // pred_check_branch
          %483 = sbr.rel (%p481) target = $region20
        $region19: #{tpu_custom_call.1} parent=11 // pred_region
          %485 = vsyncadd [#allocation6], 0
          %s486 = sshll.u32 %s3, 4
          %s487 = int_to_ptr.hbm [resolvable:$true] %s486
          %s488 = sshll.u32 [#allocation7], 4
          %s489 = int_to_ptr.vmem [resolvable:$true] %s488
          %494 = dma.hbm_to_vmem [thread:$0]  %s487, 2048, %s489, [#allocation6], 128, 128, 8
        $region20: #{tpu_custom_call.1} parent=11 // pred_fallthru
          _
        // Predicated region
        $region21: #{tpu_custom_call.1} parent=11 // pred_check
          %p495 = pneg %p159
        $region22: #{tpu_custom_call.1} parent=11 // pred_check_branch
          %497 = sbr.rel (%p495) target = $region24
        $region23: #{tpu_custom_call.1} parent=11 // pred_region
          %499 = vsyncadd [#allocation9], 0
          %s501 = sshll.u32 %s4, 4
          %s502 = int_to_ptr.hbm [resolvable:$true] %s501
          %s503 = sshll.u32 [#allocation8], 4
          %s504 = int_to_ptr.vmem [resolvable:$true] %s503
          %506 = dma.hbm_to_vmem [thread:$0]  %s502, 16, %s504, [#allocation9]
        $region24: #{tpu_custom_call.1} parent=11 // pred_fallthru
          _
        // Predicated region
        $region25: #{tpu_custom_call.1} parent=11 // pred_check
          %p507 = pneg %p180
        $region26: #{tpu_custom_call.1} parent=11 // pred_check_branch
          %509 = sbr.rel (%p507) target = $region28
        $region27: #{tpu_custom_call.1} parent=11 // pred_region
          %511 = vsyncadd [#allocation9], 0
          %s512 = sshll.u32 %s5, 4
          %s513 = int_to_ptr.hbm [resolvable:$true] %s512
          %s514 = sshll.u32 [#allocation10], 4
          %s515 = int_to_ptr.vmem [resolvable:$true] %s514
          %520 = dma.hbm_to_vmem [thread:$0]  %s513, 2048, %s515, [#allocation9], 128, 128, 8
        $region28: #{tpu_custom_call.1} parent=11 // pred_fallthru
          _
        // Predicated region
        $region29: #{tpu_custom_call.1} parent=11 // pred_check
          %p521 = pneg %p201
        $region30: #{tpu_custom_call.1} parent=11 // pred_check_branch
          %523 = sbr.rel (%p521) target = $region32
        $region31: #{tpu_custom_call.1} parent=11 // pred_region
          %525 = vsyncadd [#allocation12], 0
          %s527 = sshll.u32 %s6, 4
          %s528 = int_to_ptr.hbm [resolvable:$true] %s527
          %s529 = sshll.u32 [#allocation11], 4
          %s530 = int_to_ptr.vmem [resolvable:$true] %s529
          %532 = dma.hbm_to_vmem [thread:$0]  %s528, 16, %s530, [#allocation12]
        $region32: #{tpu_custom_call.1} parent=11 // pred_fallthru
          _
        // Predicated region
        $region33: #{tpu_custom_call.1} parent=11 // pred_check
          %p533 = pneg %p222
        $region34: #{tpu_custom_call.1} parent=11 // pred_check_branch
          %535 = sbr.rel (%p533) target = $region36
        $region35: #{tpu_custom_call.1} parent=11 // pred_region
          %537 = vsyncadd [#allocation12], 0
          %s538 = sshll.u32 %s7, 4
          %s539 = int_to_ptr.hbm [resolvable:$true] %s538
          %s540 = sshll.u32 [#allocation13], 4
          %s541 = int_to_ptr.vmem [resolvable:$true] %s540
          %546 = dma.hbm_to_vmem [thread:$0]  %s539, 2048, %s541, [#allocation12], 128, 128, 8
        $region36: #{tpu_custom_call.1} parent=11 // pred_fallthru
          _
        // Predicated region
        $region37: #{tpu_custom_call.1} parent=11 // pred_check
          %p547 = pneg %p243
        $region38: #{tpu_custom_call.1} parent=11 // pred_check_branch
          %549 = sbr.rel (%p547) target = $region40
        $region39: #{tpu_custom_call.1} parent=11 // pred_region
          %551 = vsyncadd [#allocation15], 0
          %s553 = sshll.u32 %s8, 4
          %s554 = int_to_ptr.hbm [resolvable:$true] %s553
          %s555 = sshll.u32 [#allocation14], 4
          %s556 = int_to_ptr.vmem [resolvable:$true] %s555
          %558 = dma.hbm_to_vmem [thread:$0]  %s554, 16, %s556, [#allocation15]
        $region40: #{tpu_custom_call.1} parent=11 // pred_fallthru
          _
        // Predicated region
        $region41: #{tpu_custom_call.1} parent=11 // pred_check
          %p559 = pneg %p264
        $region42: #{tpu_custom_call.1} parent=11 // pred_check_branch
          %561 = sbr.rel (%p559) target = $region44
        $region43: #{tpu_custom_call.1} parent=11 // pred_region
          %563 = vsyncadd [#allocation15], 0
          %s564 = sshll.u32 %s9, 4
          %s565 = int_to_ptr.hbm [resolvable:$true] %s564
          %s566 = sshll.u32 [#allocation16], 4
          %s567 = int_to_ptr.vmem [resolvable:$true] %s566
          %572 = dma.hbm_to_vmem [thread:$0]  %s565, 4096, %s567, [#allocation15], 128, 128, 8
        $region44: #{tpu_custom_call.1} parent=11 // pred_fallthru
          _
        // Predicated region
        $region45: #{tpu_custom_call.1} parent=11 // pred_check
          %p573 = pneg %p285
        $region46: #{tpu_custom_call.1} parent=11 // pred_check_branch
          %575 = sbr.rel (%p573) target = $region48
        $region47: #{tpu_custom_call.1} parent=11 // pred_region
          %577 = vsyncadd [#allocation18], 0
          %s578 = sshll.u32 %s10, 4
          %s579 = int_to_ptr.hbm [resolvable:$true] %s578
          %s580 = sshll.u32 [#allocation17], 4
          %s581 = int_to_ptr.vmem [resolvable:$true] %s580
          %586 = dma.hbm_to_vmem [thread:$0]  %s579, 4096, %s581, [#allocation18], 128, 128, 8
        $region48: #{tpu_custom_call.1} parent=11 // pred_fallthru
          _
        // Predicated region
        $region49: #{tpu_custom_call.1} parent=11 // pred_check
          %p587 = pneg %p306
        $region50: #{tpu_custom_call.1} parent=11 // pred_check_branch
          %589 = sbr.rel (%p587) target = $region52
        $region51: #{tpu_custom_call.1} parent=11 // pred_region
          %591 = vsyncadd [#allocation18], 0
          %s592 = sshll.u32 %s11, 4
          %s593 = int_to_ptr.hbm [resolvable:$true] %s592
          %s594 = sshll.u32 [#allocation19], 4
          %s595 = int_to_ptr.vmem [resolvable:$true] %s594
          %600 = dma.hbm_to_vmem [thread:$0]  %s593, 4096, %s595, [#allocation18], 128, 128, 8
        $region52: #{tpu_custom_call.1} parent=11 // pred_fallthru
          _
        // Predicated region
        $region53: #{tpu_custom_call.1} parent=11 // pred_check
          %p601 = pneg %p327
        $region54: #{tpu_custom_call.1} parent=11 // pred_check_branch
          %603 = sbr.rel (%p601) target = $region56
        $region55: #{tpu_custom_call.1} parent=11 // pred_region
          %605 = vsyncadd [#allocation21], 0
          %s606 = sshll.u32 %s12, 4
          %s607 = int_to_ptr.hbm [resolvable:$true] %s606
          %s608 = sshll.u32 [#allocation20], 4
          %s609 = int_to_ptr.vmem [resolvable:$true] %s608
          %614 = dma.hbm_to_vmem [thread:$0]  %s607, 32, %s609, [#allocation21], 16, 16, 1
        $region56: #{tpu_custom_call.1} parent=11 // pred_fallthru
          _
        // Predicated region
        $region57: #{tpu_custom_call.1} parent=11 // pred_check
          %p615 = pneg %p348
        $region58: #{tpu_custom_call.1} parent=11 // pred_check_branch
          %617 = sbr.rel (%p615) target = $region60
        $region59: #{tpu_custom_call.1} parent=11 // pred_region
          %619 = vsyncadd [#allocation21], 0
          %s620 = sshll.u32 %s13, 4
          %s621 = int_to_ptr.hbm [resolvable:$true] %s620
          %s622 = sshll.u32 [#allocation22], 4
          %s623 = int_to_ptr.vmem [resolvable:$true] %s622
          %628 = dma.hbm_to_vmem [thread:$0]  %s621, 4096, %s623, [#allocation21], 128, 128, 8
        $region60: #{tpu_custom_call.1} parent=11 // pred_fallthru
          _
        // Predicated region
        $region61: #{tpu_custom_call.1} parent=11 // pred_check
          %p629 = pneg %p369
        $region62: #{tpu_custom_call.1} parent=11 // pred_check_branch
          %631 = sbr.rel (%p629) target = $region64
        $region63: #{tpu_custom_call.1} parent=11 // pred_region
          %633 = vsyncadd [#allocation24], 0
          %s634 = sshll.u32 %s14, 4
          %s635 = int_to_ptr.hbm [resolvable:$true] %s634
          %s636 = sshll.u32 [#allocation23], 4
          %s637 = int_to_ptr.vmem [resolvable:$true] %s636
          %642 = dma.hbm_to_vmem [thread:$0]  %s635, 32, %s637, [#allocation24], 16, 16, 1
        $region64: #{tpu_custom_call.1} parent=11 // pred_fallthru
          _
        // Predicated region
        $region65: #{tpu_custom_call.1} parent=11 // pred_check
          %p643 = pneg %p390
        $region66: #{tpu_custom_call.1} parent=11 // pred_check_branch
          %645 = sbr.rel (%p643) target = $region68
        $region67: #{tpu_custom_call.1} parent=11 // pred_region
          %647 = vsyncadd [#allocation24], 0
          %s648 = sshll.u32 %s15, 4
          %s649 = int_to_ptr.hbm [resolvable:$true] %s648
          %s650 = sshll.u32 [#allocation25], 4
          %s651 = int_to_ptr.vmem [resolvable:$true] %s650
          %656 = dma.hbm_to_vmem [thread:$0]  %s649, 4096, %s651, [#allocation24], 128, 128, 8
        $region68: #{tpu_custom_call.1} parent=11 // pred_fallthru
          _
        // Predicated region
        $region69: #{tpu_custom_call.1} parent=11 // pred_check
          %p657 = pneg %p411
        $region70: #{tpu_custom_call.1} parent=11 // pred_check_branch
          %659 = sbr.rel (%p657) target = $region72
        $region71: #{tpu_custom_call.1} parent=11 // pred_region
          %661 = vsyncadd [#allocation27], 0
          %s662 = sshll.u32 %s16, 4
          %s663 = int_to_ptr.hbm [resolvable:$true] %s662
          %s664 = sshll.u32 [#allocation26], 4
          %s665 = int_to_ptr.vmem [resolvable:$true] %s664
          %670 = dma.hbm_to_vmem [thread:$0]  %s663, 32, %s665, [#allocation27], 16, 16, 1
        $region72: #{tpu_custom_call.1} parent=11 // pred_fallthru
          _
      $region12: #{tpu_custom_call.1} parent=5 // pred_fallthru
        _
      %p671 = scmp.lt.s32.totalorder %s44, 4
      // Predicated region
      $region73: #{tpu_custom_call.1} parent=5 // pred_check
        %p672 = pneg %p671
      $region74: #{tpu_custom_call.1} parent=5 // pred_check_branch
        %674 = sbr.rel (%p672) target = $region76
      $region75: #{tpu_custom_call.1} parent=5 // pred_region
        // Predicated region
        $region77: #{tpu_custom_call.1} parent=75 // pred_check
          %p675 = pneg %p64
        $region78: #{tpu_custom_call.1} parent=75 // pred_check_branch
          %677 = sbr.rel (%p675) target = $region80
        $region79: #{tpu_custom_call.1} parent=75 // pred_region
          %s678 = sand.u32 %s54, 1
          %s679 = scalar_lea.sflag [#allocation3], %s678
          %s680 = sand.u32 %s54, 1
          %s681 = smul.addr %s680, 256
          %s682 = scalar_lea.vmem [#allocation2], %s681
          %s683 = smul.u32 32, %s44
          %685 = vsyncadd %s679, 0
          %s686 = smul.addr %s683, 8
          %s687 = scalar_lea.hbm %s0, %s686
          %s688 = sshll.u32 %s687, 4
          %s689 = int_to_ptr.hbm [resolvable:$true] %s688
          %s690 = sshll.u32 %s682, 4
          %s691 = int_to_ptr.vmem [resolvable:$true] %s690
          %696 = dma.hbm_to_vmem [thread:$0]  %s689, 4096, %s691, %s679, 128, 128, 8
        $region80: #{tpu_custom_call.1} parent=75 // pred_fallthru
          _
        // Predicated region
        $region81: #{tpu_custom_call.1} parent=75 // pred_check
          %p697 = pneg %p90
        $region82: #{tpu_custom_call.1} parent=75 // pred_check_branch
          %699 = sbr.rel (%p697) target = $region84
        $region83: #{tpu_custom_call.1} parent=75 // pred_region
          %s700 = sand.u32 %s44, 1
          %s701 = scalar_lea.sflag [#allocation6], %s700
          %s702 = sand.u32 %s80, 1
          %s703 = smul.addr %s702, 544
          %s704 = scalar_lea.vmem [#allocation5], %s703
          %s705 = smul.u32 34, %s44
          %707 = vsyncadd %s701, 0
          %s708 = smul.addr %s705, 2
          %s709 = smul.addr %s708, 8
          %s710 = scalar_lea.hbm %s1, %s709
          %s711 = sshll.u32 %s710, 4
          %s712 = int_to_ptr.hbm [resolvable:$true] %s711
          %s713 = sshll.u32 %s704, 4
          %s714 = int_to_ptr.vmem [resolvable:$true] %s713
          %719 = dma.hbm_to_vmem [thread:$0]  %s712, 8704, %s714, %s701, 256, 256, 16
        $region84: #{tpu_custom_call.1} parent=75 // pred_fallthru
          _
      $region76: #{tpu_custom_call.1} parent=5 // pred_fallthru
        _
      %p720 = scmp.le.s32.totalorder 1, %s44
      %p721 = scmp.lt.s32.totalorder %s44, 5
      %p722 = pnand %p720, %p721
      %p723 = pneg %p722
      // Predicated region
      $region85: #{tpu_custom_call.1} parent=5 // pred_check
        _
      $region86: #{tpu_custom_call.1} parent=5 // pred_check_branch
        %725 = sbr.rel (%p722) target = $region88
      $region87: #{tpu_custom_call.1} parent=5 // pred_region
        %s726 = ssub.s32 %s44, 1
        %s727 = sand.u32 %s57, 1
        %s728 = scalar_lea.sflag [#allocation3], %s727
        %s729 = sand.u32 %s57, 1
        %s730 = smul.addr %s729, 256
        %s731 = scalar_lea.vmem [#allocation2], %s730
        // Predicated region
        $region89: #{tpu_custom_call.1} parent=87 // pred_check
          %p732 = pneg %p70
        $region90: #{tpu_custom_call.1} parent=87 // pred_check_branch
          %734 = sbr.rel (%p732) target = $region92
        $region91: #{tpu_custom_call.1} parent=87 // pred_region
          %736 = dma.done %s728, 4096
        $region92: #{tpu_custom_call.1} parent=87 // pred_fallthru
          _
        %s737 = sand.u32 %s49, 1
        %s738 = scalar_lea.sflag [#allocation6], %s737
        %s739 = sand.u32 %s83, 1
        %s740 = smul.addr %s739, 544
        %s741 = scalar_lea.vmem [#allocation5], %s740
        // Predicated region
        $region93: #{tpu_custom_call.1} parent=87 // pred_check
          %p742 = pneg %p96
        $region94: #{tpu_custom_call.1} parent=87 // pred_check_branch
          %744 = sbr.rel (%p742) target = $region96
        $region95: #{tpu_custom_call.1} parent=87 // pred_region
          %746 = dma.done %s738, 8704
        $region96: #{tpu_custom_call.1} parent=87 // pred_fallthru
          _
        // Predicated region
        $region97: #{tpu_custom_call.1} parent=87 // pred_check
          %p747 = pneg %p138
        $region98: #{tpu_custom_call.1} parent=87 // pred_check_branch
          %749 = sbr.rel (%p747) target = $region100
        $region99: #{tpu_custom_call.1} parent=87 // pred_region
          %751 = dma.done [#allocation6], 2048
        $region100: #{tpu_custom_call.1} parent=87 // pred_fallthru
          _
        // Predicated region
        $region101: #{tpu_custom_call.1} parent=87 // pred_check
          %p752 = pneg %p159
        $region102: #{tpu_custom_call.1} parent=87 // pred_check_branch
          %754 = sbr.rel (%p752) target = $region104
        $region103: #{tpu_custom_call.1} parent=87 // pred_region
          %756 = dma.done [#allocation9], 16
        $region104: #{tpu_custom_call.1} parent=87 // pred_fallthru
          _
        // Predicated region
        $region105: #{tpu_custom_call.1} parent=87 // pred_check
          %p757 = pneg %p180
        $region106: #{tpu_custom_call.1} parent=87 // pred_check_branch
          %759 = sbr.rel (%p757) target = $region108
        $region107: #{tpu_custom_call.1} parent=87 // pred_region
          %761 = dma.done [#allocation9], 2048
        $region108: #{tpu_custom_call.1} parent=87 // pred_fallthru
          _
        // Predicated region
        $region109: #{tpu_custom_call.1} parent=87 // pred_check
          %p762 = pneg %p201
        $region110: #{tpu_custom_call.1} parent=87 // pred_check_branch
          %764 = sbr.rel (%p762) target = $region112
        $region111: #{tpu_custom_call.1} parent=87 // pred_region
          %766 = dma.done [#allocation12], 16
        $region112: #{tpu_custom_call.1} parent=87 // pred_fallthru
          _
        // Predicated region
        $region113: #{tpu_custom_call.1} parent=87 // pred_check
          %p767 = pneg %p222
        $region114: #{tpu_custom_call.1} parent=87 // pred_check_branch
          %769 = sbr.rel (%p767) target = $region116
        $region115: #{tpu_custom_call.1} parent=87 // pred_region
          %771 = dma.done [#allocation12], 2048
        $region116: #{tpu_custom_call.1} parent=87 // pred_fallthru
          _
        // Predicated region
        $region117: #{tpu_custom_call.1} parent=87 // pred_check
          %p772 = pneg %p243
        $region118: #{tpu_custom_call.1} parent=87 // pred_check_branch
          %774 = sbr.rel (%p772) target = $region120
        $region119: #{tpu_custom_call.1} parent=87 // pred_region
          %776 = dma.done [#allocation15], 16
        $region120: #{tpu_custom_call.1} parent=87 // pred_fallthru
          _
        // Predicated region
        $region121: #{tpu_custom_call.1} parent=87 // pred_check
          %p777 = pneg %p264
        $region122: #{tpu_custom_call.1} parent=87 // pred_check_branch
          %779 = sbr.rel (%p777) target = $region124
        $region123: #{tpu_custom_call.1} parent=87 // pred_region
          %781 = dma.done [#allocation15], 4096
        $region124: #{tpu_custom_call.1} parent=87 // pred_fallthru
          _
        // Predicated region
        $region125: #{tpu_custom_call.1} parent=87 // pred_check
          %p782 = pneg %p285
        $region126: #{tpu_custom_call.1} parent=87 // pred_check_branch
          %784 = sbr.rel (%p782) target = $region128
        $region127: #{tpu_custom_call.1} parent=87 // pred_region
          %786 = dma.done [#allocation18], 4096
        $region128: #{tpu_custom_call.1} parent=87 // pred_fallthru
          _
        // Predicated region
        $region129: #{tpu_custom_call.1} parent=87 // pred_check
          %p787 = pneg %p306
        $region130: #{tpu_custom_call.1} parent=87 // pred_check_branch
          %789 = sbr.rel (%p787) target = $region132
        $region131: #{tpu_custom_call.1} parent=87 // pred_region
          %791 = dma.done [#allocation18], 4096
        $region132: #{tpu_custom_call.1} parent=87 // pred_fallthru
          _
        // Predicated region
        $region133: #{tpu_custom_call.1} parent=87 // pred_check
          %p792 = pneg %p327
        $region134: #{tpu_custom_call.1} parent=87 // pred_check_branch
          %794 = sbr.rel (%p792) target = $region136
        $region135: #{tpu_custom_call.1} parent=87 // pred_region
          %796 = dma.done [#allocation21], 32
        $region136: #{tpu_custom_call.1} parent=87 // pred_fallthru
          _
        // Predicated region
        $region137: #{tpu_custom_call.1} parent=87 // pred_check
          %p797 = pneg %p348
        $region138: #{tpu_custom_call.1} parent=87 // pred_check_branch
          %799 = sbr.rel (%p797) target = $region140
        $region139: #{tpu_custom_call.1} parent=87 // pred_region
          %801 = dma.done [#allocation21], 4096
        $region140: #{tpu_custom_call.1} parent=87 // pred_fallthru
          _
        // Predicated region
        $region141: #{tpu_custom_call.1} parent=87 // pred_check
          %p802 = pneg %p369
        $region142: #{tpu_custom_call.1} parent=87 // pred_check_branch
          %804 = sbr.rel (%p802) target = $region144
        $region143: #{tpu_custom_call.1} parent=87 // pred_region
          %806 = dma.done [#allocation24], 32
        $region144: #{tpu_custom_call.1} parent=87 // pred_fallthru
          _
        // Predicated region
        $region145: #{tpu_custom_call.1} parent=87 // pred_check
          %p807 = pneg %p390
        $region146: #{tpu_custom_call.1} parent=87 // pred_check_branch
          %809 = sbr.rel (%p807) target = $region148
        $region147: #{tpu_custom_call.1} parent=87 // pred_region
          %811 = dma.done [#allocation24], 4096
        $region148: #{tpu_custom_call.1} parent=87 // pred_fallthru
          _
        // Predicated region
        $region149: #{tpu_custom_call.1} parent=87 // pred_check
          %p812 = pneg %p411
        $region150: #{tpu_custom_call.1} parent=87 // pred_check_branch
          %814 = sbr.rel (%p812) target = $region152
        $region151: #{tpu_custom_call.1} parent=87 // pred_region
          %816 = dma.done [#allocation27], 32
        $region152: #{tpu_custom_call.1} parent=87 // pred_fallthru
          _
        %s817 = sand.u32 %s57, 1
        %s818 = scalar_lea.sflag [#allocation3], %s817
        %s819 = sand.u32 %s57, 1
        %s820 = smul.addr %s819, 256
        %s821 = scalar_lea.vmem [#allocation2], %s820
        %p822 = pneg %p70
        %p823 = pneg %p67
        %s824 = sand.u32 %s49, 1
        %s825 = scalar_lea.sflag [#allocation6], %s824
        %s826 = sand.u32 %s83, 1
        %s827 = smul.addr %s826, 544
        %s828 = scalar_lea.vmem [#allocation5], %s827
        %p829 = pneg %p96
        %p830 = pneg %p93
        %p831 = pneg %p117
        %p832 = pneg %p114
        %p833 = pneg %p138
        %p834 = pneg %p135
        %p835 = pneg %p159
        %p836 = pneg %p156
        %p837 = pneg %p180
        %p838 = pneg %p177
        %p839 = pneg %p201
        %p840 = pneg %p198
        %p841 = pneg %p222
        %p842 = pneg %p219
        %p843 = pneg %p243
        %p844 = pneg %p240
        %p845 = pneg %p264
        %p846 = pneg %p261
        %p847 = pneg %p285
        %p848 = pneg %p282
        %p849 = pneg %p306
        %p850 = pneg %p303
        %p851 = pneg %p327
        %p852 = pneg %p324
        %p853 = pneg %p348
        %p854 = pneg %p345
        %p855 = pneg %p369
        %p856 = pneg %p366
        %p857 = pneg %p390
        %p858 = pneg %p387
        %p859 = pneg %p411
        %p860 = pneg %p408
        %p861 = pneg %p437
        %p862 = pneg %p434
        %s863 = sand.u32 %s424, 1
        %s864 = scalar_lea.sflag [#allocation4], %s863
        %s865 = sand.u32 %s424, 1
        %s866 = smul.addr %s865, 256
        %s867 = scalar_lea.vmem [#allocation28], %s866
        %p868 = pneg %p463
        %p869 = pneg %p460
        %s870 = sand.u32 %s450, 1
        %s871 = scalar_lea.sflag [#allocation30], %s870
        %s872 = sand.u32 %s450, 1
        %s873 = smul.addr %s872, 16
        %s874 = scalar_lea.vmem [#allocation29], %s873
        %s875 = smul.u32 32, %s49
        %s876 = smul.u32 34, %s49
        %s877 = smul.u32 32, %s49
        %s878 = smul.u32 2, %s49
        %v879 = vld [vmem:[%s731] sm:$0xff]
        %v880 = vld [vmem:[%s731 + $0x8] sm:$0xff]
        %v881 = vld [vmem:[%s731 + $0x10] sm:$0xff]
        %v882 = vld [vmem:[%s731 + $0x18] sm:$0xff]
        %v883 = vld [vmem:[%s731 + $0x20] sm:$0xff]
        %v884 = vld [vmem:[%s731 + $0x28] sm:$0xff]
        %v885 = vld [vmem:[%s731 + $0x30] sm:$0xff]
        %v886 = vld [vmem:[%s731 + $0x38] sm:$0xff]
        %v887 = vld [vmem:[%s731 + $0x40] sm:$0xff]
        %v888 = vld [vmem:[%s731 + $0x48] sm:$0xff]
        %v889 = vld [vmem:[%s731 + $0x50] sm:$0xff]
        %v890 = vld [vmem:[%s731 + $0x58] sm:$0xff]
        %v891 = vld [vmem:[%s731 + $0x60] sm:$0xff]
        %v892 = vld [vmem:[%s731 + $0x68] sm:$0xff]
        %v893 = vld [vmem:[%s731 + $0x70] sm:$0xff]
        %v894 = vld [vmem:[%s731 + $0x78] sm:$0xff]
        %v895 = vld [vmem:[%s731 + $0x80] sm:$0xff]
        %v896 = vld [vmem:[%s731 + $0x88] sm:$0xff]
        %v897 = vld [vmem:[%s731 + $0x90] sm:$0xff]
        %v898 = vld [vmem:[%s731 + $0x98] sm:$0xff]
        %v899 = vld [vmem:[%s731 + $0xa0] sm:$0xff]
        %v900 = vld [vmem:[%s731 + $0xa8] sm:$0xff]
        %v901 = vld [vmem:[%s731 + $0xb0] sm:$0xff]
        %v902 = vld [vmem:[%s731 + $0xb8] sm:$0xff]
        %v903 = vld [vmem:[%s731 + $0xc0] sm:$0xff]
        %v904 = vld [vmem:[%s731 + $0xc8] sm:$0xff]
        %v905 = vld [vmem:[%s731 + $0xd0] sm:$0xff]
        %v906 = vld [vmem:[%s731 + $0xd8] sm:$0xff]
        %v907 = vld [vmem:[%s731 + $0xe0] sm:$0xff]
        %v908 = vld [vmem:[%s731 + $0xe8] sm:$0xff]
        %v909 = vld [vmem:[%s731 + $0xf0] sm:$0xff]
        %v910 = vld [vmem:[%s731 + $0xf8] sm:$0xff]
        %v911 = vld [vmem:[#allocation7] sm:$0xff]
        %v912 = vld [vmem:[#allocation7 + $0x8] sm:$0xff]
        %v913 = vld [vmem:[#allocation7 + $0x10] sm:$0xff]
        %v914 = vld [vmem:[#allocation7 + $0x18] sm:$0xff]
        %v915 = vld [vmem:[#allocation7 + $0x20] sm:$0xff]
        %v916 = vld [vmem:[#allocation7 + $0x28] sm:$0xff]
        %v917 = vld [vmem:[#allocation7 + $0x30] sm:$0xff]
        %v918 = vld [vmem:[#allocation7 + $0x38] sm:$0xff]
        %v919 = vld [vmem:[#allocation7 + $0x40] sm:$0xff]
        %v920 = vld [vmem:[#allocation7 + $0x48] sm:$0xff]
        %v921 = vld [vmem:[#allocation7 + $0x50] sm:$0xff]
        %v922 = vld [vmem:[#allocation7 + $0x58] sm:$0xff]
        %v923 = vld [vmem:[#allocation7 + $0x60] sm:$0xff]
        %v924 = vld [vmem:[#allocation7 + $0x68] sm:$0xff]
        %v925 = vld [vmem:[#allocation7 + $0x70] sm:$0xff]
        %v926 = vld [vmem:[#allocation7 + $0x78] sm:$0xff]
        %v927 = vld [vmem:[#allocation8] sm:$0x1]
        %v929 = vperm.slane %v927, 0
        %931 = vmatpush.msra.mxu0 %v926
        %932 = vmatpush.msra.mxu0 %v925
        %933 = vmatpush.msra.mxu0 %v924
        %934 = vmatpush.msra.mxu0 %v923
        %935 = vmatpush.msra.mxu0 %v922
        %936 = vmatpush.msra.mxu0 %v921
        %937 = vmatpush.msra.mxu0 %v920
        %938 = vmatpush.msra.mxu0 %v919
        %939 = vmatpush.msra.mxu0 %v918
        %940 = vmatpush.msra.mxu0 %v917
        %941 = vmatpush.msra.mxu0 %v916
        %942 = vmatpush.msra.mxu0 %v915
        %943 = vmatpush.msra.mxu0 %v914
        %944 = vmatpush.msra.mxu0 %v913
        %945 = vmatpush.msra.mxu0 %v912
        %946 = vmatpush.msra.mxu0 %v911
        %947 = vmatmul.f32.gmra.mxu0 %v879
        %v948 = vpop.f32.mrf.mxu0
        %v949 = vadd.f32 %v929, %v948
        %950 = vmatmul.f32.gmra.mxu0 %v880
        %v951 = vpop.f32.mrf.mxu0
        %v952 = vadd.f32 %v929, %v951
        %953 = vmatmul.f32.gmra.mxu0 %v881
        %v954 = vpop.f32.mrf.mxu0
        %v955 = vadd.f32 %v929, %v954
        %956 = vmatmul.f32.gmra.mxu0 %v882
        %v957 = vpop.f32.mrf.mxu0
        %v958 = vadd.f32 %v929, %v957
        %959 = vmatmul.f32.gmra.mxu0 %v883
        %v960 = vpop.f32.mrf.mxu0
        %v961 = vadd.f32 %v929, %v960
        %962 = vmatmul.f32.gmra.mxu0 %v884
        %v963 = vpop.f32.mrf.mxu0
        %v964 = vadd.f32 %v929, %v963
        %965 = vmatmul.f32.gmra.mxu0 %v885
        %v966 = vpop.f32.mrf.mxu0
        %v967 = vadd.f32 %v929, %v966
        %968 = vmatmul.f32.gmra.mxu0 %v886
        %v969 = vpop.f32.mrf.mxu0
        %v970 = vadd.f32 %v929, %v969
        %971 = vmatmul.f32.gmra.mxu0 %v887
        %v972 = vpop.f32.mrf.mxu0
        %v973 = vadd.f32 %v929, %v972
        %974 = vmatmul.f32.gmra.mxu0 %v888
        %v975 = vpop.f32.mrf.mxu0
        %v976 = vadd.f32 %v929, %v975
        %977 = vmatmul.f32.gmra.mxu0 %v889
        %v978 = vpop.f32.mrf.mxu0
        %v979 = vadd.f32 %v929, %v978
        %980 = vmatmul.f32.gmra.mxu0 %v890
        %v981 = vpop.f32.mrf.mxu0
        %v982 = vadd.f32 %v929, %v981
        %983 = vmatmul.f32.gmra.mxu0 %v891
        %v984 = vpop.f32.mrf.mxu0
        %v985 = vadd.f32 %v929, %v984
        %986 = vmatmul.f32.gmra.mxu0 %v892
        %v987 = vpop.f32.mrf.mxu0
        %v988 = vadd.f32 %v929, %v987
        %989 = vmatmul.f32.gmra.mxu0 %v893
        %v990 = vpop.f32.mrf.mxu0
        %v991 = vadd.f32 %v929, %v990
        %992 = vmatmul.f32.gmra.mxu0 %v894
        %v993 = vpop.f32.mrf.mxu0
        %v994 = vadd.f32 %v929, %v993
        %995 = vmatmul.f32.gmra.mxu0 %v895
        %v996 = vpop.f32.mrf.mxu0
        %v997 = vadd.f32 %v929, %v996
        %998 = vmatmul.f32.gmra.mxu0 %v896
        %v999 = vpop.f32.mrf.mxu0
        %v1000 = vadd.f32 %v929, %v999
        %1001 = vmatmul.f32.gmra.mxu0 %v897
        %v1002 = vpop.f32.mrf.mxu0
        %v1003 = vadd.f32 %v929, %v1002
        %1004 = vmatmul.f32.gmra.mxu0 %v898
        %v1005 = vpop.f32.mrf.mxu0
        %v1006 = vadd.f32 %v929, %v1005
        %1007 = vmatmul.f32.gmra.mxu0 %v899
        %v1008 = vpop.f32.mrf.mxu0
        %v1009 = vadd.f32 %v929, %v1008
        %1010 = vmatmul.f32.gmra.mxu0 %v900
        %v1011 = vpop.f32.mrf.mxu0
        %v1012 = vadd.f32 %v929, %v1011
        %1013 = vmatmul.f32.gmra.mxu0 %v901
        %v1014 = vpop.f32.mrf.mxu0
        %v1015 = vadd.f32 %v929, %v1014
        %1016 = vmatmul.f32.gmra.mxu0 %v902
        %v1017 = vpop.f32.mrf.mxu0
        %v1018 = vadd.f32 %v929, %v1017
        %1019 = vmatmul.f32.gmra.mxu0 %v903
        %v1020 = vpop.f32.mrf.mxu0
        %v1021 = vadd.f32 %v929, %v1020
        %1022 = vmatmul.f32.gmra.mxu0 %v904
        %v1023 = vpop.f32.mrf.mxu0
        %v1024 = vadd.f32 %v929, %v1023
        %1025 = vmatmul.f32.gmra.mxu0 %v905
        %v1026 = vpop.f32.mrf.mxu0
        %v1027 = vadd.f32 %v929, %v1026
        %1028 = vmatmul.f32.gmra.mxu0 %v906
        %v1029 = vpop.f32.mrf.mxu0
        %v1030 = vadd.f32 %v929, %v1029
        %1031 = vmatmul.f32.gmra.mxu0 %v907
        %v1032 = vpop.f32.mrf.mxu0
        %v1033 = vadd.f32 %v929, %v1032
        %1034 = vmatmul.f32.gmra.mxu0 %v908
        %v1035 = vpop.f32.mrf.mxu0
        %v1036 = vadd.f32 %v929, %v1035
        %1037 = vmatmul.f32.gmra.mxu0 %v909
        %v1038 = vpop.f32.mrf.mxu0
        %v1039 = vadd.f32 %v929, %v1038
        %1040 = vmatmul.f32.gmra.mxu0 %v910
        %v1041 = vpop.f32.mrf.mxu0
        %v1042 = vadd.f32 %v929, %v1041
        %1043 = vdwg.mxu0
        %v1044 = vmax.f32 %v949, 0.0
        %v1045 = vmax.f32 %v952, 0.0
        %v1046 = vmax.f32 %v955, 0.0
        %v1047 = vmax.f32 %v958, 0.0
        %v1048 = vmax.f32 %v961, 0.0
        %v1049 = vmax.f32 %v964, 0.0
        %v1050 = vmax.f32 %v967, 0.0
        %v1051 = vmax.f32 %v970, 0.0
        %v1052 = vmax.f32 %v973, 0.0
        %v1053 = vmax.f32 %v976, 0.0
        %v1054 = vmax.f32 %v979, 0.0
        %v1055 = vmax.f32 %v982, 0.0
        %v1056 = vmax.f32 %v985, 0.0
        %v1057 = vmax.f32 %v988, 0.0
        %v1058 = vmax.f32 %v991, 0.0
        %v1059 = vmax.f32 %v994, 0.0
        %v1060 = vmax.f32 %v997, 0.0
        %v1061 = vmax.f32 %v1000, 0.0
        %v1062 = vmax.f32 %v1003, 0.0
        %v1063 = vmax.f32 %v1006, 0.0
        %v1064 = vmax.f32 %v1009, 0.0
        %v1065 = vmax.f32 %v1012, 0.0
        %v1066 = vmax.f32 %v1015, 0.0
        %v1067 = vmax.f32 %v1018, 0.0
        %v1068 = vmax.f32 %v1021, 0.0
        %v1069 = vmax.f32 %v1024, 0.0
        %v1070 = vmax.f32 %v1027, 0.0
        %v1071 = vmax.f32 %v1030, 0.0
        %v1072 = vmax.f32 %v1033, 0.0
        %v1073 = vmax.f32 %v1036, 0.0
        %v1074 = vmax.f32 %v1039, 0.0
        %v1075 = vmax.f32 %v1042, 0.0
        %v1076 = vld [vmem:[#allocation10] sm:$0xff]
        %v1077 = vld [vmem:[#allocation10 + $0x8] sm:$0xff]
        %v1078 = vld [vmem:[#allocation10 + $0x10] sm:$0xff]
        %v1079 = vld [vmem:[#allocation10 + $0x18] sm:$0xff]
        %v1080 = vld [vmem:[#allocation10 + $0x20] sm:$0xff]
        %v1081 = vld [vmem:[#allocation10 + $0x28] sm:$0xff]
        %v1082 = vld [vmem:[#allocation10 + $0x30] sm:$0xff]
        %v1083 = vld [vmem:[#allocation10 + $0x38] sm:$0xff]
        %v1084 = vld [vmem:[#allocation10 + $0x40] sm:$0xff]
        %v1085 = vld [vmem:[#allocation10 + $0x48] sm:$0xff]
        %v1086 = vld [vmem:[#allocation10 + $0x50] sm:$0xff]
        %v1087 = vld [vmem:[#allocation10 + $0x58] sm:$0xff]
        %v1088 = vld [vmem:[#allocation10 + $0x60] sm:$0xff]
        %v1089 = vld [vmem:[#allocation10 + $0x68] sm:$0xff]
        %v1090 = vld [vmem:[#allocation10 + $0x70] sm:$0xff]
        %v1091 = vld [vmem:[#allocation10 + $0x78] sm:$0xff]
        %v1092 = vld [vmem:[#allocation11] sm:$0x1]
        %v1094 = vperm.slane %v1092, 0
        %1096 = vmatpush.msra.mxu0 %v1091
        %1097 = vmatpush.msra.mxu0 %v1090
        %1098 = vmatpush.msra.mxu0 %v1089
        %1099 = vmatpush.msra.mxu0 %v1088
        %1100 = vmatpush.msra.mxu0 %v1087
        %1101 = vmatpush.msra.mxu0 %v1086
        %1102 = vmatpush.msra.mxu0 %v1085
        %1103 = vmatpush.msra.mxu0 %v1084
        %1104 = vmatpush.msra.mxu0 %v1083
        %1105 = vmatpush.msra.mxu0 %v1082
        %1106 = vmatpush.msra.mxu0 %v1081
        %1107 = vmatpush.msra.mxu0 %v1080
        %1108 = vmatpush.msra.mxu0 %v1079
        %1109 = vmatpush.msra.mxu0 %v1078
        %1110 = vmatpush.msra.mxu0 %v1077
        %1111 = vmatpush.msra.mxu0 %v1076
        %1112 = vmatmul.f32.gmra.mxu0 %v1044
        %v1113 = vpop.f32.mrf.mxu0
        %v1114 = vadd.f32 %v1094, %v1113
        %1115 = vmatmul.f32.gmra.mxu0 %v1045
        %v1116 = vpop.f32.mrf.mxu0
        %v1117 = vadd.f32 %v1094, %v1116
        %1118 = vmatmul.f32.gmra.mxu0 %v1046
        %v1119 = vpop.f32.mrf.mxu0
        %v1120 = vadd.f32 %v1094, %v1119
        %1121 = vmatmul.f32.gmra.mxu0 %v1047
        %v1122 = vpop.f32.mrf.mxu0
        %v1123 = vadd.f32 %v1094, %v1122
        %1124 = vmatmul.f32.gmra.mxu0 %v1048
        %v1125 = vpop.f32.mrf.mxu0
        %v1126 = vadd.f32 %v1094, %v1125
        %1127 = vmatmul.f32.gmra.mxu0 %v1049
        %v1128 = vpop.f32.mrf.mxu0
        %v1129 = vadd.f32 %v1094, %v1128
        %1130 = vmatmul.f32.gmra.mxu0 %v1050
        %v1131 = vpop.f32.mrf.mxu0
        %v1132 = vadd.f32 %v1094, %v1131
        %1133 = vmatmul.f32.gmra.mxu0 %v1051
        %v1134 = vpop.f32.mrf.mxu0
        %v1135 = vadd.f32 %v1094, %v1134
        %1136 = vmatmul.f32.gmra.mxu0 %v1052
        %v1137 = vpop.f32.mrf.mxu0
        %v1138 = vadd.f32 %v1094, %v1137
        %1139 = vmatmul.f32.gmra.mxu0 %v1053
        %v1140 = vpop.f32.mrf.mxu0
        %v1141 = vadd.f32 %v1094, %v1140
        %1142 = vmatmul.f32.gmra.mxu0 %v1054
        %v1143 = vpop.f32.mrf.mxu0
        %v1144 = vadd.f32 %v1094, %v1143
        %1145 = vmatmul.f32.gmra.mxu0 %v1055
        %v1146 = vpop.f32.mrf.mxu0
        %v1147 = vadd.f32 %v1094, %v1146
        %1148 = vmatmul.f32.gmra.mxu0 %v1056
        %v1149 = vpop.f32.mrf.mxu0
        %v1150 = vadd.f32 %v1094, %v1149
        %1151 = vmatmul.f32.gmra.mxu0 %v1057
        %v1152 = vpop.f32.mrf.mxu0
        %v1153 = vadd.f32 %v1094, %v1152
        %1154 = vmatmul.f32.gmra.mxu0 %v1058
        %v1155 = vpop.f32.mrf.mxu0
        %v1156 = vadd.f32 %v1094, %v1155
        %1157 = vmatmul.f32.gmra.mxu0 %v1059
        %v1158 = vpop.f32.mrf.mxu0
        %v1159 = vadd.f32 %v1094, %v1158
        %1160 = vmatmul.f32.gmra.mxu0 %v1060
        %v1161 = vpop.f32.mrf.mxu0
        %v1162 = vadd.f32 %v1094, %v1161
        %1163 = vmatmul.f32.gmra.mxu0 %v1061
        %v1164 = vpop.f32.mrf.mxu0
        %v1165 = vadd.f32 %v1094, %v1164
        %1166 = vmatmul.f32.gmra.mxu0 %v1062
        %v1167 = vpop.f32.mrf.mxu0
        %v1168 = vadd.f32 %v1094, %v1167
        %1169 = vmatmul.f32.gmra.mxu0 %v1063
        %v1170 = vpop.f32.mrf.mxu0
        %v1171 = vadd.f32 %v1094, %v1170
        %1172 = vmatmul.f32.gmra.mxu0 %v1064
        %v1173 = vpop.f32.mrf.mxu0
        %v1174 = vadd.f32 %v1094, %v1173
        %1175 = vmatmul.f32.gmra.mxu0 %v1065
        %v1176 = vpop.f32.mrf.mxu0
        %v1177 = vadd.f32 %v1094, %v1176
        %1178 = vmatmul.f32.gmra.mxu0 %v1066
        %v1179 = vpop.f32.mrf.mxu0
        %v1180 = vadd.f32 %v1094, %v1179
        %1181 = vmatmul.f32.gmra.mxu0 %v1067
        %v1182 = vpop.f32.mrf.mxu0
        %v1183 = vadd.f32 %v1094, %v1182
        %1184 = vmatmul.f32.gmra.mxu0 %v1068
        %v1185 = vpop.f32.mrf.mxu0
        %v1186 = vadd.f32 %v1094, %v1185
        %1187 = vmatmul.f32.gmra.mxu0 %v1069
        %v1188 = vpop.f32.mrf.mxu0
        %v1189 = vadd.f32 %v1094, %v1188
        %1190 = vmatmul.f32.gmra.mxu0 %v1070
        %v1191 = vpop.f32.mrf.mxu0
        %v1192 = vadd.f32 %v1094, %v1191
        %1193 = vmatmul.f32.gmra.mxu0 %v1071
        %v1194 = vpop.f32.mrf.mxu0
        %v1195 = vadd.f32 %v1094, %v1194
        %1196 = vmatmul.f32.gmra.mxu0 %v1072
        %v1197 = vpop.f32.mrf.mxu0
        %v1198 = vadd.f32 %v1094, %v1197
        %1199 = vmatmul.f32.gmra.mxu0 %v1073
        %v1200 = vpop.f32.mrf.mxu0
        %v1201 = vadd.f32 %v1094, %v1200
        %1202 = vmatmul.f32.gmra.mxu0 %v1074
        %v1203 = vpop.f32.mrf.mxu0
        %v1204 = vadd.f32 %v1094, %v1203
        %1205 = vmatmul.f32.gmra.mxu0 %v1075
        %v1206 = vpop.f32.mrf.mxu0
        %v1207 = vadd.f32 %v1094, %v1206
        %1208 = vdwg.mxu0
        %v1209 = vmax.f32 %v1114, 0.0
        %v1210 = vmax.f32 %v1117, 0.0
        %v1211 = vmax.f32 %v1120, 0.0
        %v1212 = vmax.f32 %v1123, 0.0
        %v1213 = vmax.f32 %v1126, 0.0
        %v1214 = vmax.f32 %v1129, 0.0
        %v1215 = vmax.f32 %v1132, 0.0
        %v1216 = vmax.f32 %v1135, 0.0
        %v1217 = vmax.f32 %v1138, 0.0
        %v1218 = vmax.f32 %v1141, 0.0
        %v1219 = vmax.f32 %v1144, 0.0
        %v1220 = vmax.f32 %v1147, 0.0
        %v1221 = vmax.f32 %v1150, 0.0
        %v1222 = vmax.f32 %v1153, 0.0
        %v1223 = vmax.f32 %v1156, 0.0
        %v1224 = vmax.f32 %v1159, 0.0
        %v1225 = vmax.f32 %v1162, 0.0
        %v1226 = vmax.f32 %v1165, 0.0
        %v1227 = vmax.f32 %v1168, 0.0
        %v1228 = vmax.f32 %v1171, 0.0
        %v1229 = vmax.f32 %v1174, 0.0
        %v1230 = vmax.f32 %v1177, 0.0
        %v1231 = vmax.f32 %v1180, 0.0
        %v1232 = vmax.f32 %v1183, 0.0
        %v1233 = vmax.f32 %v1186, 0.0
        %v1234 = vmax.f32 %v1189, 0.0
        %v1235 = vmax.f32 %v1192, 0.0
        %v1236 = vmax.f32 %v1195, 0.0
        %v1237 = vmax.f32 %v1198, 0.0
        %v1238 = vmax.f32 %v1201, 0.0
        %v1239 = vmax.f32 %v1204, 0.0
        %v1240 = vmax.f32 %v1207, 0.0
        %v1241 = vld [vmem:[#allocation13] sm:$0xff]
        %v1242 = vld [vmem:[#allocation13 + $0x8] sm:$0xff]
        %v1243 = vld [vmem:[#allocation13 + $0x10] sm:$0xff]
        %v1244 = vld [vmem:[#allocation13 + $0x18] sm:$0xff]
        %v1245 = vld [vmem:[#allocation13 + $0x20] sm:$0xff]
        %v1246 = vld [vmem:[#allocation13 + $0x28] sm:$0xff]
        %v1247 = vld [vmem:[#allocation13 + $0x30] sm:$0xff]
        %v1248 = vld [vmem:[#allocation13 + $0x38] sm:$0xff]
        %v1249 = vld [vmem:[#allocation13 + $0x40] sm:$0xff]
        %v1250 = vld [vmem:[#allocation13 + $0x48] sm:$0xff]
        %v1251 = vld [vmem:[#allocation13 + $0x50] sm:$0xff]
        %v1252 = vld [vmem:[#allocation13 + $0x58] sm:$0xff]
        %v1253 = vld [vmem:[#allocation13 + $0x60] sm:$0xff]
        %v1254 = vld [vmem:[#allocation13 + $0x68] sm:$0xff]
        %v1255 = vld [vmem:[#allocation13 + $0x70] sm:$0xff]
        %v1256 = vld [vmem:[#allocation13 + $0x78] sm:$0xff]
        %v1257 = vld [vmem:[#allocation14] sm:$0x1]
        %v1259 = vperm.slane %v1257, 0
        %1261 = vmatpush.msra.mxu0 %v1256
        %1262 = vmatpush.msra.mxu0 %v1255
        %1263 = vmatpush.msra.mxu0 %v1254
        %1264 = vmatpush.msra.mxu0 %v1253
        %1265 = vmatpush.msra.mxu0 %v1252
        %1266 = vmatpush.msra.mxu0 %v1251
        %1267 = vmatpush.msra.mxu0 %v1250
        %1268 = vmatpush.msra.mxu0 %v1249
        %1269 = vmatpush.msra.mxu0 %v1248
        %1270 = vmatpush.msra.mxu0 %v1247
        %1271 = vmatpush.msra.mxu0 %v1246
        %1272 = vmatpush.msra.mxu0 %v1245
        %1273 = vmatpush.msra.mxu0 %v1244
        %1274 = vmatpush.msra.mxu0 %v1243
        %1275 = vmatpush.msra.mxu0 %v1242
        %1276 = vmatpush.msra.mxu0 %v1241
        %1277 = vmatmul.f32.gmra.mxu0 %v1209
        %v1278 = vpop.f32.mrf.mxu0
        %v1279 = vadd.f32 %v1259, %v1278
        %1280 = vmatmul.f32.gmra.mxu0 %v1210
        %v1281 = vpop.f32.mrf.mxu0
        %v1282 = vadd.f32 %v1259, %v1281
        %1283 = vmatmul.f32.gmra.mxu0 %v1211
        %v1284 = vpop.f32.mrf.mxu0
        %v1285 = vadd.f32 %v1259, %v1284
        %1286 = vmatmul.f32.gmra.mxu0 %v1212
        %v1287 = vpop.f32.mrf.mxu0
        %v1288 = vadd.f32 %v1259, %v1287
        %1289 = vmatmul.f32.gmra.mxu0 %v1213
        %v1290 = vpop.f32.mrf.mxu0
        %v1291 = vadd.f32 %v1259, %v1290
        %1292 = vmatmul.f32.gmra.mxu0 %v1214
        %v1293 = vpop.f32.mrf.mxu0
        %v1294 = vadd.f32 %v1259, %v1293
        %1295 = vmatmul.f32.gmra.mxu0 %v1215
        %v1296 = vpop.f32.mrf.mxu0
        %v1297 = vadd.f32 %v1259, %v1296
        %1298 = vmatmul.f32.gmra.mxu0 %v1216
        %v1299 = vpop.f32.mrf.mxu0
        %v1300 = vadd.f32 %v1259, %v1299
        %1301 = vmatmul.f32.gmra.mxu0 %v1217
        %v1302 = vpop.f32.mrf.mxu0
        %v1303 = vadd.f32 %v1259, %v1302
        %1304 = vmatmul.f32.gmra.mxu0 %v1218
        %v1305 = vpop.f32.mrf.mxu0
        %v1306 = vadd.f32 %v1259, %v1305
        %1307 = vmatmul.f32.gmra.mxu0 %v1219
        %v1308 = vpop.f32.mrf.mxu0
        %v1309 = vadd.f32 %v1259, %v1308
        %1310 = vmatmul.f32.gmra.mxu0 %v1220
        %v1311 = vpop.f32.mrf.mxu0
        %v1312 = vadd.f32 %v1259, %v1311
        %1313 = vmatmul.f32.gmra.mxu0 %v1221
        %v1314 = vpop.f32.mrf.mxu0
        %v1315 = vadd.f32 %v1259, %v1314
        %1316 = vmatmul.f32.gmra.mxu0 %v1222
        %v1317 = vpop.f32.mrf.mxu0
        %v1318 = vadd.f32 %v1259, %v1317
        %1319 = vmatmul.f32.gmra.mxu0 %v1223
        %v1320 = vpop.f32.mrf.mxu0
        %v1321 = vadd.f32 %v1259, %v1320
        %1322 = vmatmul.f32.gmra.mxu0 %v1224
        %v1323 = vpop.f32.mrf.mxu0
        %v1324 = vadd.f32 %v1259, %v1323
        %1325 = vmatmul.f32.gmra.mxu0 %v1225
        %v1326 = vpop.f32.mrf.mxu0
        %v1327 = vadd.f32 %v1259, %v1326
        %1328 = vmatmul.f32.gmra.mxu0 %v1226
        %v1329 = vpop.f32.mrf.mxu0
        %v1330 = vadd.f32 %v1259, %v1329
        %1331 = vmatmul.f32.gmra.mxu0 %v1227
        %v1332 = vpop.f32.mrf.mxu0
        %v1333 = vadd.f32 %v1259, %v1332
        %1334 = vmatmul.f32.gmra.mxu0 %v1228
        %v1335 = vpop.f32.mrf.mxu0
        %v1336 = vadd.f32 %v1259, %v1335
        %1337 = vmatmul.f32.gmra.mxu0 %v1229
        %v1338 = vpop.f32.mrf.mxu0
        %v1339 = vadd.f32 %v1259, %v1338
        %1340 = vmatmul.f32.gmra.mxu0 %v1230
        %v1341 = vpop.f32.mrf.mxu0
        %v1342 = vadd.f32 %v1259, %v1341
        %1343 = vmatmul.f32.gmra.mxu0 %v1231
        %v1344 = vpop.f32.mrf.mxu0
        %v1345 = vadd.f32 %v1259, %v1344
        %1346 = vmatmul.f32.gmra.mxu0 %v1232
        %v1347 = vpop.f32.mrf.mxu0
        %v1348 = vadd.f32 %v1259, %v1347
        %1349 = vmatmul.f32.gmra.mxu0 %v1233
        %v1350 = vpop.f32.mrf.mxu0
        %v1351 = vadd.f32 %v1259, %v1350
        %1352 = vmatmul.f32.gmra.mxu0 %v1234
        %v1353 = vpop.f32.mrf.mxu0
        %v1354 = vadd.f32 %v1259, %v1353
        %1355 = vmatmul.f32.gmra.mxu0 %v1235
        %v1356 = vpop.f32.mrf.mxu0
        %v1357 = vadd.f32 %v1259, %v1356
        %1358 = vmatmul.f32.gmra.mxu0 %v1236
        %v1359 = vpop.f32.mrf.mxu0
        %v1360 = vadd.f32 %v1259, %v1359
        %1361 = vmatmul.f32.gmra.mxu0 %v1237
        %v1362 = vpop.f32.mrf.mxu0
        %v1363 = vadd.f32 %v1259, %v1362
        %1364 = vmatmul.f32.gmra.mxu0 %v1238
        %v1365 = vpop.f32.mrf.mxu0
        %v1366 = vadd.f32 %v1259, %v1365
        %1367 = vmatmul.f32.gmra.mxu0 %v1239
        %v1368 = vpop.f32.mrf.mxu0
        %v1369 = vadd.f32 %v1259, %v1368
        %1370 = vmatmul.f32.gmra.mxu0 %v1240
        %v1371 = vpop.f32.mrf.mxu0
        %v1372 = vadd.f32 %v1259, %v1371
        %1373 = vdwg.mxu0
        %v1374 = vld [vmem:[%s741] sm:$0xff]
        %v1375 = vld [vmem:[%s741 + $0x8] sm:$0xff]
        %v1376 = vld [vmem:[%s741 + $0x10] sm:$0xff]
        %v1377 = vld [vmem:[%s741 + $0x18] sm:$0xff]
        %v1378 = vld [vmem:[%s741 + $0x20] sm:$0xff]
        %v1379 = vld [vmem:[%s741 + $0x28] sm:$0xff]
        %v1380 = vld [vmem:[%s741 + $0x30] sm:$0xff]
        %v1381 = vld [vmem:[%s741 + $0x38] sm:$0xff]
        %v1382 = vld [vmem:[%s741 + $0x40] sm:$0xff]
        %v1383 = vld [vmem:[%s741 + $0x48] sm:$0xff]
        %v1384 = vld [vmem:[%s741 + $0x50] sm:$0xff]
        %v1385 = vld [vmem:[%s741 + $0x58] sm:$0xff]
        %v1386 = vld [vmem:[%s741 + $0x60] sm:$0xff]
        %v1387 = vld [vmem:[%s741 + $0x68] sm:$0xff]
        %v1388 = vld [vmem:[%s741 + $0x70] sm:$0xff]
        %v1389 = vld [vmem:[%s741 + $0x78] sm:$0xff]
        %v1390 = vld [vmem:[%s741 + $0x80] sm:$0xff]
        %v1391 = vld [vmem:[%s741 + $0x88] sm:$0xff]
        %v1392 = vld [vmem:[%s741 + $0x90] sm:$0xff]
        %v1393 = vld [vmem:[%s741 + $0x98] sm:$0xff]
        %v1394 = vld [vmem:[%s741 + $0xa0] sm:$0xff]
        %v1395 = vld [vmem:[%s741 + $0xa8] sm:$0xff]
        %v1396 = vld [vmem:[%s741 + $0xb0] sm:$0xff]
        %v1397 = vld [vmem:[%s741 + $0xb8] sm:$0xff]
        %v1398 = vld [vmem:[%s741 + $0xc0] sm:$0xff]
        %v1399 = vld [vmem:[%s741 + $0xc8] sm:$0xff]
        %v1400 = vld [vmem:[%s741 + $0xd0] sm:$0xff]
        %v1401 = vld [vmem:[%s741 + $0xd8] sm:$0xff]
        %v1402 = vld [vmem:[%s741 + $0xe0] sm:$0xff]
        %v1403 = vld [vmem:[%s741 + $0xe8] sm:$0xff]
        %v1404 = vld [vmem:[%s741 + $0xf0] sm:$0xff]
        %v1405 = vld [vmem:[%s741 + $0xf8] sm:$0xff]
        %v1406 = vld [vmem:[%s741 + $0x100] sm:$0xff]
        %v1407 = vld [vmem:[%s741 + $0x108] sm:$0xff]
        %v1408 = vld [vmem:[%s741 + $0x110] sm:$0xff]
        %v1409 = vld [vmem:[%s741 + $0x118] sm:$0xff]
        %v1410 = vld [vmem:[%s741 + $0x120] sm:$0xff]
        %v1411 = vld [vmem:[%s741 + $0x128] sm:$0xff]
        %v1412 = vld [vmem:[%s741 + $0x130] sm:$0xff]
        %v1413 = vld [vmem:[%s741 + $0x138] sm:$0xff]
        %v1414 = vld [vmem:[%s741 + $0x140] sm:$0xff]
        %v1415 = vld [vmem:[%s741 + $0x148] sm:$0xff]
        %v1416 = vld [vmem:[%s741 + $0x150] sm:$0xff]
        %v1417 = vld [vmem:[%s741 + $0x158] sm:$0xff]
        %v1418 = vld [vmem:[%s741 + $0x160] sm:$0xff]
        %v1419 = vld [vmem:[%s741 + $0x168] sm:$0xff]
        %v1420 = vld [vmem:[%s741 + $0x170] sm:$0xff]
        %v1421 = vld [vmem:[%s741 + $0x178] sm:$0xff]
        %v1422 = vld [vmem:[%s741 + $0x180] sm:$0xff]
        %v1423 = vld [vmem:[%s741 + $0x188] sm:$0xff]
        %v1424 = vld [vmem:[%s741 + $0x190] sm:$0xff]
        %v1425 = vld [vmem:[%s741 + $0x198] sm:$0xff]
        %v1426 = vld [vmem:[%s741 + $0x1a0] sm:$0xff]
        %v1427 = vld [vmem:[%s741 + $0x1a8] sm:$0xff]
        %v1428 = vld [vmem:[%s741 + $0x1b0] sm:$0xff]
        %v1429 = vld [vmem:[%s741 + $0x1b8] sm:$0xff]
        %v1430 = vld [vmem:[%s741 + $0x1c0] sm:$0xff]
        %v1431 = vld [vmem:[%s741 + $0x1c8] sm:$0xff]
        %v1432 = vld [vmem:[%s741 + $0x1d0] sm:$0xff]
        %v1433 = vld [vmem:[%s741 + $0x1d8] sm:$0xff]
        %v1434 = vld [vmem:[%s741 + $0x1e0] sm:$0xff]
        %v1435 = vld [vmem:[%s741 + $0x1e8] sm:$0xff]
        %v1436 = vld [vmem:[%s741 + $0x1f0] sm:$0xff]
        %v1437 = vld [vmem:[%s741 + $0x1f8] sm:$0xff]
        %v1438 = vld [vmem:[%s741 + $0x200] sm:$0xff]
        %v1439 = vld [vmem:[%s741 + $0x208] sm:$0xff]
        %v1440 = vld [vmem:[%s741 + $0x210] sm:$0xff]
        %v1441 = vld [vmem:[%s741 + $0x218] sm:$0xff]
        %1442 = vmatpush.msra.mxu0 %v1324
        %1443 = vmatpush.msra.mxu0 %v1321
        %1444 = vmatpush.msra.mxu0 %v1318
        %1445 = vmatpush.msra.mxu0 %v1315
        %1446 = vmatpush.msra.mxu0 %v1312
        %1447 = vmatpush.msra.mxu0 %v1309
        %1448 = vmatpush.msra.mxu0 %v1306
        %1449 = vmatpush.msra.mxu0 %v1303
        %1450 = vmatpush.msra.mxu0 %v1300
        %1451 = vmatpush.msra.mxu0 %v1297
        %1452 = vmatpush.msra.mxu0 %v1294
        %1453 = vmatpush.msra.mxu0 %v1291
        %1454 = vmatpush.msra.mxu0 %v1288
        %1455 = vmatpush.msra.mxu0 %v1285
        %1456 = vmatpush.msra.mxu0 %v1282
        %1457 = vmatpush.msra.mxu0 %v1279
        %1458 = vmatmul.f32.gmra.mxu0 %v1374
        %v1459 = vpop.f32.mrf.mxu0
        %v1460 = vadd.f32 0.0, %v1459
        %1461 = vmatmul.f32.gmra.mxu0 %v1376
        %v1462 = vpop.f32.mrf.mxu0
        %v1463 = vadd.f32 0.0, %v1462
        %1464 = vmatmul.f32.gmra.mxu0 %v1378
        %v1465 = vpop.f32.mrf.mxu0
        %v1466 = vadd.f32 0.0, %v1465
        %1467 = vmatmul.f32.gmra.mxu0 %v1380
        %v1468 = vpop.f32.mrf.mxu0
        %v1469 = vadd.f32 0.0, %v1468
        %1470 = vmatmul.f32.gmra.mxu0 %v1382
        %v1471 = vpop.f32.mrf.mxu0
        %v1472 = vadd.f32 0.0, %v1471
        %1473 = vmatmul.f32.gmra.mxu0 %v1384
        %v1474 = vpop.f32.mrf.mxu0
        %v1475 = vadd.f32 0.0, %v1474
        %1476 = vmatmul.f32.gmra.mxu0 %v1386
        %v1477 = vpop.f32.mrf.mxu0
        %v1478 = vadd.f32 0.0, %v1477
        %1479 = vmatmul.f32.gmra.mxu0 %v1388
        %v1480 = vpop.f32.mrf.mxu0
        %v1481 = vadd.f32 0.0, %v1480
        %1482 = vmatmul.f32.gmra.mxu0 %v1390
        %v1483 = vpop.f32.mrf.mxu0
        %v1484 = vadd.f32 0.0, %v1483
        %1485 = vmatmul.f32.gmra.mxu0 %v1392
        %v1486 = vpop.f32.mrf.mxu0
        %v1487 = vadd.f32 0.0, %v1486
        %1488 = vmatmul.f32.gmra.mxu0 %v1394
        %v1489 = vpop.f32.mrf.mxu0
        %v1490 = vadd.f32 0.0, %v1489
        %1491 = vmatmul.f32.gmra.mxu0 %v1396
        %v1492 = vpop.f32.mrf.mxu0
        %v1493 = vadd.f32 0.0, %v1492
        %1494 = vmatmul.f32.gmra.mxu0 %v1398
        %v1495 = vpop.f32.mrf.mxu0
        %v1496 = vadd.f32 0.0, %v1495
        %1497 = vmatmul.f32.gmra.mxu0 %v1400
        %v1498 = vpop.f32.mrf.mxu0
        %v1499 = vadd.f32 0.0, %v1498
        %1500 = vmatmul.f32.gmra.mxu0 %v1402
        %v1501 = vpop.f32.mrf.mxu0
        %v1502 = vadd.f32 0.0, %v1501
        %1503 = vmatmul.f32.gmra.mxu0 %v1404
        %v1504 = vpop.f32.mrf.mxu0
        %v1505 = vadd.f32 0.0, %v1504
        %1506 = vmatmul.f32.gmra.mxu0 %v1406
        %v1507 = vpop.f32.mrf.mxu0
        %v1508 = vadd.f32 0.0, %v1507
        %1509 = vmatmul.f32.gmra.mxu0 %v1408
        %v1510 = vpop.f32.mrf.mxu0
        %v1511 = vadd.f32 0.0, %v1510
        %1512 = vmatmul.f32.gmra.mxu0 %v1410
        %v1513 = vpop.f32.mrf.mxu0
        %v1514 = vadd.f32 0.0, %v1513
        %1515 = vmatmul.f32.gmra.mxu0 %v1412
        %v1516 = vpop.f32.mrf.mxu0
        %v1517 = vadd.f32 0.0, %v1516
        %1518 = vmatmul.f32.gmra.mxu0 %v1414
        %v1519 = vpop.f32.mrf.mxu0
        %v1520 = vadd.f32 0.0, %v1519
        %1521 = vmatmul.f32.gmra.mxu0 %v1416
        %v1522 = vpop.f32.mrf.mxu0
        %v1523 = vadd.f32 0.0, %v1522
        %1524 = vmatmul.f32.gmra.mxu0 %v1418
        %v1525 = vpop.f32.mrf.mxu0
        %v1526 = vadd.f32 0.0, %v1525
        %1527 = vmatmul.f32.gmra.mxu0 %v1420
        %v1528 = vpop.f32.mrf.mxu0
        %v1529 = vadd.f32 0.0, %v1528
        %1530 = vmatmul.f32.gmra.mxu0 %v1422
        %v1531 = vpop.f32.mrf.mxu0
        %v1532 = vadd.f32 0.0, %v1531
        %1533 = vmatmul.f32.gmra.mxu0 %v1424
        %v1534 = vpop.f32.mrf.mxu0
        %v1535 = vadd.f32 0.0, %v1534
        %1536 = vmatmul.f32.gmra.mxu0 %v1426
        %v1537 = vpop.f32.mrf.mxu0
        %v1538 = vadd.f32 0.0, %v1537
        %1539 = vmatmul.f32.gmra.mxu0 %v1428
        %v1540 = vpop.f32.mrf.mxu0
        %v1541 = vadd.f32 0.0, %v1540
        %1542 = vmatmul.f32.gmra.mxu0 %v1430
        %v1543 = vpop.f32.mrf.mxu0
        %v1544 = vadd.f32 0.0, %v1543
        %1545 = vmatmul.f32.gmra.mxu0 %v1432
        %v1546 = vpop.f32.mrf.mxu0
        %v1547 = vadd.f32 0.0, %v1546
        %1548 = vmatmul.f32.gmra.mxu0 %v1434
        %v1549 = vpop.f32.mrf.mxu0
        %v1550 = vadd.f32 0.0, %v1549
        %1551 = vmatmul.f32.gmra.mxu0 %v1436
        %v1552 = vpop.f32.mrf.mxu0
        %v1553 = vadd.f32 0.0, %v1552
        %1554 = vmatmul.f32.gmra.mxu0 %v1438
        %v1555 = vpop.f32.mrf.mxu0
        %v1556 = vadd.f32 0.0, %v1555
        %1557 = vmatmul.f32.gmra.mxu0 %v1440
        %v1558 = vpop.f32.mrf.mxu0
        %v1559 = vadd.f32 0.0, %v1558
        %1560 = vdwg.mxu0
        %1561 = vmatpush.msra.mxu0 %v1372
        %1562 = vmatpush.msra.mxu0 %v1369
        %1563 = vmatpush.msra.mxu0 %v1366
        %1564 = vmatpush.msra.mxu0 %v1363
        %1565 = vmatpush.msra.mxu0 %v1360
        %1566 = vmatpush.msra.mxu0 %v1357
        %1567 = vmatpush.msra.mxu0 %v1354
        %1568 = vmatpush.msra.mxu0 %v1351
        %1569 = vmatpush.msra.mxu0 %v1348
        %1570 = vmatpush.msra.mxu0 %v1345
        %1571 = vmatpush.msra.mxu0 %v1342
        %1572 = vmatpush.msra.mxu0 %v1339
        %1573 = vmatpush.msra.mxu0 %v1336
        %1574 = vmatpush.msra.mxu0 %v1333
        %1575 = vmatpush.msra.mxu0 %v1330
        %1576 = vmatpush.msra.mxu0 %v1327
        %1577 = vmatmul.f32.gmra.mxu0 %v1375
        %v1578 = vpop.f32.mrf.mxu0
        %v1579 = vadd.f32 %v1460, %v1578
        %1580 = vmatmul.f32.gmra.mxu0 %v1377
        %v1581 = vpop.f32.mrf.mxu0
        %v1582 = vadd.f32 %v1463, %v1581
        %1583 = vmatmul.f32.gmra.mxu0 %v1379
        %v1584 = vpop.f32.mrf.mxu0
        %v1585 = vadd.f32 %v1466, %v1584
        %1586 = vmatmul.f32.gmra.mxu0 %v1381
        %v1587 = vpop.f32.mrf.mxu0
        %v1588 = vadd.f32 %v1469, %v1587
        %1589 = vmatmul.f32.gmra.mxu0 %v1383
        %v1590 = vpop.f32.mrf.mxu0
        %v1591 = vadd.f32 %v1472, %v1590
        %1592 = vmatmul.f32.gmra.mxu0 %v1385
        %v1593 = vpop.f32.mrf.mxu0
        %v1594 = vadd.f32 %v1475, %v1593
        %1595 = vmatmul.f32.gmra.mxu0 %v1387
        %v1596 = vpop.f32.mrf.mxu0
        %v1597 = vadd.f32 %v1478, %v1596
        %1598 = vmatmul.f32.gmra.mxu0 %v1389
        %v1599 = vpop.f32.mrf.mxu0
        %v1600 = vadd.f32 %v1481, %v1599
        %1601 = vmatmul.f32.gmra.mxu0 %v1391
        %v1602 = vpop.f32.mrf.mxu0
        %v1603 = vadd.f32 %v1484, %v1602
        %1604 = vmatmul.f32.gmra.mxu0 %v1393
        %v1605 = vpop.f32.mrf.mxu0
        %v1606 = vadd.f32 %v1487, %v1605
        %1607 = vmatmul.f32.gmra.mxu0 %v1395
        %v1608 = vpop.f32.mrf.mxu0
        %v1609 = vadd.f32 %v1490, %v1608
        %1610 = vmatmul.f32.gmra.mxu0 %v1397
        %v1611 = vpop.f32.mrf.mxu0
        %v1612 = vadd.f32 %v1493, %v1611
        %1613 = vmatmul.f32.gmra.mxu0 %v1399
        %v1614 = vpop.f32.mrf.mxu0
        %v1615 = vadd.f32 %v1496, %v1614
        %1616 = vmatmul.f32.gmra.mxu0 %v1401
        %v1617 = vpop.f32.mrf.mxu0
        %v1618 = vadd.f32 %v1499, %v1617
        %1619 = vmatmul.f32.gmra.mxu0 %v1403
        %v1620 = vpop.f32.mrf.mxu0
        %v1621 = vadd.f32 %v1502, %v1620
        %1622 = vmatmul.f32.gmra.mxu0 %v1405
        %v1623 = vpop.f32.mrf.mxu0
        %v1624 = vadd.f32 %v1505, %v1623
        %1625 = vmatmul.f32.gmra.mxu0 %v1407
        %v1626 = vpop.f32.mrf.mxu0
        %v1627 = vadd.f32 %v1508, %v1626
        %1628 = vmatmul.f32.gmra.mxu0 %v1409
        %v1629 = vpop.f32.mrf.mxu0
        %v1630 = vadd.f32 %v1511, %v1629
        %1631 = vmatmul.f32.gmra.mxu0 %v1411
        %v1632 = vpop.f32.mrf.mxu0
        %v1633 = vadd.f32 %v1514, %v1632
        %1634 = vmatmul.f32.gmra.mxu0 %v1413
        %v1635 = vpop.f32.mrf.mxu0
        %v1636 = vadd.f32 %v1517, %v1635
        %1637 = vmatmul.f32.gmra.mxu0 %v1415
        %v1638 = vpop.f32.mrf.mxu0
        %v1639 = vadd.f32 %v1520, %v1638
        %1640 = vmatmul.f32.gmra.mxu0 %v1417
        %v1641 = vpop.f32.mrf.mxu0
        %v1642 = vadd.f32 %v1523, %v1641
        %1643 = vmatmul.f32.gmra.mxu0 %v1419
        %v1644 = vpop.f32.mrf.mxu0
        %v1645 = vadd.f32 %v1526, %v1644
        %1646 = vmatmul.f32.gmra.mxu0 %v1421
        %v1647 = vpop.f32.mrf.mxu0
        %v1648 = vadd.f32 %v1529, %v1647
        %1649 = vmatmul.f32.gmra.mxu0 %v1423
        %v1650 = vpop.f32.mrf.mxu0
        %v1651 = vadd.f32 %v1532, %v1650
        %1652 = vmatmul.f32.gmra.mxu0 %v1425
        %v1653 = vpop.f32.mrf.mxu0
        %v1654 = vadd.f32 %v1535, %v1653
        %1655 = vmatmul.f32.gmra.mxu0 %v1427
        %v1656 = vpop.f32.mrf.mxu0
        %v1657 = vadd.f32 %v1538, %v1656
        %1658 = vmatmul.f32.gmra.mxu0 %v1429
        %v1659 = vpop.f32.mrf.mxu0
        %v1660 = vadd.f32 %v1541, %v1659
        %1661 = vmatmul.f32.gmra.mxu0 %v1431
        %v1662 = vpop.f32.mrf.mxu0
        %v1663 = vadd.f32 %v1544, %v1662
        %1664 = vmatmul.f32.gmra.mxu0 %v1433
        %v1665 = vpop.f32.mrf.mxu0
        %v1666 = vadd.f32 %v1547, %v1665
        %1667 = vmatmul.f32.gmra.mxu0 %v1435
        %v1668 = vpop.f32.mrf.mxu0
        %v1669 = vadd.f32 %v1550, %v1668
        %1670 = vmatmul.f32.gmra.mxu0 %v1437
        %v1671 = vpop.f32.mrf.mxu0
        %v1672 = vadd.f32 %v1553, %v1671
        %1673 = vmatmul.f32.gmra.mxu0 %v1439
        %v1674 = vpop.f32.mrf.mxu0
        %v1675 = vadd.f32 %v1556, %v1674
        %1676 = vmatmul.f32.gmra.mxu0 %v1441
        %v1677 = vpop.f32.mrf.mxu0
        %v1678 = vadd.f32 %v1559, %v1677
        %1679 = vdwg.mxu0
        %v1680 = vmul.f32 %v1675, %v1675
        %v1681 = vmul.f32 %v1678, %v1678
        %1682 = vadd.xlane.f32.xlu0 %v1680
        %v1683 = vpop.xlane.xlu0 %1682
        %1684 = vadd.xlane.f32.xlu0 %v1681
        %v1685 = vpop.xlane.xlu0 %1684
        %v1686 = vrsqrt.pop %v1683
        %v1687 = vmul.f32 %v1686, %v1683
        %v1688 = vmul.f32 %v1687, %v1686
        %v1689 = vmul.f32 0.5, %v1688
        %v1690 = vsub.f32 1.5, %v1689
        %v1691 = vmul.f32 %v1686, %v1690
        %v1692 = vmul.f32 %v1683, %v1691
        %vm1693 = vcmp.eq.f32.partialorder %v1683, inf
        %v1694 = vsel %vm1693, %v1683, %v1692
        %vm1695 = vcmp.eq.f32.partialorder %v1683, 0.0
        %v1696 = vand.u32 %v1683, 2147483648
        %v1697 = vsel %vm1695, %v1696, %v1694
        %v1698 = vrsqrt.pop %v1685
        %v1699 = vmul.f32 %v1698, %v1685
        %v1700 = vmul.f32 %v1699, %v1698
        %v1701 = vmul.f32 0.5, %v1700
        %v1702 = vsub.f32 1.5, %v1701
        %v1703 = vmul.f32 %v1698, %v1702
        %v1704 = vmul.f32 %v1685, %v1703
        %vm1705 = vcmp.eq.f32.partialorder %v1685, inf
        %v1706 = vsel %vm1705, %v1685, %v1704
        %vm1707 = vcmp.eq.f32.partialorder %v1685, 0.0
        %v1708 = vand.u32 %v1685, 2147483648
        %v1709 = vsel %vm1707, %v1708, %v1706
        %v1710 = vadd.f32 %v1697, 1e-08
        %v1711 = vadd.f32 %v1709, 1e-08
        %v1712 = vrcp.pop %v1710
        %v1713 = vmul.f32 %v1710, %v1712
        %v1714 = vsub.f32 1.0, %v1713
        %v1715 = vmul.f32 %v1712, %v1714
        %v1716 = vadd.f32 %v1712, %v1715
        %vm1717 = vweird.f32 %v1710
        %vm1718 = vweird.f32 %v1712
        %vm1719 = vmor %vm1717, %vm1718
        %v1720 = vsel %vm1719, %v1712, %v1716
        %v1721 = vand.u32 2147483647, %v1710
        %vm1722 = vcmp.eq.f32.partialorder %v1721, 8.507059e+37
        %v1723 = vand.u32 %v1710, 2147483648
        %v1724 = vor.u32 1.1754944e-38, %v1723
        %v1725 = vsel %vm1722, %v1724, %v1720
        %v1726 = vrcp.pop %v1711
        %v1727 = vmul.f32 %v1711, %v1726
        %v1728 = vsub.f32 1.0, %v1727
        %v1729 = vmul.f32 %v1726, %v1728
        %v1730 = vadd.f32 %v1726, %v1729
        %vm1731 = vweird.f32 %v1711
        %vm1732 = vweird.f32 %v1726
        %vm1733 = vmor %vm1731, %vm1732
        %v1734 = vsel %vm1733, %v1726, %v1730
        %v1735 = vand.u32 2147483647, %v1711
        %vm1736 = vcmp.eq.f32.partialorder %v1735, 8.507059e+37
        %v1737 = vand.u32 %v1711, 2147483648
        %v1738 = vor.u32 1.1754944e-38, %v1737
        %v1739 = vsel %vm1736, %v1738, %v1734
        %v1740 = vmul.f32 %v1675, %v1725
        %v1741 = vmul.f32 %v1678, %v1739
        %v1742 = vld [vmem:[#allocation19] sm:$0xff]
        %v1743 = vld [vmem:[#allocation19 + $0x8] sm:$0xff]
        %v1744 = vld [vmem:[#allocation19 + $0x10] sm:$0xff]
        %v1745 = vld [vmem:[#allocation19 + $0x18] sm:$0xff]
        %v1746 = vld [vmem:[#allocation19 + $0x20] sm:$0xff]
        %v1747 = vld [vmem:[#allocation19 + $0x28] sm:$0xff]
        %v1748 = vld [vmem:[#allocation19 + $0x30] sm:$0xff]
        %v1749 = vld [vmem:[#allocation19 + $0x38] sm:$0xff]
        %v1750 = vld [vmem:[#allocation19 + $0x40] sm:$0xff]
        %v1751 = vld [vmem:[#allocation19 + $0x48] sm:$0xff]
        %v1752 = vld [vmem:[#allocation19 + $0x50] sm:$0xff]
        %v1753 = vld [vmem:[#allocation19 + $0x58] sm:$0xff]
        %v1754 = vld [vmem:[#allocation19 + $0x60] sm:$0xff]
        %v1755 = vld [vmem:[#allocation19 + $0x68] sm:$0xff]
        %v1756 = vld [vmem:[#allocation19 + $0x70] sm:$0xff]
        %v1757 = vld [vmem:[#allocation19 + $0x78] sm:$0xff]
        %1758 = vmatpush.msra.mxu0 %v1757
        %1759 = vmatpush.msra.mxu0 %v1756
        %1760 = vmatpush.msra.mxu0 %v1755
        %1761 = vmatpush.msra.mxu0 %v1754
        %1762 = vmatpush.msra.mxu0 %v1753
        %1763 = vmatpush.msra.mxu0 %v1752
        %1764 = vmatpush.msra.mxu0 %v1751
        %1765 = vmatpush.msra.mxu0 %v1750
        %1766 = vmatpush.msra.mxu0 %v1749
        %1767 = vmatpush.msra.mxu0 %v1748
        %1768 = vmatpush.msra.mxu0 %v1747
        %1769 = vmatpush.msra.mxu0 %v1746
        %1770 = vmatpush.msra.mxu0 %v1745
        %1771 = vmatpush.msra.mxu0 %v1744
        %1772 = vmatpush.msra.mxu0 %v1743
        %1773 = vmatpush.msra.mxu0 %v1742
        %1774 = vmatmul.f32.gmra.mxu0 %v1740
        %v1775 = vpop.f32.mrf.mxu0
        %v1776 = vadd.f32 0.0, %v1775
        %1777 = vmatmul.f32.gmra.mxu0 %v1741
        %v1778 = vpop.f32.mrf.mxu0
        %v1779 = vadd.f32 0.0, %v1778
        %1780 = vdwg.mxu0
        %v1781 = vld [vmem:[#allocation16] sm:$0xff]
        %v1782 = vld [vmem:[#allocation16 + $0x8] sm:$0xff]
        %v1783 = vld [vmem:[#allocation16 + $0x10] sm:$0xff]
        %v1784 = vld [vmem:[#allocation16 + $0x18] sm:$0xff]
        %v1785 = vld [vmem:[#allocation16 + $0x20] sm:$0xff]
        %v1786 = vld [vmem:[#allocation16 + $0x28] sm:$0xff]
        %v1787 = vld [vmem:[#allocation16 + $0x30] sm:$0xff]
        %v1788 = vld [vmem:[#allocation16 + $0x38] sm:$0xff]
        %v1789 = vld [vmem:[#allocation16 + $0x40] sm:$0xff]
        %v1790 = vld [vmem:[#allocation16 + $0x48] sm:$0xff]
        %v1791 = vld [vmem:[#allocation16 + $0x50] sm:$0xff]
        %v1792 = vld [vmem:[#allocation16 + $0x58] sm:$0xff]
        %v1793 = vld [vmem:[#allocation16 + $0x60] sm:$0xff]
        %v1794 = vld [vmem:[#allocation16 + $0x68] sm:$0xff]
        %v1795 = vld [vmem:[#allocation16 + $0x70] sm:$0xff]
        %v1796 = vld [vmem:[#allocation16 + $0x78] sm:$0xff]
        %v1797 = vld [vmem:[#allocation17] sm:$0xff]
        %v1798 = vld [vmem:[#allocation17 + $0x8] sm:$0xff]
        %v1799 = vld [vmem:[#allocation17 + $0x10] sm:$0xff]
        %v1800 = vld [vmem:[#allocation17 + $0x18] sm:$0xff]
        %v1801 = vld [vmem:[#allocation17 + $0x20] sm:$0xff]
        %v1802 = vld [vmem:[#allocation17 + $0x28] sm:$0xff]
        %v1803 = vld [vmem:[#allocation17 + $0x30] sm:$0xff]
        %v1804 = vld [vmem:[#allocation17 + $0x38] sm:$0xff]
        %v1805 = vld [vmem:[#allocation17 + $0x40] sm:$0xff]
        %v1806 = vld [vmem:[#allocation17 + $0x48] sm:$0xff]
        %v1807 = vld [vmem:[#allocation17 + $0x50] sm:$0xff]
        %v1808 = vld [vmem:[#allocation17 + $0x58] sm:$0xff]
        %v1809 = vld [vmem:[#allocation17 + $0x60] sm:$0xff]
        %v1810 = vld [vmem:[#allocation17 + $0x68] sm:$0xff]
        %v1811 = vld [vmem:[#allocation17 + $0x70] sm:$0xff]
        %v1812 = vld [vmem:[#allocation17 + $0x78] sm:$0xff]
        %1813 = vmatpush.msra.mxu0 %v1812
        %1814 = vmatpush.msra.mxu0 %v1811
        %1815 = vmatpush.msra.mxu0 %v1810
        %1816 = vmatpush.msra.mxu0 %v1809
        %1817 = vmatpush.msra.mxu0 %v1808
        %1818 = vmatpush.msra.mxu0 %v1807
        %1819 = vmatpush.msra.mxu0 %v1806
        %1820 = vmatpush.msra.mxu0 %v1805
        %1821 = vmatpush.msra.mxu0 %v1804
        %1822 = vmatpush.msra.mxu0 %v1803
        %1823 = vmatpush.msra.mxu0 %v1802
        %1824 = vmatpush.msra.mxu0 %v1801
        %1825 = vmatpush.msra.mxu0 %v1800
        %1826 = vmatpush.msra.mxu0 %v1799
        %1827 = vmatpush.msra.mxu0 %v1798
        %1828 = vmatpush.msra.mxu0 %v1797
        %1829 = vmatmul.f32.gmra.mxu0 %v1279
        %v1830 = vpop.f32.mrf.mxu0
        %v1831 = vadd.f32 0.0, %v1830
        %1832 = vmatmul.f32.gmra.mxu0 %v1282
        %v1833 = vpop.f32.mrf.mxu0
        %v1834 = vadd.f32 0.0, %v1833
        %1835 = vmatmul.f32.gmra.mxu0 %v1285
        %v1836 = vpop.f32.mrf.mxu0
        %v1837 = vadd.f32 0.0, %v1836
        %1838 = vmatmul.f32.gmra.mxu0 %v1288
        %v1839 = vpop.f32.mrf.mxu0
        %v1840 = vadd.f32 0.0, %v1839
        %1841 = vmatmul.f32.gmra.mxu0 %v1291
        %v1842 = vpop.f32.mrf.mxu0
        %v1843 = vadd.f32 0.0, %v1842
        %1844 = vmatmul.f32.gmra.mxu0 %v1294
        %v1845 = vpop.f32.mrf.mxu0
        %v1846 = vadd.f32 0.0, %v1845
        %1847 = vmatmul.f32.gmra.mxu0 %v1297
        %v1848 = vpop.f32.mrf.mxu0
        %v1849 = vadd.f32 0.0, %v1848
        %1850 = vmatmul.f32.gmra.mxu0 %v1300
        %v1851 = vpop.f32.mrf.mxu0
        %v1852 = vadd.f32 0.0, %v1851
        %1853 = vmatmul.f32.gmra.mxu0 %v1303
        %v1854 = vpop.f32.mrf.mxu0
        %v1855 = vadd.f32 0.0, %v1854
        %1856 = vmatmul.f32.gmra.mxu0 %v1306
        %v1857 = vpop.f32.mrf.mxu0
        %v1858 = vadd.f32 0.0, %v1857
        %1859 = vmatmul.f32.gmra.mxu0 %v1309
        %v1860 = vpop.f32.mrf.mxu0
        %v1861 = vadd.f32 0.0, %v1860
        %1862 = vmatmul.f32.gmra.mxu0 %v1312
        %v1863 = vpop.f32.mrf.mxu0
        %v1864 = vadd.f32 0.0, %v1863
        %1865 = vmatmul.f32.gmra.mxu0 %v1315
        %v1866 = vpop.f32.mrf.mxu0
        %v1867 = vadd.f32 0.0, %v1866
        %1868 = vmatmul.f32.gmra.mxu0 %v1318
        %v1869 = vpop.f32.mrf.mxu0
        %v1870 = vadd.f32 0.0, %v1869
        %1871 = vmatmul.f32.gmra.mxu0 %v1321
        %v1872 = vpop.f32.mrf.mxu0
        %v1873 = vadd.f32 0.0, %v1872
        %1874 = vmatmul.f32.gmra.mxu0 %v1324
        %v1875 = vpop.f32.mrf.mxu0
        %v1876 = vadd.f32 0.0, %v1875
        %1877 = vmatmul.f32.gmra.mxu0 %v1327
        %v1878 = vpop.f32.mrf.mxu0
        %v1879 = vadd.f32 0.0, %v1878
        %1880 = vmatmul.f32.gmra.mxu0 %v1330
        %v1881 = vpop.f32.mrf.mxu0
        %v1882 = vadd.f32 0.0, %v1881
        %1883 = vmatmul.f32.gmra.mxu0 %v1333
        %v1884 = vpop.f32.mrf.mxu0
        %v1885 = vadd.f32 0.0, %v1884
        %1886 = vmatmul.f32.gmra.mxu0 %v1336
        %v1887 = vpop.f32.mrf.mxu0
        %v1888 = vadd.f32 0.0, %v1887
        %1889 = vmatmul.f32.gmra.mxu0 %v1339
        %v1890 = vpop.f32.mrf.mxu0
        %v1891 = vadd.f32 0.0, %v1890
        %1892 = vmatmul.f32.gmra.mxu0 %v1342
        %v1893 = vpop.f32.mrf.mxu0
        %v1894 = vadd.f32 0.0, %v1893
        %1895 = vmatmul.f32.gmra.mxu0 %v1345
        %v1896 = vpop.f32.mrf.mxu0
        %v1897 = vadd.f32 0.0, %v1896
        %1898 = vmatmul.f32.gmra.mxu0 %v1348
        %v1899 = vpop.f32.mrf.mxu0
        %v1900 = vadd.f32 0.0, %v1899
        %1901 = vmatmul.f32.gmra.mxu0 %v1351
        %v1902 = vpop.f32.mrf.mxu0
        %v1903 = vadd.f32 0.0, %v1902
        %1904 = vmatmul.f32.gmra.mxu0 %v1354
        %v1905 = vpop.f32.mrf.mxu0
        %v1906 = vadd.f32 0.0, %v1905
        %1907 = vmatmul.f32.gmra.mxu0 %v1357
        %v1908 = vpop.f32.mrf.mxu0
        %v1909 = vadd.f32 0.0, %v1908
        %1910 = vmatmul.f32.gmra.mxu0 %v1360
        %v1911 = vpop.f32.mrf.mxu0
        %v1912 = vadd.f32 0.0, %v1911
        %1913 = vmatmul.f32.gmra.mxu0 %v1363
        %v1914 = vpop.f32.mrf.mxu0
        %v1915 = vadd.f32 0.0, %v1914
        %1916 = vmatmul.f32.gmra.mxu0 %v1366
        %v1917 = vpop.f32.mrf.mxu0
        %v1918 = vadd.f32 0.0, %v1917
        %1919 = vmatmul.f32.gmra.mxu0 %v1369
        %v1920 = vpop.f32.mrf.mxu0
        %v1921 = vadd.f32 0.0, %v1920
        %1922 = vmatmul.f32.gmra.mxu0 %v1372
        %v1923 = vpop.f32.mrf.mxu0
        %v1924 = vadd.f32 0.0, %v1923
        %1925 = vdwg.mxu0
        %1926 = vmatpush.msra.mxu0 %v1796
        %1927 = vmatpush.msra.mxu0 %v1795
        %1928 = vmatpush.msra.mxu0 %v1794
        %1929 = vmatpush.msra.mxu0 %v1793
        %1930 = vmatpush.msra.mxu0 %v1792
        %1931 = vmatpush.msra.mxu0 %v1791
        %1932 = vmatpush.msra.mxu0 %v1790
        %1933 = vmatpush.msra.mxu0 %v1789
        %1934 = vmatpush.msra.mxu0 %v1788
        %1935 = vmatpush.msra.mxu0 %v1787
        %1936 = vmatpush.msra.mxu0 %v1786
        %1937 = vmatpush.msra.mxu0 %v1785
        %1938 = vmatpush.msra.mxu0 %v1784
        %1939 = vmatpush.msra.mxu0 %v1783
        %1940 = vmatpush.msra.mxu0 %v1782
        %1941 = vmatpush.msra.mxu0 %v1781
        %1942 = vmatmul.f32.gmra.mxu0 %v1579
        %v1943 = vpop.f32.mrf.mxu0
        %v1944 = vadd.f32 %v1831, %v1943
        %1945 = vmatmul.f32.gmra.mxu0 %v1582
        %v1946 = vpop.f32.mrf.mxu0
        %v1947 = vadd.f32 %v1834, %v1946
        %1948 = vmatmul.f32.gmra.mxu0 %v1585
        %v1949 = vpop.f32.mrf.mxu0
        %v1950 = vadd.f32 %v1837, %v1949
        %1951 = vmatmul.f32.gmra.mxu0 %v1588
        %v1952 = vpop.f32.mrf.mxu0
        %v1953 = vadd.f32 %v1840, %v1952
        %1954 = vmatmul.f32.gmra.mxu0 %v1591
        %v1955 = vpop.f32.mrf.mxu0
        %v1956 = vadd.f32 %v1843, %v1955
        %1957 = vmatmul.f32.gmra.mxu0 %v1594
        %v1958 = vpop.f32.mrf.mxu0
        %v1959 = vadd.f32 %v1846, %v1958
        %1960 = vmatmul.f32.gmra.mxu0 %v1597
        %v1961 = vpop.f32.mrf.mxu0
        %v1962 = vadd.f32 %v1849, %v1961
        %1963 = vmatmul.f32.gmra.mxu0 %v1600
        %v1964 = vpop.f32.mrf.mxu0
        %v1965 = vadd.f32 %v1852, %v1964
        %1966 = vmatmul.f32.gmra.mxu0 %v1603
        %v1967 = vpop.f32.mrf.mxu0
        %v1968 = vadd.f32 %v1855, %v1967
        %1969 = vmatmul.f32.gmra.mxu0 %v1606
        %v1970 = vpop.f32.mrf.mxu0
        %v1971 = vadd.f32 %v1858, %v1970
        %1972 = vmatmul.f32.gmra.mxu0 %v1609
        %v1973 = vpop.f32.mrf.mxu0
        %v1974 = vadd.f32 %v1861, %v1973
        %1975 = vmatmul.f32.gmra.mxu0 %v1612
        %v1976 = vpop.f32.mrf.mxu0
        %v1977 = vadd.f32 %v1864, %v1976
        %1978 = vmatmul.f32.gmra.mxu0 %v1615
        %v1979 = vpop.f32.mrf.mxu0
        %v1980 = vadd.f32 %v1867, %v1979
        %1981 = vmatmul.f32.gmra.mxu0 %v1618
        %v1982 = vpop.f32.mrf.mxu0
        %v1983 = vadd.f32 %v1870, %v1982
        %1984 = vmatmul.f32.gmra.mxu0 %v1621
        %v1985 = vpop.f32.mrf.mxu0
        %v1986 = vadd.f32 %v1873, %v1985
        %1987 = vmatmul.f32.gmra.mxu0 %v1624
        %v1988 = vpop.f32.mrf.mxu0
        %v1989 = vadd.f32 %v1876, %v1988
        %1990 = vmatmul.f32.gmra.mxu0 %v1627
        %v1991 = vpop.f32.mrf.mxu0
        %v1992 = vadd.f32 %v1879, %v1991
        %1993 = vmatmul.f32.gmra.mxu0 %v1630
        %v1994 = vpop.f32.mrf.mxu0
        %v1995 = vadd.f32 %v1882, %v1994
        %1996 = vmatmul.f32.gmra.mxu0 %v1633
        %v1997 = vpop.f32.mrf.mxu0
        %v1998 = vadd.f32 %v1885, %v1997
        %1999 = vmatmul.f32.gmra.mxu0 %v1636
        %v2000 = vpop.f32.mrf.mxu0
        %v2001 = vadd.f32 %v1888, %v2000
        %2002 = vmatmul.f32.gmra.mxu0 %v1639
        %v2003 = vpop.f32.mrf.mxu0
        %v2004 = vadd.f32 %v1891, %v2003
        %2005 = vmatmul.f32.gmra.mxu0 %v1642
        %v2006 = vpop.f32.mrf.mxu0
        %v2007 = vadd.f32 %v1894, %v2006
        %2008 = vmatmul.f32.gmra.mxu0 %v1645
        %v2009 = vpop.f32.mrf.mxu0
        %v2010 = vadd.f32 %v1897, %v2009
        %2011 = vmatmul.f32.gmra.mxu0 %v1648
        %v2012 = vpop.f32.mrf.mxu0
        %v2013 = vadd.f32 %v1900, %v2012
        %2014 = vmatmul.f32.gmra.mxu0 %v1651
        %v2015 = vpop.f32.mrf.mxu0
        %v2016 = vadd.f32 %v1903, %v2015
        %2017 = vmatmul.f32.gmra.mxu0 %v1654
        %v2018 = vpop.f32.mrf.mxu0
        %v2019 = vadd.f32 %v1906, %v2018
        %2020 = vmatmul.f32.gmra.mxu0 %v1657
        %v2021 = vpop.f32.mrf.mxu0
        %v2022 = vadd.f32 %v1909, %v2021
        %2023 = vmatmul.f32.gmra.mxu0 %v1660
        %v2024 = vpop.f32.mrf.mxu0
        %v2025 = vadd.f32 %v1912, %v2024
        %2026 = vmatmul.f32.gmra.mxu0 %v1663
        %v2027 = vpop.f32.mrf.mxu0
        %v2028 = vadd.f32 %v1915, %v2027
        %2029 = vmatmul.f32.gmra.mxu0 %v1666
        %v2030 = vpop.f32.mrf.mxu0
        %v2031 = vadd.f32 %v1918, %v2030
        %2032 = vmatmul.f32.gmra.mxu0 %v1669
        %v2033 = vpop.f32.mrf.mxu0
        %v2034 = vadd.f32 %v1921, %v2033
        %2035 = vmatmul.f32.gmra.mxu0 %v1672
        %v2036 = vpop.f32.mrf.mxu0
        %v2037 = vadd.f32 %v1924, %v2036
        %2038 = vdwg.mxu0
        %v2039 = vld [vmem:[%s2] sm:$0xff]
        %v2040 = vld [vmem:[%s2 + $0x8] sm:$0xff]
        %v2041 = vld [vmem:[%s2 + $0x10] sm:$0xff]
        %v2042 = vld [vmem:[%s2 + $0x18] sm:$0xff]
        %v2043 = vld [vmem:[%s2 + $0x20] sm:$0xff]
        %v2044 = vld [vmem:[%s2 + $0x28] sm:$0xff]
        %v2045 = vld [vmem:[%s2 + $0x30] sm:$0xff]
        %v2046 = vld [vmem:[%s2 + $0x38] sm:$0xff]
        %v2047 = vld [vmem:[%s2 + $0x40] sm:$0xff]
        %v2048 = vld [vmem:[%s2 + $0x48] sm:$0xff]
        %v2049 = vld [vmem:[%s2 + $0x50] sm:$0xff]
        %v2050 = vld [vmem:[%s2 + $0x58] sm:$0xff]
        %v2051 = vld [vmem:[%s2 + $0x60] sm:$0xff]
        %v2052 = vld [vmem:[%s2 + $0x68] sm:$0xff]
        %v2053 = vld [vmem:[%s2 + $0x70] sm:$0xff]
        %v2054 = vld [vmem:[%s2 + $0x78] sm:$0xff]
        %v2055 = vld [vmem:[%s2 + $0x80] sm:$0xff]
        %v2056 = vld [vmem:[%s2 + $0x88] sm:$0xff]
        %v2057 = vld [vmem:[%s2 + $0x90] sm:$0xff]
        %v2058 = vld [vmem:[%s2 + $0x98] sm:$0xff]
        %v2059 = vld [vmem:[%s2 + $0xa0] sm:$0xff]
        %v2060 = vld [vmem:[%s2 + $0xa8] sm:$0xff]
        %v2061 = vld [vmem:[%s2 + $0xb0] sm:$0xff]
        %v2062 = vld [vmem:[%s2 + $0xb8] sm:$0xff]
        %v2063 = vld [vmem:[%s2 + $0xc0] sm:$0xff]
        %v2064 = vld [vmem:[%s2 + $0xc8] sm:$0xff]
        %v2065 = vld [vmem:[%s2 + $0xd0] sm:$0xff]
        %v2066 = vld [vmem:[%s2 + $0xd8] sm:$0xff]
        %v2067 = vld [vmem:[%s2 + $0xe0] sm:$0xff]
        %v2068 = vld [vmem:[%s2 + $0xe8] sm:$0xff]
        %v2069 = vld [vmem:[%s2 + $0xf0] sm:$0xff]
        %v2070 = vld [vmem:[%s2 + $0xf8] sm:$0xff]
        %vm2071 = vcmask 130048
        %v2073 = vsel %vm2071, %v2039, 0
        %v2076 = vsel %vm2071, %v2040, 0
        %v2079 = vsel %vm2071, %v2041, 0
        %v2082 = vsel %vm2071, %v2042, 0
        %v2085 = vsel %vm2071, %v2043, 0
        %v2088 = vsel %vm2071, %v2044, 0
        %v2091 = vsel %vm2071, %v2045, 0
        %v2094 = vsel %vm2071, %v2046, 0
        %v2097 = vsel %vm2071, %v2047, 0
        %v2100 = vsel %vm2071, %v2048, 0
        %v2103 = vsel %vm2071, %v2049, 0
        %v2106 = vsel %vm2071, %v2050, 0
        %v2109 = vsel %vm2071, %v2051, 0
        %v2112 = vsel %vm2071, %v2052, 0
        %v2115 = vsel %vm2071, %v2053, 0
        %v2118 = vsel %vm2071, %v2054, 0
        %v2121 = vsel %vm2071, %v2055, 0
        %v2124 = vsel %vm2071, %v2056, 0
        %v2127 = vsel %vm2071, %v2057, 0
        %v2130 = vsel %vm2071, %v2058, 0
        %v2133 = vsel %vm2071, %v2059, 0
        %v2136 = vsel %vm2071, %v2060, 0
        %v2139 = vsel %vm2071, %v2061, 0
        %v2142 = vsel %vm2071, %v2062, 0
        %v2145 = vsel %vm2071, %v2063, 0
        %v2148 = vsel %vm2071, %v2064, 0
        %v2151 = vsel %vm2071, %v2065, 0
        %v2154 = vsel %vm2071, %v2066, 0
        %v2157 = vsel %vm2071, %v2067, 0
        %v2160 = vsel %vm2071, %v2068, 0
        %v2163 = vsel %vm2071, %v2069, 0
        %v2166 = vsel %vm2071, %v2070, 0
        %2168 = vmatpush.msra.mxu0 0.0
        %2169 = vmatpush.msra.mxu0 0.0
        %2170 = vmatpush.msra.mxu0 0.0
        %2171 = vmatpush.msra.mxu0 0.0
        %2172 = vmatpush.msra.mxu0 0.0
        %2173 = vmatpush.msra.mxu0 0.0
        %2174 = vmatpush.msra.mxu0 0.0
        %2175 = vmatpush.msra.mxu0 0.0
        %2176 = vmatpush.msra.mxu0 0.0
        %2177 = vmatpush.msra.mxu0 0.0
        %2178 = vmatpush.msra.mxu0 0.0
        %2179 = vmatpush.msra.mxu0 0.0
        %2180 = vmatpush.msra.mxu0 0.0
        %2181 = vmatpush.msra.mxu0 0.0
        %2182 = vmatpush.msra.mxu0 %v1779
        %2183 = vmatpush.msra.mxu0 %v1776
        %2184 = vmatmul.f32.gmra.mxu0 %v2073
        %v2185 = vpop.f32.mrf.mxu0
        %v2186 = vadd.f32 0.0, %v2185
        %2187 = vmatmul.f32.gmra.mxu0 %v2076
        %v2188 = vpop.f32.mrf.mxu0
        %v2189 = vadd.f32 0.0, %v2188
        %2190 = vmatmul.f32.gmra.mxu0 %v2079
        %v2191 = vpop.f32.mrf.mxu0
        %v2192 = vadd.f32 0.0, %v2191
        %2193 = vmatmul.f32.gmra.mxu0 %v2082
        %v2194 = vpop.f32.mrf.mxu0
        %v2195 = vadd.f32 0.0, %v2194
        %2196 = vmatmul.f32.gmra.mxu0 %v2085
        %v2197 = vpop.f32.mrf.mxu0
        %v2198 = vadd.f32 0.0, %v2197
        %2199 = vmatmul.f32.gmra.mxu0 %v2088
        %v2200 = vpop.f32.mrf.mxu0
        %v2201 = vadd.f32 0.0, %v2200
        %2202 = vmatmul.f32.gmra.mxu0 %v2091
        %v2203 = vpop.f32.mrf.mxu0
        %v2204 = vadd.f32 0.0, %v2203
        %2205 = vmatmul.f32.gmra.mxu0 %v2094
        %v2206 = vpop.f32.mrf.mxu0
        %v2207 = vadd.f32 0.0, %v2206
        %2208 = vmatmul.f32.gmra.mxu0 %v2097
        %v2209 = vpop.f32.mrf.mxu0
        %v2210 = vadd.f32 0.0, %v2209
        %2211 = vmatmul.f32.gmra.mxu0 %v2100
        %v2212 = vpop.f32.mrf.mxu0
        %v2213 = vadd.f32 0.0, %v2212
        %2214 = vmatmul.f32.gmra.mxu0 %v2103
        %v2215 = vpop.f32.mrf.mxu0
        %v2216 = vadd.f32 0.0, %v2215
        %2217 = vmatmul.f32.gmra.mxu0 %v2106
        %v2218 = vpop.f32.mrf.mxu0
        %v2219 = vadd.f32 0.0, %v2218
        %2220 = vmatmul.f32.gmra.mxu0 %v2109
        %v2221 = vpop.f32.mrf.mxu0
        %v2222 = vadd.f32 0.0, %v2221
        %2223 = vmatmul.f32.gmra.mxu0 %v2112
        %v2224 = vpop.f32.mrf.mxu0
        %v2225 = vadd.f32 0.0, %v2224
        %2226 = vmatmul.f32.gmra.mxu0 %v2115
        %v2227 = vpop.f32.mrf.mxu0
        %v2228 = vadd.f32 0.0, %v2227
        %2229 = vmatmul.f32.gmra.mxu0 %v2118
        %v2230 = vpop.f32.mrf.mxu0
        %v2231 = vadd.f32 0.0, %v2230
        %2232 = vmatmul.f32.gmra.mxu0 %v2121
        %v2233 = vpop.f32.mrf.mxu0
        %v2234 = vadd.f32 0.0, %v2233
        %2235 = vmatmul.f32.gmra.mxu0 %v2124
        %v2236 = vpop.f32.mrf.mxu0
        %v2237 = vadd.f32 0.0, %v2236
        %2238 = vmatmul.f32.gmra.mxu0 %v2127
        %v2239 = vpop.f32.mrf.mxu0
        %v2240 = vadd.f32 0.0, %v2239
        %2241 = vmatmul.f32.gmra.mxu0 %v2130
        %v2242 = vpop.f32.mrf.mxu0
        %v2243 = vadd.f32 0.0, %v2242
        %2244 = vmatmul.f32.gmra.mxu0 %v2133
        %v2245 = vpop.f32.mrf.mxu0
        %v2246 = vadd.f32 0.0, %v2245
        %2247 = vmatmul.f32.gmra.mxu0 %v2136
        %v2248 = vpop.f32.mrf.mxu0
        %v2249 = vadd.f32 0.0, %v2248
        %2250 = vmatmul.f32.gmra.mxu0 %v2139
        %v2251 = vpop.f32.mrf.mxu0
        %v2252 = vadd.f32 0.0, %v2251
        %2253 = vmatmul.f32.gmra.mxu0 %v2142
        %v2254 = vpop.f32.mrf.mxu0
        %v2255 = vadd.f32 0.0, %v2254
        %2256 = vmatmul.f32.gmra.mxu0 %v2145
        %v2257 = vpop.f32.mrf.mxu0
        %v2258 = vadd.f32 0.0, %v2257
        %2259 = vmatmul.f32.gmra.mxu0 %v2148
        %v2260 = vpop.f32.mrf.mxu0
        %v2261 = vadd.f32 0.0, %v2260
        %2262 = vmatmul.f32.gmra.mxu0 %v2151
        %v2263 = vpop.f32.mrf.mxu0
        %v2264 = vadd.f32 0.0, %v2263
        %2265 = vmatmul.f32.gmra.mxu0 %v2154
        %v2266 = vpop.f32.mrf.mxu0
        %v2267 = vadd.f32 0.0, %v2266
        %2268 = vmatmul.f32.gmra.mxu0 %v2157
        %v2269 = vpop.f32.mrf.mxu0
        %v2270 = vadd.f32 0.0, %v2269
        %2271 = vmatmul.f32.gmra.mxu0 %v2160
        %v2272 = vpop.f32.mrf.mxu0
        %v2273 = vadd.f32 0.0, %v2272
        %2274 = vmatmul.f32.gmra.mxu0 %v2163
        %v2275 = vpop.f32.mrf.mxu0
        %v2276 = vadd.f32 0.0, %v2275
        %2277 = vmatmul.f32.gmra.mxu0 %v2166
        %v2278 = vpop.f32.mrf.mxu0
        %v2279 = vadd.f32 0.0, %v2278
        %2280 = vdwg.mxu0
        %v2281 = vadd.f32 %v1944, %v2186
        %v2282 = vadd.f32 %v1947, %v2189
        %v2283 = vadd.f32 %v1950, %v2192
        %v2284 = vadd.f32 %v1953, %v2195
        %v2285 = vadd.f32 %v1956, %v2198
        %v2286 = vadd.f32 %v1959, %v2201
        %v2287 = vadd.f32 %v1962, %v2204
        %v2288 = vadd.f32 %v1965, %v2207
        %v2289 = vadd.f32 %v1968, %v2210
        %v2290 = vadd.f32 %v1971, %v2213
        %v2291 = vadd.f32 %v1974, %v2216
        %v2292 = vadd.f32 %v1977, %v2219
        %v2293 = vadd.f32 %v1980, %v2222
        %v2294 = vadd.f32 %v1983, %v2225
        %v2295 = vadd.f32 %v1986, %v2228
        %v2296 = vadd.f32 %v1989, %v2231
        %v2297 = vadd.f32 %v1992, %v2234
        %v2298 = vadd.f32 %v1995, %v2237
        %v2299 = vadd.f32 %v1998, %v2240
        %v2300 = vadd.f32 %v2001, %v2243
        %v2301 = vadd.f32 %v2004, %v2246
        %v2302 = vadd.f32 %v2007, %v2249
        %v2303 = vadd.f32 %v2010, %v2252
        %v2304 = vadd.f32 %v2013, %v2255
        %v2305 = vadd.f32 %v2016, %v2258
        %v2306 = vadd.f32 %v2019, %v2261
        %v2307 = vadd.f32 %v2022, %v2264
        %v2308 = vadd.f32 %v2025, %v2267
        %v2309 = vadd.f32 %v2028, %v2270
        %v2310 = vadd.f32 %v2031, %v2273
        %v2311 = vadd.f32 %v2034, %v2276
        %v2312 = vadd.f32 %v2037, %v2279
        %v2313 = vld [vmem:[#allocation20] sm:$0x1]
        %v2315 = vperm.slane %v2313, 0
        %v2317 = vadd.f32 %v2281, %v2315
        %v2318 = vadd.f32 %v2282, %v2315
        %v2319 = vadd.f32 %v2283, %v2315
        %v2320 = vadd.f32 %v2284, %v2315
        %v2321 = vadd.f32 %v2285, %v2315
        %v2322 = vadd.f32 %v2286, %v2315
        %v2323 = vadd.f32 %v2287, %v2315
        %v2324 = vadd.f32 %v2288, %v2315
        %v2325 = vadd.f32 %v2289, %v2315
        %v2326 = vadd.f32 %v2290, %v2315
        %v2327 = vadd.f32 %v2291, %v2315
        %v2328 = vadd.f32 %v2292, %v2315
        %v2329 = vadd.f32 %v2293, %v2315
        %v2330 = vadd.f32 %v2294, %v2315
        %v2331 = vadd.f32 %v2295, %v2315
        %v2332 = vadd.f32 %v2296, %v2315
        %v2333 = vadd.f32 %v2297, %v2315
        %v2334 = vadd.f32 %v2298, %v2315
        %v2335 = vadd.f32 %v2299, %v2315
        %v2336 = vadd.f32 %v2300, %v2315
        %v2337 = vadd.f32 %v2301, %v2315
        %v2338 = vadd.f32 %v2302, %v2315
        %v2339 = vadd.f32 %v2303, %v2315
        %v2340 = vadd.f32 %v2304, %v2315
        %v2341 = vadd.f32 %v2305, %v2315
        %v2342 = vadd.f32 %v2306, %v2315
        %v2343 = vadd.f32 %v2307, %v2315
        %v2344 = vadd.f32 %v2308, %v2315
        %v2345 = vadd.f32 %v2309, %v2315
        %v2346 = vadd.f32 %v2310, %v2315
        %v2347 = vadd.f32 %v2311, %v2315
        %v2348 = vadd.f32 %v2312, %v2315
        %v2349 = vmax.f32 %v2317, 0.0
        %v2350 = vmax.f32 %v2318, 0.0
        %v2351 = vmax.f32 %v2319, 0.0
        %v2352 = vmax.f32 %v2320, 0.0
        %v2353 = vmax.f32 %v2321, 0.0
        %v2354 = vmax.f32 %v2322, 0.0
        %v2355 = vmax.f32 %v2323, 0.0
        %v2356 = vmax.f32 %v2324, 0.0
        %v2357 = vmax.f32 %v2325, 0.0
        %v2358 = vmax.f32 %v2326, 0.0
        %v2359 = vmax.f32 %v2327, 0.0
        %v2360 = vmax.f32 %v2328, 0.0
        %v2361 = vmax.f32 %v2329, 0.0
        %v2362 = vmax.f32 %v2330, 0.0
        %v2363 = vmax.f32 %v2331, 0.0
        %v2364 = vmax.f32 %v2332, 0.0
        %v2365 = vmax.f32 %v2333, 0.0
        %v2366 = vmax.f32 %v2334, 0.0
        %v2367 = vmax.f32 %v2335, 0.0
        %v2368 = vmax.f32 %v2336, 0.0
        %v2369 = vmax.f32 %v2337, 0.0
        %v2370 = vmax.f32 %v2338, 0.0
        %v2371 = vmax.f32 %v2339, 0.0
        %v2372 = vmax.f32 %v2340, 0.0
        %v2373 = vmax.f32 %v2341, 0.0
        %v2374 = vmax.f32 %v2342, 0.0
        %v2375 = vmax.f32 %v2343, 0.0
        %v2376 = vmax.f32 %v2344, 0.0
        %v2377 = vmax.f32 %v2345, 0.0
        %v2378 = vmax.f32 %v2346, 0.0
        %v2379 = vmax.f32 %v2347, 0.0
        %v2380 = vmax.f32 %v2348, 0.0
        %v2381 = vld [vmem:[#allocation22] sm:$0xff]
        %v2382 = vld [vmem:[#allocation22 + $0x8] sm:$0xff]
        %v2383 = vld [vmem:[#allocation22 + $0x10] sm:$0xff]
        %v2384 = vld [vmem:[#allocation22 + $0x18] sm:$0xff]
        %v2385 = vld [vmem:[#allocation22 + $0x20] sm:$0xff]
        %v2386 = vld [vmem:[#allocation22 + $0x28] sm:$0xff]
        %v2387 = vld [vmem:[#allocation22 + $0x30] sm:$0xff]
        %v2388 = vld [vmem:[#allocation22 + $0x38] sm:$0xff]
        %v2389 = vld [vmem:[#allocation22 + $0x40] sm:$0xff]
        %v2390 = vld [vmem:[#allocation22 + $0x48] sm:$0xff]
        %v2391 = vld [vmem:[#allocation22 + $0x50] sm:$0xff]
        %v2392 = vld [vmem:[#allocation22 + $0x58] sm:$0xff]
        %v2393 = vld [vmem:[#allocation22 + $0x60] sm:$0xff]
        %v2394 = vld [vmem:[#allocation22 + $0x68] sm:$0xff]
        %v2395 = vld [vmem:[#allocation22 + $0x70] sm:$0xff]
        %v2396 = vld [vmem:[#allocation22 + $0x78] sm:$0xff]
        %v2397 = vld [vmem:[#allocation23] sm:$0x1]
        %v2399 = vperm.slane %v2397, 0
        %2401 = vmatpush.msra.mxu0 %v2396
        %2402 = vmatpush.msra.mxu0 %v2395
        %2403 = vmatpush.msra.mxu0 %v2394
        %2404 = vmatpush.msra.mxu0 %v2393
        %2405 = vmatpush.msra.mxu0 %v2392
        %2406 = vmatpush.msra.mxu0 %v2391
        %2407 = vmatpush.msra.mxu0 %v2390
        %2408 = vmatpush.msra.mxu0 %v2389
        %2409 = vmatpush.msra.mxu0 %v2388
        %2410 = vmatpush.msra.mxu0 %v2387
        %2411 = vmatpush.msra.mxu0 %v2386
        %2412 = vmatpush.msra.mxu0 %v2385
        %2413 = vmatpush.msra.mxu0 %v2384
        %2414 = vmatpush.msra.mxu0 %v2383
        %2415 = vmatpush.msra.mxu0 %v2382
        %2416 = vmatpush.msra.mxu0 %v2381
        %2417 = vmatmul.f32.gmra.mxu0 %v2349
        %v2418 = vpop.f32.mrf.mxu0
        %v2419 = vadd.f32 %v2399, %v2418
        %2420 = vmatmul.f32.gmra.mxu0 %v2350
        %v2421 = vpop.f32.mrf.mxu0
        %v2422 = vadd.f32 %v2399, %v2421
        %2423 = vmatmul.f32.gmra.mxu0 %v2351
        %v2424 = vpop.f32.mrf.mxu0
        %v2425 = vadd.f32 %v2399, %v2424
        %2426 = vmatmul.f32.gmra.mxu0 %v2352
        %v2427 = vpop.f32.mrf.mxu0
        %v2428 = vadd.f32 %v2399, %v2427
        %2429 = vmatmul.f32.gmra.mxu0 %v2353
        %v2430 = vpop.f32.mrf.mxu0
        %v2431 = vadd.f32 %v2399, %v2430
        %2432 = vmatmul.f32.gmra.mxu0 %v2354
        %v2433 = vpop.f32.mrf.mxu0
        %v2434 = vadd.f32 %v2399, %v2433
        %2435 = vmatmul.f32.gmra.mxu0 %v2355
        %v2436 = vpop.f32.mrf.mxu0
        %v2437 = vadd.f32 %v2399, %v2436
        %2438 = vmatmul.f32.gmra.mxu0 %v2356
        %v2439 = vpop.f32.mrf.mxu0
        %v2440 = vadd.f32 %v2399, %v2439
        %2441 = vmatmul.f32.gmra.mxu0 %v2357
        %v2442 = vpop.f32.mrf.mxu0
        %v2443 = vadd.f32 %v2399, %v2442
        %2444 = vmatmul.f32.gmra.mxu0 %v2358
        %v2445 = vpop.f32.mrf.mxu0
        %v2446 = vadd.f32 %v2399, %v2445
        %2447 = vmatmul.f32.gmra.mxu0 %v2359
        %v2448 = vpop.f32.mrf.mxu0
        %v2449 = vadd.f32 %v2399, %v2448
        %2450 = vmatmul.f32.gmra.mxu0 %v2360
        %v2451 = vpop.f32.mrf.mxu0
        %v2452 = vadd.f32 %v2399, %v2451
        %2453 = vmatmul.f32.gmra.mxu0 %v2361
        %v2454 = vpop.f32.mrf.mxu0
        %v2455 = vadd.f32 %v2399, %v2454
        %2456 = vmatmul.f32.gmra.mxu0 %v2362
        %v2457 = vpop.f32.mrf.mxu0
        %v2458 = vadd.f32 %v2399, %v2457
        %2459 = vmatmul.f32.gmra.mxu0 %v2363
        %v2460 = vpop.f32.mrf.mxu0
        %v2461 = vadd.f32 %v2399, %v2460
        %2462 = vmatmul.f32.gmra.mxu0 %v2364
        %v2463 = vpop.f32.mrf.mxu0
        %v2464 = vadd.f32 %v2399, %v2463
        %2465 = vmatmul.f32.gmra.mxu0 %v2365
        %v2466 = vpop.f32.mrf.mxu0
        %v2467 = vadd.f32 %v2399, %v2466
        %2468 = vmatmul.f32.gmra.mxu0 %v2366
        %v2469 = vpop.f32.mrf.mxu0
        %v2470 = vadd.f32 %v2399, %v2469
        %2471 = vmatmul.f32.gmra.mxu0 %v2367
        %v2472 = vpop.f32.mrf.mxu0
        %v2473 = vadd.f32 %v2399, %v2472
        %2474 = vmatmul.f32.gmra.mxu0 %v2368
        %v2475 = vpop.f32.mrf.mxu0
        %v2476 = vadd.f32 %v2399, %v2475
        %2477 = vmatmul.f32.gmra.mxu0 %v2369
        %v2478 = vpop.f32.mrf.mxu0
        %v2479 = vadd.f32 %v2399, %v2478
        %2480 = vmatmul.f32.gmra.mxu0 %v2370
        %v2481 = vpop.f32.mrf.mxu0
        %v2482 = vadd.f32 %v2399, %v2481
        %2483 = vmatmul.f32.gmra.mxu0 %v2371
        %v2484 = vpop.f32.mrf.mxu0
        %v2485 = vadd.f32 %v2399, %v2484
        %2486 = vmatmul.f32.gmra.mxu0 %v2372
        %v2487 = vpop.f32.mrf.mxu0
        %v2488 = vadd.f32 %v2399, %v2487
        %2489 = vmatmul.f32.gmra.mxu0 %v2373
        %v2490 = vpop.f32.mrf.mxu0
        %v2491 = vadd.f32 %v2399, %v2490
        %2492 = vmatmul.f32.gmra.mxu0 %v2374
        %v2493 = vpop.f32.mrf.mxu0
        %v2494 = vadd.f32 %v2399, %v2493
        %2495 = vmatmul.f32.gmra.mxu0 %v2375
        %v2496 = vpop.f32.mrf.mxu0
        %v2497 = vadd.f32 %v2399, %v2496
        %2498 = vmatmul.f32.gmra.mxu0 %v2376
        %v2499 = vpop.f32.mrf.mxu0
        %v2500 = vadd.f32 %v2399, %v2499
        %2501 = vmatmul.f32.gmra.mxu0 %v2377
        %v2502 = vpop.f32.mrf.mxu0
        %v2503 = vadd.f32 %v2399, %v2502
        %2504 = vmatmul.f32.gmra.mxu0 %v2378
        %v2505 = vpop.f32.mrf.mxu0
        %v2506 = vadd.f32 %v2399, %v2505
        %2507 = vmatmul.f32.gmra.mxu0 %v2379
        %v2508 = vpop.f32.mrf.mxu0
        %v2509 = vadd.f32 %v2399, %v2508
        %2510 = vmatmul.f32.gmra.mxu0 %v2380
        %v2511 = vpop.f32.mrf.mxu0
        %v2512 = vadd.f32 %v2399, %v2511
        %2513 = vdwg.mxu0
        %v2514 = vmax.f32 %v2419, 0.0
        %v2515 = vmax.f32 %v2422, 0.0
        %v2516 = vmax.f32 %v2425, 0.0
        %v2517 = vmax.f32 %v2428, 0.0
        %v2518 = vmax.f32 %v2431, 0.0
        %v2519 = vmax.f32 %v2434, 0.0
        %v2520 = vmax.f32 %v2437, 0.0
        %v2521 = vmax.f32 %v2440, 0.0
        %v2522 = vmax.f32 %v2443, 0.0
        %v2523 = vmax.f32 %v2446, 0.0
        %v2524 = vmax.f32 %v2449, 0.0
        %v2525 = vmax.f32 %v2452, 0.0
        %v2526 = vmax.f32 %v2455, 0.0
        %v2527 = vmax.f32 %v2458, 0.0
        %v2528 = vmax.f32 %v2461, 0.0
        %v2529 = vmax.f32 %v2464, 0.0
        %v2530 = vmax.f32 %v2467, 0.0
        %v2531 = vmax.f32 %v2470, 0.0
        %v2532 = vmax.f32 %v2473, 0.0
        %v2533 = vmax.f32 %v2476, 0.0
        %v2534 = vmax.f32 %v2479, 0.0
        %v2535 = vmax.f32 %v2482, 0.0
        %v2536 = vmax.f32 %v2485, 0.0
        %v2537 = vmax.f32 %v2488, 0.0
        %v2538 = vmax.f32 %v2491, 0.0
        %v2539 = vmax.f32 %v2494, 0.0
        %v2540 = vmax.f32 %v2497, 0.0
        %v2541 = vmax.f32 %v2500, 0.0
        %v2542 = vmax.f32 %v2503, 0.0
        %v2543 = vmax.f32 %v2506, 0.0
        %v2544 = vmax.f32 %v2509, 0.0
        %v2545 = vmax.f32 %v2512, 0.0
        %v2546 = vld [vmem:[#allocation25] sm:$0xff]
        %v2547 = vld [vmem:[#allocation25 + $0x8] sm:$0xff]
        %v2548 = vld [vmem:[#allocation25 + $0x10] sm:$0xff]
        %v2549 = vld [vmem:[#allocation25 + $0x18] sm:$0xff]
        %v2550 = vld [vmem:[#allocation25 + $0x20] sm:$0xff]
        %v2551 = vld [vmem:[#allocation25 + $0x28] sm:$0xff]
        %v2552 = vld [vmem:[#allocation25 + $0x30] sm:$0xff]
        %v2553 = vld [vmem:[#allocation25 + $0x38] sm:$0xff]
        %v2554 = vld [vmem:[#allocation25 + $0x40] sm:$0xff]
        %v2555 = vld [vmem:[#allocation25 + $0x48] sm:$0xff]
        %v2556 = vld [vmem:[#allocation25 + $0x50] sm:$0xff]
        %v2557 = vld [vmem:[#allocation25 + $0x58] sm:$0xff]
        %v2558 = vld [vmem:[#allocation25 + $0x60] sm:$0xff]
        %v2559 = vld [vmem:[#allocation25 + $0x68] sm:$0xff]
        %v2560 = vld [vmem:[#allocation25 + $0x70] sm:$0xff]
        %v2561 = vld [vmem:[#allocation25 + $0x78] sm:$0xff]
        %v2562 = vld [vmem:[#allocation26] sm:$0x1]
        %v2564 = vperm.slane %v2562, 0
        %2566 = vmatpush.msra.mxu0 %v2561
        %2567 = vmatpush.msra.mxu0 %v2560
        %2568 = vmatpush.msra.mxu0 %v2559
        %2569 = vmatpush.msra.mxu0 %v2558
        %2570 = vmatpush.msra.mxu0 %v2557
        %2571 = vmatpush.msra.mxu0 %v2556
        %2572 = vmatpush.msra.mxu0 %v2555
        %2573 = vmatpush.msra.mxu0 %v2554
        %2574 = vmatpush.msra.mxu0 %v2553
        %2575 = vmatpush.msra.mxu0 %v2552
        %2576 = vmatpush.msra.mxu0 %v2551
        %2577 = vmatpush.msra.mxu0 %v2550
        %2578 = vmatpush.msra.mxu0 %v2549
        %2579 = vmatpush.msra.mxu0 %v2548
        %2580 = vmatpush.msra.mxu0 %v2547
        %2581 = vmatpush.msra.mxu0 %v2546
        %2582 = vmatmul.f32.gmra.mxu0 %v2514
        %v2583 = vpop.f32.mrf.mxu0
        %v2584 = vadd.f32 %v2564, %v2583
        %2585 = vmatmul.f32.gmra.mxu0 %v2515
        %v2586 = vpop.f32.mrf.mxu0
        %v2587 = vadd.f32 %v2564, %v2586
        %2588 = vmatmul.f32.gmra.mxu0 %v2516
        %v2589 = vpop.f32.mrf.mxu0
        %v2590 = vadd.f32 %v2564, %v2589
        %2591 = vmatmul.f32.gmra.mxu0 %v2517
        %v2592 = vpop.f32.mrf.mxu0
        %v2593 = vadd.f32 %v2564, %v2592
        %2594 = vmatmul.f32.gmra.mxu0 %v2518
        %v2595 = vpop.f32.mrf.mxu0
        %v2596 = vadd.f32 %v2564, %v2595
        %2597 = vmatmul.f32.gmra.mxu0 %v2519
        %v2598 = vpop.f32.mrf.mxu0
        %v2599 = vadd.f32 %v2564, %v2598
        %2600 = vmatmul.f32.gmra.mxu0 %v2520
        %v2601 = vpop.f32.mrf.mxu0
        %v2602 = vadd.f32 %v2564, %v2601
        %2603 = vmatmul.f32.gmra.mxu0 %v2521
        %v2604 = vpop.f32.mrf.mxu0
        %v2605 = vadd.f32 %v2564, %v2604
        %2606 = vmatmul.f32.gmra.mxu0 %v2522
        %v2607 = vpop.f32.mrf.mxu0
        %v2608 = vadd.f32 %v2564, %v2607
        %2609 = vmatmul.f32.gmra.mxu0 %v2523
        %v2610 = vpop.f32.mrf.mxu0
        %v2611 = vadd.f32 %v2564, %v2610
        %2612 = vmatmul.f32.gmra.mxu0 %v2524
        %v2613 = vpop.f32.mrf.mxu0
        %v2614 = vadd.f32 %v2564, %v2613
        %2615 = vmatmul.f32.gmra.mxu0 %v2525
        %v2616 = vpop.f32.mrf.mxu0
        %v2617 = vadd.f32 %v2564, %v2616
        %2618 = vmatmul.f32.gmra.mxu0 %v2526
        %v2619 = vpop.f32.mrf.mxu0
        %v2620 = vadd.f32 %v2564, %v2619
        %2621 = vmatmul.f32.gmra.mxu0 %v2527
        %v2622 = vpop.f32.mrf.mxu0
        %v2623 = vadd.f32 %v2564, %v2622
        %2624 = vmatmul.f32.gmra.mxu0 %v2528
        %v2625 = vpop.f32.mrf.mxu0
        %v2626 = vadd.f32 %v2564, %v2625
        %2627 = vmatmul.f32.gmra.mxu0 %v2529
        %v2628 = vpop.f32.mrf.mxu0
        %v2629 = vadd.f32 %v2564, %v2628
        %2630 = vmatmul.f32.gmra.mxu0 %v2530
        %v2631 = vpop.f32.mrf.mxu0
        %v2632 = vadd.f32 %v2564, %v2631
        %2633 = vmatmul.f32.gmra.mxu0 %v2531
        %v2634 = vpop.f32.mrf.mxu0
        %v2635 = vadd.f32 %v2564, %v2634
        %2636 = vmatmul.f32.gmra.mxu0 %v2532
        %v2637 = vpop.f32.mrf.mxu0
        %v2638 = vadd.f32 %v2564, %v2637
        %2639 = vmatmul.f32.gmra.mxu0 %v2533
        %v2640 = vpop.f32.mrf.mxu0
        %v2641 = vadd.f32 %v2564, %v2640
        %2642 = vmatmul.f32.gmra.mxu0 %v2534
        %v2643 = vpop.f32.mrf.mxu0
        %v2644 = vadd.f32 %v2564, %v2643
        %2645 = vmatmul.f32.gmra.mxu0 %v2535
        %v2646 = vpop.f32.mrf.mxu0
        %v2647 = vadd.f32 %v2564, %v2646
        %2648 = vmatmul.f32.gmra.mxu0 %v2536
        %v2649 = vpop.f32.mrf.mxu0
        %v2650 = vadd.f32 %v2564, %v2649
        %2651 = vmatmul.f32.gmra.mxu0 %v2537
        %v2652 = vpop.f32.mrf.mxu0
        %v2653 = vadd.f32 %v2564, %v2652
        %2654 = vmatmul.f32.gmra.mxu0 %v2538
        %v2655 = vpop.f32.mrf.mxu0
        %v2656 = vadd.f32 %v2564, %v2655
        %2657 = vmatmul.f32.gmra.mxu0 %v2539
        %v2658 = vpop.f32.mrf.mxu0
        %v2659 = vadd.f32 %v2564, %v2658
        %2660 = vmatmul.f32.gmra.mxu0 %v2540
        %v2661 = vpop.f32.mrf.mxu0
        %v2662 = vadd.f32 %v2564, %v2661
        %2663 = vmatmul.f32.gmra.mxu0 %v2541
        %v2664 = vpop.f32.mrf.mxu0
        %v2665 = vadd.f32 %v2564, %v2664
        %2666 = vmatmul.f32.gmra.mxu0 %v2542
        %v2667 = vpop.f32.mrf.mxu0
        %v2668 = vadd.f32 %v2564, %v2667
        %2669 = vmatmul.f32.gmra.mxu0 %v2543
        %v2670 = vpop.f32.mrf.mxu0
        %v2671 = vadd.f32 %v2564, %v2670
        %2672 = vmatmul.f32.gmra.mxu0 %v2544
        %v2673 = vpop.f32.mrf.mxu0
        %v2674 = vadd.f32 %v2564, %v2673
        %2675 = vmatmul.f32.gmra.mxu0 %v2545
        %v2676 = vpop.f32.mrf.mxu0
        %v2677 = vadd.f32 %v2564, %v2676
        %2678 = vdwg.mxu0
        %v2679 = vmul.f32 %v2584, %v2584
        %v2680 = vmul.f32 %v2587, %v2587
        %v2681 = vmul.f32 %v2590, %v2590
        %v2682 = vmul.f32 %v2593, %v2593
        %v2683 = vmul.f32 %v2596, %v2596
        %v2684 = vmul.f32 %v2599, %v2599
        %v2685 = vmul.f32 %v2602, %v2602
        %v2686 = vmul.f32 %v2605, %v2605
        %v2687 = vmul.f32 %v2608, %v2608
        %v2688 = vmul.f32 %v2611, %v2611
        %v2689 = vmul.f32 %v2614, %v2614
        %v2690 = vmul.f32 %v2617, %v2617
        %v2691 = vmul.f32 %v2620, %v2620
        %v2692 = vmul.f32 %v2623, %v2623
        %v2693 = vmul.f32 %v2626, %v2626
        %v2694 = vmul.f32 %v2629, %v2629
        %v2695 = vmul.f32 %v2632, %v2632
        %v2696 = vmul.f32 %v2635, %v2635
        %v2697 = vmul.f32 %v2638, %v2638
        %v2698 = vmul.f32 %v2641, %v2641
        %v2699 = vmul.f32 %v2644, %v2644
        %v2700 = vmul.f32 %v2647, %v2647
        %v2701 = vmul.f32 %v2650, %v2650
        %v2702 = vmul.f32 %v2653, %v2653
        %v2703 = vmul.f32 %v2656, %v2656
        %v2704 = vmul.f32 %v2659, %v2659
        %v2705 = vmul.f32 %v2662, %v2662
        %v2706 = vmul.f32 %v2665, %v2665
        %v2707 = vmul.f32 %v2668, %v2668
        %v2708 = vmul.f32 %v2671, %v2671
        %v2709 = vmul.f32 %v2674, %v2674
        %v2710 = vmul.f32 %v2677, %v2677
        %2711 = vadd.xlane.f32.xlu0 %v2679
        %v2712 = vpop.xlane.xlu0 %2711
        %2713 = vadd.xlane.f32.xlu0 %v2680
        %v2714 = vpop.xlane.xlu0 %2713
        %2715 = vadd.xlane.f32.xlu0 %v2681
        %v2716 = vpop.xlane.xlu0 %2715
        %2717 = vadd.xlane.f32.xlu0 %v2682
        %v2718 = vpop.xlane.xlu0 %2717
        %2719 = vadd.xlane.f32.xlu0 %v2683
        %v2720 = vpop.xlane.xlu0 %2719
        %2721 = vadd.xlane.f32.xlu0 %v2684
        %v2722 = vpop.xlane.xlu0 %2721
        %2723 = vadd.xlane.f32.xlu0 %v2685
        %v2724 = vpop.xlane.xlu0 %2723
        %2725 = vadd.xlane.f32.xlu0 %v2686
        %v2726 = vpop.xlane.xlu0 %2725
        %2727 = vadd.xlane.f32.xlu0 %v2687
        %v2728 = vpop.xlane.xlu0 %2727
        %2729 = vadd.xlane.f32.xlu0 %v2688
        %v2730 = vpop.xlane.xlu0 %2729
        %2731 = vadd.xlane.f32.xlu0 %v2689
        %v2732 = vpop.xlane.xlu0 %2731
        %2733 = vadd.xlane.f32.xlu0 %v2690
        %v2734 = vpop.xlane.xlu0 %2733
        %2735 = vadd.xlane.f32.xlu0 %v2691
        %v2736 = vpop.xlane.xlu0 %2735
        %2737 = vadd.xlane.f32.xlu0 %v2692
        %v2738 = vpop.xlane.xlu0 %2737
        %2739 = vadd.xlane.f32.xlu0 %v2693
        %v2740 = vpop.xlane.xlu0 %2739
        %2741 = vadd.xlane.f32.xlu0 %v2694
        %v2742 = vpop.xlane.xlu0 %2741
        %2743 = vadd.xlane.f32.xlu0 %v2695
        %v2744 = vpop.xlane.xlu0 %2743
        %2745 = vadd.xlane.f32.xlu0 %v2696
        %v2746 = vpop.xlane.xlu0 %2745
        %2747 = vadd.xlane.f32.xlu0 %v2697
        %v2748 = vpop.xlane.xlu0 %2747
        %2749 = vadd.xlane.f32.xlu0 %v2698
        %v2750 = vpop.xlane.xlu0 %2749
        %2751 = vadd.xlane.f32.xlu0 %v2699
        %v2752 = vpop.xlane.xlu0 %2751
        %2753 = vadd.xlane.f32.xlu0 %v2700
        %v2754 = vpop.xlane.xlu0 %2753
        %2755 = vadd.xlane.f32.xlu0 %v2701
        %v2756 = vpop.xlane.xlu0 %2755
        %2757 = vadd.xlane.f32.xlu0 %v2702
        %v2758 = vpop.xlane.xlu0 %2757
        %2759 = vadd.xlane.f32.xlu0 %v2703
        %v2760 = vpop.xlane.xlu0 %2759
        %2761 = vadd.xlane.f32.xlu0 %v2704
        %v2762 = vpop.xlane.xlu0 %2761
        %2763 = vadd.xlane.f32.xlu0 %v2705
        %v2764 = vpop.xlane.xlu0 %2763
        %2765 = vadd.xlane.f32.xlu0 %v2706
        %v2766 = vpop.xlane.xlu0 %2765
        %2767 = vadd.xlane.f32.xlu0 %v2707
        %v2768 = vpop.xlane.xlu0 %2767
        %2769 = vadd.xlane.f32.xlu0 %v2708
        %v2770 = vpop.xlane.xlu0 %2769
        %2771 = vadd.xlane.f32.xlu0 %v2709
        %v2772 = vpop.xlane.xlu0 %2771
        %2773 = vadd.xlane.f32.xlu0 %v2710
        %v2774 = vpop.xlane.xlu0 %2773
        %v2775 = vrsqrt.pop %v2712
        %v2776 = vmul.f32 %v2775, %v2712
        %v2777 = vmul.f32 %v2776, %v2775
        %v2778 = vmul.f32 0.5, %v2777
        %v2779 = vsub.f32 1.5, %v2778
        %v2780 = vmul.f32 %v2775, %v2779
        %v2781 = vmul.f32 %v2712, %v2780
        %vm2782 = vcmp.eq.f32.partialorder %v2712, inf
        %v2783 = vsel %vm2782, %v2712, %v2781
        %vm2784 = vcmp.eq.f32.partialorder %v2712, 0.0
        %v2785 = vand.u32 %v2712, 2147483648
        %v2786 = vsel %vm2784, %v2785, %v2783
        %v2787 = vrsqrt.pop %v2714
        %v2788 = vmul.f32 %v2787, %v2714
        %v2789 = vmul.f32 %v2788, %v2787
        %v2790 = vmul.f32 0.5, %v2789
        %v2791 = vsub.f32 1.5, %v2790
        %v2792 = vmul.f32 %v2787, %v2791
        %v2793 = vmul.f32 %v2714, %v2792
        %vm2794 = vcmp.eq.f32.partialorder %v2714, inf
        %v2795 = vsel %vm2794, %v2714, %v2793
        %vm2796 = vcmp.eq.f32.partialorder %v2714, 0.0
        %v2797 = vand.u32 %v2714, 2147483648
        %v2798 = vsel %vm2796, %v2797, %v2795
        %v2799 = vrsqrt.pop %v2716
        %v2800 = vmul.f32 %v2799, %v2716
        %v2801 = vmul.f32 %v2800, %v2799
        %v2802 = vmul.f32 0.5, %v2801
        %v2803 = vsub.f32 1.5, %v2802
        %v2804 = vmul.f32 %v2799, %v2803
        %v2805 = vmul.f32 %v2716, %v2804
        %vm2806 = vcmp.eq.f32.partialorder %v2716, inf
        %v2807 = vsel %vm2806, %v2716, %v2805
        %vm2808 = vcmp.eq.f32.partialorder %v2716, 0.0
        %v2809 = vand.u32 %v2716, 2147483648
        %v2810 = vsel %vm2808, %v2809, %v2807
        %v2811 = vrsqrt.pop %v2718
        %v2812 = vmul.f32 %v2811, %v2718
        %v2813 = vmul.f32 %v2812, %v2811
        %v2814 = vmul.f32 0.5, %v2813
        %v2815 = vsub.f32 1.5, %v2814
        %v2816 = vmul.f32 %v2811, %v2815
        %v2817 = vmul.f32 %v2718, %v2816
        %vm2818 = vcmp.eq.f32.partialorder %v2718, inf
        %v2819 = vsel %vm2818, %v2718, %v2817
        %vm2820 = vcmp.eq.f32.partialorder %v2718, 0.0
        %v2821 = vand.u32 %v2718, 2147483648
        %v2822 = vsel %vm2820, %v2821, %v2819
        %v2823 = vrsqrt.pop %v2720
        %v2824 = vmul.f32 %v2823, %v2720
        %v2825 = vmul.f32 %v2824, %v2823
        %v2826 = vmul.f32 0.5, %v2825
        %v2827 = vsub.f32 1.5, %v2826
        %v2828 = vmul.f32 %v2823, %v2827
        %v2829 = vmul.f32 %v2720, %v2828
        %vm2830 = vcmp.eq.f32.partialorder %v2720, inf
        %v2831 = vsel %vm2830, %v2720, %v2829
        %vm2832 = vcmp.eq.f32.partialorder %v2720, 0.0
        %v2833 = vand.u32 %v2720, 2147483648
        %v2834 = vsel %vm2832, %v2833, %v2831
        %v2835 = vrsqrt.pop %v2722
        %v2836 = vmul.f32 %v2835, %v2722
        %v2837 = vmul.f32 %v2836, %v2835
        %v2838 = vmul.f32 0.5, %v2837
        %v2839 = vsub.f32 1.5, %v2838
        %v2840 = vmul.f32 %v2835, %v2839
        %v2841 = vmul.f32 %v2722, %v2840
        %vm2842 = vcmp.eq.f32.partialorder %v2722, inf
        %v2843 = vsel %vm2842, %v2722, %v2841
        %vm2844 = vcmp.eq.f32.partialorder %v2722, 0.0
        %v2845 = vand.u32 %v2722, 2147483648
        %v2846 = vsel %vm2844, %v2845, %v2843
        %v2847 = vrsqrt.pop %v2724
        %v2848 = vmul.f32 %v2847, %v2724
        %v2849 = vmul.f32 %v2848, %v2847
        %v2850 = vmul.f32 0.5, %v2849
        %v2851 = vsub.f32 1.5, %v2850
        %v2852 = vmul.f32 %v2847, %v2851
        %v2853 = vmul.f32 %v2724, %v2852
        %vm2854 = vcmp.eq.f32.partialorder %v2724, inf
        %v2855 = vsel %vm2854, %v2724, %v2853
        %vm2856 = vcmp.eq.f32.partialorder %v2724, 0.0
        %v2857 = vand.u32 %v2724, 2147483648
        %v2858 = vsel %vm2856, %v2857, %v2855
        %v2859 = vrsqrt.pop %v2726
        %v2860 = vmul.f32 %v2859, %v2726
        %v2861 = vmul.f32 %v2860, %v2859
        %v2862 = vmul.f32 0.5, %v2861
        %v2863 = vsub.f32 1.5, %v2862
        %v2864 = vmul.f32 %v2859, %v2863
        %v2865 = vmul.f32 %v2726, %v2864
        %vm2866 = vcmp.eq.f32.partialorder %v2726, inf
        %v2867 = vsel %vm2866, %v2726, %v2865
        %vm2868 = vcmp.eq.f32.partialorder %v2726, 0.0
        %v2869 = vand.u32 %v2726, 2147483648
        %v2870 = vsel %vm2868, %v2869, %v2867
        %v2871 = vrsqrt.pop %v2728
        %v2872 = vmul.f32 %v2871, %v2728
        %v2873 = vmul.f32 %v2872, %v2871
        %v2874 = vmul.f32 0.5, %v2873
        %v2875 = vsub.f32 1.5, %v2874
        %v2876 = vmul.f32 %v2871, %v2875
        %v2877 = vmul.f32 %v2728, %v2876
        %vm2878 = vcmp.eq.f32.partialorder %v2728, inf
        %v2879 = vsel %vm2878, %v2728, %v2877
        %vm2880 = vcmp.eq.f32.partialorder %v2728, 0.0
        %v2881 = vand.u32 %v2728, 2147483648
        %v2882 = vsel %vm2880, %v2881, %v2879
        %v2883 = vrsqrt.pop %v2730
        %v2884 = vmul.f32 %v2883, %v2730
        %v2885 = vmul.f32 %v2884, %v2883
        %v2886 = vmul.f32 0.5, %v2885
        %v2887 = vsub.f32 1.5, %v2886
        %v2888 = vmul.f32 %v2883, %v2887
        %v2889 = vmul.f32 %v2730, %v2888
        %vm2890 = vcmp.eq.f32.partialorder %v2730, inf
        %v2891 = vsel %vm2890, %v2730, %v2889
        %vm2892 = vcmp.eq.f32.partialorder %v2730, 0.0
        %v2893 = vand.u32 %v2730, 2147483648
        %v2894 = vsel %vm2892, %v2893, %v2891
        %v2895 = vrsqrt.pop %v2732
        %v2896 = vmul.f32 %v2895, %v2732
        %v2897 = vmul.f32 %v2896, %v2895
        %v2898 = vmul.f32 0.5, %v2897
        %v2899 = vsub.f32 1.5, %v2898
        %v2900 = vmul.f32 %v2895, %v2899
        %v2901 = vmul.f32 %v2732, %v2900
        %vm2902 = vcmp.eq.f32.partialorder %v2732, inf
        %v2903 = vsel %vm2902, %v2732, %v2901
        %vm2904 = vcmp.eq.f32.partialorder %v2732, 0.0
        %v2905 = vand.u32 %v2732, 2147483648
        %v2906 = vsel %vm2904, %v2905, %v2903
        %v2907 = vrsqrt.pop %v2734
        %v2908 = vmul.f32 %v2907, %v2734
        %v2909 = vmul.f32 %v2908, %v2907
        %v2910 = vmul.f32 0.5, %v2909
        %v2911 = vsub.f32 1.5, %v2910
        %v2912 = vmul.f32 %v2907, %v2911
        %v2913 = vmul.f32 %v2734, %v2912
        %vm2914 = vcmp.eq.f32.partialorder %v2734, inf
        %v2915 = vsel %vm2914, %v2734, %v2913
        %vm2916 = vcmp.eq.f32.partialorder %v2734, 0.0
        %v2917 = vand.u32 %v2734, 2147483648
        %v2918 = vsel %vm2916, %v2917, %v2915
        %v2919 = vrsqrt.pop %v2736
        %v2920 = vmul.f32 %v2919, %v2736
        %v2921 = vmul.f32 %v2920, %v2919
        %v2922 = vmul.f32 0.5, %v2921
        %v2923 = vsub.f32 1.5, %v2922
        %v2924 = vmul.f32 %v2919, %v2923
        %v2925 = vmul.f32 %v2736, %v2924
        %vm2926 = vcmp.eq.f32.partialorder %v2736, inf
        %v2927 = vsel %vm2926, %v2736, %v2925
        %vm2928 = vcmp.eq.f32.partialorder %v2736, 0.0
        %v2929 = vand.u32 %v2736, 2147483648
        %v2930 = vsel %vm2928, %v2929, %v2927
        %v2931 = vrsqrt.pop %v2738
        %v2932 = vmul.f32 %v2931, %v2738
        %v2933 = vmul.f32 %v2932, %v2931
        %v2934 = vmul.f32 0.5, %v2933
        %v2935 = vsub.f32 1.5, %v2934
        %v2936 = vmul.f32 %v2931, %v2935
        %v2937 = vmul.f32 %v2738, %v2936
        %vm2938 = vcmp.eq.f32.partialorder %v2738, inf
        %v2939 = vsel %vm2938, %v2738, %v2937
        %vm2940 = vcmp.eq.f32.partialorder %v2738, 0.0
        %v2941 = vand.u32 %v2738, 2147483648
        %v2942 = vsel %vm2940, %v2941, %v2939
        %v2943 = vrsqrt.pop %v2740
        %v2944 = vmul.f32 %v2943, %v2740
        %v2945 = vmul.f32 %v2944, %v2943
        %v2946 = vmul.f32 0.5, %v2945
        %v2947 = vsub.f32 1.5, %v2946
        %v2948 = vmul.f32 %v2943, %v2947
        %v2949 = vmul.f32 %v2740, %v2948
        %vm2950 = vcmp.eq.f32.partialorder %v2740, inf
        %v2951 = vsel %vm2950, %v2740, %v2949
        %vm2952 = vcmp.eq.f32.partialorder %v2740, 0.0
        %v2953 = vand.u32 %v2740, 2147483648
        %v2954 = vsel %vm2952, %v2953, %v2951
        %v2955 = vrsqrt.pop %v2742
        %v2956 = vmul.f32 %v2955, %v2742
        %v2957 = vmul.f32 %v2956, %v2955
        %v2958 = vmul.f32 0.5, %v2957
        %v2959 = vsub.f32 1.5, %v2958
        %v2960 = vmul.f32 %v2955, %v2959
        %v2961 = vmul.f32 %v2742, %v2960
        %vm2962 = vcmp.eq.f32.partialorder %v2742, inf
        %v2963 = vsel %vm2962, %v2742, %v2961
        %vm2964 = vcmp.eq.f32.partialorder %v2742, 0.0
        %v2965 = vand.u32 %v2742, 2147483648
        %v2966 = vsel %vm2964, %v2965, %v2963
        %v2967 = vrsqrt.pop %v2744
        %v2968 = vmul.f32 %v2967, %v2744
        %v2969 = vmul.f32 %v2968, %v2967
        %v2970 = vmul.f32 0.5, %v2969
        %v2971 = vsub.f32 1.5, %v2970
        %v2972 = vmul.f32 %v2967, %v2971
        %v2973 = vmul.f32 %v2744, %v2972
        %vm2974 = vcmp.eq.f32.partialorder %v2744, inf
        %v2975 = vsel %vm2974, %v2744, %v2973
        %vm2976 = vcmp.eq.f32.partialorder %v2744, 0.0
        %v2977 = vand.u32 %v2744, 2147483648
        %v2978 = vsel %vm2976, %v2977, %v2975
        %v2979 = vrsqrt.pop %v2746
        %v2980 = vmul.f32 %v2979, %v2746
        %v2981 = vmul.f32 %v2980, %v2979
        %v2982 = vmul.f32 0.5, %v2981
        %v2983 = vsub.f32 1.5, %v2982
        %v2984 = vmul.f32 %v2979, %v2983
        %v2985 = vmul.f32 %v2746, %v2984
        %vm2986 = vcmp.eq.f32.partialorder %v2746, inf
        %v2987 = vsel %vm2986, %v2746, %v2985
        %vm2988 = vcmp.eq.f32.partialorder %v2746, 0.0
        %v2989 = vand.u32 %v2746, 2147483648
        %v2990 = vsel %vm2988, %v2989, %v2987
        %v2991 = vrsqrt.pop %v2748
        %v2992 = vmul.f32 %v2991, %v2748
        %v2993 = vmul.f32 %v2992, %v2991
        %v2994 = vmul.f32 0.5, %v2993
        %v2995 = vsub.f32 1.5, %v2994
        %v2996 = vmul.f32 %v2991, %v2995
        %v2997 = vmul.f32 %v2748, %v2996
        %vm2998 = vcmp.eq.f32.partialorder %v2748, inf
        %v2999 = vsel %vm2998, %v2748, %v2997
        %vm3000 = vcmp.eq.f32.partialorder %v2748, 0.0
        %v3001 = vand.u32 %v2748, 2147483648
        %v3002 = vsel %vm3000, %v3001, %v2999
        %v3003 = vrsqrt.pop %v2750
        %v3004 = vmul.f32 %v3003, %v2750
        %v3005 = vmul.f32 %v3004, %v3003
        %v3006 = vmul.f32 0.5, %v3005
        %v3007 = vsub.f32 1.5, %v3006
        %v3008 = vmul.f32 %v3003, %v3007
        %v3009 = vmul.f32 %v2750, %v3008
        %vm3010 = vcmp.eq.f32.partialorder %v2750, inf
        %v3011 = vsel %vm3010, %v2750, %v3009
        %vm3012 = vcmp.eq.f32.partialorder %v2750, 0.0
        %v3013 = vand.u32 %v2750, 2147483648
        %v3014 = vsel %vm3012, %v3013, %v3011
        %v3015 = vrsqrt.pop %v2752
        %v3016 = vmul.f32 %v3015, %v2752
        %v3017 = vmul.f32 %v3016, %v3015
        %v3018 = vmul.f32 0.5, %v3017
        %v3019 = vsub.f32 1.5, %v3018
        %v3020 = vmul.f32 %v3015, %v3019
        %v3021 = vmul.f32 %v2752, %v3020
        %vm3022 = vcmp.eq.f32.partialorder %v2752, inf
        %v3023 = vsel %vm3022, %v2752, %v3021
        %vm3024 = vcmp.eq.f32.partialorder %v2752, 0.0
        %v3025 = vand.u32 %v2752, 2147483648
        %v3026 = vsel %vm3024, %v3025, %v3023
        %v3027 = vrsqrt.pop %v2754
        %v3028 = vmul.f32 %v3027, %v2754
        %v3029 = vmul.f32 %v3028, %v3027
        %v3030 = vmul.f32 0.5, %v3029
        %v3031 = vsub.f32 1.5, %v3030
        %v3032 = vmul.f32 %v3027, %v3031
        %v3033 = vmul.f32 %v2754, %v3032
        %vm3034 = vcmp.eq.f32.partialorder %v2754, inf
        %v3035 = vsel %vm3034, %v2754, %v3033
        %vm3036 = vcmp.eq.f32.partialorder %v2754, 0.0
        %v3037 = vand.u32 %v2754, 2147483648
        %v3038 = vsel %vm3036, %v3037, %v3035
        %v3039 = vrsqrt.pop %v2756
        %v3040 = vmul.f32 %v3039, %v2756
        %v3041 = vmul.f32 %v3040, %v3039
        %v3042 = vmul.f32 0.5, %v3041
        %v3043 = vsub.f32 1.5, %v3042
        %v3044 = vmul.f32 %v3039, %v3043
        %v3045 = vmul.f32 %v2756, %v3044
        %vm3046 = vcmp.eq.f32.partialorder %v2756, inf
        %v3047 = vsel %vm3046, %v2756, %v3045
        %vm3048 = vcmp.eq.f32.partialorder %v2756, 0.0
        %v3049 = vand.u32 %v2756, 2147483648
        %v3050 = vsel %vm3048, %v3049, %v3047
        %v3051 = vrsqrt.pop %v2758
        %v3052 = vmul.f32 %v3051, %v2758
        %v3053 = vmul.f32 %v3052, %v3051
        %v3054 = vmul.f32 0.5, %v3053
        %v3055 = vsub.f32 1.5, %v3054
        %v3056 = vmul.f32 %v3051, %v3055
        %v3057 = vmul.f32 %v2758, %v3056
        %vm3058 = vcmp.eq.f32.partialorder %v2758, inf
        %v3059 = vsel %vm3058, %v2758, %v3057
        %vm3060 = vcmp.eq.f32.partialorder %v2758, 0.0
        %v3061 = vand.u32 %v2758, 2147483648
        %v3062 = vsel %vm3060, %v3061, %v3059
        %v3063 = vrsqrt.pop %v2760
        %v3064 = vmul.f32 %v3063, %v2760
        %v3065 = vmul.f32 %v3064, %v3063
        %v3066 = vmul.f32 0.5, %v3065
        %v3067 = vsub.f32 1.5, %v3066
        %v3068 = vmul.f32 %v3063, %v3067
        %v3069 = vmul.f32 %v2760, %v3068
        %vm3070 = vcmp.eq.f32.partialorder %v2760, inf
        %v3071 = vsel %vm3070, %v2760, %v3069
        %vm3072 = vcmp.eq.f32.partialorder %v2760, 0.0
        %v3073 = vand.u32 %v2760, 2147483648
        %v3074 = vsel %vm3072, %v3073, %v3071
        %v3075 = vrsqrt.pop %v2762
        %v3076 = vmul.f32 %v3075, %v2762
        %v3077 = vmul.f32 %v3076, %v3075
        %v3078 = vmul.f32 0.5, %v3077
        %v3079 = vsub.f32 1.5, %v3078
        %v3080 = vmul.f32 %v3075, %v3079
        %v3081 = vmul.f32 %v2762, %v3080
        %vm3082 = vcmp.eq.f32.partialorder %v2762, inf
        %v3083 = vsel %vm3082, %v2762, %v3081
        %vm3084 = vcmp.eq.f32.partialorder %v2762, 0.0
        %v3085 = vand.u32 %v2762, 2147483648
        %v3086 = vsel %vm3084, %v3085, %v3083
        %v3087 = vrsqrt.pop %v2764
        %v3088 = vmul.f32 %v3087, %v2764
        %v3089 = vmul.f32 %v3088, %v3087
        %v3090 = vmul.f32 0.5, %v3089
        %v3091 = vsub.f32 1.5, %v3090
        %v3092 = vmul.f32 %v3087, %v3091
        %v3093 = vmul.f32 %v2764, %v3092
        %vm3094 = vcmp.eq.f32.partialorder %v2764, inf
        %v3095 = vsel %vm3094, %v2764, %v3093
        %vm3096 = vcmp.eq.f32.partialorder %v2764, 0.0
        %v3097 = vand.u32 %v2764, 2147483648
        %v3098 = vsel %vm3096, %v3097, %v3095
        %v3099 = vrsqrt.pop %v2766
        %v3100 = vmul.f32 %v3099, %v2766
        %v3101 = vmul.f32 %v3100, %v3099
        %v3102 = vmul.f32 0.5, %v3101
        %v3103 = vsub.f32 1.5, %v3102
        %v3104 = vmul.f32 %v3099, %v3103
        %v3105 = vmul.f32 %v2766, %v3104
        %vm3106 = vcmp.eq.f32.partialorder %v2766, inf
        %v3107 = vsel %vm3106, %v2766, %v3105
        %vm3108 = vcmp.eq.f32.partialorder %v2766, 0.0
        %v3109 = vand.u32 %v2766, 2147483648
        %v3110 = vsel %vm3108, %v3109, %v3107
        %v3111 = vrsqrt.pop %v2768
        %v3112 = vmul.f32 %v3111, %v2768
        %v3113 = vmul.f32 %v3112, %v3111
        %v3114 = vmul.f32 0.5, %v3113
        %v3115 = vsub.f32 1.5, %v3114
        %v3116 = vmul.f32 %v3111, %v3115
        %v3117 = vmul.f32 %v2768, %v3116
        %vm3118 = vcmp.eq.f32.partialorder %v2768, inf
        %v3119 = vsel %vm3118, %v2768, %v3117
        %vm3120 = vcmp.eq.f32.partialorder %v2768, 0.0
        %v3121 = vand.u32 %v2768, 2147483648
        %v3122 = vsel %vm3120, %v3121, %v3119
        %v3123 = vrsqrt.pop %v2770
        %v3124 = vmul.f32 %v3123, %v2770
        %v3125 = vmul.f32 %v3124, %v3123
        %v3126 = vmul.f32 0.5, %v3125
        %v3127 = vsub.f32 1.5, %v3126
        %v3128 = vmul.f32 %v3123, %v3127
        %v3129 = vmul.f32 %v2770, %v3128
        %vm3130 = vcmp.eq.f32.partialorder %v2770, inf
        %v3131 = vsel %vm3130, %v2770, %v3129
        %vm3132 = vcmp.eq.f32.partialorder %v2770, 0.0
        %v3133 = vand.u32 %v2770, 2147483648
        %v3134 = vsel %vm3132, %v3133, %v3131
        %v3135 = vrsqrt.pop %v2772
        %v3136 = vmul.f32 %v3135, %v2772
        %v3137 = vmul.f32 %v3136, %v3135
        %v3138 = vmul.f32 0.5, %v3137
        %v3139 = vsub.f32 1.5, %v3138
        %v3140 = vmul.f32 %v3135, %v3139
        %v3141 = vmul.f32 %v2772, %v3140
        %vm3142 = vcmp.eq.f32.partialorder %v2772, inf
        %v3143 = vsel %vm3142, %v2772, %v3141
        %vm3144 = vcmp.eq.f32.partialorder %v2772, 0.0
        %v3145 = vand.u32 %v2772, 2147483648
        %v3146 = vsel %vm3144, %v3145, %v3143
        %v3147 = vrsqrt.pop %v2774
        %v3148 = vmul.f32 %v3147, %v2774
        %v3149 = vmul.f32 %v3148, %v3147
        %v3150 = vmul.f32 0.5, %v3149
        %v3151 = vsub.f32 1.5, %v3150
        %v3152 = vmul.f32 %v3147, %v3151
        %v3153 = vmul.f32 %v2774, %v3152
        %vm3154 = vcmp.eq.f32.partialorder %v2774, inf
        %v3155 = vsel %vm3154, %v2774, %v3153
        %vm3156 = vcmp.eq.f32.partialorder %v2774, 0.0
        %v3157 = vand.u32 %v2774, 2147483648
        %v3158 = vsel %vm3156, %v3157, %v3155
        %v3159 = vadd.f32 %v2786, 1e-08
        %v3160 = vadd.f32 %v2798, 1e-08
        %v3161 = vadd.f32 %v2810, 1e-08
        %v3162 = vadd.f32 %v2822, 1e-08
        %v3163 = vadd.f32 %v2834, 1e-08
        %v3164 = vadd.f32 %v2846, 1e-08
        %v3165 = vadd.f32 %v2858, 1e-08
        %v3166 = vadd.f32 %v2870, 1e-08
        %v3167 = vadd.f32 %v2882, 1e-08
        %v3168 = vadd.f32 %v2894, 1e-08
        %v3169 = vadd.f32 %v2906, 1e-08
        %v3170 = vadd.f32 %v2918, 1e-08
        %v3171 = vadd.f32 %v2930, 1e-08
        %v3172 = vadd.f32 %v2942, 1e-08
        %v3173 = vadd.f32 %v2954, 1e-08
        %v3174 = vadd.f32 %v2966, 1e-08
        %v3175 = vadd.f32 %v2978, 1e-08
        %v3176 = vadd.f32 %v2990, 1e-08
        %v3177 = vadd.f32 %v3002, 1e-08
        %v3178 = vadd.f32 %v3014, 1e-08
        %v3179 = vadd.f32 %v3026, 1e-08
        %v3180 = vadd.f32 %v3038, 1e-08
        %v3181 = vadd.f32 %v3050, 1e-08
        %v3182 = vadd.f32 %v3062, 1e-08
        %v3183 = vadd.f32 %v3074, 1e-08
        %v3184 = vadd.f32 %v3086, 1e-08
        %v3185 = vadd.f32 %v3098, 1e-08
        %v3186 = vadd.f32 %v3110, 1e-08
        %v3187 = vadd.f32 %v3122, 1e-08
        %v3188 = vadd.f32 %v3134, 1e-08
        %v3189 = vadd.f32 %v3146, 1e-08
        %v3190 = vadd.f32 %v3158, 1e-08
        %v3191 = vrcp.pop %v3159
        %v3192 = vmul.f32 %v3159, %v3191
        %v3193 = vsub.f32 1.0, %v3192
        %v3194 = vmul.f32 %v3191, %v3193
        %v3195 = vadd.f32 %v3191, %v3194
        %vm3196 = vweird.f32 %v3159
        %vm3197 = vweird.f32 %v3191
        %vm3198 = vmor %vm3196, %vm3197
        %v3199 = vsel %vm3198, %v3191, %v3195
        %v3200 = vand.u32 2147483647, %v3159
        %vm3201 = vcmp.eq.f32.partialorder %v3200, 8.507059e+37
        %v3202 = vand.u32 %v3159, 2147483648
        %v3203 = vor.u32 1.1754944e-38, %v3202
        %v3204 = vsel %vm3201, %v3203, %v3199
        %v3205 = vrcp.pop %v3160
        %v3206 = vmul.f32 %v3160, %v3205
        %v3207 = vsub.f32 1.0, %v3206
        %v3208 = vmul.f32 %v3205, %v3207
        %v3209 = vadd.f32 %v3205, %v3208
        %vm3210 = vweird.f32 %v3160
        %vm3211 = vweird.f32 %v3205
        %vm3212 = vmor %vm3210, %vm3211
        %v3213 = vsel %vm3212, %v3205, %v3209
        %v3214 = vand.u32 2147483647, %v3160
        %vm3215 = vcmp.eq.f32.partialorder %v3214, 8.507059e+37
        %v3216 = vand.u32 %v3160, 2147483648
        %v3217 = vor.u32 1.1754944e-38, %v3216
        %v3218 = vsel %vm3215, %v3217, %v3213
        %v3219 = vrcp.pop %v3161
        %v3220 = vmul.f32 %v3161, %v3219
        %v3221 = vsub.f32 1.0, %v3220
        %v3222 = vmul.f32 %v3219, %v3221
        %v3223 = vadd.f32 %v3219, %v3222
        %vm3224 = vweird.f32 %v3161
        %vm3225 = vweird.f32 %v3219
        %vm3226 = vmor %vm3224, %vm3225
        %v3227 = vsel %vm3226, %v3219, %v3223
        %v3228 = vand.u32 2147483647, %v3161
        %vm3229 = vcmp.eq.f32.partialorder %v3228, 8.507059e+37
        %v3230 = vand.u32 %v3161, 2147483648
        %v3231 = vor.u32 1.1754944e-38, %v3230
        %v3232 = vsel %vm3229, %v3231, %v3227
        %v3233 = vrcp.pop %v3162
        %v3234 = vmul.f32 %v3162, %v3233
        %v3235 = vsub.f32 1.0, %v3234
        %v3236 = vmul.f32 %v3233, %v3235
        %v3237 = vadd.f32 %v3233, %v3236
        %vm3238 = vweird.f32 %v3162
        %vm3239 = vweird.f32 %v3233
        %vm3240 = vmor %vm3238, %vm3239
        %v3241 = vsel %vm3240, %v3233, %v3237
        %v3242 = vand.u32 2147483647, %v3162
        %vm3243 = vcmp.eq.f32.partialorder %v3242, 8.507059e+37
        %v3244 = vand.u32 %v3162, 2147483648
        %v3245 = vor.u32 1.1754944e-38, %v3244
        %v3246 = vsel %vm3243, %v3245, %v3241
        %v3247 = vrcp.pop %v3163
        %v3248 = vmul.f32 %v3163, %v3247
        %v3249 = vsub.f32 1.0, %v3248
        %v3250 = vmul.f32 %v3247, %v3249
        %v3251 = vadd.f32 %v3247, %v3250
        %vm3252 = vweird.f32 %v3163
        %vm3253 = vweird.f32 %v3247
        %vm3254 = vmor %vm3252, %vm3253
        %v3255 = vsel %vm3254, %v3247, %v3251
        %v3256 = vand.u32 2147483647, %v3163
        %vm3257 = vcmp.eq.f32.partialorder %v3256, 8.507059e+37
        %v3258 = vand.u32 %v3163, 2147483648
        %v3259 = vor.u32 1.1754944e-38, %v3258
        %v3260 = vsel %vm3257, %v3259, %v3255
        %v3261 = vrcp.pop %v3164
        %v3262 = vmul.f32 %v3164, %v3261
        %v3263 = vsub.f32 1.0, %v3262
        %v3264 = vmul.f32 %v3261, %v3263
        %v3265 = vadd.f32 %v3261, %v3264
        %vm3266 = vweird.f32 %v3164
        %vm3267 = vweird.f32 %v3261
        %vm3268 = vmor %vm3266, %vm3267
        %v3269 = vsel %vm3268, %v3261, %v3265
        %v3270 = vand.u32 2147483647, %v3164
        %vm3271 = vcmp.eq.f32.partialorder %v3270, 8.507059e+37
        %v3272 = vand.u32 %v3164, 2147483648
        %v3273 = vor.u32 1.1754944e-38, %v3272
        %v3274 = vsel %vm3271, %v3273, %v3269
        %v3275 = vrcp.pop %v3165
        %v3276 = vmul.f32 %v3165, %v3275
        %v3277 = vsub.f32 1.0, %v3276
        %v3278 = vmul.f32 %v3275, %v3277
        %v3279 = vadd.f32 %v3275, %v3278
        %vm3280 = vweird.f32 %v3165
        %vm3281 = vweird.f32 %v3275
        %vm3282 = vmor %vm3280, %vm3281
        %v3283 = vsel %vm3282, %v3275, %v3279
        %v3284 = vand.u32 2147483647, %v3165
        %vm3285 = vcmp.eq.f32.partialorder %v3284, 8.507059e+37
        %v3286 = vand.u32 %v3165, 2147483648
        %v3287 = vor.u32 1.1754944e-38, %v3286
        %v3288 = vsel %vm3285, %v3287, %v3283
        %v3289 = vrcp.pop %v3166
        %v3290 = vmul.f32 %v3166, %v3289
        %v3291 = vsub.f32 1.0, %v3290
        %v3292 = vmul.f32 %v3289, %v3291
        %v3293 = vadd.f32 %v3289, %v3292
        %vm3294 = vweird.f32 %v3166
        %vm3295 = vweird.f32 %v3289
        %vm3296 = vmor %vm3294, %vm3295
        %v3297 = vsel %vm3296, %v3289, %v3293
        %v3298 = vand.u32 2147483647, %v3166
        %vm3299 = vcmp.eq.f32.partialorder %v3298, 8.507059e+37
        %v3300 = vand.u32 %v3166, 2147483648
        %v3301 = vor.u32 1.1754944e-38, %v3300
        %v3302 = vsel %vm3299, %v3301, %v3297
        %v3303 = vrcp.pop %v3167
        %v3304 = vmul.f32 %v3167, %v3303
        %v3305 = vsub.f32 1.0, %v3304
        %v3306 = vmul.f32 %v3303, %v3305
        %v3307 = vadd.f32 %v3303, %v3306
        %vm3308 = vweird.f32 %v3167
        %vm3309 = vweird.f32 %v3303
        %vm3310 = vmor %vm3308, %vm3309
        %v3311 = vsel %vm3310, %v3303, %v3307
        %v3312 = vand.u32 2147483647, %v3167
        %vm3313 = vcmp.eq.f32.partialorder %v3312, 8.507059e+37
        %v3314 = vand.u32 %v3167, 2147483648
        %v3315 = vor.u32 1.1754944e-38, %v3314
        %v3316 = vsel %vm3313, %v3315, %v3311
        %v3317 = vrcp.pop %v3168
        %v3318 = vmul.f32 %v3168, %v3317
        %v3319 = vsub.f32 1.0, %v3318
        %v3320 = vmul.f32 %v3317, %v3319
        %v3321 = vadd.f32 %v3317, %v3320
        %vm3322 = vweird.f32 %v3168
        %vm3323 = vweird.f32 %v3317
        %vm3324 = vmor %vm3322, %vm3323
        %v3325 = vsel %vm3324, %v3317, %v3321
        %v3326 = vand.u32 2147483647, %v3168
        %vm3327 = vcmp.eq.f32.partialorder %v3326, 8.507059e+37
        %v3328 = vand.u32 %v3168, 2147483648
        %v3329 = vor.u32 1.1754944e-38, %v3328
        %v3330 = vsel %vm3327, %v3329, %v3325
        %v3331 = vrcp.pop %v3169
        %v3332 = vmul.f32 %v3169, %v3331
        %v3333 = vsub.f32 1.0, %v3332
        %v3334 = vmul.f32 %v3331, %v3333
        %v3335 = vadd.f32 %v3331, %v3334
        %vm3336 = vweird.f32 %v3169
        %vm3337 = vweird.f32 %v3331
        %vm3338 = vmor %vm3336, %vm3337
        %v3339 = vsel %vm3338, %v3331, %v3335
        %v3340 = vand.u32 2147483647, %v3169
        %vm3341 = vcmp.eq.f32.partialorder %v3340, 8.507059e+37
        %v3342 = vand.u32 %v3169, 2147483648
        %v3343 = vor.u32 1.1754944e-38, %v3342
        %v3344 = vsel %vm3341, %v3343, %v3339
        %v3345 = vrcp.pop %v3170
        %v3346 = vmul.f32 %v3170, %v3345
        %v3347 = vsub.f32 1.0, %v3346
        %v3348 = vmul.f32 %v3345, %v3347
        %v3349 = vadd.f32 %v3345, %v3348
        %vm3350 = vweird.f32 %v3170
        %vm3351 = vweird.f32 %v3345
        %vm3352 = vmor %vm3350, %vm3351
        %v3353 = vsel %vm3352, %v3345, %v3349
        %v3354 = vand.u32 2147483647, %v3170
        %vm3355 = vcmp.eq.f32.partialorder %v3354, 8.507059e+37
        %v3356 = vand.u32 %v3170, 2147483648
        %v3357 = vor.u32 1.1754944e-38, %v3356
        %v3358 = vsel %vm3355, %v3357, %v3353
        %v3359 = vrcp.pop %v3171
        %v3360 = vmul.f32 %v3171, %v3359
        %v3361 = vsub.f32 1.0, %v3360
        %v3362 = vmul.f32 %v3359, %v3361
        %v3363 = vadd.f32 %v3359, %v3362
        %vm3364 = vweird.f32 %v3171
        %vm3365 = vweird.f32 %v3359
        %vm3366 = vmor %vm3364, %vm3365
        %v3367 = vsel %vm3366, %v3359, %v3363
        %v3368 = vand.u32 2147483647, %v3171
        %vm3369 = vcmp.eq.f32.partialorder %v3368, 8.507059e+37
        %v3370 = vand.u32 %v3171, 2147483648
        %v3371 = vor.u32 1.1754944e-38, %v3370
        %v3372 = vsel %vm3369, %v3371, %v3367
        %v3373 = vrcp.pop %v3172
        %v3374 = vmul.f32 %v3172, %v3373
        %v3375 = vsub.f32 1.0, %v3374
        %v3376 = vmul.f32 %v3373, %v3375
        %v3377 = vadd.f32 %v3373, %v3376
        %vm3378 = vweird.f32 %v3172
        %vm3379 = vweird.f32 %v3373
        %vm3380 = vmor %vm3378, %vm3379
        %v3381 = vsel %vm3380, %v3373, %v3377
        %v3382 = vand.u32 2147483647, %v3172
        %vm3383 = vcmp.eq.f32.partialorder %v3382, 8.507059e+37
        %v3384 = vand.u32 %v3172, 2147483648
        %v3385 = vor.u32 1.1754944e-38, %v3384
        %v3386 = vsel %vm3383, %v3385, %v3381
        %v3387 = vrcp.pop %v3173
        %v3388 = vmul.f32 %v3173, %v3387
        %v3389 = vsub.f32 1.0, %v3388
        %v3390 = vmul.f32 %v3387, %v3389
        %v3391 = vadd.f32 %v3387, %v3390
        %vm3392 = vweird.f32 %v3173
        %vm3393 = vweird.f32 %v3387
        %vm3394 = vmor %vm3392, %vm3393
        %v3395 = vsel %vm3394, %v3387, %v3391
        %v3396 = vand.u32 2147483647, %v3173
        %vm3397 = vcmp.eq.f32.partialorder %v3396, 8.507059e+37
        %v3398 = vand.u32 %v3173, 2147483648
        %v3399 = vor.u32 1.1754944e-38, %v3398
        %v3400 = vsel %vm3397, %v3399, %v3395
        %v3401 = vrcp.pop %v3174
        %v3402 = vmul.f32 %v3174, %v3401
        %v3403 = vsub.f32 1.0, %v3402
        %v3404 = vmul.f32 %v3401, %v3403
        %v3405 = vadd.f32 %v3401, %v3404
        %vm3406 = vweird.f32 %v3174
        %vm3407 = vweird.f32 %v3401
        %vm3408 = vmor %vm3406, %vm3407
        %v3409 = vsel %vm3408, %v3401, %v3405
        %v3410 = vand.u32 2147483647, %v3174
        %vm3411 = vcmp.eq.f32.partialorder %v3410, 8.507059e+37
        %v3412 = vand.u32 %v3174, 2147483648
        %v3413 = vor.u32 1.1754944e-38, %v3412
        %v3414 = vsel %vm3411, %v3413, %v3409
        %v3415 = vrcp.pop %v3175
        %v3416 = vmul.f32 %v3175, %v3415
        %v3417 = vsub.f32 1.0, %v3416
        %v3418 = vmul.f32 %v3415, %v3417
        %v3419 = vadd.f32 %v3415, %v3418
        %vm3420 = vweird.f32 %v3175
        %vm3421 = vweird.f32 %v3415
        %vm3422 = vmor %vm3420, %vm3421
        %v3423 = vsel %vm3422, %v3415, %v3419
        %v3424 = vand.u32 2147483647, %v3175
        %vm3425 = vcmp.eq.f32.partialorder %v3424, 8.507059e+37
        %v3426 = vand.u32 %v3175, 2147483648
        %v3427 = vor.u32 1.1754944e-38, %v3426
        %v3428 = vsel %vm3425, %v3427, %v3423
        %v3429 = vrcp.pop %v3176
        %v3430 = vmul.f32 %v3176, %v3429
        %v3431 = vsub.f32 1.0, %v3430
        %v3432 = vmul.f32 %v3429, %v3431
        %v3433 = vadd.f32 %v3429, %v3432
        %vm3434 = vweird.f32 %v3176
        %vm3435 = vweird.f32 %v3429
        %vm3436 = vmor %vm3434, %vm3435
        %v3437 = vsel %vm3436, %v3429, %v3433
        %v3438 = vand.u32 2147483647, %v3176
        %vm3439 = vcmp.eq.f32.partialorder %v3438, 8.507059e+37
        %v3440 = vand.u32 %v3176, 2147483648
        %v3441 = vor.u32 1.1754944e-38, %v3440
        %v3442 = vsel %vm3439, %v3441, %v3437
        %v3443 = vrcp.pop %v3177
        %v3444 = vmul.f32 %v3177, %v3443
        %v3445 = vsub.f32 1.0, %v3444
        %v3446 = vmul.f32 %v3443, %v3445
        %v3447 = vadd.f32 %v3443, %v3446
        %vm3448 = vweird.f32 %v3177
        %vm3449 = vweird.f32 %v3443
        %vm3450 = vmor %vm3448, %vm3449
        %v3451 = vsel %vm3450, %v3443, %v3447
        %v3452 = vand.u32 2147483647, %v3177
        %vm3453 = vcmp.eq.f32.partialorder %v3452, 8.507059e+37
        %v3454 = vand.u32 %v3177, 2147483648
        %v3455 = vor.u32 1.1754944e-38, %v3454
        %v3456 = vsel %vm3453, %v3455, %v3451
        %v3457 = vrcp.pop %v3178
        %v3458 = vmul.f32 %v3178, %v3457
        %v3459 = vsub.f32 1.0, %v3458
        %v3460 = vmul.f32 %v3457, %v3459
        %v3461 = vadd.f32 %v3457, %v3460
        %vm3462 = vweird.f32 %v3178
        %vm3463 = vweird.f32 %v3457
        %vm3464 = vmor %vm3462, %vm3463
        %v3465 = vsel %vm3464, %v3457, %v3461
        %v3466 = vand.u32 2147483647, %v3178
        %vm3467 = vcmp.eq.f32.partialorder %v3466, 8.507059e+37
        %v3468 = vand.u32 %v3178, 2147483648
        %v3469 = vor.u32 1.1754944e-38, %v3468
        %v3470 = vsel %vm3467, %v3469, %v3465
        %v3471 = vrcp.pop %v3179
        %v3472 = vmul.f32 %v3179, %v3471
        %v3473 = vsub.f32 1.0, %v3472
        %v3474 = vmul.f32 %v3471, %v3473
        %v3475 = vadd.f32 %v3471, %v3474
        %vm3476 = vweird.f32 %v3179
        %vm3477 = vweird.f32 %v3471
        %vm3478 = vmor %vm3476, %vm3477
        %v3479 = vsel %vm3478, %v3471, %v3475
        %v3480 = vand.u32 2147483647, %v3179
        %vm3481 = vcmp.eq.f32.partialorder %v3480, 8.507059e+37
        %v3482 = vand.u32 %v3179, 2147483648
        %v3483 = vor.u32 1.1754944e-38, %v3482
        %v3484 = vsel %vm3481, %v3483, %v3479
        %v3485 = vrcp.pop %v3180
        %v3486 = vmul.f32 %v3180, %v3485
        %v3487 = vsub.f32 1.0, %v3486
        %v3488 = vmul.f32 %v3485, %v3487
        %v3489 = vadd.f32 %v3485, %v3488
        %vm3490 = vweird.f32 %v3180
        %vm3491 = vweird.f32 %v3485
        %vm3492 = vmor %vm3490, %vm3491
        %v3493 = vsel %vm3492, %v3485, %v3489
        %v3494 = vand.u32 2147483647, %v3180
        %vm3495 = vcmp.eq.f32.partialorder %v3494, 8.507059e+37
        %v3496 = vand.u32 %v3180, 2147483648
        %v3497 = vor.u32 1.1754944e-38, %v3496
        %v3498 = vsel %vm3495, %v3497, %v3493
        %v3499 = vrcp.pop %v3181
        %v3500 = vmul.f32 %v3181, %v3499
        %v3501 = vsub.f32 1.0, %v3500
        %v3502 = vmul.f32 %v3499, %v3501
        %v3503 = vadd.f32 %v3499, %v3502
        %vm3504 = vweird.f32 %v3181
        %vm3505 = vweird.f32 %v3499
        %vm3506 = vmor %vm3504, %vm3505
        %v3507 = vsel %vm3506, %v3499, %v3503
        %v3508 = vand.u32 2147483647, %v3181
        %vm3509 = vcmp.eq.f32.partialorder %v3508, 8.507059e+37
        %v3510 = vand.u32 %v3181, 2147483648
        %v3511 = vor.u32 1.1754944e-38, %v3510
        %v3512 = vsel %vm3509, %v3511, %v3507
        %v3513 = vrcp.pop %v3182
        %v3514 = vmul.f32 %v3182, %v3513
        %v3515 = vsub.f32 1.0, %v3514
        %v3516 = vmul.f32 %v3513, %v3515
        %v3517 = vadd.f32 %v3513, %v3516
        %vm3518 = vweird.f32 %v3182
        %vm3519 = vweird.f32 %v3513
        %vm3520 = vmor %vm3518, %vm3519
        %v3521 = vsel %vm3520, %v3513, %v3517
        %v3522 = vand.u32 2147483647, %v3182
        %vm3523 = vcmp.eq.f32.partialorder %v3522, 8.507059e+37
        %v3524 = vand.u32 %v3182, 2147483648
        %v3525 = vor.u32 1.1754944e-38, %v3524
        %v3526 = vsel %vm3523, %v3525, %v3521
        %v3527 = vrcp.pop %v3183
        %v3528 = vmul.f32 %v3183, %v3527
        %v3529 = vsub.f32 1.0, %v3528
        %v3530 = vmul.f32 %v3527, %v3529
        %v3531 = vadd.f32 %v3527, %v3530
        %vm3532 = vweird.f32 %v3183
        %vm3533 = vweird.f32 %v3527
        %vm3534 = vmor %vm3532, %vm3533
        %v3535 = vsel %vm3534, %v3527, %v3531
        %v3536 = vand.u32 2147483647, %v3183
        %vm3537 = vcmp.eq.f32.partialorder %v3536, 8.507059e+37
        %v3538 = vand.u32 %v3183, 2147483648
        %v3539 = vor.u32 1.1754944e-38, %v3538
        %v3540 = vsel %vm3537, %v3539, %v3535
        %v3541 = vrcp.pop %v3184
        %v3542 = vmul.f32 %v3184, %v3541
        %v3543 = vsub.f32 1.0, %v3542
        %v3544 = vmul.f32 %v3541, %v3543
        %v3545 = vadd.f32 %v3541, %v3544
        %vm3546 = vweird.f32 %v3184
        %vm3547 = vweird.f32 %v3541
        %vm3548 = vmor %vm3546, %vm3547
        %v3549 = vsel %vm3548, %v3541, %v3545
        %v3550 = vand.u32 2147483647, %v3184
        %vm3551 = vcmp.eq.f32.partialorder %v3550, 8.507059e+37
        %v3552 = vand.u32 %v3184, 2147483648
        %v3553 = vor.u32 1.1754944e-38, %v3552
        %v3554 = vsel %vm3551, %v3553, %v3549
        %v3555 = vrcp.pop %v3185
        %v3556 = vmul.f32 %v3185, %v3555
        %v3557 = vsub.f32 1.0, %v3556
        %v3558 = vmul.f32 %v3555, %v3557
        %v3559 = vadd.f32 %v3555, %v3558
        %vm3560 = vweird.f32 %v3185
        %vm3561 = vweird.f32 %v3555
        %vm3562 = vmor %vm3560, %vm3561
        %v3563 = vsel %vm3562, %v3555, %v3559
        %v3564 = vand.u32 2147483647, %v3185
        %vm3565 = vcmp.eq.f32.partialorder %v3564, 8.507059e+37
        %v3566 = vand.u32 %v3185, 2147483648
        %v3567 = vor.u32 1.1754944e-38, %v3566
        %v3568 = vsel %vm3565, %v3567, %v3563
        %v3569 = vrcp.pop %v3186
        %v3570 = vmul.f32 %v3186, %v3569
        %v3571 = vsub.f32 1.0, %v3570
        %v3572 = vmul.f32 %v3569, %v3571
        %v3573 = vadd.f32 %v3569, %v3572
        %vm3574 = vweird.f32 %v3186
        %vm3575 = vweird.f32 %v3569
        %vm3576 = vmor %vm3574, %vm3575
        %v3577 = vsel %vm3576, %v3569, %v3573
        %v3578 = vand.u32 2147483647, %v3186
        %vm3579 = vcmp.eq.f32.partialorder %v3578, 8.507059e+37
        %v3580 = vand.u32 %v3186, 2147483648
        %v3581 = vor.u32 1.1754944e-38, %v3580
        %v3582 = vsel %vm3579, %v3581, %v3577
        %v3583 = vrcp.pop %v3187
        %v3584 = vmul.f32 %v3187, %v3583
        %v3585 = vsub.f32 1.0, %v3584
        %v3586 = vmul.f32 %v3583, %v3585
        %v3587 = vadd.f32 %v3583, %v3586
        %vm3588 = vweird.f32 %v3187
        %vm3589 = vweird.f32 %v3583
        %vm3590 = vmor %vm3588, %vm3589
        %v3591 = vsel %vm3590, %v3583, %v3587
        %v3592 = vand.u32 2147483647, %v3187
        %vm3593 = vcmp.eq.f32.partialorder %v3592, 8.507059e+37
        %v3594 = vand.u32 %v3187, 2147483648
        %v3595 = vor.u32 1.1754944e-38, %v3594
        %v3596 = vsel %vm3593, %v3595, %v3591
        %v3597 = vrcp.pop %v3188
        %v3598 = vmul.f32 %v3188, %v3597
        %v3599 = vsub.f32 1.0, %v3598
        %v3600 = vmul.f32 %v3597, %v3599
        %v3601 = vadd.f32 %v3597, %v3600
        %vm3602 = vweird.f32 %v3188
        %vm3603 = vweird.f32 %v3597
        %vm3604 = vmor %vm3602, %vm3603
        %v3605 = vsel %vm3604, %v3597, %v3601
        %v3606 = vand.u32 2147483647, %v3188
        %vm3607 = vcmp.eq.f32.partialorder %v3606, 8.507059e+37
        %v3608 = vand.u32 %v3188, 2147483648
        %v3609 = vor.u32 1.1754944e-38, %v3608
        %v3610 = vsel %vm3607, %v3609, %v3605
        %v3611 = vrcp.pop %v3189
        %v3612 = vmul.f32 %v3189, %v3611
        %v3613 = vsub.f32 1.0, %v3612
        %v3614 = vmul.f32 %v3611, %v3613
        %v3615 = vadd.f32 %v3611, %v3614
        %vm3616 = vweird.f32 %v3189
        %vm3617 = vweird.f32 %v3611
        %vm3618 = vmor %vm3616, %vm3617
        %v3619 = vsel %vm3618, %v3611, %v3615
        %v3620 = vand.u32 2147483647, %v3189
        %vm3621 = vcmp.eq.f32.partialorder %v3620, 8.507059e+37
        %v3622 = vand.u32 %v3189, 2147483648
        %v3623 = vor.u32 1.1754944e-38, %v3622
        %v3624 = vsel %vm3621, %v3623, %v3619
        %v3625 = vrcp.pop %v3190
        %v3626 = vmul.f32 %v3190, %v3625
        %v3627 = vsub.f32 1.0, %v3626
        %v3628 = vmul.f32 %v3625, %v3627
        %v3629 = vadd.f32 %v3625, %v3628
        %vm3630 = vweird.f32 %v3190
        %vm3631 = vweird.f32 %v3625
        %vm3632 = vmor %vm3630, %vm3631
        %v3633 = vsel %vm3632, %v3625, %v3629
        %v3634 = vand.u32 2147483647, %v3190
        %vm3635 = vcmp.eq.f32.partialorder %v3634, 8.507059e+37
        %v3636 = vand.u32 %v3190, 2147483648
        %v3637 = vor.u32 1.1754944e-38, %v3636
        %v3638 = vsel %vm3635, %v3637, %v3633
        %v3639 = vmul.f32 %v2584, %v3204
        %v3640 = vmul.f32 %v2587, %v3218
        %v3641 = vmul.f32 %v2590, %v3232
        %v3642 = vmul.f32 %v2593, %v3246
        %v3643 = vmul.f32 %v2596, %v3260
        %v3644 = vmul.f32 %v2599, %v3274
        %v3645 = vmul.f32 %v2602, %v3288
        %v3646 = vmul.f32 %v2605, %v3302
        %v3647 = vmul.f32 %v2608, %v3316
        %v3648 = vmul.f32 %v2611, %v3330
        %v3649 = vmul.f32 %v2614, %v3344
        %v3650 = vmul.f32 %v2617, %v3358
        %v3651 = vmul.f32 %v2620, %v3372
        %v3652 = vmul.f32 %v2623, %v3386
        %v3653 = vmul.f32 %v2626, %v3400
        %v3654 = vmul.f32 %v2629, %v3414
        %v3655 = vmul.f32 %v2632, %v3428
        %v3656 = vmul.f32 %v2635, %v3442
        %v3657 = vmul.f32 %v2638, %v3456
        %v3658 = vmul.f32 %v2641, %v3470
        %v3659 = vmul.f32 %v2644, %v3484
        %v3660 = vmul.f32 %v2647, %v3498
        %v3661 = vmul.f32 %v2650, %v3512
        %v3662 = vmul.f32 %v2653, %v3526
        %v3663 = vmul.f32 %v2656, %v3540
        %v3664 = vmul.f32 %v2659, %v3554
        %v3665 = vmul.f32 %v2662, %v3568
        %v3666 = vmul.f32 %v2665, %v3582
        %v3667 = vmul.f32 %v2668, %v3596
        %v3668 = vmul.f32 %v2671, %v3610
        %v3669 = vmul.f32 %v2674, %v3624
        %v3670 = vmul.f32 %v2677, %v3638
        %3671 = vmatpush.msra.mxu0 %v3654
        %3672 = vmatpush.msra.mxu0 %v3653
        %3673 = vmatpush.msra.mxu0 %v3652
        %3674 = vmatpush.msra.mxu0 %v3651
        %3675 = vmatpush.msra.mxu0 %v3650
        %3676 = vmatpush.msra.mxu0 %v3649
        %3677 = vmatpush.msra.mxu0 %v3648
        %3678 = vmatpush.msra.mxu0 %v3647
        %3679 = vmatpush.msra.mxu0 %v3646
        %3680 = vmatpush.msra.mxu0 %v3645
        %3681 = vmatpush.msra.mxu0 %v3644
        %3682 = vmatpush.msra.mxu0 %v3643
        %3683 = vmatpush.msra.mxu0 %v3642
        %3684 = vmatpush.msra.mxu0 %v3641
        %3685 = vmatpush.msra.mxu0 %v3640
        %3686 = vmatpush.msra.mxu0 %v3639
        %3687 = vmatmul.f32.gmra.mxu0 %v1374
        %v3688 = vpop.f32.mrf.mxu0
        %v3689 = vadd.f32 0.0, %v3688
        %3690 = vmatmul.f32.gmra.mxu0 %v1376
        %v3691 = vpop.f32.mrf.mxu0
        %v3692 = vadd.f32 0.0, %v3691
        %3693 = vmatmul.f32.gmra.mxu0 %v1378
        %v3694 = vpop.f32.mrf.mxu0
        %v3695 = vadd.f32 0.0, %v3694
        %3696 = vmatmul.f32.gmra.mxu0 %v1380
        %v3697 = vpop.f32.mrf.mxu0
        %v3698 = vadd.f32 0.0, %v3697
        %3699 = vmatmul.f32.gmra.mxu0 %v1382
        %v3700 = vpop.f32.mrf.mxu0
        %v3701 = vadd.f32 0.0, %v3700
        %3702 = vmatmul.f32.gmra.mxu0 %v1384
        %v3703 = vpop.f32.mrf.mxu0
        %v3704 = vadd.f32 0.0, %v3703
        %3705 = vmatmul.f32.gmra.mxu0 %v1386
        %v3706 = vpop.f32.mrf.mxu0
        %v3707 = vadd.f32 0.0, %v3706
        %3708 = vmatmul.f32.gmra.mxu0 %v1388
        %v3709 = vpop.f32.mrf.mxu0
        %v3710 = vadd.f32 0.0, %v3709
        %3711 = vmatmul.f32.gmra.mxu0 %v1390
        %v3712 = vpop.f32.mrf.mxu0
        %v3713 = vadd.f32 0.0, %v3712
        %3714 = vmatmul.f32.gmra.mxu0 %v1392
        %v3715 = vpop.f32.mrf.mxu0
        %v3716 = vadd.f32 0.0, %v3715
        %3717 = vmatmul.f32.gmra.mxu0 %v1394
        %v3718 = vpop.f32.mrf.mxu0
        %v3719 = vadd.f32 0.0, %v3718
        %3720 = vmatmul.f32.gmra.mxu0 %v1396
        %v3721 = vpop.f32.mrf.mxu0
        %v3722 = vadd.f32 0.0, %v3721
        %3723 = vmatmul.f32.gmra.mxu0 %v1398
        %v3724 = vpop.f32.mrf.mxu0
        %v3725 = vadd.f32 0.0, %v3724
        %3726 = vmatmul.f32.gmra.mxu0 %v1400
        %v3727 = vpop.f32.mrf.mxu0
        %v3728 = vadd.f32 0.0, %v3727
        %3729 = vmatmul.f32.gmra.mxu0 %v1402
        %v3730 = vpop.f32.mrf.mxu0
        %v3731 = vadd.f32 0.0, %v3730
        %3732 = vmatmul.f32.gmra.mxu0 %v1404
        %v3733 = vpop.f32.mrf.mxu0
        %v3734 = vadd.f32 0.0, %v3733
        %3735 = vmatmul.f32.gmra.mxu0 %v1406
        %v3736 = vpop.f32.mrf.mxu0
        %v3737 = vadd.f32 0.0, %v3736
        %3738 = vmatmul.f32.gmra.mxu0 %v1408
        %v3739 = vpop.f32.mrf.mxu0
        %v3740 = vadd.f32 0.0, %v3739
        %3741 = vmatmul.f32.gmra.mxu0 %v1410
        %v3742 = vpop.f32.mrf.mxu0
        %v3743 = vadd.f32 0.0, %v3742
        %3744 = vmatmul.f32.gmra.mxu0 %v1412
        %v3745 = vpop.f32.mrf.mxu0
        %v3746 = vadd.f32 0.0, %v3745
        %3747 = vmatmul.f32.gmra.mxu0 %v1414
        %v3748 = vpop.f32.mrf.mxu0
        %v3749 = vadd.f32 0.0, %v3748
        %3750 = vmatmul.f32.gmra.mxu0 %v1416
        %v3751 = vpop.f32.mrf.mxu0
        %v3752 = vadd.f32 0.0, %v3751
        %3753 = vmatmul.f32.gmra.mxu0 %v1418
        %v3754 = vpop.f32.mrf.mxu0
        %v3755 = vadd.f32 0.0, %v3754
        %3756 = vmatmul.f32.gmra.mxu0 %v1420
        %v3757 = vpop.f32.mrf.mxu0
        %v3758 = vadd.f32 0.0, %v3757
        %3759 = vmatmul.f32.gmra.mxu0 %v1422
        %v3760 = vpop.f32.mrf.mxu0
        %v3761 = vadd.f32 0.0, %v3760
        %3762 = vmatmul.f32.gmra.mxu0 %v1424
        %v3763 = vpop.f32.mrf.mxu0
        %v3764 = vadd.f32 0.0, %v3763
        %3765 = vmatmul.f32.gmra.mxu0 %v1426
        %v3766 = vpop.f32.mrf.mxu0
        %v3767 = vadd.f32 0.0, %v3766
        %3768 = vmatmul.f32.gmra.mxu0 %v1428
        %v3769 = vpop.f32.mrf.mxu0
        %v3770 = vadd.f32 0.0, %v3769
        %3771 = vmatmul.f32.gmra.mxu0 %v1430
        %v3772 = vpop.f32.mrf.mxu0
        %v3773 = vadd.f32 0.0, %v3772
        %3774 = vmatmul.f32.gmra.mxu0 %v1432
        %v3775 = vpop.f32.mrf.mxu0
        %v3776 = vadd.f32 0.0, %v3775
        %3777 = vmatmul.f32.gmra.mxu0 %v1434
        %v3778 = vpop.f32.mrf.mxu0
        %v3779 = vadd.f32 0.0, %v3778
        %3780 = vmatmul.f32.gmra.mxu0 %v1436
        %v3781 = vpop.f32.mrf.mxu0
        %v3782 = vadd.f32 0.0, %v3781
        %3783 = vmatmul.f32.gmra.mxu0 %v1438
        %v3784 = vpop.f32.mrf.mxu0
        %v3785 = vadd.f32 0.0, %v3784
        %3786 = vmatmul.f32.gmra.mxu0 %v1440
        %v3787 = vpop.f32.mrf.mxu0
        %v3788 = vadd.f32 0.0, %v3787
        %3789 = vdwg.mxu0
        %3790 = vmatpush.msra.mxu0 %v3670
        %3791 = vmatpush.msra.mxu0 %v3669
        %3792 = vmatpush.msra.mxu0 %v3668
        %3793 = vmatpush.msra.mxu0 %v3667
        %3794 = vmatpush.msra.mxu0 %v3666
        %3795 = vmatpush.msra.mxu0 %v3665
        %3796 = vmatpush.msra.mxu0 %v3664
        %3797 = vmatpush.msra.mxu0 %v3663
        %3798 = vmatpush.msra.mxu0 %v3662
        %3799 = vmatpush.msra.mxu0 %v3661
        %3800 = vmatpush.msra.mxu0 %v3660
        %3801 = vmatpush.msra.mxu0 %v3659
        %3802 = vmatpush.msra.mxu0 %v3658
        %3803 = vmatpush.msra.mxu0 %v3657
        %3804 = vmatpush.msra.mxu0 %v3656
        %3805 = vmatpush.msra.mxu0 %v3655
        %3806 = vmatmul.f32.gmra.mxu0 %v1375
        %v3807 = vpop.f32.mrf.mxu0
        %v3808 = vadd.f32 %v3689, %v3807
        %3809 = vmatmul.f32.gmra.mxu0 %v1377
        %v3810 = vpop.f32.mrf.mxu0
        %v3811 = vadd.f32 %v3692, %v3810
        %3812 = vmatmul.f32.gmra.mxu0 %v1379
        %v3813 = vpop.f32.mrf.mxu0
        %v3814 = vadd.f32 %v3695, %v3813
        %3815 = vmatmul.f32.gmra.mxu0 %v1381
        %v3816 = vpop.f32.mrf.mxu0
        %v3817 = vadd.f32 %v3698, %v3816
        %3818 = vmatmul.f32.gmra.mxu0 %v1383
        %v3819 = vpop.f32.mrf.mxu0
        %v3820 = vadd.f32 %v3701, %v3819
        %3821 = vmatmul.f32.gmra.mxu0 %v1385
        %v3822 = vpop.f32.mrf.mxu0
        %v3823 = vadd.f32 %v3704, %v3822
        %3824 = vmatmul.f32.gmra.mxu0 %v1387
        %v3825 = vpop.f32.mrf.mxu0
        %v3826 = vadd.f32 %v3707, %v3825
        %3827 = vmatmul.f32.gmra.mxu0 %v1389
        %v3828 = vpop.f32.mrf.mxu0
        %v3829 = vadd.f32 %v3710, %v3828
        %3830 = vmatmul.f32.gmra.mxu0 %v1391
        %v3831 = vpop.f32.mrf.mxu0
        %v3832 = vadd.f32 %v3713, %v3831
        %3833 = vmatmul.f32.gmra.mxu0 %v1393
        %v3834 = vpop.f32.mrf.mxu0
        %v3835 = vadd.f32 %v3716, %v3834
        %3836 = vmatmul.f32.gmra.mxu0 %v1395
        %v3837 = vpop.f32.mrf.mxu0
        %v3838 = vadd.f32 %v3719, %v3837
        %3839 = vmatmul.f32.gmra.mxu0 %v1397
        %v3840 = vpop.f32.mrf.mxu0
        %v3841 = vadd.f32 %v3722, %v3840
        %3842 = vmatmul.f32.gmra.mxu0 %v1399
        %v3843 = vpop.f32.mrf.mxu0
        %v3844 = vadd.f32 %v3725, %v3843
        %3845 = vmatmul.f32.gmra.mxu0 %v1401
        %v3846 = vpop.f32.mrf.mxu0
        %v3847 = vadd.f32 %v3728, %v3846
        %3848 = vmatmul.f32.gmra.mxu0 %v1403
        %v3849 = vpop.f32.mrf.mxu0
        %v3850 = vadd.f32 %v3731, %v3849
        %3851 = vmatmul.f32.gmra.mxu0 %v1405
        %v3852 = vpop.f32.mrf.mxu0
        %v3853 = vadd.f32 %v3734, %v3852
        %3854 = vmatmul.f32.gmra.mxu0 %v1407
        %v3855 = vpop.f32.mrf.mxu0
        %v3856 = vadd.f32 %v3737, %v3855
        %3857 = vmatmul.f32.gmra.mxu0 %v1409
        %v3858 = vpop.f32.mrf.mxu0
        %v3859 = vadd.f32 %v3740, %v3858
        %3860 = vmatmul.f32.gmra.mxu0 %v1411
        %v3861 = vpop.f32.mrf.mxu0
        %v3862 = vadd.f32 %v3743, %v3861
        %3863 = vmatmul.f32.gmra.mxu0 %v1413
        %v3864 = vpop.f32.mrf.mxu0
        %v3865 = vadd.f32 %v3746, %v3864
        %3866 = vmatmul.f32.gmra.mxu0 %v1415
        %v3867 = vpop.f32.mrf.mxu0
        %v3868 = vadd.f32 %v3749, %v3867
        %3869 = vmatmul.f32.gmra.mxu0 %v1417
        %v3870 = vpop.f32.mrf.mxu0
        %v3871 = vadd.f32 %v3752, %v3870
        %3872 = vmatmul.f32.gmra.mxu0 %v1419
        %v3873 = vpop.f32.mrf.mxu0
        %v3874 = vadd.f32 %v3755, %v3873
        %3875 = vmatmul.f32.gmra.mxu0 %v1421
        %v3876 = vpop.f32.mrf.mxu0
        %v3877 = vadd.f32 %v3758, %v3876
        %3878 = vmatmul.f32.gmra.mxu0 %v1423
        %v3879 = vpop.f32.mrf.mxu0
        %v3880 = vadd.f32 %v3761, %v3879
        %3881 = vmatmul.f32.gmra.mxu0 %v1425
        %v3882 = vpop.f32.mrf.mxu0
        %v3883 = vadd.f32 %v3764, %v3882
        %3884 = vmatmul.f32.gmra.mxu0 %v1427
        %v3885 = vpop.f32.mrf.mxu0
        %v3886 = vadd.f32 %v3767, %v3885
        %3887 = vmatmul.f32.gmra.mxu0 %v1429
        %v3888 = vpop.f32.mrf.mxu0
        %v3889 = vadd.f32 %v3770, %v3888
        %3890 = vmatmul.f32.gmra.mxu0 %v1431
        %v3891 = vpop.f32.mrf.mxu0
        %v3892 = vadd.f32 %v3773, %v3891
        %3893 = vmatmul.f32.gmra.mxu0 %v1433
        %v3894 = vpop.f32.mrf.mxu0
        %v3895 = vadd.f32 %v3776, %v3894
        %3896 = vmatmul.f32.gmra.mxu0 %v1435
        %v3897 = vpop.f32.mrf.mxu0
        %v3898 = vadd.f32 %v3779, %v3897
        %3899 = vmatmul.f32.gmra.mxu0 %v1437
        %v3900 = vpop.f32.mrf.mxu0
        %v3901 = vadd.f32 %v3782, %v3900
        %3902 = vmatmul.f32.gmra.mxu0 %v1439
        %v3903 = vpop.f32.mrf.mxu0
        %v3904 = vadd.f32 %v3785, %v3903
        %3905 = vmatmul.f32.gmra.mxu0 %v1441
        %v3906 = vpop.f32.mrf.mxu0
        %v3907 = vadd.f32 %v3788, %v3906
        %3908 = vdwg.mxu0
        %v3909 = vmul.f32 %v3904, %v3904
        %v3910 = vmul.f32 %v3907, %v3907
        %3911 = vadd.xlane.f32.xlu0 %v3909
        %v3912 = vpop.xlane.xlu0 %3911
        %3913 = vadd.xlane.f32.xlu0 %v3910
        %v3914 = vpop.xlane.xlu0 %3913
        %v3915 = vrsqrt.pop %v3912
        %v3916 = vmul.f32 %v3915, %v3912
        %v3917 = vmul.f32 %v3916, %v3915
        %v3918 = vmul.f32 0.5, %v3917
        %v3919 = vsub.f32 1.5, %v3918
        %v3920 = vmul.f32 %v3915, %v3919
        %v3921 = vmul.f32 %v3912, %v3920
        %vm3922 = vcmp.eq.f32.partialorder %v3912, inf
        %v3923 = vsel %vm3922, %v3912, %v3921
        %vm3924 = vcmp.eq.f32.partialorder %v3912, 0.0
        %v3925 = vand.u32 %v3912, 2147483648
        %v3926 = vsel %vm3924, %v3925, %v3923
        %v3927 = vrsqrt.pop %v3914
        %v3928 = vmul.f32 %v3927, %v3914
        %v3929 = vmul.f32 %v3928, %v3927
        %v3930 = vmul.f32 0.5, %v3929
        %v3931 = vsub.f32 1.5, %v3930
        %v3932 = vmul.f32 %v3927, %v3931
        %v3933 = vmul.f32 %v3914, %v3932
        %vm3934 = vcmp.eq.f32.partialorder %v3914, inf
        %v3935 = vsel %vm3934, %v3914, %v3933
        %vm3936 = vcmp.eq.f32.partialorder %v3914, 0.0
        %v3937 = vand.u32 %v3914, 2147483648
        %v3938 = vsel %vm3936, %v3937, %v3935
        %v3939 = vadd.f32 %v3926, 1e-08
        %v3940 = vadd.f32 %v3938, 1e-08
        %v3941 = vrcp.pop %v3939
        %v3942 = vmul.f32 %v3939, %v3941
        %v3943 = vsub.f32 1.0, %v3942
        %v3944 = vmul.f32 %v3941, %v3943
        %v3945 = vadd.f32 %v3941, %v3944
        %vm3946 = vweird.f32 %v3939
        %vm3947 = vweird.f32 %v3941
        %vm3948 = vmor %vm3946, %vm3947
        %v3949 = vsel %vm3948, %v3941, %v3945
        %v3950 = vand.u32 2147483647, %v3939
        %vm3951 = vcmp.eq.f32.partialorder %v3950, 8.507059e+37
        %v3952 = vand.u32 %v3939, 2147483648
        %v3953 = vor.u32 1.1754944e-38, %v3952
        %v3954 = vsel %vm3951, %v3953, %v3949
        %v3955 = vrcp.pop %v3940
        %v3956 = vmul.f32 %v3940, %v3955
        %v3957 = vsub.f32 1.0, %v3956
        %v3958 = vmul.f32 %v3955, %v3957
        %v3959 = vadd.f32 %v3955, %v3958
        %vm3960 = vweird.f32 %v3940
        %vm3961 = vweird.f32 %v3955
        %vm3962 = vmor %vm3960, %vm3961
        %v3963 = vsel %vm3962, %v3955, %v3959
        %v3964 = vand.u32 2147483647, %v3940
        %vm3965 = vcmp.eq.f32.partialorder %v3964, 8.507059e+37
        %v3966 = vand.u32 %v3940, 2147483648
        %v3967 = vor.u32 1.1754944e-38, %v3966
        %v3968 = vsel %vm3965, %v3967, %v3963
        %v3969 = vmul.f32 %v3904, %v3954
        %v3970 = vmul.f32 %v3907, %v3968
        %s3971 = scalar_lea.vmem [#allocation19], 128
        %v3972 = vld [vmem:[%s3971] sm:$0xff]
        %v3973 = vld [vmem:[%s3971 + $0x8] sm:$0xff]
        %v3974 = vld [vmem:[%s3971 + $0x10] sm:$0xff]
        %v3975 = vld [vmem:[%s3971 + $0x18] sm:$0xff]
        %v3976 = vld [vmem:[%s3971 + $0x20] sm:$0xff]
        %v3977 = vld [vmem:[%s3971 + $0x28] sm:$0xff]
        %v3978 = vld [vmem:[%s3971 + $0x30] sm:$0xff]
        %v3979 = vld [vmem:[%s3971 + $0x38] sm:$0xff]
        %v3980 = vld [vmem:[%s3971 + $0x40] sm:$0xff]
        %v3981 = vld [vmem:[%s3971 + $0x48] sm:$0xff]
        %v3982 = vld [vmem:[%s3971 + $0x50] sm:$0xff]
        %v3983 = vld [vmem:[%s3971 + $0x58] sm:$0xff]
        %v3984 = vld [vmem:[%s3971 + $0x60] sm:$0xff]
        %v3985 = vld [vmem:[%s3971 + $0x68] sm:$0xff]
        %v3986 = vld [vmem:[%s3971 + $0x70] sm:$0xff]
        %v3987 = vld [vmem:[%s3971 + $0x78] sm:$0xff]
        %3988 = vmatpush.msra.mxu0 %v3987
        %3989 = vmatpush.msra.mxu0 %v3986
        %3990 = vmatpush.msra.mxu0 %v3985
        %3991 = vmatpush.msra.mxu0 %v3984
        %3992 = vmatpush.msra.mxu0 %v3983
        %3993 = vmatpush.msra.mxu0 %v3982
        %3994 = vmatpush.msra.mxu0 %v3981
        %3995 = vmatpush.msra.mxu0 %v3980
        %3996 = vmatpush.msra.mxu0 %v3979
        %3997 = vmatpush.msra.mxu0 %v3978
        %3998 = vmatpush.msra.mxu0 %v3977
        %3999 = vmatpush.msra.mxu0 %v3976
        %4000 = vmatpush.msra.mxu0 %v3975
        %4001 = vmatpush.msra.mxu0 %v3974
        %4002 = vmatpush.msra.mxu0 %v3973
        %4003 = vmatpush.msra.mxu0 %v3972
        %4004 = vmatmul.f32.gmra.mxu0 %v3969
        %v4005 = vpop.f32.mrf.mxu0
        %v4006 = vadd.f32 0.0, %v4005
        %4007 = vmatmul.f32.gmra.mxu0 %v3970
        %v4008 = vpop.f32.mrf.mxu0
        %v4009 = vadd.f32 0.0, %v4008
        %4010 = vdwg.mxu0
        %s4011 = scalar_lea.vmem [#allocation16], 128
        %v4012 = vld [vmem:[%s4011] sm:$0xff]
        %v4013 = vld [vmem:[%s4011 + $0x8] sm:$0xff]
        %v4014 = vld [vmem:[%s4011 + $0x10] sm:$0xff]
        %v4015 = vld [vmem:[%s4011 + $0x18] sm:$0xff]
        %v4016 = vld [vmem:[%s4011 + $0x20] sm:$0xff]
        %v4017 = vld [vmem:[%s4011 + $0x28] sm:$0xff]
        %v4018 = vld [vmem:[%s4011 + $0x30] sm:$0xff]
        %v4019 = vld [vmem:[%s4011 + $0x38] sm:$0xff]
        %v4020 = vld [vmem:[%s4011 + $0x40] sm:$0xff]
        %v4021 = vld [vmem:[%s4011 + $0x48] sm:$0xff]
        %v4022 = vld [vmem:[%s4011 + $0x50] sm:$0xff]
        %v4023 = vld [vmem:[%s4011 + $0x58] sm:$0xff]
        %v4024 = vld [vmem:[%s4011 + $0x60] sm:$0xff]
        %v4025 = vld [vmem:[%s4011 + $0x68] sm:$0xff]
        %v4026 = vld [vmem:[%s4011 + $0x70] sm:$0xff]
        %v4027 = vld [vmem:[%s4011 + $0x78] sm:$0xff]
        %s4028 = scalar_lea.vmem [#allocation17], 128
        %v4029 = vld [vmem:[%s4028] sm:$0xff]
        %v4030 = vld [vmem:[%s4028 + $0x8] sm:$0xff]
        %v4031 = vld [vmem:[%s4028 + $0x10] sm:$0xff]
        %v4032 = vld [vmem:[%s4028 + $0x18] sm:$0xff]
        %v4033 = vld [vmem:[%s4028 + $0x20] sm:$0xff]
        %v4034 = vld [vmem:[%s4028 + $0x28] sm:$0xff]
        %v4035 = vld [vmem:[%s4028 + $0x30] sm:$0xff]
        %v4036 = vld [vmem:[%s4028 + $0x38] sm:$0xff]
        %v4037 = vld [vmem:[%s4028 + $0x40] sm:$0xff]
        %v4038 = vld [vmem:[%s4028 + $0x48] sm:$0xff]
        %v4039 = vld [vmem:[%s4028 + $0x50] sm:$0xff]
        %v4040 = vld [vmem:[%s4028 + $0x58] sm:$0xff]
        %v4041 = vld [vmem:[%s4028 + $0x60] sm:$0xff]
        %v4042 = vld [vmem:[%s4028 + $0x68] sm:$0xff]
        %v4043 = vld [vmem:[%s4028 + $0x70] sm:$0xff]
        %v4044 = vld [vmem:[%s4028 + $0x78] sm:$0xff]
        %4045 = vmatpush.msra.mxu0 %v4044
        %4046 = vmatpush.msra.mxu0 %v4043
        %4047 = vmatpush.msra.mxu0 %v4042
        %4048 = vmatpush.msra.mxu0 %v4041
        %4049 = vmatpush.msra.mxu0 %v4040
        %4050 = vmatpush.msra.mxu0 %v4039
        %4051 = vmatpush.msra.mxu0 %v4038
        %4052 = vmatpush.msra.mxu0 %v4037
        %4053 = vmatpush.msra.mxu0 %v4036
        %4054 = vmatpush.msra.mxu0 %v4035
        %4055 = vmatpush.msra.mxu0 %v4034
        %4056 = vmatpush.msra.mxu0 %v4033
        %4057 = vmatpush.msra.mxu0 %v4032
        %4058 = vmatpush.msra.mxu0 %v4031
        %4059 = vmatpush.msra.mxu0 %v4030
        %4060 = vmatpush.msra.mxu0 %v4029
        %4061 = vmatmul.f32.gmra.mxu0 %v3639
        %v4062 = vpop.f32.mrf.mxu0
        %v4063 = vadd.f32 0.0, %v4062
        %4064 = vmatmul.f32.gmra.mxu0 %v3640
        %v4065 = vpop.f32.mrf.mxu0
        %v4066 = vadd.f32 0.0, %v4065
        %4067 = vmatmul.f32.gmra.mxu0 %v3641
        %v4068 = vpop.f32.mrf.mxu0
        %v4069 = vadd.f32 0.0, %v4068
        %4070 = vmatmul.f32.gmra.mxu0 %v3642
        %v4071 = vpop.f32.mrf.mxu0
        %v4072 = vadd.f32 0.0, %v4071
        %4073 = vmatmul.f32.gmra.mxu0 %v3643
        %v4074 = vpop.f32.mrf.mxu0
        %v4075 = vadd.f32 0.0, %v4074
        %4076 = vmatmul.f32.gmra.mxu0 %v3644
        %v4077 = vpop.f32.mrf.mxu0
        %v4078 = vadd.f32 0.0, %v4077
        %4079 = vmatmul.f32.gmra.mxu0 %v3645
        %v4080 = vpop.f32.mrf.mxu0
        %v4081 = vadd.f32 0.0, %v4080
        %4082 = vmatmul.f32.gmra.mxu0 %v3646
        %v4083 = vpop.f32.mrf.mxu0
        %v4084 = vadd.f32 0.0, %v4083
        %4085 = vmatmul.f32.gmra.mxu0 %v3647
        %v4086 = vpop.f32.mrf.mxu0
        %v4087 = vadd.f32 0.0, %v4086
        %4088 = vmatmul.f32.gmra.mxu0 %v3648
        %v4089 = vpop.f32.mrf.mxu0
        %v4090 = vadd.f32 0.0, %v4089
        %4091 = vmatmul.f32.gmra.mxu0 %v3649
        %v4092 = vpop.f32.mrf.mxu0
        %v4093 = vadd.f32 0.0, %v4092
        %4094 = vmatmul.f32.gmra.mxu0 %v3650
        %v4095 = vpop.f32.mrf.mxu0
        %v4096 = vadd.f32 0.0, %v4095
        %4097 = vmatmul.f32.gmra.mxu0 %v3651
        %v4098 = vpop.f32.mrf.mxu0
        %v4099 = vadd.f32 0.0, %v4098
        %4100 = vmatmul.f32.gmra.mxu0 %v3652
        %v4101 = vpop.f32.mrf.mxu0
        %v4102 = vadd.f32 0.0, %v4101
        %4103 = vmatmul.f32.gmra.mxu0 %v3653
        %v4104 = vpop.f32.mrf.mxu0
        %v4105 = vadd.f32 0.0, %v4104
        %4106 = vmatmul.f32.gmra.mxu0 %v3654
        %v4107 = vpop.f32.mrf.mxu0
        %v4108 = vadd.f32 0.0, %v4107
        %4109 = vmatmul.f32.gmra.mxu0 %v3655
        %v4110 = vpop.f32.mrf.mxu0
        %v4111 = vadd.f32 0.0, %v4110
        %4112 = vmatmul.f32.gmra.mxu0 %v3656
        %v4113 = vpop.f32.mrf.mxu0
        %v4114 = vadd.f32 0.0, %v4113
        %4115 = vmatmul.f32.gmra.mxu0 %v3657
        %v4116 = vpop.f32.mrf.mxu0
        %v4117 = vadd.f32 0.0, %v4116
        %4118 = vmatmul.f32.gmra.mxu0 %v3658
        %v4119 = vpop.f32.mrf.mxu0
        %v4120 = vadd.f32 0.0, %v4119
        %4121 = vmatmul.f32.gmra.mxu0 %v3659
        %v4122 = vpop.f32.mrf.mxu0
        %v4123 = vadd.f32 0.0, %v4122
        %4124 = vmatmul.f32.gmra.mxu0 %v3660
        %v4125 = vpop.f32.mrf.mxu0
        %v4126 = vadd.f32 0.0, %v4125
        %4127 = vmatmul.f32.gmra.mxu0 %v3661
        %v4128 = vpop.f32.mrf.mxu0
        %v4129 = vadd.f32 0.0, %v4128
        %4130 = vmatmul.f32.gmra.mxu0 %v3662
        %v4131 = vpop.f32.mrf.mxu0
        %v4132 = vadd.f32 0.0, %v4131
        %4133 = vmatmul.f32.gmra.mxu0 %v3663
        %v4134 = vpop.f32.mrf.mxu0
        %v4135 = vadd.f32 0.0, %v4134
        %4136 = vmatmul.f32.gmra.mxu0 %v3664
        %v4137 = vpop.f32.mrf.mxu0
        %v4138 = vadd.f32 0.0, %v4137
        %4139 = vmatmul.f32.gmra.mxu0 %v3665
        %v4140 = vpop.f32.mrf.mxu0
        %v4141 = vadd.f32 0.0, %v4140
        %4142 = vmatmul.f32.gmra.mxu0 %v3666
        %v4143 = vpop.f32.mrf.mxu0
        %v4144 = vadd.f32 0.0, %v4143
        %4145 = vmatmul.f32.gmra.mxu0 %v3667
        %v4146 = vpop.f32.mrf.mxu0
        %v4147 = vadd.f32 0.0, %v4146
        %4148 = vmatmul.f32.gmra.mxu0 %v3668
        %v4149 = vpop.f32.mrf.mxu0
        %v4150 = vadd.f32 0.0, %v4149
        %4151 = vmatmul.f32.gmra.mxu0 %v3669
        %v4152 = vpop.f32.mrf.mxu0
        %v4153 = vadd.f32 0.0, %v4152
        %4154 = vmatmul.f32.gmra.mxu0 %v3670
        %v4155 = vpop.f32.mrf.mxu0
        %v4156 = vadd.f32 0.0, %v4155
        %4157 = vdwg.mxu0
        %4158 = vmatpush.msra.mxu0 %v4027
        %4159 = vmatpush.msra.mxu0 %v4026
        %4160 = vmatpush.msra.mxu0 %v4025
        %4161 = vmatpush.msra.mxu0 %v4024
        %4162 = vmatpush.msra.mxu0 %v4023
        %4163 = vmatpush.msra.mxu0 %v4022
        %4164 = vmatpush.msra.mxu0 %v4021
        %4165 = vmatpush.msra.mxu0 %v4020
        %4166 = vmatpush.msra.mxu0 %v4019
        %4167 = vmatpush.msra.mxu0 %v4018
        %4168 = vmatpush.msra.mxu0 %v4017
        %4169 = vmatpush.msra.mxu0 %v4016
        %4170 = vmatpush.msra.mxu0 %v4015
        %4171 = vmatpush.msra.mxu0 %v4014
        %4172 = vmatpush.msra.mxu0 %v4013
        %4173 = vmatpush.msra.mxu0 %v4012
        %4174 = vmatmul.f32.gmra.mxu0 %v3808
        %v4175 = vpop.f32.mrf.mxu0
        %v4176 = vadd.f32 %v4063, %v4175
        %4177 = vmatmul.f32.gmra.mxu0 %v3811
        %v4178 = vpop.f32.mrf.mxu0
        %v4179 = vadd.f32 %v4066, %v4178
        %4180 = vmatmul.f32.gmra.mxu0 %v3814
        %v4181 = vpop.f32.mrf.mxu0
        %v4182 = vadd.f32 %v4069, %v4181
        %4183 = vmatmul.f32.gmra.mxu0 %v3817
        %v4184 = vpop.f32.mrf.mxu0
        %v4185 = vadd.f32 %v4072, %v4184
        %4186 = vmatmul.f32.gmra.mxu0 %v3820
        %v4187 = vpop.f32.mrf.mxu0
        %v4188 = vadd.f32 %v4075, %v4187
        %4189 = vmatmul.f32.gmra.mxu0 %v3823
        %v4190 = vpop.f32.mrf.mxu0
        %v4191 = vadd.f32 %v4078, %v4190
        %4192 = vmatmul.f32.gmra.mxu0 %v3826
        %v4193 = vpop.f32.mrf.mxu0
        %v4194 = vadd.f32 %v4081, %v4193
        %4195 = vmatmul.f32.gmra.mxu0 %v3829
        %v4196 = vpop.f32.mrf.mxu0
        %v4197 = vadd.f32 %v4084, %v4196
        %4198 = vmatmul.f32.gmra.mxu0 %v3832
        %v4199 = vpop.f32.mrf.mxu0
        %v4200 = vadd.f32 %v4087, %v4199
        %4201 = vmatmul.f32.gmra.mxu0 %v3835
        %v4202 = vpop.f32.mrf.mxu0
        %v4203 = vadd.f32 %v4090, %v4202
        %4204 = vmatmul.f32.gmra.mxu0 %v3838
        %v4205 = vpop.f32.mrf.mxu0
        %v4206 = vadd.f32 %v4093, %v4205
        %4207 = vmatmul.f32.gmra.mxu0 %v3841
        %v4208 = vpop.f32.mrf.mxu0
        %v4209 = vadd.f32 %v4096, %v4208
        %4210 = vmatmul.f32.gmra.mxu0 %v3844
        %v4211 = vpop.f32.mrf.mxu0
        %v4212 = vadd.f32 %v4099, %v4211
        %4213 = vmatmul.f32.gmra.mxu0 %v3847
        %v4214 = vpop.f32.mrf.mxu0
        %v4215 = vadd.f32 %v4102, %v4214
        %4216 = vmatmul.f32.gmra.mxu0 %v3850
        %v4217 = vpop.f32.mrf.mxu0
        %v4218 = vadd.f32 %v4105, %v4217
        %4219 = vmatmul.f32.gmra.mxu0 %v3853
        %v4220 = vpop.f32.mrf.mxu0
        %v4221 = vadd.f32 %v4108, %v4220
        %4222 = vmatmul.f32.gmra.mxu0 %v3856
        %v4223 = vpop.f32.mrf.mxu0
        %v4224 = vadd.f32 %v4111, %v4223
        %4225 = vmatmul.f32.gmra.mxu0 %v3859
        %v4226 = vpop.f32.mrf.mxu0
        %v4227 = vadd.f32 %v4114, %v4226
        %4228 = vmatmul.f32.gmra.mxu0 %v3862
        %v4229 = vpop.f32.mrf.mxu0
        %v4230 = vadd.f32 %v4117, %v4229
        %4231 = vmatmul.f32.gmra.mxu0 %v3865
        %v4232 = vpop.f32.mrf.mxu0
        %v4233 = vadd.f32 %v4120, %v4232
        %4234 = vmatmul.f32.gmra.mxu0 %v3868
        %v4235 = vpop.f32.mrf.mxu0
        %v4236 = vadd.f32 %v4123, %v4235
        %4237 = vmatmul.f32.gmra.mxu0 %v3871
        %v4238 = vpop.f32.mrf.mxu0
        %v4239 = vadd.f32 %v4126, %v4238
        %4240 = vmatmul.f32.gmra.mxu0 %v3874
        %v4241 = vpop.f32.mrf.mxu0
        %v4242 = vadd.f32 %v4129, %v4241
        %4243 = vmatmul.f32.gmra.mxu0 %v3877
        %v4244 = vpop.f32.mrf.mxu0
        %v4245 = vadd.f32 %v4132, %v4244
        %4246 = vmatmul.f32.gmra.mxu0 %v3880
        %v4247 = vpop.f32.mrf.mxu0
        %v4248 = vadd.f32 %v4135, %v4247
        %4249 = vmatmul.f32.gmra.mxu0 %v3883
        %v4250 = vpop.f32.mrf.mxu0
        %v4251 = vadd.f32 %v4138, %v4250
        %4252 = vmatmul.f32.gmra.mxu0 %v3886
        %v4253 = vpop.f32.mrf.mxu0
        %v4254 = vadd.f32 %v4141, %v4253
        %4255 = vmatmul.f32.gmra.mxu0 %v3889
        %v4256 = vpop.f32.mrf.mxu0
        %v4257 = vadd.f32 %v4144, %v4256
        %4258 = vmatmul.f32.gmra.mxu0 %v3892
        %v4259 = vpop.f32.mrf.mxu0
        %v4260 = vadd.f32 %v4147, %v4259
        %4261 = vmatmul.f32.gmra.mxu0 %v3895
        %v4262 = vpop.f32.mrf.mxu0
        %v4263 = vadd.f32 %v4150, %v4262
        %4264 = vmatmul.f32.gmra.mxu0 %v3898
        %v4265 = vpop.f32.mrf.mxu0
        %v4266 = vadd.f32 %v4153, %v4265
        %4267 = vmatmul.f32.gmra.mxu0 %v3901
        %v4268 = vpop.f32.mrf.mxu0
        %v4269 = vadd.f32 %v4156, %v4268
        %4270 = vdwg.mxu0
        %4271 = vmatpush.msra.mxu0 0.0
        %4272 = vmatpush.msra.mxu0 0.0
        %4273 = vmatpush.msra.mxu0 0.0
        %4274 = vmatpush.msra.mxu0 0.0
        %4275 = vmatpush.msra.mxu0 0.0
        %4276 = vmatpush.msra.mxu0 0.0
        %4277 = vmatpush.msra.mxu0 0.0
        %4278 = vmatpush.msra.mxu0 0.0
        %4279 = vmatpush.msra.mxu0 0.0
        %4280 = vmatpush.msra.mxu0 0.0
        %4281 = vmatpush.msra.mxu0 0.0
        %4282 = vmatpush.msra.mxu0 0.0
        %4283 = vmatpush.msra.mxu0 0.0
        %4284 = vmatpush.msra.mxu0 0.0
        %4285 = vmatpush.msra.mxu0 %v4009
        %4286 = vmatpush.msra.mxu0 %v4006
        %4287 = vmatmul.f32.gmra.mxu0 %v2073
        %v4288 = vpop.f32.mrf.mxu0
        %v4289 = vadd.f32 0.0, %v4288
        %4290 = vmatmul.f32.gmra.mxu0 %v2076
        %v4291 = vpop.f32.mrf.mxu0
        %v4292 = vadd.f32 0.0, %v4291
        %4293 = vmatmul.f32.gmra.mxu0 %v2079
        %v4294 = vpop.f32.mrf.mxu0
        %v4295 = vadd.f32 0.0, %v4294
        %4296 = vmatmul.f32.gmra.mxu0 %v2082
        %v4297 = vpop.f32.mrf.mxu0
        %v4298 = vadd.f32 0.0, %v4297
        %4299 = vmatmul.f32.gmra.mxu0 %v2085
        %v4300 = vpop.f32.mrf.mxu0
        %v4301 = vadd.f32 0.0, %v4300
        %4302 = vmatmul.f32.gmra.mxu0 %v2088
        %v4303 = vpop.f32.mrf.mxu0
        %v4304 = vadd.f32 0.0, %v4303
        %4305 = vmatmul.f32.gmra.mxu0 %v2091
        %v4306 = vpop.f32.mrf.mxu0
        %v4307 = vadd.f32 0.0, %v4306
        %4308 = vmatmul.f32.gmra.mxu0 %v2094
        %v4309 = vpop.f32.mrf.mxu0
        %v4310 = vadd.f32 0.0, %v4309
        %4311 = vmatmul.f32.gmra.mxu0 %v2097
        %v4312 = vpop.f32.mrf.mxu0
        %v4313 = vadd.f32 0.0, %v4312
        %4314 = vmatmul.f32.gmra.mxu0 %v2100
        %v4315 = vpop.f32.mrf.mxu0
        %v4316 = vadd.f32 0.0, %v4315
        %4317 = vmatmul.f32.gmra.mxu0 %v2103
        %v4318 = vpop.f32.mrf.mxu0
        %v4319 = vadd.f32 0.0, %v4318
        %4320 = vmatmul.f32.gmra.mxu0 %v2106
        %v4321 = vpop.f32.mrf.mxu0
        %v4322 = vadd.f32 0.0, %v4321
        %4323 = vmatmul.f32.gmra.mxu0 %v2109
        %v4324 = vpop.f32.mrf.mxu0
        %v4325 = vadd.f32 0.0, %v4324
        %4326 = vmatmul.f32.gmra.mxu0 %v2112
        %v4327 = vpop.f32.mrf.mxu0
        %v4328 = vadd.f32 0.0, %v4327
        %4329 = vmatmul.f32.gmra.mxu0 %v2115
        %v4330 = vpop.f32.mrf.mxu0
        %v4331 = vadd.f32 0.0, %v4330
        %4332 = vmatmul.f32.gmra.mxu0 %v2118
        %v4333 = vpop.f32.mrf.mxu0
        %v4334 = vadd.f32 0.0, %v4333
        %4335 = vmatmul.f32.gmra.mxu0 %v2121
        %v4336 = vpop.f32.mrf.mxu0
        %v4337 = vadd.f32 0.0, %v4336
        %4338 = vmatmul.f32.gmra.mxu0 %v2124
        %v4339 = vpop.f32.mrf.mxu0
        %v4340 = vadd.f32 0.0, %v4339
        %4341 = vmatmul.f32.gmra.mxu0 %v2127
        %v4342 = vpop.f32.mrf.mxu0
        %v4343 = vadd.f32 0.0, %v4342
        %4344 = vmatmul.f32.gmra.mxu0 %v2130
        %v4345 = vpop.f32.mrf.mxu0
        %v4346 = vadd.f32 0.0, %v4345
        %4347 = vmatmul.f32.gmra.mxu0 %v2133
        %v4348 = vpop.f32.mrf.mxu0
        %v4349 = vadd.f32 0.0, %v4348
        %4350 = vmatmul.f32.gmra.mxu0 %v2136
        %v4351 = vpop.f32.mrf.mxu0
        %v4352 = vadd.f32 0.0, %v4351
        %4353 = vmatmul.f32.gmra.mxu0 %v2139
        %v4354 = vpop.f32.mrf.mxu0
        %v4355 = vadd.f32 0.0, %v4354
        %4356 = vmatmul.f32.gmra.mxu0 %v2142
        %v4357 = vpop.f32.mrf.mxu0
        %v4358 = vadd.f32 0.0, %v4357
        %4359 = vmatmul.f32.gmra.mxu0 %v2145
        %v4360 = vpop.f32.mrf.mxu0
        %v4361 = vadd.f32 0.0, %v4360
        %4362 = vmatmul.f32.gmra.mxu0 %v2148
        %v4363 = vpop.f32.mrf.mxu0
        %v4364 = vadd.f32 0.0, %v4363
        %4365 = vmatmul.f32.gmra.mxu0 %v2151
        %v4366 = vpop.f32.mrf.mxu0
        %v4367 = vadd.f32 0.0, %v4366
        %4368 = vmatmul.f32.gmra.mxu0 %v2154
        %v4369 = vpop.f32.mrf.mxu0
        %v4370 = vadd.f32 0.0, %v4369
        %4371 = vmatmul.f32.gmra.mxu0 %v2157
        %v4372 = vpop.f32.mrf.mxu0
        %v4373 = vadd.f32 0.0, %v4372
        %4374 = vmatmul.f32.gmra.mxu0 %v2160
        %v4375 = vpop.f32.mrf.mxu0
        %v4376 = vadd.f32 0.0, %v4375
        %4377 = vmatmul.f32.gmra.mxu0 %v2163
        %v4378 = vpop.f32.mrf.mxu0
        %v4379 = vadd.f32 0.0, %v4378
        %4380 = vmatmul.f32.gmra.mxu0 %v2166
        %v4381 = vpop.f32.mrf.mxu0
        %v4382 = vadd.f32 0.0, %v4381
        %4383 = vdwg.mxu0
        %v4384 = vadd.f32 %v4176, %v4289
        %v4385 = vadd.f32 %v4179, %v4292
        %v4386 = vadd.f32 %v4182, %v4295
        %v4387 = vadd.f32 %v4185, %v4298
        %v4388 = vadd.f32 %v4188, %v4301
        %v4389 = vadd.f32 %v4191, %v4304
        %v4390 = vadd.f32 %v4194, %v4307
        %v4391 = vadd.f32 %v4197, %v4310
        %v4392 = vadd.f32 %v4200, %v4313
        %v4393 = vadd.f32 %v4203, %v4316
        %v4394 = vadd.f32 %v4206, %v4319
        %v4395 = vadd.f32 %v4209, %v4322
        %v4396 = vadd.f32 %v4212, %v4325
        %v4397 = vadd.f32 %v4215, %v4328
        %v4398 = vadd.f32 %v4218, %v4331
        %v4399 = vadd.f32 %v4221, %v4334
        %v4400 = vadd.f32 %v4224, %v4337
        %v4401 = vadd.f32 %v4227, %v4340
        %v4402 = vadd.f32 %v4230, %v4343
        %v4403 = vadd.f32 %v4233, %v4346
        %v4404 = vadd.f32 %v4236, %v4349
        %v4405 = vadd.f32 %v4239, %v4352
        %v4406 = vadd.f32 %v4242, %v4355
        %v4407 = vadd.f32 %v4245, %v4358
        %v4408 = vadd.f32 %v4248, %v4361
        %v4409 = vadd.f32 %v4251, %v4364
        %v4410 = vadd.f32 %v4254, %v4367
        %v4411 = vadd.f32 %v4257, %v4370
        %v4412 = vadd.f32 %v4260, %v4373
        %v4413 = vadd.f32 %v4263, %v4376
        %v4414 = vadd.f32 %v4266, %v4379
        %v4415 = vadd.f32 %v4269, %v4382
        %s4416 = scalar_lea.vmem [#allocation20], 1
        %v4417 = vld [vmem:[%s4416] sm:$0x1]
        %v4419 = vperm.slane %v4417, 0
        %v4421 = vadd.f32 %v4384, %v4419
        %v4422 = vadd.f32 %v4385, %v4419
        %v4423 = vadd.f32 %v4386, %v4419
        %v4424 = vadd.f32 %v4387, %v4419
        %v4425 = vadd.f32 %v4388, %v4419
        %v4426 = vadd.f32 %v4389, %v4419
        %v4427 = vadd.f32 %v4390, %v4419
        %v4428 = vadd.f32 %v4391, %v4419
        %v4429 = vadd.f32 %v4392, %v4419
        %v4430 = vadd.f32 %v4393, %v4419
        %v4431 = vadd.f32 %v4394, %v4419
        %v4432 = vadd.f32 %v4395, %v4419
        %v4433 = vadd.f32 %v4396, %v4419
        %v4434 = vadd.f32 %v4397, %v4419
        %v4435 = vadd.f32 %v4398, %v4419
        %v4436 = vadd.f32 %v4399, %v4419
        %v4437 = vadd.f32 %v4400, %v4419
        %v4438 = vadd.f32 %v4401, %v4419
        %v4439 = vadd.f32 %v4402, %v4419
        %v4440 = vadd.f32 %v4403, %v4419
        %v4441 = vadd.f32 %v4404, %v4419
        %v4442 = vadd.f32 %v4405, %v4419
        %v4443 = vadd.f32 %v4406, %v4419
        %v4444 = vadd.f32 %v4407, %v4419
        %v4445 = vadd.f32 %v4408, %v4419
        %v4446 = vadd.f32 %v4409, %v4419
        %v4447 = vadd.f32 %v4410, %v4419
        %v4448 = vadd.f32 %v4411, %v4419
        %v4449 = vadd.f32 %v4412, %v4419
        %v4450 = vadd.f32 %v4413, %v4419
        %v4451 = vadd.f32 %v4414, %v4419
        %v4452 = vadd.f32 %v4415, %v4419
        %v4453 = vmax.f32 %v4421, 0.0
        %v4454 = vmax.f32 %v4422, 0.0
        %v4455 = vmax.f32 %v4423, 0.0
        %v4456 = vmax.f32 %v4424, 0.0
        %v4457 = vmax.f32 %v4425, 0.0
        %v4458 = vmax.f32 %v4426, 0.0
        %v4459 = vmax.f32 %v4427, 0.0
        %v4460 = vmax.f32 %v4428, 0.0
        %v4461 = vmax.f32 %v4429, 0.0
        %v4462 = vmax.f32 %v4430, 0.0
        %v4463 = vmax.f32 %v4431, 0.0
        %v4464 = vmax.f32 %v4432, 0.0
        %v4465 = vmax.f32 %v4433, 0.0
        %v4466 = vmax.f32 %v4434, 0.0
        %v4467 = vmax.f32 %v4435, 0.0
        %v4468 = vmax.f32 %v4436, 0.0
        %v4469 = vmax.f32 %v4437, 0.0
        %v4470 = vmax.f32 %v4438, 0.0
        %v4471 = vmax.f32 %v4439, 0.0
        %v4472 = vmax.f32 %v4440, 0.0
        %v4473 = vmax.f32 %v4441, 0.0
        %v4474 = vmax.f32 %v4442, 0.0
        %v4475 = vmax.f32 %v4443, 0.0
        %v4476 = vmax.f32 %v4444, 0.0
        %v4477 = vmax.f32 %v4445, 0.0
        %v4478 = vmax.f32 %v4446, 0.0
        %v4479 = vmax.f32 %v4447, 0.0
        %v4480 = vmax.f32 %v4448, 0.0
        %v4481 = vmax.f32 %v4449, 0.0
        %v4482 = vmax.f32 %v4450, 0.0
        %v4483 = vmax.f32 %v4451, 0.0
        %v4484 = vmax.f32 %v4452, 0.0
        %s4485 = scalar_lea.vmem [#allocation22], 128
        %v4486 = vld [vmem:[%s4485] sm:$0xff]
        %v4487 = vld [vmem:[%s4485 + $0x8] sm:$0xff]
        %v4488 = vld [vmem:[%s4485 + $0x10] sm:$0xff]
        %v4489 = vld [vmem:[%s4485 + $0x18] sm:$0xff]
        %v4490 = vld [vmem:[%s4485 + $0x20] sm:$0xff]
        %v4491 = vld [vmem:[%s4485 + $0x28] sm:$0xff]
        %v4492 = vld [vmem:[%s4485 + $0x30] sm:$0xff]
        %v4493 = vld [vmem:[%s4485 + $0x38] sm:$0xff]
        %v4494 = vld [vmem:[%s4485 + $0x40] sm:$0xff]
        %v4495 = vld [vmem:[%s4485 + $0x48] sm:$0xff]
        %v4496 = vld [vmem:[%s4485 + $0x50] sm:$0xff]
        %v4497 = vld [vmem:[%s4485 + $0x58] sm:$0xff]
        %v4498 = vld [vmem:[%s4485 + $0x60] sm:$0xff]
        %v4499 = vld [vmem:[%s4485 + $0x68] sm:$0xff]
        %v4500 = vld [vmem:[%s4485 + $0x70] sm:$0xff]
        %v4501 = vld [vmem:[%s4485 + $0x78] sm:$0xff]
        %s4502 = scalar_lea.vmem [#allocation23], 1
        %v4503 = vld [vmem:[%s4502] sm:$0x1]
        %v4505 = vperm.slane %v4503, 0
        %4507 = vmatpush.msra.mxu0 %v4501
        %4508 = vmatpush.msra.mxu0 %v4500
        %4509 = vmatpush.msra.mxu0 %v4499
        %4510 = vmatpush.msra.mxu0 %v4498
        %4511 = vmatpush.msra.mxu0 %v4497
        %4512 = vmatpush.msra.mxu0 %v4496
        %4513 = vmatpush.msra.mxu0 %v4495
        %4514 = vmatpush.msra.mxu0 %v4494
        %4515 = vmatpush.msra.mxu0 %v4493
        %4516 = vmatpush.msra.mxu0 %v4492
        %4517 = vmatpush.msra.mxu0 %v4491
        %4518 = vmatpush.msra.mxu0 %v4490
        %4519 = vmatpush.msra.mxu0 %v4489
        %4520 = vmatpush.msra.mxu0 %v4488
        %4521 = vmatpush.msra.mxu0 %v4487
        %4522 = vmatpush.msra.mxu0 %v4486
        %4523 = vmatmul.f32.gmra.mxu0 %v4453
        %v4524 = vpop.f32.mrf.mxu0
        %v4525 = vadd.f32 %v4505, %v4524
        %4526 = vmatmul.f32.gmra.mxu0 %v4454
        %v4527 = vpop.f32.mrf.mxu0
        %v4528 = vadd.f32 %v4505, %v4527
        %4529 = vmatmul.f32.gmra.mxu0 %v4455
        %v4530 = vpop.f32.mrf.mxu0
        %v4531 = vadd.f32 %v4505, %v4530
        %4532 = vmatmul.f32.gmra.mxu0 %v4456
        %v4533 = vpop.f32.mrf.mxu0
        %v4534 = vadd.f32 %v4505, %v4533
        %4535 = vmatmul.f32.gmra.mxu0 %v4457
        %v4536 = vpop.f32.mrf.mxu0
        %v4537 = vadd.f32 %v4505, %v4536
        %4538 = vmatmul.f32.gmra.mxu0 %v4458
        %v4539 = vpop.f32.mrf.mxu0
        %v4540 = vadd.f32 %v4505, %v4539
        %4541 = vmatmul.f32.gmra.mxu0 %v4459
        %v4542 = vpop.f32.mrf.mxu0
        %v4543 = vadd.f32 %v4505, %v4542
        %4544 = vmatmul.f32.gmra.mxu0 %v4460
        %v4545 = vpop.f32.mrf.mxu0
        %v4546 = vadd.f32 %v4505, %v4545
        %4547 = vmatmul.f32.gmra.mxu0 %v4461
        %v4548 = vpop.f32.mrf.mxu0
        %v4549 = vadd.f32 %v4505, %v4548
        %4550 = vmatmul.f32.gmra.mxu0 %v4462
        %v4551 = vpop.f32.mrf.mxu0
        %v4552 = vadd.f32 %v4505, %v4551
        %4553 = vmatmul.f32.gmra.mxu0 %v4463
        %v4554 = vpop.f32.mrf.mxu0
        %v4555 = vadd.f32 %v4505, %v4554
        %4556 = vmatmul.f32.gmra.mxu0 %v4464
        %v4557 = vpop.f32.mrf.mxu0
        %v4558 = vadd.f32 %v4505, %v4557
        %4559 = vmatmul.f32.gmra.mxu0 %v4465
        %v4560 = vpop.f32.mrf.mxu0
        %v4561 = vadd.f32 %v4505, %v4560
        %4562 = vmatmul.f32.gmra.mxu0 %v4466
        %v4563 = vpop.f32.mrf.mxu0
        %v4564 = vadd.f32 %v4505, %v4563
        %4565 = vmatmul.f32.gmra.mxu0 %v4467
        %v4566 = vpop.f32.mrf.mxu0
        %v4567 = vadd.f32 %v4505, %v4566
        %4568 = vmatmul.f32.gmra.mxu0 %v4468
        %v4569 = vpop.f32.mrf.mxu0
        %v4570 = vadd.f32 %v4505, %v4569
        %4571 = vmatmul.f32.gmra.mxu0 %v4469
        %v4572 = vpop.f32.mrf.mxu0
        %v4573 = vadd.f32 %v4505, %v4572
        %4574 = vmatmul.f32.gmra.mxu0 %v4470
        %v4575 = vpop.f32.mrf.mxu0
        %v4576 = vadd.f32 %v4505, %v4575
        %4577 = vmatmul.f32.gmra.mxu0 %v4471
        %v4578 = vpop.f32.mrf.mxu0
        %v4579 = vadd.f32 %v4505, %v4578
        %4580 = vmatmul.f32.gmra.mxu0 %v4472
        %v4581 = vpop.f32.mrf.mxu0
        %v4582 = vadd.f32 %v4505, %v4581
        %4583 = vmatmul.f32.gmra.mxu0 %v4473
        %v4584 = vpop.f32.mrf.mxu0
        %v4585 = vadd.f32 %v4505, %v4584
        %4586 = vmatmul.f32.gmra.mxu0 %v4474
        %v4587 = vpop.f32.mrf.mxu0
        %v4588 = vadd.f32 %v4505, %v4587
        %4589 = vmatmul.f32.gmra.mxu0 %v4475
        %v4590 = vpop.f32.mrf.mxu0
        %v4591 = vadd.f32 %v4505, %v4590
        %4592 = vmatmul.f32.gmra.mxu0 %v4476
        %v4593 = vpop.f32.mrf.mxu0
        %v4594 = vadd.f32 %v4505, %v4593
        %4595 = vmatmul.f32.gmra.mxu0 %v4477
        %v4596 = vpop.f32.mrf.mxu0
        %v4597 = vadd.f32 %v4505, %v4596
        %4598 = vmatmul.f32.gmra.mxu0 %v4478
        %v4599 = vpop.f32.mrf.mxu0
        %v4600 = vadd.f32 %v4505, %v4599
        %4601 = vmatmul.f32.gmra.mxu0 %v4479
        %v4602 = vpop.f32.mrf.mxu0
        %v4603 = vadd.f32 %v4505, %v4602
        %4604 = vmatmul.f32.gmra.mxu0 %v4480
        %v4605 = vpop.f32.mrf.mxu0
        %v4606 = vadd.f32 %v4505, %v4605
        %4607 = vmatmul.f32.gmra.mxu0 %v4481
        %v4608 = vpop.f32.mrf.mxu0
        %v4609 = vadd.f32 %v4505, %v4608
        %4610 = vmatmul.f32.gmra.mxu0 %v4482
        %v4611 = vpop.f32.mrf.mxu0
        %v4612 = vadd.f32 %v4505, %v4611
        %4613 = vmatmul.f32.gmra.mxu0 %v4483
        %v4614 = vpop.f32.mrf.mxu0
        %v4615 = vadd.f32 %v4505, %v4614
        %4616 = vmatmul.f32.gmra.mxu0 %v4484
        %v4617 = vpop.f32.mrf.mxu0
        %v4618 = vadd.f32 %v4505, %v4617
        %4619 = vdwg.mxu0
        %v4620 = vmax.f32 %v4525, 0.0
        %v4621 = vmax.f32 %v4528, 0.0
        %v4622 = vmax.f32 %v4531, 0.0
        %v4623 = vmax.f32 %v4534, 0.0
        %v4624 = vmax.f32 %v4537, 0.0
        %v4625 = vmax.f32 %v4540, 0.0
        %v4626 = vmax.f32 %v4543, 0.0
        %v4627 = vmax.f32 %v4546, 0.0
        %v4628 = vmax.f32 %v4549, 0.0
        %v4629 = vmax.f32 %v4552, 0.0
        %v4630 = vmax.f32 %v4555, 0.0
        %v4631 = vmax.f32 %v4558, 0.0
        %v4632 = vmax.f32 %v4561, 0.0
        %v4633 = vmax.f32 %v4564, 0.0
        %v4634 = vmax.f32 %v4567, 0.0
        %v4635 = vmax.f32 %v4570, 0.0
        %v4636 = vmax.f32 %v4573, 0.0
        %v4637 = vmax.f32 %v4576, 0.0
        %v4638 = vmax.f32 %v4579, 0.0
        %v4639 = vmax.f32 %v4582, 0.0
        %v4640 = vmax.f32 %v4585, 0.0
        %v4641 = vmax.f32 %v4588, 0.0
        %v4642 = vmax.f32 %v4591, 0.0
        %v4643 = vmax.f32 %v4594, 0.0
        %v4644 = vmax.f32 %v4597, 0.0
        %v4645 = vmax.f32 %v4600, 0.0
        %v4646 = vmax.f32 %v4603, 0.0
        %v4647 = vmax.f32 %v4606, 0.0
        %v4648 = vmax.f32 %v4609, 0.0
        %v4649 = vmax.f32 %v4612, 0.0
        %v4650 = vmax.f32 %v4615, 0.0
        %v4651 = vmax.f32 %v4618, 0.0
        %s4652 = scalar_lea.vmem [#allocation25], 128
        %v4653 = vld [vmem:[%s4652] sm:$0xff]
        %v4654 = vld [vmem:[%s4652 + $0x8] sm:$0xff]
        %v4655 = vld [vmem:[%s4652 + $0x10] sm:$0xff]
        %v4656 = vld [vmem:[%s4652 + $0x18] sm:$0xff]
        %v4657 = vld [vmem:[%s4652 + $0x20] sm:$0xff]
        %v4658 = vld [vmem:[%s4652 + $0x28] sm:$0xff]
        %v4659 = vld [vmem:[%s4652 + $0x30] sm:$0xff]
        %v4660 = vld [vmem:[%s4652 + $0x38] sm:$0xff]
        %v4661 = vld [vmem:[%s4652 + $0x40] sm:$0xff]
        %v4662 = vld [vmem:[%s4652 + $0x48] sm:$0xff]
        %v4663 = vld [vmem:[%s4652 + $0x50] sm:$0xff]
        %v4664 = vld [vmem:[%s4652 + $0x58] sm:$0xff]
        %v4665 = vld [vmem:[%s4652 + $0x60] sm:$0xff]
        %v4666 = vld [vmem:[%s4652 + $0x68] sm:$0xff]
        %v4667 = vld [vmem:[%s4652 + $0x70] sm:$0xff]
        %v4668 = vld [vmem:[%s4652 + $0x78] sm:$0xff]
        %s4669 = scalar_lea.vmem [#allocation26], 1
        %v4670 = vld [vmem:[%s4669] sm:$0x1]
        %v4672 = vperm.slane %v4670, 0
        %4674 = vmatpush.msra.mxu0 %v4668
        %4675 = vmatpush.msra.mxu0 %v4667
        %4676 = vmatpush.msra.mxu0 %v4666
        %4677 = vmatpush.msra.mxu0 %v4665
        %4678 = vmatpush.msra.mxu0 %v4664
        %4679 = vmatpush.msra.mxu0 %v4663
        %4680 = vmatpush.msra.mxu0 %v4662
        %4681 = vmatpush.msra.mxu0 %v4661
        %4682 = vmatpush.msra.mxu0 %v4660
        %4683 = vmatpush.msra.mxu0 %v4659
        %4684 = vmatpush.msra.mxu0 %v4658
        %4685 = vmatpush.msra.mxu0 %v4657
        %4686 = vmatpush.msra.mxu0 %v4656
        %4687 = vmatpush.msra.mxu0 %v4655
        %4688 = vmatpush.msra.mxu0 %v4654
        %4689 = vmatpush.msra.mxu0 %v4653
        %4690 = vmatmul.f32.gmra.mxu0 %v4620
        %v4691 = vpop.f32.mrf.mxu0
        %v4692 = vadd.f32 %v4672, %v4691
        %4693 = vmatmul.f32.gmra.mxu0 %v4621
        %v4694 = vpop.f32.mrf.mxu0
        %v4695 = vadd.f32 %v4672, %v4694
        %4696 = vmatmul.f32.gmra.mxu0 %v4622
        %v4697 = vpop.f32.mrf.mxu0
        %v4698 = vadd.f32 %v4672, %v4697
        %4699 = vmatmul.f32.gmra.mxu0 %v4623
        %v4700 = vpop.f32.mrf.mxu0
        %v4701 = vadd.f32 %v4672, %v4700
        %4702 = vmatmul.f32.gmra.mxu0 %v4624
        %v4703 = vpop.f32.mrf.mxu0
        %v4704 = vadd.f32 %v4672, %v4703
        %4705 = vmatmul.f32.gmra.mxu0 %v4625
        %v4706 = vpop.f32.mrf.mxu0
        %v4707 = vadd.f32 %v4672, %v4706
        %4708 = vmatmul.f32.gmra.mxu0 %v4626
        %v4709 = vpop.f32.mrf.mxu0
        %v4710 = vadd.f32 %v4672, %v4709
        %4711 = vmatmul.f32.gmra.mxu0 %v4627
        %v4712 = vpop.f32.mrf.mxu0
        %v4713 = vadd.f32 %v4672, %v4712
        %4714 = vmatmul.f32.gmra.mxu0 %v4628
        %v4715 = vpop.f32.mrf.mxu0
        %v4716 = vadd.f32 %v4672, %v4715
        %4717 = vmatmul.f32.gmra.mxu0 %v4629
        %v4718 = vpop.f32.mrf.mxu0
        %v4719 = vadd.f32 %v4672, %v4718
        %4720 = vmatmul.f32.gmra.mxu0 %v4630
        %v4721 = vpop.f32.mrf.mxu0
        %v4722 = vadd.f32 %v4672, %v4721
        %4723 = vmatmul.f32.gmra.mxu0 %v4631
        %v4724 = vpop.f32.mrf.mxu0
        %v4725 = vadd.f32 %v4672, %v4724
        %4726 = vmatmul.f32.gmra.mxu0 %v4632
        %v4727 = vpop.f32.mrf.mxu0
        %v4728 = vadd.f32 %v4672, %v4727
        %4729 = vmatmul.f32.gmra.mxu0 %v4633
        %v4730 = vpop.f32.mrf.mxu0
        %v4731 = vadd.f32 %v4672, %v4730
        %4732 = vmatmul.f32.gmra.mxu0 %v4634
        %v4733 = vpop.f32.mrf.mxu0
        %v4734 = vadd.f32 %v4672, %v4733
        %4735 = vmatmul.f32.gmra.mxu0 %v4635
        %v4736 = vpop.f32.mrf.mxu0
        %v4737 = vadd.f32 %v4672, %v4736
        %4738 = vmatmul.f32.gmra.mxu0 %v4636
        %v4739 = vpop.f32.mrf.mxu0
        %v4740 = vadd.f32 %v4672, %v4739
        %4741 = vmatmul.f32.gmra.mxu0 %v4637
        %v4742 = vpop.f32.mrf.mxu0
        %v4743 = vadd.f32 %v4672, %v4742
        %4744 = vmatmul.f32.gmra.mxu0 %v4638
        %v4745 = vpop.f32.mrf.mxu0
        %v4746 = vadd.f32 %v4672, %v4745
        %4747 = vmatmul.f32.gmra.mxu0 %v4639
        %v4748 = vpop.f32.mrf.mxu0
        %v4749 = vadd.f32 %v4672, %v4748
        %4750 = vmatmul.f32.gmra.mxu0 %v4640
        %v4751 = vpop.f32.mrf.mxu0
        %v4752 = vadd.f32 %v4672, %v4751
        %4753 = vmatmul.f32.gmra.mxu0 %v4641
        %v4754 = vpop.f32.mrf.mxu0
        %v4755 = vadd.f32 %v4672, %v4754
        %4756 = vmatmul.f32.gmra.mxu0 %v4642
        %v4757 = vpop.f32.mrf.mxu0
        %v4758 = vadd.f32 %v4672, %v4757
        %4759 = vmatmul.f32.gmra.mxu0 %v4643
        %v4760 = vpop.f32.mrf.mxu0
        %v4761 = vadd.f32 %v4672, %v4760
        %4762 = vmatmul.f32.gmra.mxu0 %v4644
        %v4763 = vpop.f32.mrf.mxu0
        %v4764 = vadd.f32 %v4672, %v4763
        %4765 = vmatmul.f32.gmra.mxu0 %v4645
        %v4766 = vpop.f32.mrf.mxu0
        %v4767 = vadd.f32 %v4672, %v4766
        %4768 = vmatmul.f32.gmra.mxu0 %v4646
        %v4769 = vpop.f32.mrf.mxu0
        %v4770 = vadd.f32 %v4672, %v4769
        %4771 = vmatmul.f32.gmra.mxu0 %v4647
        %v4772 = vpop.f32.mrf.mxu0
        %v4773 = vadd.f32 %v4672, %v4772
        %4774 = vmatmul.f32.gmra.mxu0 %v4648
        %v4775 = vpop.f32.mrf.mxu0
        %v4776 = vadd.f32 %v4672, %v4775
        %4777 = vmatmul.f32.gmra.mxu0 %v4649
        %v4778 = vpop.f32.mrf.mxu0
        %v4779 = vadd.f32 %v4672, %v4778
        %4780 = vmatmul.f32.gmra.mxu0 %v4650
        %v4781 = vpop.f32.mrf.mxu0
        %v4782 = vadd.f32 %v4672, %v4781
        %4783 = vmatmul.f32.gmra.mxu0 %v4651
        %v4784 = vpop.f32.mrf.mxu0
        %v4785 = vadd.f32 %v4672, %v4784
        %4786 = vdwg.mxu0
        %v4787 = vmul.f32 %v4692, %v4692
        %v4788 = vmul.f32 %v4695, %v4695
        %v4789 = vmul.f32 %v4698, %v4698
        %v4790 = vmul.f32 %v4701, %v4701
        %v4791 = vmul.f32 %v4704, %v4704
        %v4792 = vmul.f32 %v4707, %v4707
        %v4793 = vmul.f32 %v4710, %v4710
        %v4794 = vmul.f32 %v4713, %v4713
        %v4795 = vmul.f32 %v4716, %v4716
        %v4796 = vmul.f32 %v4719, %v4719
        %v4797 = vmul.f32 %v4722, %v4722
        %v4798 = vmul.f32 %v4725, %v4725
        %v4799 = vmul.f32 %v4728, %v4728
        %v4800 = vmul.f32 %v4731, %v4731
        %v4801 = vmul.f32 %v4734, %v4734
        %v4802 = vmul.f32 %v4737, %v4737
        %v4803 = vmul.f32 %v4740, %v4740
        %v4804 = vmul.f32 %v4743, %v4743
        %v4805 = vmul.f32 %v4746, %v4746
        %v4806 = vmul.f32 %v4749, %v4749
        %v4807 = vmul.f32 %v4752, %v4752
        %v4808 = vmul.f32 %v4755, %v4755
        %v4809 = vmul.f32 %v4758, %v4758
        %v4810 = vmul.f32 %v4761, %v4761
        %v4811 = vmul.f32 %v4764, %v4764
        %v4812 = vmul.f32 %v4767, %v4767
        %v4813 = vmul.f32 %v4770, %v4770
        %v4814 = vmul.f32 %v4773, %v4773
        %v4815 = vmul.f32 %v4776, %v4776
        %v4816 = vmul.f32 %v4779, %v4779
        %v4817 = vmul.f32 %v4782, %v4782
        %v4818 = vmul.f32 %v4785, %v4785
        %4819 = vadd.xlane.f32.xlu0 %v4787
        %v4820 = vpop.xlane.xlu0 %4819
        %4821 = vadd.xlane.f32.xlu0 %v4788
        %v4822 = vpop.xlane.xlu0 %4821
        %4823 = vadd.xlane.f32.xlu0 %v4789
        %v4824 = vpop.xlane.xlu0 %4823
        %4825 = vadd.xlane.f32.xlu0 %v4790
        %v4826 = vpop.xlane.xlu0 %4825
        %4827 = vadd.xlane.f32.xlu0 %v4791
        %v4828 = vpop.xlane.xlu0 %4827
        %4829 = vadd.xlane.f32.xlu0 %v4792
        %v4830 = vpop.xlane.xlu0 %4829
        %4831 = vadd.xlane.f32.xlu0 %v4793
        %v4832 = vpop.xlane.xlu0 %4831
        %4833 = vadd.xlane.f32.xlu0 %v4794
        %v4834 = vpop.xlane.xlu0 %4833
        %4835 = vadd.xlane.f32.xlu0 %v4795
        %v4836 = vpop.xlane.xlu0 %4835
        %4837 = vadd.xlane.f32.xlu0 %v4796
        %v4838 = vpop.xlane.xlu0 %4837
        %4839 = vadd.xlane.f32.xlu0 %v4797
        %v4840 = vpop.xlane.xlu0 %4839
        %4841 = vadd.xlane.f32.xlu0 %v4798
        %v4842 = vpop.xlane.xlu0 %4841
        %4843 = vadd.xlane.f32.xlu0 %v4799
        %v4844 = vpop.xlane.xlu0 %4843
        %4845 = vadd.xlane.f32.xlu0 %v4800
        %v4846 = vpop.xlane.xlu0 %4845
        %4847 = vadd.xlane.f32.xlu0 %v4801
        %v4848 = vpop.xlane.xlu0 %4847
        %4849 = vadd.xlane.f32.xlu0 %v4802
        %v4850 = vpop.xlane.xlu0 %4849
        %4851 = vadd.xlane.f32.xlu0 %v4803
        %v4852 = vpop.xlane.xlu0 %4851
        %4853 = vadd.xlane.f32.xlu0 %v4804
        %v4854 = vpop.xlane.xlu0 %4853
        %4855 = vadd.xlane.f32.xlu0 %v4805
        %v4856 = vpop.xlane.xlu0 %4855
        %4857 = vadd.xlane.f32.xlu0 %v4806
        %v4858 = vpop.xlane.xlu0 %4857
        %4859 = vadd.xlane.f32.xlu0 %v4807
        %v4860 = vpop.xlane.xlu0 %4859
        %4861 = vadd.xlane.f32.xlu0 %v4808
        %v4862 = vpop.xlane.xlu0 %4861
        %4863 = vadd.xlane.f32.xlu0 %v4809
        %v4864 = vpop.xlane.xlu0 %4863
        %4865 = vadd.xlane.f32.xlu0 %v4810
        %v4866 = vpop.xlane.xlu0 %4865
        %4867 = vadd.xlane.f32.xlu0 %v4811
        %v4868 = vpop.xlane.xlu0 %4867
        %4869 = vadd.xlane.f32.xlu0 %v4812
        %v4870 = vpop.xlane.xlu0 %4869
        %4871 = vadd.xlane.f32.xlu0 %v4813
        %v4872 = vpop.xlane.xlu0 %4871
        %4873 = vadd.xlane.f32.xlu0 %v4814
        %v4874 = vpop.xlane.xlu0 %4873
        %4875 = vadd.xlane.f32.xlu0 %v4815
        %v4876 = vpop.xlane.xlu0 %4875
        %4877 = vadd.xlane.f32.xlu0 %v4816
        %v4878 = vpop.xlane.xlu0 %4877
        %4879 = vadd.xlane.f32.xlu0 %v4817
        %v4880 = vpop.xlane.xlu0 %4879
        %4881 = vadd.xlane.f32.xlu0 %v4818
        %v4882 = vpop.xlane.xlu0 %4881
        %v4883 = vrsqrt.pop %v4820
        %v4884 = vmul.f32 %v4883, %v4820
        %v4885 = vmul.f32 %v4884, %v4883
        %v4886 = vmul.f32 0.5, %v4885
        %v4887 = vsub.f32 1.5, %v4886
        %v4888 = vmul.f32 %v4883, %v4887
        %v4889 = vmul.f32 %v4820, %v4888
        %vm4890 = vcmp.eq.f32.partialorder %v4820, inf
        %v4891 = vsel %vm4890, %v4820, %v4889
        %vm4892 = vcmp.eq.f32.partialorder %v4820, 0.0
        %v4893 = vand.u32 %v4820, 2147483648
        %v4894 = vsel %vm4892, %v4893, %v4891
        %v4895 = vrsqrt.pop %v4822
        %v4896 = vmul.f32 %v4895, %v4822
        %v4897 = vmul.f32 %v4896, %v4895
        %v4898 = vmul.f32 0.5, %v4897
        %v4899 = vsub.f32 1.5, %v4898
        %v4900 = vmul.f32 %v4895, %v4899
        %v4901 = vmul.f32 %v4822, %v4900
        %vm4902 = vcmp.eq.f32.partialorder %v4822, inf
        %v4903 = vsel %vm4902, %v4822, %v4901
        %vm4904 = vcmp.eq.f32.partialorder %v4822, 0.0
        %v4905 = vand.u32 %v4822, 2147483648
        %v4906 = vsel %vm4904, %v4905, %v4903
        %v4907 = vrsqrt.pop %v4824
        %v4908 = vmul.f32 %v4907, %v4824
        %v4909 = vmul.f32 %v4908, %v4907
        %v4910 = vmul.f32 0.5, %v4909
        %v4911 = vsub.f32 1.5, %v4910
        %v4912 = vmul.f32 %v4907, %v4911
        %v4913 = vmul.f32 %v4824, %v4912
        %vm4914 = vcmp.eq.f32.partialorder %v4824, inf
        %v4915 = vsel %vm4914, %v4824, %v4913
        %vm4916 = vcmp.eq.f32.partialorder %v4824, 0.0
        %v4917 = vand.u32 %v4824, 2147483648
        %v4918 = vsel %vm4916, %v4917, %v4915
        %v4919 = vrsqrt.pop %v4826
        %v4920 = vmul.f32 %v4919, %v4826
        %v4921 = vmul.f32 %v4920, %v4919
        %v4922 = vmul.f32 0.5, %v4921
        %v4923 = vsub.f32 1.5, %v4922
        %v4924 = vmul.f32 %v4919, %v4923
        %v4925 = vmul.f32 %v4826, %v4924
        %vm4926 = vcmp.eq.f32.partialorder %v4826, inf
        %v4927 = vsel %vm4926, %v4826, %v4925
        %vm4928 = vcmp.eq.f32.partialorder %v4826, 0.0
        %v4929 = vand.u32 %v4826, 2147483648
        %v4930 = vsel %vm4928, %v4929, %v4927
        %v4931 = vrsqrt.pop %v4828
        %v4932 = vmul.f32 %v4931, %v4828
        %v4933 = vmul.f32 %v4932, %v4931
        %v4934 = vmul.f32 0.5, %v4933
        %v4935 = vsub.f32 1.5, %v4934
        %v4936 = vmul.f32 %v4931, %v4935
        %v4937 = vmul.f32 %v4828, %v4936
        %vm4938 = vcmp.eq.f32.partialorder %v4828, inf
        %v4939 = vsel %vm4938, %v4828, %v4937
        %vm4940 = vcmp.eq.f32.partialorder %v4828, 0.0
        %v4941 = vand.u32 %v4828, 2147483648
        %v4942 = vsel %vm4940, %v4941, %v4939
        %v4943 = vrsqrt.pop %v4830
        %v4944 = vmul.f32 %v4943, %v4830
        %v4945 = vmul.f32 %v4944, %v4943
        %v4946 = vmul.f32 0.5, %v4945
        %v4947 = vsub.f32 1.5, %v4946
        %v4948 = vmul.f32 %v4943, %v4947
        %v4949 = vmul.f32 %v4830, %v4948
        %vm4950 = vcmp.eq.f32.partialorder %v4830, inf
        %v4951 = vsel %vm4950, %v4830, %v4949
        %vm4952 = vcmp.eq.f32.partialorder %v4830, 0.0
        %v4953 = vand.u32 %v4830, 2147483648
        %v4954 = vsel %vm4952, %v4953, %v4951
        %v4955 = vrsqrt.pop %v4832
        %v4956 = vmul.f32 %v4955, %v4832
        %v4957 = vmul.f32 %v4956, %v4955
        %v4958 = vmul.f32 0.5, %v4957
        %v4959 = vsub.f32 1.5, %v4958
        %v4960 = vmul.f32 %v4955, %v4959
        %v4961 = vmul.f32 %v4832, %v4960
        %vm4962 = vcmp.eq.f32.partialorder %v4832, inf
        %v4963 = vsel %vm4962, %v4832, %v4961
        %vm4964 = vcmp.eq.f32.partialorder %v4832, 0.0
        %v4965 = vand.u32 %v4832, 2147483648
        %v4966 = vsel %vm4964, %v4965, %v4963
        %v4967 = vrsqrt.pop %v4834
        %v4968 = vmul.f32 %v4967, %v4834
        %v4969 = vmul.f32 %v4968, %v4967
        %v4970 = vmul.f32 0.5, %v4969
        %v4971 = vsub.f32 1.5, %v4970
        %v4972 = vmul.f32 %v4967, %v4971
        %v4973 = vmul.f32 %v4834, %v4972
        %vm4974 = vcmp.eq.f32.partialorder %v4834, inf
        %v4975 = vsel %vm4974, %v4834, %v4973
        %vm4976 = vcmp.eq.f32.partialorder %v4834, 0.0
        %v4977 = vand.u32 %v4834, 2147483648
        %v4978 = vsel %vm4976, %v4977, %v4975
        %v4979 = vrsqrt.pop %v4836
        %v4980 = vmul.f32 %v4979, %v4836
        %v4981 = vmul.f32 %v4980, %v4979
        %v4982 = vmul.f32 0.5, %v4981
        %v4983 = vsub.f32 1.5, %v4982
        %v4984 = vmul.f32 %v4979, %v4983
        %v4985 = vmul.f32 %v4836, %v4984
        %vm4986 = vcmp.eq.f32.partialorder %v4836, inf
        %v4987 = vsel %vm4986, %v4836, %v4985
        %vm4988 = vcmp.eq.f32.partialorder %v4836, 0.0
        %v4989 = vand.u32 %v4836, 2147483648
        %v4990 = vsel %vm4988, %v4989, %v4987
        %v4991 = vrsqrt.pop %v4838
        %v4992 = vmul.f32 %v4991, %v4838
        %v4993 = vmul.f32 %v4992, %v4991
        %v4994 = vmul.f32 0.5, %v4993
        %v4995 = vsub.f32 1.5, %v4994
        %v4996 = vmul.f32 %v4991, %v4995
        %v4997 = vmul.f32 %v4838, %v4996
        %vm4998 = vcmp.eq.f32.partialorder %v4838, inf
        %v4999 = vsel %vm4998, %v4838, %v4997
        %vm5000 = vcmp.eq.f32.partialorder %v4838, 0.0
        %v5001 = vand.u32 %v4838, 2147483648
        %v5002 = vsel %vm5000, %v5001, %v4999
        %v5003 = vrsqrt.pop %v4840
        %v5004 = vmul.f32 %v5003, %v4840
        %v5005 = vmul.f32 %v5004, %v5003
        %v5006 = vmul.f32 0.5, %v5005
        %v5007 = vsub.f32 1.5, %v5006
        %v5008 = vmul.f32 %v5003, %v5007
        %v5009 = vmul.f32 %v4840, %v5008
        %vm5010 = vcmp.eq.f32.partialorder %v4840, inf
        %v5011 = vsel %vm5010, %v4840, %v5009
        %vm5012 = vcmp.eq.f32.partialorder %v4840, 0.0
        %v5013 = vand.u32 %v4840, 2147483648
        %v5014 = vsel %vm5012, %v5013, %v5011
        %v5015 = vrsqrt.pop %v4842
        %v5016 = vmul.f32 %v5015, %v4842
        %v5017 = vmul.f32 %v5016, %v5015
        %v5018 = vmul.f32 0.5, %v5017
        %v5019 = vsub.f32 1.5, %v5018
        %v5020 = vmul.f32 %v5015, %v5019
        %v5021 = vmul.f32 %v4842, %v5020
        %vm5022 = vcmp.eq.f32.partialorder %v4842, inf
        %v5023 = vsel %vm5022, %v4842, %v5021
        %vm5024 = vcmp.eq.f32.partialorder %v4842, 0.0
        %v5025 = vand.u32 %v4842, 2147483648
        %v5026 = vsel %vm5024, %v5025, %v5023
        %v5027 = vrsqrt.pop %v4844
        %v5028 = vmul.f32 %v5027, %v4844
        %v5029 = vmul.f32 %v5028, %v5027
        %v5030 = vmul.f32 0.5, %v5029
        %v5031 = vsub.f32 1.5, %v5030
        %v5032 = vmul.f32 %v5027, %v5031
        %v5033 = vmul.f32 %v4844, %v5032
        %vm5034 = vcmp.eq.f32.partialorder %v4844, inf
        %v5035 = vsel %vm5034, %v4844, %v5033
        %vm5036 = vcmp.eq.f32.partialorder %v4844, 0.0
        %v5037 = vand.u32 %v4844, 2147483648
        %v5038 = vsel %vm5036, %v5037, %v5035
        %v5039 = vrsqrt.pop %v4846
        %v5040 = vmul.f32 %v5039, %v4846
        %v5041 = vmul.f32 %v5040, %v5039
        %v5042 = vmul.f32 0.5, %v5041
        %v5043 = vsub.f32 1.5, %v5042
        %v5044 = vmul.f32 %v5039, %v5043
        %v5045 = vmul.f32 %v4846, %v5044
        %vm5046 = vcmp.eq.f32.partialorder %v4846, inf
        %v5047 = vsel %vm5046, %v4846, %v5045
        %vm5048 = vcmp.eq.f32.partialorder %v4846, 0.0
        %v5049 = vand.u32 %v4846, 2147483648
        %v5050 = vsel %vm5048, %v5049, %v5047
        %v5051 = vrsqrt.pop %v4848
        %v5052 = vmul.f32 %v5051, %v4848
        %v5053 = vmul.f32 %v5052, %v5051
        %v5054 = vmul.f32 0.5, %v5053
        %v5055 = vsub.f32 1.5, %v5054
        %v5056 = vmul.f32 %v5051, %v5055
        %v5057 = vmul.f32 %v4848, %v5056
        %vm5058 = vcmp.eq.f32.partialorder %v4848, inf
        %v5059 = vsel %vm5058, %v4848, %v5057
        %vm5060 = vcmp.eq.f32.partialorder %v4848, 0.0
        %v5061 = vand.u32 %v4848, 2147483648
        %v5062 = vsel %vm5060, %v5061, %v5059
        %v5063 = vrsqrt.pop %v4850
        %v5064 = vmul.f32 %v5063, %v4850
        %v5065 = vmul.f32 %v5064, %v5063
        %v5066 = vmul.f32 0.5, %v5065
        %v5067 = vsub.f32 1.5, %v5066
        %v5068 = vmul.f32 %v5063, %v5067
        %v5069 = vmul.f32 %v4850, %v5068
        %vm5070 = vcmp.eq.f32.partialorder %v4850, inf
        %v5071 = vsel %vm5070, %v4850, %v5069
        %vm5072 = vcmp.eq.f32.partialorder %v4850, 0.0
        %v5073 = vand.u32 %v4850, 2147483648
        %v5074 = vsel %vm5072, %v5073, %v5071
        %v5075 = vrsqrt.pop %v4852
        %v5076 = vmul.f32 %v5075, %v4852
        %v5077 = vmul.f32 %v5076, %v5075
        %v5078 = vmul.f32 0.5, %v5077
        %v5079 = vsub.f32 1.5, %v5078
        %v5080 = vmul.f32 %v5075, %v5079
        %v5081 = vmul.f32 %v4852, %v5080
        %vm5082 = vcmp.eq.f32.partialorder %v4852, inf
        %v5083 = vsel %vm5082, %v4852, %v5081
        %vm5084 = vcmp.eq.f32.partialorder %v4852, 0.0
        %v5085 = vand.u32 %v4852, 2147483648
        %v5086 = vsel %vm5084, %v5085, %v5083
        %v5087 = vrsqrt.pop %v4854
        %v5088 = vmul.f32 %v5087, %v4854
        %v5089 = vmul.f32 %v5088, %v5087
        %v5090 = vmul.f32 0.5, %v5089
        %v5091 = vsub.f32 1.5, %v5090
        %v5092 = vmul.f32 %v5087, %v5091
        %v5093 = vmul.f32 %v4854, %v5092
        %vm5094 = vcmp.eq.f32.partialorder %v4854, inf
        %v5095 = vsel %vm5094, %v4854, %v5093
        %vm5096 = vcmp.eq.f32.partialorder %v4854, 0.0
        %v5097 = vand.u32 %v4854, 2147483648
        %v5098 = vsel %vm5096, %v5097, %v5095
        %v5099 = vrsqrt.pop %v4856
        %v5100 = vmul.f32 %v5099, %v4856
        %v5101 = vmul.f32 %v5100, %v5099
        %v5102 = vmul.f32 0.5, %v5101
        %v5103 = vsub.f32 1.5, %v5102
        %v5104 = vmul.f32 %v5099, %v5103
        %v5105 = vmul.f32 %v4856, %v5104
        %vm5106 = vcmp.eq.f32.partialorder %v4856, inf
        %v5107 = vsel %vm5106, %v4856, %v5105
        %vm5108 = vcmp.eq.f32.partialorder %v4856, 0.0
        %v5109 = vand.u32 %v4856, 2147483648
        %v5110 = vsel %vm5108, %v5109, %v5107
        %v5111 = vrsqrt.pop %v4858
        %v5112 = vmul.f32 %v5111, %v4858
        %v5113 = vmul.f32 %v5112, %v5111
        %v5114 = vmul.f32 0.5, %v5113
        %v5115 = vsub.f32 1.5, %v5114
        %v5116 = vmul.f32 %v5111, %v5115
        %v5117 = vmul.f32 %v4858, %v5116
        %vm5118 = vcmp.eq.f32.partialorder %v4858, inf
        %v5119 = vsel %vm5118, %v4858, %v5117
        %vm5120 = vcmp.eq.f32.partialorder %v4858, 0.0
        %v5121 = vand.u32 %v4858, 2147483648
        %v5122 = vsel %vm5120, %v5121, %v5119
        %v5123 = vrsqrt.pop %v4860
        %v5124 = vmul.f32 %v5123, %v4860
        %v5125 = vmul.f32 %v5124, %v5123
        %v5126 = vmul.f32 0.5, %v5125
        %v5127 = vsub.f32 1.5, %v5126
        %v5128 = vmul.f32 %v5123, %v5127
        %v5129 = vmul.f32 %v4860, %v5128
        %vm5130 = vcmp.eq.f32.partialorder %v4860, inf
        %v5131 = vsel %vm5130, %v4860, %v5129
        %vm5132 = vcmp.eq.f32.partialorder %v4860, 0.0
        %v5133 = vand.u32 %v4860, 2147483648
        %v5134 = vsel %vm5132, %v5133, %v5131
        %v5135 = vrsqrt.pop %v4862
        %v5136 = vmul.f32 %v5135, %v4862
        %v5137 = vmul.f32 %v5136, %v5135
        %v5138 = vmul.f32 0.5, %v5137
        %v5139 = vsub.f32 1.5, %v5138
        %v5140 = vmul.f32 %v5135, %v5139
        %v5141 = vmul.f32 %v4862, %v5140
        %vm5142 = vcmp.eq.f32.partialorder %v4862, inf
        %v5143 = vsel %vm5142, %v4862, %v5141
        %vm5144 = vcmp.eq.f32.partialorder %v4862, 0.0
        %v5145 = vand.u32 %v4862, 2147483648
        %v5146 = vsel %vm5144, %v5145, %v5143
        %v5147 = vrsqrt.pop %v4864
        %v5148 = vmul.f32 %v5147, %v4864
        %v5149 = vmul.f32 %v5148, %v5147
        %v5150 = vmul.f32 0.5, %v5149
        %v5151 = vsub.f32 1.5, %v5150
        %v5152 = vmul.f32 %v5147, %v5151
        %v5153 = vmul.f32 %v4864, %v5152
        %vm5154 = vcmp.eq.f32.partialorder %v4864, inf
        %v5155 = vsel %vm5154, %v4864, %v5153
        %vm5156 = vcmp.eq.f32.partialorder %v4864, 0.0
        %v5157 = vand.u32 %v4864, 2147483648
        %v5158 = vsel %vm5156, %v5157, %v5155
        %v5159 = vrsqrt.pop %v4866
        %v5160 = vmul.f32 %v5159, %v4866
        %v5161 = vmul.f32 %v5160, %v5159
        %v5162 = vmul.f32 0.5, %v5161
        %v5163 = vsub.f32 1.5, %v5162
        %v5164 = vmul.f32 %v5159, %v5163
        %v5165 = vmul.f32 %v4866, %v5164
        %vm5166 = vcmp.eq.f32.partialorder %v4866, inf
        %v5167 = vsel %vm5166, %v4866, %v5165
        %vm5168 = vcmp.eq.f32.partialorder %v4866, 0.0
        %v5169 = vand.u32 %v4866, 2147483648
        %v5170 = vsel %vm5168, %v5169, %v5167
        %v5171 = vrsqrt.pop %v4868
        %v5172 = vmul.f32 %v5171, %v4868
        %v5173 = vmul.f32 %v5172, %v5171
        %v5174 = vmul.f32 0.5, %v5173
        %v5175 = vsub.f32 1.5, %v5174
        %v5176 = vmul.f32 %v5171, %v5175
        %v5177 = vmul.f32 %v4868, %v5176
        %vm5178 = vcmp.eq.f32.partialorder %v4868, inf
        %v5179 = vsel %vm5178, %v4868, %v5177
        %vm5180 = vcmp.eq.f32.partialorder %v4868, 0.0
        %v5181 = vand.u32 %v4868, 2147483648
        %v5182 = vsel %vm5180, %v5181, %v5179
        %v5183 = vrsqrt.pop %v4870
        %v5184 = vmul.f32 %v5183, %v4870
        %v5185 = vmul.f32 %v5184, %v5183
        %v5186 = vmul.f32 0.5, %v5185
        %v5187 = vsub.f32 1.5, %v5186
        %v5188 = vmul.f32 %v5183, %v5187
        %v5189 = vmul.f32 %v4870, %v5188
        %vm5190 = vcmp.eq.f32.partialorder %v4870, inf
        %v5191 = vsel %vm5190, %v4870, %v5189
        %vm5192 = vcmp.eq.f32.partialorder %v4870, 0.0
        %v5193 = vand.u32 %v4870, 2147483648
        %v5194 = vsel %vm5192, %v5193, %v5191
        %v5195 = vrsqrt.pop %v4872
        %v5196 = vmul.f32 %v5195, %v4872
        %v5197 = vmul.f32 %v5196, %v5195
        %v5198 = vmul.f32 0.5, %v5197
        %v5199 = vsub.f32 1.5, %v5198
        %v5200 = vmul.f32 %v5195, %v5199
        %v5201 = vmul.f32 %v4872, %v5200
        %vm5202 = vcmp.eq.f32.partialorder %v4872, inf
        %v5203 = vsel %vm5202, %v4872, %v5201
        %vm5204 = vcmp.eq.f32.partialorder %v4872, 0.0
        %v5205 = vand.u32 %v4872, 2147483648
        %v5206 = vsel %vm5204, %v5205, %v5203
        %v5207 = vrsqrt.pop %v4874
        %v5208 = vmul.f32 %v5207, %v4874
        %v5209 = vmul.f32 %v5208, %v5207
        %v5210 = vmul.f32 0.5, %v5209
        %v5211 = vsub.f32 1.5, %v5210
        %v5212 = vmul.f32 %v5207, %v5211
        %v5213 = vmul.f32 %v4874, %v5212
        %vm5214 = vcmp.eq.f32.partialorder %v4874, inf
        %v5215 = vsel %vm5214, %v4874, %v5213
        %vm5216 = vcmp.eq.f32.partialorder %v4874, 0.0
        %v5217 = vand.u32 %v4874, 2147483648
        %v5218 = vsel %vm5216, %v5217, %v5215
        %v5219 = vrsqrt.pop %v4876
        %v5220 = vmul.f32 %v5219, %v4876
        %v5221 = vmul.f32 %v5220, %v5219
        %v5222 = vmul.f32 0.5, %v5221
        %v5223 = vsub.f32 1.5, %v5222
        %v5224 = vmul.f32 %v5219, %v5223
        %v5225 = vmul.f32 %v4876, %v5224
        %vm5226 = vcmp.eq.f32.partialorder %v4876, inf
        %v5227 = vsel %vm5226, %v4876, %v5225
        %vm5228 = vcmp.eq.f32.partialorder %v4876, 0.0
        %v5229 = vand.u32 %v4876, 2147483648
        %v5230 = vsel %vm5228, %v5229, %v5227
        %v5231 = vrsqrt.pop %v4878
        %v5232 = vmul.f32 %v5231, %v4878
        %v5233 = vmul.f32 %v5232, %v5231
        %v5234 = vmul.f32 0.5, %v5233
        %v5235 = vsub.f32 1.5, %v5234
        %v5236 = vmul.f32 %v5231, %v5235
        %v5237 = vmul.f32 %v4878, %v5236
        %vm5238 = vcmp.eq.f32.partialorder %v4878, inf
        %v5239 = vsel %vm5238, %v4878, %v5237
        %vm5240 = vcmp.eq.f32.partialorder %v4878, 0.0
        %v5241 = vand.u32 %v4878, 2147483648
        %v5242 = vsel %vm5240, %v5241, %v5239
        %v5243 = vrsqrt.pop %v4880
        %v5244 = vmul.f32 %v5243, %v4880
        %v5245 = vmul.f32 %v5244, %v5243
        %v5246 = vmul.f32 0.5, %v5245
        %v5247 = vsub.f32 1.5, %v5246
        %v5248 = vmul.f32 %v5243, %v5247
        %v5249 = vmul.f32 %v4880, %v5248
        %vm5250 = vcmp.eq.f32.partialorder %v4880, inf
        %v5251 = vsel %vm5250, %v4880, %v5249
        %vm5252 = vcmp.eq.f32.partialorder %v4880, 0.0
        %v5253 = vand.u32 %v4880, 2147483648
        %v5254 = vsel %vm5252, %v5253, %v5251
        %v5255 = vrsqrt.pop %v4882
        %v5256 = vmul.f32 %v5255, %v4882
        %v5257 = vmul.f32 %v5256, %v5255
        %v5258 = vmul.f32 0.5, %v5257
        %v5259 = vsub.f32 1.5, %v5258
        %v5260 = vmul.f32 %v5255, %v5259
        %v5261 = vmul.f32 %v4882, %v5260
        %vm5262 = vcmp.eq.f32.partialorder %v4882, inf
        %v5263 = vsel %vm5262, %v4882, %v5261
        %vm5264 = vcmp.eq.f32.partialorder %v4882, 0.0
        %v5265 = vand.u32 %v4882, 2147483648
        %v5266 = vsel %vm5264, %v5265, %v5263
        %v5267 = vadd.f32 %v4894, 1e-08
        %v5268 = vadd.f32 %v4906, 1e-08
        %v5269 = vadd.f32 %v4918, 1e-08
        %v5270 = vadd.f32 %v4930, 1e-08
        %v5271 = vadd.f32 %v4942, 1e-08
        %v5272 = vadd.f32 %v4954, 1e-08
        %v5273 = vadd.f32 %v4966, 1e-08
        %v5274 = vadd.f32 %v4978, 1e-08
        %v5275 = vadd.f32 %v4990, 1e-08
        %v5276 = vadd.f32 %v5002, 1e-08
        %v5277 = vadd.f32 %v5014, 1e-08
        %v5278 = vadd.f32 %v5026, 1e-08
        %v5279 = vadd.f32 %v5038, 1e-08
        %v5280 = vadd.f32 %v5050, 1e-08
        %v5281 = vadd.f32 %v5062, 1e-08
        %v5282 = vadd.f32 %v5074, 1e-08
        %v5283 = vadd.f32 %v5086, 1e-08
        %v5284 = vadd.f32 %v5098, 1e-08
        %v5285 = vadd.f32 %v5110, 1e-08
        %v5286 = vadd.f32 %v5122, 1e-08
        %v5287 = vadd.f32 %v5134, 1e-08
        %v5288 = vadd.f32 %v5146, 1e-08
        %v5289 = vadd.f32 %v5158, 1e-08
        %v5290 = vadd.f32 %v5170, 1e-08
        %v5291 = vadd.f32 %v5182, 1e-08
        %v5292 = vadd.f32 %v5194, 1e-08
        %v5293 = vadd.f32 %v5206, 1e-08
        %v5294 = vadd.f32 %v5218, 1e-08
        %v5295 = vadd.f32 %v5230, 1e-08
        %v5296 = vadd.f32 %v5242, 1e-08
        %v5297 = vadd.f32 %v5254, 1e-08
        %v5298 = vadd.f32 %v5266, 1e-08
        %v5299 = vrcp.pop %v5267
        %v5300 = vmul.f32 %v5267, %v5299
        %v5301 = vsub.f32 1.0, %v5300
        %v5302 = vmul.f32 %v5299, %v5301
        %v5303 = vadd.f32 %v5299, %v5302
        %vm5304 = vweird.f32 %v5267
        %vm5305 = vweird.f32 %v5299
        %vm5306 = vmor %vm5304, %vm5305
        %v5307 = vsel %vm5306, %v5299, %v5303
        %v5308 = vand.u32 2147483647, %v5267
        %vm5309 = vcmp.eq.f32.partialorder %v5308, 8.507059e+37
        %v5310 = vand.u32 %v5267, 2147483648
        %v5311 = vor.u32 1.1754944e-38, %v5310
        %v5312 = vsel %vm5309, %v5311, %v5307
        %v5313 = vrcp.pop %v5268
        %v5314 = vmul.f32 %v5268, %v5313
        %v5315 = vsub.f32 1.0, %v5314
        %v5316 = vmul.f32 %v5313, %v5315
        %v5317 = vadd.f32 %v5313, %v5316
        %vm5318 = vweird.f32 %v5268
        %vm5319 = vweird.f32 %v5313
        %vm5320 = vmor %vm5318, %vm5319
        %v5321 = vsel %vm5320, %v5313, %v5317
        %v5322 = vand.u32 2147483647, %v5268
        %vm5323 = vcmp.eq.f32.partialorder %v5322, 8.507059e+37
        %v5324 = vand.u32 %v5268, 2147483648
        %v5325 = vor.u32 1.1754944e-38, %v5324
        %v5326 = vsel %vm5323, %v5325, %v5321
        %v5327 = vrcp.pop %v5269
        %v5328 = vmul.f32 %v5269, %v5327
        %v5329 = vsub.f32 1.0, %v5328
        %v5330 = vmul.f32 %v5327, %v5329
        %v5331 = vadd.f32 %v5327, %v5330
        %vm5332 = vweird.f32 %v5269
        %vm5333 = vweird.f32 %v5327
        %vm5334 = vmor %vm5332, %vm5333
        %v5335 = vsel %vm5334, %v5327, %v5331
        %v5336 = vand.u32 2147483647, %v5269
        %vm5337 = vcmp.eq.f32.partialorder %v5336, 8.507059e+37
        %v5338 = vand.u32 %v5269, 2147483648
        %v5339 = vor.u32 1.1754944e-38, %v5338
        %v5340 = vsel %vm5337, %v5339, %v5335
        %v5341 = vrcp.pop %v5270
        %v5342 = vmul.f32 %v5270, %v5341
        %v5343 = vsub.f32 1.0, %v5342
        %v5344 = vmul.f32 %v5341, %v5343
        %v5345 = vadd.f32 %v5341, %v5344
        %vm5346 = vweird.f32 %v5270
        %vm5347 = vweird.f32 %v5341
        %vm5348 = vmor %vm5346, %vm5347
        %v5349 = vsel %vm5348, %v5341, %v5345
        %v5350 = vand.u32 2147483647, %v5270
        %vm5351 = vcmp.eq.f32.partialorder %v5350, 8.507059e+37
        %v5352 = vand.u32 %v5270, 2147483648
        %v5353 = vor.u32 1.1754944e-38, %v5352
        %v5354 = vsel %vm5351, %v5353, %v5349
        %v5355 = vrcp.pop %v5271
        %v5356 = vmul.f32 %v5271, %v5355
        %v5357 = vsub.f32 1.0, %v5356
        %v5358 = vmul.f32 %v5355, %v5357
        %v5359 = vadd.f32 %v5355, %v5358
        %vm5360 = vweird.f32 %v5271
        %vm5361 = vweird.f32 %v5355
        %vm5362 = vmor %vm5360, %vm5361
        %v5363 = vsel %vm5362, %v5355, %v5359
        %v5364 = vand.u32 2147483647, %v5271
        %vm5365 = vcmp.eq.f32.partialorder %v5364, 8.507059e+37
        %v5366 = vand.u32 %v5271, 2147483648
        %v5367 = vor.u32 1.1754944e-38, %v5366
        %v5368 = vsel %vm5365, %v5367, %v5363
        %v5369 = vrcp.pop %v5272
        %v5370 = vmul.f32 %v5272, %v5369
        %v5371 = vsub.f32 1.0, %v5370
        %v5372 = vmul.f32 %v5369, %v5371
        %v5373 = vadd.f32 %v5369, %v5372
        %vm5374 = vweird.f32 %v5272
        %vm5375 = vweird.f32 %v5369
        %vm5376 = vmor %vm5374, %vm5375
        %v5377 = vsel %vm5376, %v5369, %v5373
        %v5378 = vand.u32 2147483647, %v5272
        %vm5379 = vcmp.eq.f32.partialorder %v5378, 8.507059e+37
        %v5380 = vand.u32 %v5272, 2147483648
        %v5381 = vor.u32 1.1754944e-38, %v5380
        %v5382 = vsel %vm5379, %v5381, %v5377
        %v5383 = vrcp.pop %v5273
        %v5384 = vmul.f32 %v5273, %v5383
        %v5385 = vsub.f32 1.0, %v5384
        %v5386 = vmul.f32 %v5383, %v5385
        %v5387 = vadd.f32 %v5383, %v5386
        %vm5388 = vweird.f32 %v5273
        %vm5389 = vweird.f32 %v5383
        %vm5390 = vmor %vm5388, %vm5389
        %v5391 = vsel %vm5390, %v5383, %v5387
        %v5392 = vand.u32 2147483647, %v5273
        %vm5393 = vcmp.eq.f32.partialorder %v5392, 8.507059e+37
        %v5394 = vand.u32 %v5273, 2147483648
        %v5395 = vor.u32 1.1754944e-38, %v5394
        %v5396 = vsel %vm5393, %v5395, %v5391
        %v5397 = vrcp.pop %v5274
        %v5398 = vmul.f32 %v5274, %v5397
        %v5399 = vsub.f32 1.0, %v5398
        %v5400 = vmul.f32 %v5397, %v5399
        %v5401 = vadd.f32 %v5397, %v5400
        %vm5402 = vweird.f32 %v5274
        %vm5403 = vweird.f32 %v5397
        %vm5404 = vmor %vm5402, %vm5403
        %v5405 = vsel %vm5404, %v5397, %v5401
        %v5406 = vand.u32 2147483647, %v5274
        %vm5407 = vcmp.eq.f32.partialorder %v5406, 8.507059e+37
        %v5408 = vand.u32 %v5274, 2147483648
        %v5409 = vor.u32 1.1754944e-38, %v5408
        %v5410 = vsel %vm5407, %v5409, %v5405
        %v5411 = vrcp.pop %v5275
        %v5412 = vmul.f32 %v5275, %v5411
        %v5413 = vsub.f32 1.0, %v5412
        %v5414 = vmul.f32 %v5411, %v5413
        %v5415 = vadd.f32 %v5411, %v5414
        %vm5416 = vweird.f32 %v5275
        %vm5417 = vweird.f32 %v5411
        %vm5418 = vmor %vm5416, %vm5417
        %v5419 = vsel %vm5418, %v5411, %v5415
        %v5420 = vand.u32 2147483647, %v5275
        %vm5421 = vcmp.eq.f32.partialorder %v5420, 8.507059e+37
        %v5422 = vand.u32 %v5275, 2147483648
        %v5423 = vor.u32 1.1754944e-38, %v5422
        %v5424 = vsel %vm5421, %v5423, %v5419
        %v5425 = vrcp.pop %v5276
        %v5426 = vmul.f32 %v5276, %v5425
        %v5427 = vsub.f32 1.0, %v5426
        %v5428 = vmul.f32 %v5425, %v5427
        %v5429 = vadd.f32 %v5425, %v5428
        %vm5430 = vweird.f32 %v5276
        %vm5431 = vweird.f32 %v5425
        %vm5432 = vmor %vm5430, %vm5431
        %v5433 = vsel %vm5432, %v5425, %v5429
        %v5434 = vand.u32 2147483647, %v5276
        %vm5435 = vcmp.eq.f32.partialorder %v5434, 8.507059e+37
        %v5436 = vand.u32 %v5276, 2147483648
        %v5437 = vor.u32 1.1754944e-38, %v5436
        %v5438 = vsel %vm5435, %v5437, %v5433
        %v5439 = vrcp.pop %v5277
        %v5440 = vmul.f32 %v5277, %v5439
        %v5441 = vsub.f32 1.0, %v5440
        %v5442 = vmul.f32 %v5439, %v5441
        %v5443 = vadd.f32 %v5439, %v5442
        %vm5444 = vweird.f32 %v5277
        %vm5445 = vweird.f32 %v5439
        %vm5446 = vmor %vm5444, %vm5445
        %v5447 = vsel %vm5446, %v5439, %v5443
        %v5448 = vand.u32 2147483647, %v5277
        %vm5449 = vcmp.eq.f32.partialorder %v5448, 8.507059e+37
        %v5450 = vand.u32 %v5277, 2147483648
        %v5451 = vor.u32 1.1754944e-38, %v5450
        %v5452 = vsel %vm5449, %v5451, %v5447
        %v5453 = vrcp.pop %v5278
        %v5454 = vmul.f32 %v5278, %v5453
        %v5455 = vsub.f32 1.0, %v5454
        %v5456 = vmul.f32 %v5453, %v5455
        %v5457 = vadd.f32 %v5453, %v5456
        %vm5458 = vweird.f32 %v5278
        %vm5459 = vweird.f32 %v5453
        %vm5460 = vmor %vm5458, %vm5459
        %v5461 = vsel %vm5460, %v5453, %v5457
        %v5462 = vand.u32 2147483647, %v5278
        %vm5463 = vcmp.eq.f32.partialorder %v5462, 8.507059e+37
        %v5464 = vand.u32 %v5278, 2147483648
        %v5465 = vor.u32 1.1754944e-38, %v5464
        %v5466 = vsel %vm5463, %v5465, %v5461
        %v5467 = vrcp.pop %v5279
        %v5468 = vmul.f32 %v5279, %v5467
        %v5469 = vsub.f32 1.0, %v5468
        %v5470 = vmul.f32 %v5467, %v5469
        %v5471 = vadd.f32 %v5467, %v5470
        %vm5472 = vweird.f32 %v5279
        %vm5473 = vweird.f32 %v5467
        %vm5474 = vmor %vm5472, %vm5473
        %v5475 = vsel %vm5474, %v5467, %v5471
        %v5476 = vand.u32 2147483647, %v5279
        %vm5477 = vcmp.eq.f32.partialorder %v5476, 8.507059e+37
        %v5478 = vand.u32 %v5279, 2147483648
        %v5479 = vor.u32 1.1754944e-38, %v5478
        %v5480 = vsel %vm5477, %v5479, %v5475
        %v5481 = vrcp.pop %v5280
        %v5482 = vmul.f32 %v5280, %v5481
        %v5483 = vsub.f32 1.0, %v5482
        %v5484 = vmul.f32 %v5481, %v5483
        %v5485 = vadd.f32 %v5481, %v5484
        %vm5486 = vweird.f32 %v5280
        %vm5487 = vweird.f32 %v5481
        %vm5488 = vmor %vm5486, %vm5487
        %v5489 = vsel %vm5488, %v5481, %v5485
        %v5490 = vand.u32 2147483647, %v5280
        %vm5491 = vcmp.eq.f32.partialorder %v5490, 8.507059e+37
        %v5492 = vand.u32 %v5280, 2147483648
        %v5493 = vor.u32 1.1754944e-38, %v5492
        %v5494 = vsel %vm5491, %v5493, %v5489
        %v5495 = vrcp.pop %v5281
        %v5496 = vmul.f32 %v5281, %v5495
        %v5497 = vsub.f32 1.0, %v5496
        %v5498 = vmul.f32 %v5495, %v5497
        %v5499 = vadd.f32 %v5495, %v5498
        %vm5500 = vweird.f32 %v5281
        %vm5501 = vweird.f32 %v5495
        %vm5502 = vmor %vm5500, %vm5501
        %v5503 = vsel %vm5502, %v5495, %v5499
        %v5504 = vand.u32 2147483647, %v5281
        %vm5505 = vcmp.eq.f32.partialorder %v5504, 8.507059e+37
        %v5506 = vand.u32 %v5281, 2147483648
        %v5507 = vor.u32 1.1754944e-38, %v5506
        %v5508 = vsel %vm5505, %v5507, %v5503
        %v5509 = vrcp.pop %v5282
        %v5510 = vmul.f32 %v5282, %v5509
        %v5511 = vsub.f32 1.0, %v5510
        %v5512 = vmul.f32 %v5509, %v5511
        %v5513 = vadd.f32 %v5509, %v5512
        %vm5514 = vweird.f32 %v5282
        %vm5515 = vweird.f32 %v5509
        %vm5516 = vmor %vm5514, %vm5515
        %v5517 = vsel %vm5516, %v5509, %v5513
        %v5518 = vand.u32 2147483647, %v5282
        %vm5519 = vcmp.eq.f32.partialorder %v5518, 8.507059e+37
        %v5520 = vand.u32 %v5282, 2147483648
        %v5521 = vor.u32 1.1754944e-38, %v5520
        %v5522 = vsel %vm5519, %v5521, %v5517
        %v5523 = vrcp.pop %v5283
        %v5524 = vmul.f32 %v5283, %v5523
        %v5525 = vsub.f32 1.0, %v5524
        %v5526 = vmul.f32 %v5523, %v5525
        %v5527 = vadd.f32 %v5523, %v5526
        %vm5528 = vweird.f32 %v5283
        %vm5529 = vweird.f32 %v5523
        %vm5530 = vmor %vm5528, %vm5529
        %v5531 = vsel %vm5530, %v5523, %v5527
        %v5532 = vand.u32 2147483647, %v5283
        %vm5533 = vcmp.eq.f32.partialorder %v5532, 8.507059e+37
        %v5534 = vand.u32 %v5283, 2147483648
        %v5535 = vor.u32 1.1754944e-38, %v5534
        %v5536 = vsel %vm5533, %v5535, %v5531
        %v5537 = vrcp.pop %v5284
        %v5538 = vmul.f32 %v5284, %v5537
        %v5539 = vsub.f32 1.0, %v5538
        %v5540 = vmul.f32 %v5537, %v5539
        %v5541 = vadd.f32 %v5537, %v5540
        %vm5542 = vweird.f32 %v5284
        %vm5543 = vweird.f32 %v5537
        %vm5544 = vmor %vm5542, %vm5543
        %v5545 = vsel %vm5544, %v5537, %v5541
        %v5546 = vand.u32 2147483647, %v5284
        %vm5547 = vcmp.eq.f32.partialorder %v5546, 8.507059e+37
        %v5548 = vand.u32 %v5284, 2147483648
        %v5549 = vor.u32 1.1754944e-38, %v5548
        %v5550 = vsel %vm5547, %v5549, %v5545
        %v5551 = vrcp.pop %v5285
        %v5552 = vmul.f32 %v5285, %v5551
        %v5553 = vsub.f32 1.0, %v5552
        %v5554 = vmul.f32 %v5551, %v5553
        %v5555 = vadd.f32 %v5551, %v5554
        %vm5556 = vweird.f32 %v5285
        %vm5557 = vweird.f32 %v5551
        %vm5558 = vmor %vm5556, %vm5557
        %v5559 = vsel %vm5558, %v5551, %v5555
        %v5560 = vand.u32 2147483647, %v5285
        %vm5561 = vcmp.eq.f32.partialorder %v5560, 8.507059e+37
        %v5562 = vand.u32 %v5285, 2147483648
        %v5563 = vor.u32 1.1754944e-38, %v5562
        %v5564 = vsel %vm5561, %v5563, %v5559
        %v5565 = vrcp.pop %v5286
        %v5566 = vmul.f32 %v5286, %v5565
        %v5567 = vsub.f32 1.0, %v5566
        %v5568 = vmul.f32 %v5565, %v5567
        %v5569 = vadd.f32 %v5565, %v5568
        %vm5570 = vweird.f32 %v5286
        %vm5571 = vweird.f32 %v5565
        %vm5572 = vmor %vm5570, %vm5571
        %v5573 = vsel %vm5572, %v5565, %v5569
        %v5574 = vand.u32 2147483647, %v5286
        %vm5575 = vcmp.eq.f32.partialorder %v5574, 8.507059e+37
        %v5576 = vand.u32 %v5286, 2147483648
        %v5577 = vor.u32 1.1754944e-38, %v5576
        %v5578 = vsel %vm5575, %v5577, %v5573
        %v5579 = vrcp.pop %v5287
        %v5580 = vmul.f32 %v5287, %v5579
        %v5581 = vsub.f32 1.0, %v5580
        %v5582 = vmul.f32 %v5579, %v5581
        %v5583 = vadd.f32 %v5579, %v5582
        %vm5584 = vweird.f32 %v5287
        %vm5585 = vweird.f32 %v5579
        %vm5586 = vmor %vm5584, %vm5585
        %v5587 = vsel %vm5586, %v5579, %v5583
        %v5588 = vand.u32 2147483647, %v5287
        %vm5589 = vcmp.eq.f32.partialorder %v5588, 8.507059e+37
        %v5590 = vand.u32 %v5287, 2147483648
        %v5591 = vor.u32 1.1754944e-38, %v5590
        %v5592 = vsel %vm5589, %v5591, %v5587
        %v5593 = vrcp.pop %v5288
        %v5594 = vmul.f32 %v5288, %v5593
        %v5595 = vsub.f32 1.0, %v5594
        %v5596 = vmul.f32 %v5593, %v5595
        %v5597 = vadd.f32 %v5593, %v5596
        %vm5598 = vweird.f32 %v5288
        %vm5599 = vweird.f32 %v5593
        %vm5600 = vmor %vm5598, %vm5599
        %v5601 = vsel %vm5600, %v5593, %v5597
        %v5602 = vand.u32 2147483647, %v5288
        %vm5603 = vcmp.eq.f32.partialorder %v5602, 8.507059e+37
        %v5604 = vand.u32 %v5288, 2147483648
        %v5605 = vor.u32 1.1754944e-38, %v5604
        %v5606 = vsel %vm5603, %v5605, %v5601
        %v5607 = vrcp.pop %v5289
        %v5608 = vmul.f32 %v5289, %v5607
        %v5609 = vsub.f32 1.0, %v5608
        %v5610 = vmul.f32 %v5607, %v5609
        %v5611 = vadd.f32 %v5607, %v5610
        %vm5612 = vweird.f32 %v5289
        %vm5613 = vweird.f32 %v5607
        %vm5614 = vmor %vm5612, %vm5613
        %v5615 = vsel %vm5614, %v5607, %v5611
        %v5616 = vand.u32 2147483647, %v5289
        %vm5617 = vcmp.eq.f32.partialorder %v5616, 8.507059e+37
        %v5618 = vand.u32 %v5289, 2147483648
        %v5619 = vor.u32 1.1754944e-38, %v5618
        %v5620 = vsel %vm5617, %v5619, %v5615
        %v5621 = vrcp.pop %v5290
        %v5622 = vmul.f32 %v5290, %v5621
        %v5623 = vsub.f32 1.0, %v5622
        %v5624 = vmul.f32 %v5621, %v5623
        %v5625 = vadd.f32 %v5621, %v5624
        %vm5626 = vweird.f32 %v5290
        %vm5627 = vweird.f32 %v5621
        %vm5628 = vmor %vm5626, %vm5627
        %v5629 = vsel %vm5628, %v5621, %v5625
        %v5630 = vand.u32 2147483647, %v5290
        %vm5631 = vcmp.eq.f32.partialorder %v5630, 8.507059e+37
        %v5632 = vand.u32 %v5290, 2147483648
        %v5633 = vor.u32 1.1754944e-38, %v5632
        %v5634 = vsel %vm5631, %v5633, %v5629
        %v5635 = vrcp.pop %v5291
        %v5636 = vmul.f32 %v5291, %v5635
        %v5637 = vsub.f32 1.0, %v5636
        %v5638 = vmul.f32 %v5635, %v5637
        %v5639 = vadd.f32 %v5635, %v5638
        %vm5640 = vweird.f32 %v5291
        %vm5641 = vweird.f32 %v5635
        %vm5642 = vmor %vm5640, %vm5641
        %v5643 = vsel %vm5642, %v5635, %v5639
        %v5644 = vand.u32 2147483647, %v5291
        %vm5645 = vcmp.eq.f32.partialorder %v5644, 8.507059e+37
        %v5646 = vand.u32 %v5291, 2147483648
        %v5647 = vor.u32 1.1754944e-38, %v5646
        %v5648 = vsel %vm5645, %v5647, %v5643
        %v5649 = vrcp.pop %v5292
        %v5650 = vmul.f32 %v5292, %v5649
        %v5651 = vsub.f32 1.0, %v5650
        %v5652 = vmul.f32 %v5649, %v5651
        %v5653 = vadd.f32 %v5649, %v5652
        %vm5654 = vweird.f32 %v5292
        %vm5655 = vweird.f32 %v5649
        %vm5656 = vmor %vm5654, %vm5655
        %v5657 = vsel %vm5656, %v5649, %v5653
        %v5658 = vand.u32 2147483647, %v5292
        %vm5659 = vcmp.eq.f32.partialorder %v5658, 8.507059e+37
        %v5660 = vand.u32 %v5292, 2147483648
        %v5661 = vor.u32 1.1754944e-38, %v5660
        %v5662 = vsel %vm5659, %v5661, %v5657
        %v5663 = vrcp.pop %v5293
        %v5664 = vmul.f32 %v5293, %v5663
        %v5665 = vsub.f32 1.0, %v5664
        %v5666 = vmul.f32 %v5663, %v5665
        %v5667 = vadd.f32 %v5663, %v5666
        %vm5668 = vweird.f32 %v5293
        %vm5669 = vweird.f32 %v5663
        %vm5670 = vmor %vm5668, %vm5669
        %v5671 = vsel %vm5670, %v5663, %v5667
        %v5672 = vand.u32 2147483647, %v5293
        %vm5673 = vcmp.eq.f32.partialorder %v5672, 8.507059e+37
        %v5674 = vand.u32 %v5293, 2147483648
        %v5675 = vor.u32 1.1754944e-38, %v5674
        %v5676 = vsel %vm5673, %v5675, %v5671
        %v5677 = vrcp.pop %v5294
        %v5678 = vmul.f32 %v5294, %v5677
        %v5679 = vsub.f32 1.0, %v5678
        %v5680 = vmul.f32 %v5677, %v5679
        %v5681 = vadd.f32 %v5677, %v5680
        %vm5682 = vweird.f32 %v5294
        %vm5683 = vweird.f32 %v5677
        %vm5684 = vmor %vm5682, %vm5683
        %v5685 = vsel %vm5684, %v5677, %v5681
        %v5686 = vand.u32 2147483647, %v5294
        %vm5687 = vcmp.eq.f32.partialorder %v5686, 8.507059e+37
        %v5688 = vand.u32 %v5294, 2147483648
        %v5689 = vor.u32 1.1754944e-38, %v5688
        %v5690 = vsel %vm5687, %v5689, %v5685
        %v5691 = vrcp.pop %v5295
        %v5692 = vmul.f32 %v5295, %v5691
        %v5693 = vsub.f32 1.0, %v5692
        %v5694 = vmul.f32 %v5691, %v5693
        %v5695 = vadd.f32 %v5691, %v5694
        %vm5696 = vweird.f32 %v5295
        %vm5697 = vweird.f32 %v5691
        %vm5698 = vmor %vm5696, %vm5697
        %v5699 = vsel %vm5698, %v5691, %v5695
        %v5700 = vand.u32 2147483647, %v5295
        %vm5701 = vcmp.eq.f32.partialorder %v5700, 8.507059e+37
        %v5702 = vand.u32 %v5295, 2147483648
        %v5703 = vor.u32 1.1754944e-38, %v5702
        %v5704 = vsel %vm5701, %v5703, %v5699
        %v5705 = vrcp.pop %v5296
        %v5706 = vmul.f32 %v5296, %v5705
        %v5707 = vsub.f32 1.0, %v5706
        %v5708 = vmul.f32 %v5705, %v5707
        %v5709 = vadd.f32 %v5705, %v5708
        %vm5710 = vweird.f32 %v5296
        %vm5711 = vweird.f32 %v5705
        %vm5712 = vmor %vm5710, %vm5711
        %v5713 = vsel %vm5712, %v5705, %v5709
        %v5714 = vand.u32 2147483647, %v5296
        %vm5715 = vcmp.eq.f32.partialorder %v5714, 8.507059e+37
        %v5716 = vand.u32 %v5296, 2147483648
        %v5717 = vor.u32 1.1754944e-38, %v5716
        %v5718 = vsel %vm5715, %v5717, %v5713
        %v5719 = vrcp.pop %v5297
        %v5720 = vmul.f32 %v5297, %v5719
        %v5721 = vsub.f32 1.0, %v5720
        %v5722 = vmul.f32 %v5719, %v5721
        %v5723 = vadd.f32 %v5719, %v5722
        %vm5724 = vweird.f32 %v5297
        %vm5725 = vweird.f32 %v5719
        %vm5726 = vmor %vm5724, %vm5725
        %v5727 = vsel %vm5726, %v5719, %v5723
        %v5728 = vand.u32 2147483647, %v5297
        %vm5729 = vcmp.eq.f32.partialorder %v5728, 8.507059e+37
        %v5730 = vand.u32 %v5297, 2147483648
        %v5731 = vor.u32 1.1754944e-38, %v5730
        %v5732 = vsel %vm5729, %v5731, %v5727
        %v5733 = vrcp.pop %v5298
        %v5734 = vmul.f32 %v5298, %v5733
        %v5735 = vsub.f32 1.0, %v5734
        %v5736 = vmul.f32 %v5733, %v5735
        %v5737 = vadd.f32 %v5733, %v5736
        %vm5738 = vweird.f32 %v5298
        %vm5739 = vweird.f32 %v5733
        %vm5740 = vmor %vm5738, %vm5739
        %v5741 = vsel %vm5740, %v5733, %v5737
        %v5742 = vand.u32 2147483647, %v5298
        %vm5743 = vcmp.eq.f32.partialorder %v5742, 8.507059e+37
        %v5744 = vand.u32 %v5298, 2147483648
        %v5745 = vor.u32 1.1754944e-38, %v5744
        %v5746 = vsel %vm5743, %v5745, %v5741
        %v5747 = vmul.f32 %v4692, %v5312
        %v5748 = vmul.f32 %v4695, %v5326
        %v5749 = vmul.f32 %v4698, %v5340
        %v5750 = vmul.f32 %v4701, %v5354
        %v5751 = vmul.f32 %v4704, %v5368
        %v5752 = vmul.f32 %v4707, %v5382
        %v5753 = vmul.f32 %v4710, %v5396
        %v5754 = vmul.f32 %v4713, %v5410
        %v5755 = vmul.f32 %v4716, %v5424
        %v5756 = vmul.f32 %v4719, %v5438
        %v5757 = vmul.f32 %v4722, %v5452
        %v5758 = vmul.f32 %v4725, %v5466
        %v5759 = vmul.f32 %v4728, %v5480
        %v5760 = vmul.f32 %v4731, %v5494
        %v5761 = vmul.f32 %v4734, %v5508
        %v5762 = vmul.f32 %v4737, %v5522
        %v5763 = vmul.f32 %v4740, %v5536
        %v5764 = vmul.f32 %v4743, %v5550
        %v5765 = vmul.f32 %v4746, %v5564
        %v5766 = vmul.f32 %v4749, %v5578
        %v5767 = vmul.f32 %v4752, %v5592
        %v5768 = vmul.f32 %v4755, %v5606
        %v5769 = vmul.f32 %v4758, %v5620
        %v5770 = vmul.f32 %v4761, %v5634
        %v5771 = vmul.f32 %v4764, %v5648
        %v5772 = vmul.f32 %v4767, %v5662
        %v5773 = vmul.f32 %v4770, %v5676
        %v5774 = vmul.f32 %v4773, %v5690
        %v5775 = vmul.f32 %v4776, %v5704
        %v5776 = vmul.f32 %v4779, %v5718
        %v5777 = vmul.f32 %v4782, %v5732
        %v5778 = vmul.f32 %v4785, %v5746
        %5779 = vst [vmem:[%s867] sm:$0xff] %v5747
        %5780 = vst [vmem:[%s867 + $0x8] sm:$0xff] %v5748
        %5781 = vst [vmem:[%s867 + $0x10] sm:$0xff] %v5749
        %5782 = vst [vmem:[%s867 + $0x18] sm:$0xff] %v5750
        %5783 = vst [vmem:[%s867 + $0x20] sm:$0xff] %v5751
        %5784 = vst [vmem:[%s867 + $0x28] sm:$0xff] %v5752
        %5785 = vst [vmem:[%s867 + $0x30] sm:$0xff] %v5753
        %5786 = vst [vmem:[%s867 + $0x38] sm:$0xff] %v5754
        %5787 = vst [vmem:[%s867 + $0x40] sm:$0xff] %v5755
        %5788 = vst [vmem:[%s867 + $0x48] sm:$0xff] %v5756
        %5789 = vst [vmem:[%s867 + $0x50] sm:$0xff] %v5757
        %5790 = vst [vmem:[%s867 + $0x58] sm:$0xff] %v5758
        %5791 = vst [vmem:[%s867 + $0x60] sm:$0xff] %v5759
        %5792 = vst [vmem:[%s867 + $0x68] sm:$0xff] %v5760
        %5793 = vst [vmem:[%s867 + $0x70] sm:$0xff] %v5761
        %5794 = vst [vmem:[%s867 + $0x78] sm:$0xff] %v5762
        %5795 = vst [vmem:[%s867 + $0x80] sm:$0xff] %v5763
        %5796 = vst [vmem:[%s867 + $0x88] sm:$0xff] %v5764
        %5797 = vst [vmem:[%s867 + $0x90] sm:$0xff] %v5765
        %5798 = vst [vmem:[%s867 + $0x98] sm:$0xff] %v5766
        %5799 = vst [vmem:[%s867 + $0xa0] sm:$0xff] %v5767
        %5800 = vst [vmem:[%s867 + $0xa8] sm:$0xff] %v5768
        %5801 = vst [vmem:[%s867 + $0xb0] sm:$0xff] %v5769
        %5802 = vst [vmem:[%s867 + $0xb8] sm:$0xff] %v5770
        %5803 = vst [vmem:[%s867 + $0xc0] sm:$0xff] %v5771
        %5804 = vst [vmem:[%s867 + $0xc8] sm:$0xff] %v5772
        %5805 = vst [vmem:[%s867 + $0xd0] sm:$0xff] %v5773
        %5806 = vst [vmem:[%s867 + $0xd8] sm:$0xff] %v5774
        %5807 = vst [vmem:[%s867 + $0xe0] sm:$0xff] %v5775
        %5808 = vst [vmem:[%s867 + $0xe8] sm:$0xff] %v5776
        %5809 = vst [vmem:[%s867 + $0xf0] sm:$0xff] %v5777
        %5810 = vst [vmem:[%s867 + $0xf8] sm:$0xff] %v5778
        %v5811 = vld [vmem:[%s741 + $0x200] sm:$0xff]
        %v5812 = vld [vmem:[%s741 + $0x208] sm:$0xff]
        %v5813 = vld [vmem:[%s741 + $0x210] sm:$0xff]
        %v5814 = vld [vmem:[%s741 + $0x218] sm:$0xff]
        %5815 = vmatpush.msra.mxu0 %v5762
        %5816 = vmatpush.msra.mxu0 %v5761
        %5817 = vmatpush.msra.mxu0 %v5760
        %5818 = vmatpush.msra.mxu0 %v5759
        %5819 = vmatpush.msra.mxu0 %v5758
        %5820 = vmatpush.msra.mxu0 %v5757
        %5821 = vmatpush.msra.mxu0 %v5756
        %5822 = vmatpush.msra.mxu0 %v5755
        %5823 = vmatpush.msra.mxu0 %v5754
        %5824 = vmatpush.msra.mxu0 %v5753
        %5825 = vmatpush.msra.mxu0 %v5752
        %5826 = vmatpush.msra.mxu0 %v5751
        %5827 = vmatpush.msra.mxu0 %v5750
        %5828 = vmatpush.msra.mxu0 %v5749
        %5829 = vmatpush.msra.mxu0 %v5748
        %5830 = vmatpush.msra.mxu0 %v5747
        %5831 = vmatmul.f32.gmra.mxu0 %v5811
        %v5832 = vpop.f32.mrf.mxu0
        %v5833 = vadd.f32 0.0, %v5832
        %5834 = vmatmul.f32.gmra.mxu0 %v5813
        %v5835 = vpop.f32.mrf.mxu0
        %v5836 = vadd.f32 0.0, %v5835
        %5837 = vdwg.mxu0
        %5838 = vmatpush.msra.mxu0 %v5778
        %5839 = vmatpush.msra.mxu0 %v5777
        %5840 = vmatpush.msra.mxu0 %v5776
        %5841 = vmatpush.msra.mxu0 %v5775
        %5842 = vmatpush.msra.mxu0 %v5774
        %5843 = vmatpush.msra.mxu0 %v5773
        %5844 = vmatpush.msra.mxu0 %v5772
        %5845 = vmatpush.msra.mxu0 %v5771
        %5846 = vmatpush.msra.mxu0 %v5770
        %5847 = vmatpush.msra.mxu0 %v5769
        %5848 = vmatpush.msra.mxu0 %v5768
        %5849 = vmatpush.msra.mxu0 %v5767
        %5850 = vmatpush.msra.mxu0 %v5766
        %5851 = vmatpush.msra.mxu0 %v5765
        %5852 = vmatpush.msra.mxu0 %v5764
        %5853 = vmatpush.msra.mxu0 %v5763
        %5854 = vmatmul.f32.gmra.mxu0 %v5812
        %v5855 = vpop.f32.mrf.mxu0
        %v5856 = vadd.f32 %v5833, %v5855
        %5857 = vmatmul.f32.gmra.mxu0 %v5814
        %v5858 = vpop.f32.mrf.mxu0
        %v5859 = vadd.f32 %v5836, %v5858
        %5860 = vdwg.mxu0
        %v5861 = vmul.f32 %v5856, %v5856
        %v5862 = vmul.f32 %v5859, %v5859
        %5863 = vadd.xlane.f32.xlu0 %v5861
        %v5864 = vpop.xlane.xlu0 %5863
        %5865 = vadd.xlane.f32.xlu0 %v5862
        %v5866 = vpop.xlane.xlu0 %5865
        %v5867 = vrsqrt.pop %v5864
        %v5868 = vmul.f32 %v5867, %v5864
        %v5869 = vmul.f32 %v5868, %v5867
        %v5870 = vmul.f32 0.5, %v5869
        %v5871 = vsub.f32 1.5, %v5870
        %v5872 = vmul.f32 %v5867, %v5871
        %v5873 = vmul.f32 %v5864, %v5872
        %vm5874 = vcmp.eq.f32.partialorder %v5864, inf
        %v5875 = vsel %vm5874, %v5864, %v5873
        %vm5876 = vcmp.eq.f32.partialorder %v5864, 0.0
        %v5877 = vand.u32 %v5864, 2147483648
        %v5878 = vsel %vm5876, %v5877, %v5875
        %v5879 = vrsqrt.pop %v5866
        %v5880 = vmul.f32 %v5879, %v5866
        %v5881 = vmul.f32 %v5880, %v5879
        %v5882 = vmul.f32 0.5, %v5881
        %v5883 = vsub.f32 1.5, %v5882
        %v5884 = vmul.f32 %v5879, %v5883
        %v5885 = vmul.f32 %v5866, %v5884
        %vm5886 = vcmp.eq.f32.partialorder %v5866, inf
        %v5887 = vsel %vm5886, %v5866, %v5885
        %vm5888 = vcmp.eq.f32.partialorder %v5866, 0.0
        %v5889 = vand.u32 %v5866, 2147483648
        %v5890 = vsel %vm5888, %v5889, %v5887
        %v5891 = vadd.f32 %v5878, 1e-08
        %v5892 = vadd.f32 %v5890, 1e-08
        %v5893 = vrcp.pop %v5891
        %v5894 = vmul.f32 %v5891, %v5893
        %v5895 = vsub.f32 1.0, %v5894
        %v5896 = vmul.f32 %v5893, %v5895
        %v5897 = vadd.f32 %v5893, %v5896
        %vm5898 = vweird.f32 %v5891
        %vm5899 = vweird.f32 %v5893
        %vm5900 = vmor %vm5898, %vm5899
        %v5901 = vsel %vm5900, %v5893, %v5897
        %v5902 = vand.u32 2147483647, %v5891
        %vm5903 = vcmp.eq.f32.partialorder %v5902, 8.507059e+37
        %v5904 = vand.u32 %v5891, 2147483648
        %v5905 = vor.u32 1.1754944e-38, %v5904
        %v5906 = vsel %vm5903, %v5905, %v5901
        %v5907 = vrcp.pop %v5892
        %v5908 = vmul.f32 %v5892, %v5907
        %v5909 = vsub.f32 1.0, %v5908
        %v5910 = vmul.f32 %v5907, %v5909
        %v5911 = vadd.f32 %v5907, %v5910
        %vm5912 = vweird.f32 %v5892
        %vm5913 = vweird.f32 %v5907
        %vm5914 = vmor %vm5912, %vm5913
        %v5915 = vsel %vm5914, %v5907, %v5911
        %v5916 = vand.u32 2147483647, %v5892
        %vm5917 = vcmp.eq.f32.partialorder %v5916, 8.507059e+37
        %v5918 = vand.u32 %v5892, 2147483648
        %v5919 = vor.u32 1.1754944e-38, %v5918
        %v5920 = vsel %vm5917, %v5919, %v5915
        %v5921 = vmul.f32 %v5856, %v5906
        %v5922 = vmul.f32 %v5859, %v5920
        %5923 = vst [vmem:[%s874] sm:$0xff] %v5921
        %5924 = vst [vmem:[%s874 + $0x8] sm:$0xff] %v5922
        %s5925 = sand.u32 %s424, 1
        %s5926 = scalar_lea.sflag [#allocation4], %s5925
        %s5927 = sand.u32 %s424, 1
        %s5928 = smul.addr %s5927, 256
        %s5929 = scalar_lea.vmem [#allocation28], %s5928
        %s5930 = sand.u32 %s450, 1
        %s5931 = scalar_lea.sflag [#allocation30], %s5930
        %s5932 = sand.u32 %s450, 1
        %s5933 = smul.addr %s5932, 16
        %s5934 = scalar_lea.vmem [#allocation29], %s5933
        // Predicated region
        $region153: #{tpu_custom_call.1} parent=87 // pred_check
          %p5935 = pneg %p434
        $region154: #{tpu_custom_call.1} parent=87 // pred_check_branch
          %5937 = sbr.rel (%p5935) target = $region156
        $region155: #{tpu_custom_call.1} parent=87 // pred_region
          %s5938 = smul.u32 32, %s49
          %5940 = vsyncadd %s5926, 0
          %s5941 = smul.addr %s5938, 8
          %s5942 = scalar_lea.hbm %s17, %s5941
          %s5943 = sshll.u32 %s5929, 4
          %s5944 = int_to_ptr.vmem [resolvable:$true] %s5943
          %s5945 = sshll.u32 %s5942, 4
          %s5946 = int_to_ptr.hbm [resolvable:$true] %s5945
          %5951 = dma.vmem_to_hbm [thread:$0]  %s5944, 4096, %s5946, %s5926, 128, 128, 8
        $region156: #{tpu_custom_call.1} parent=87 // pred_fallthru
          _
        // Predicated region
        $region157: #{tpu_custom_call.1} parent=87 // pred_check
          %p5952 = pneg %p460
        $region158: #{tpu_custom_call.1} parent=87 // pred_check_branch
          %5954 = sbr.rel (%p5952) target = $region160
        $region159: #{tpu_custom_call.1} parent=87 // pred_region
          %s5955 = smul.u32 2, %s49
          %5957 = vsyncadd %s5931, 0
          %s5958 = smul.addr %s5955, 8
          %s5959 = scalar_lea.hbm %s18, %s5958
          %s5960 = sshll.u32 %s5934, 4
          %s5961 = int_to_ptr.vmem [resolvable:$true] %s5960
          %s5962 = sshll.u32 %s5959, 4
          %s5963 = int_to_ptr.hbm [resolvable:$true] %s5962
          %5968 = dma.vmem_to_hbm [thread:$0]  %s5961, 256, %s5963, %s5931, 128, 128, 8
        $region160: #{tpu_custom_call.1} parent=87 // pred_fallthru
          _
      $region88: #{tpu_custom_call.1} parent=5 // pred_fallthru
        _
      %p5969 = scmp.le.s32.totalorder 2, %s44
      // Predicated region
      $region161: #{tpu_custom_call.1} parent=5 // pred_check
        %p5970 = pneg %p5969
      $region162: #{tpu_custom_call.1} parent=5 // pred_check_branch
        %5972 = sbr.rel (%p5970) target = $region164
      $region163: #{tpu_custom_call.1} parent=5 // pred_region
        %s5973 = ssub.s32 %s44, 2
        // Predicated region
        $region165: #{tpu_custom_call.1} parent=163 // pred_check
          %p5974 = pneg %p440
        $region166: #{tpu_custom_call.1} parent=163 // pred_check_branch
          %5976 = sbr.rel (%p5974) target = $region168
        $region167: #{tpu_custom_call.1} parent=163 // pred_region
          %s5977 = sand.u32 %s425, 1
          %s5978 = scalar_lea.sflag [#allocation4], %s5977
          %s5979 = sand.u32 %s425, 1
          %s5980 = smul.addr %s5979, 256
          %s5981 = scalar_lea.vmem [#allocation28], %s5980
          %5983 = dma.done %s5978, 4096
        $region168: #{tpu_custom_call.1} parent=163 // pred_fallthru
          _
        // Predicated region
        $region169: #{tpu_custom_call.1} parent=163 // pred_check
          %p5984 = pneg %p466
        $region170: #{tpu_custom_call.1} parent=163 // pred_check_branch
          %5986 = sbr.rel (%p5984) target = $region172
        $region171: #{tpu_custom_call.1} parent=163 // pred_region
          %s5987 = sand.u32 %s451, 1
          %s5988 = scalar_lea.sflag [#allocation30], %s5987
          %s5989 = sand.u32 %s451, 1
          %s5990 = smul.addr %s5989, 16
          %s5991 = scalar_lea.vmem [#allocation29], %s5990
          %5993 = dma.done %s5988, 256
        $region172: #{tpu_custom_call.1} parent=163 // pred_fallthru
          _
      $region164: #{tpu_custom_call.1} parent=5 // pred_fallthru
        _
    $region6: #{tpu_custom_call.1} parent=1 // loop_footer
      %s48 = sadd.s32 1, %s44
    $region7: #{tpu_custom_call.1} parent=1 // loop_footer_branch
      %43 = sbr.rel target = $region3
    $region8: #{tpu_custom_call.1} parent=1 // loop_exit
      _
    %5994 = vsyncpa [#allocation3], 1
    %s5995 = scalar_lea.sflag [#allocation3], 1
    %5996 = vsyncpa %s5995, 1
    %5997 = vsyncpa [#allocation6], 1
    %s5998 = scalar_lea.sflag [#allocation6], 1
    %5999 = vsyncpa %s5998, 1
    %6000 = vsyncpa [#allocation9], 1
    %6001 = vsyncpa [#allocation12], 1
    %6002 = vsyncpa [#allocation15], 1
    %6003 = vsyncpa [#allocation18], 1
    %6004 = vsyncpa [#allocation21], 1
    %6005 = vsyncpa [#allocation24], 1
    %6006 = vsyncpa [#allocation27], 1
    %6007 = vsyncpa [#allocation4], 1
    %s6008 = scalar_lea.sflag [#allocation4], 1
    %6009 = vsyncpa %s6008, 1
    %6010 = vsyncpa [#allocation30], 1
    %s6011 = scalar_lea.sflag [#allocation30], 1
    %6012 = vsyncpa %s6011, 1

</llo_original>
